<compile_context>
chip_gen: v6e
topology: v6e:2x2x1
jax: 0.10.0
libtpu: 0.0.40
codegen_flags: <defaults>
</compile_context>

<pallas_src>
import functools
import math

import jax
import jax.numpy as jnp
import numpy as np
from jax import lax
from jax.experimental import pallas as pl
from jax.experimental.pallas import tpu as pltpu

MAX_LEN = 5
NUM_SKILLS = 6


# ----------------------------- shared math ---------------------------------
def _layer_norm(x, w, b, eps=1e-5):
    mu = jnp.mean(x, axis=-1, keepdims=True)
    var = jnp.mean((x - mu) ** 2, axis=-1, keepdims=True)
    return (x - mu) * lax.rsqrt(var + eps) * w + b


# ------------------------------- kernel -------------------------------------
def clip_skill_kernel(vf_ref, skill_ref, emb_w_ref, emb_b_ref,
                      sa_in_w_ref, sa_in_b_ref, sa_out_w_ref, sa_out_b_ref,
                      ca_v_w_ref, ca_v_b_ref, ca_out_w_ref, ca_out_b_ref,
                      l1_w_ref, l1_b_ref, l2_w_ref, l2_b_ref,
                      n1_w_ref, n1_b_ref, n2_w_ref, n2_b_ref, n3_w_ref, n3_b_ref,
                      head_w_ref, head_b_ref, out_ref, *, num_layers, nhead):
    f32 = jnp.float32
    BT = vf_ref.shape[0]                     # batch elements in this tile
    L, H = skill_ref.shape                   # max_len, hidden
    N = BT * L                               # stacked decoder rows (row = b*L + l)
    dh = H // nhead
    scale = 1.0 / math.sqrt(dh)

    # ---- hoisted index machinery (all 2-D, comparison/matmul only; no div/mod) ----
    r_i = lax.broadcasted_iota(jnp.int32, (N, BT), 0)          # row index
    b_i = lax.broadcasted_iota(jnp.int32, (N, BT), 1)          # candidate batch
    lower = b_i * L
    sel_batch = jnp.logical_and(r_i >= lower, r_i < lower + L).astype(f32)   # (N, BT) one-hot

    # block-diagonal self-attention mask as an additive bias (0 inside, -1e30 across)
    same_batch = lax.dot_general(sel_batch, sel_batch,
                                 (((1,), (1,)), ((), ())),
                                 preferred_element_type=f32)    # (N, N) exactly 0/1
    mask_bias = (same_batch - 1.0) * 1e30

    # position one-hot: pos(r) = r - L*batch(r)
    batch_off = jnp.sum(sel_batch * b_i.astype(f32), axis=1, keepdims=True) * float(L)  # (N,1)
    row_f = lax.broadcasted_iota(jnp.int32, (N, L), 0).astype(f32)
    col_f = lax.broadcasted_iota(jnp.int32, (N, L), 1).astype(f32)
    sel_pos = ((row_f - batch_off) == col_f).astype(f32)        # (N, L) one-hot

    # ---- context embedding (memory of length 1 per batch element) ----
    ctx = jnp.dot(vf_ref[...], emb_w_ref[...], preferred_element_type=f32) + emb_b_ref[...]  # (BT, H)
    ctx_rows = jnp.dot(sel_batch, ctx, preferred_element_type=f32)                           # (N, H)

    # ---- decoder target: skill tokens replicated per batch element ----
    x = jnp.dot(sel_pos, skill_ref[...], preferred_element_type=f32)                         # (N, H)

    for li in range(num_layers):
        # -------- self-attention (post-norm), heads unrolled, masked full matrix --------
        qkv = jnp.dot(x, sa_in_w_ref[li], preferred_element_type=f32) + sa_in_b_ref[li]      # (N, 3H)
        heads = []
        for h in range(nhead):
            qh = qkv[:, h * dh:(h + 1) * dh]
            kh = qkv[:, H + h * dh:H + (h + 1) * dh]
            vh = qkv[:, 2 * H + h * dh:2 * H + (h + 1) * dh]
            s = lax.dot_general(qh, kh, (((1,), (1,)), ((), ())),
                                preferred_element_type=f32) * scale                           # (N, N)
            s = s + mask_bias
            s = s - jnp.max(s, axis=-1, keepdims=True)
            p = jnp.exp(s)
            p = p * pl.reciprocal(jnp.sum(p, axis=-1, keepdims=True), approx=True)
            heads.append(jnp.dot(p, vh, preferred_element_type=f32))                          # (N, dh)
        o = jnp.concatenate(heads, axis=-1)                                                   # (N, H)
        sa = jnp.dot(o, sa_out_w_ref[li], preferred_element_type=f32) + sa_out_b_ref[li]
        x = _layer_norm(x + sa, n1_w_ref[li], n1_b_ref[li])

        # -------- cross-attention: memory length == 1 -> softmax == 1 (exact) --------
        v_ctx = jnp.dot(ctx_rows, ca_v_w_ref[li], preferred_element_type=f32) + ca_v_b_ref[li]
        ca = jnp.dot(v_ctx, ca_out_w_ref[li], preferred_element_type=f32) + ca_out_b_ref[li]
        x = _layer_norm(x + ca, n2_w_ref[li], n2_b_ref[li])

        # -------- feed-forward (ReLU) --------
        h1 = jnp.maximum(
            jnp.dot(x, l1_w_ref[li], preferred_element_type=f32) + l1_b_ref[li], 0.0)
        ff = jnp.dot(h1, l2_w_ref[li], preferred_element_type=f32) + l2_b_ref[li]
        x = _layer_norm(x + ff, n3_w_ref[li], n3_b_ref[li])

    # -------- lane-dense (padded) output head --------
    logits = jnp.dot(x, head_w_ref[...], preferred_element_type=f32) + head_b_ref[...]        # (N, S_pad)
    out_ref[...] = logits


# ------------------------------- wrapper -------------------------------------
def _rep_spec(shape):
    n = len(shape)
    return pl.BlockSpec(shape, lambda i, _n=n: (0,) * _n)


def _pick_b_tile(B, requested):
    bt = 32 if requested is None else requested
    bt = max(1, min(bt, B))
    if bt >= B:
        return B                        # single grid step: blocks == full arrays
    bt = max(8, (bt // 8) * 8)          # multi-step: keep tiles sublane-aligned
    return B if bt >= B else bt


def clip_skill_predictor(vision_feat, params, *, nhead=4, num_layers=2,
                         b_tile=None, vmem_limit_bytes=None):
    B, D = vision_feat.shape
    L, H = params['skill'].shape
    S = params['head_w_t'].shape[1]
    assert H % nhead == 0

    bt = _pick_b_tile(B, b_tile)
    Bp = ((B + bt - 1) // bt) * bt
    vf = vision_feat if Bp == B else jnp.pad(vision_feat, ((0, Bp - B), (0, 0)))

    # lane-dense output head (pad S -> multiple of 128); sliced back afterwards
    S_pad = max(128, ((S + 127) // 128) * 128)
    head_w = jnp.pad(params['head_w_t'], ((0, 0), (0, S_pad - S)))
    head_b = jnp.pad(params['head_b'], ((0, 0), (0, S_pad - S)))

    # cross-attention memory has length 1 -> only the V slice of in_proj is needed
    ca_v_w = params['ca_in_w_t'][:, :, 2 * H:3 * H]
    ca_v_b = params['ca_in_b'][:, :, 2 * H:3 * H]

    weights = [params['skill'], params['emb_w_t'], params['emb_b'],
               params['sa_in_w_t'], params['sa_in_b'],
               params['sa_out_w_t'], params['sa_out_b'],
               ca_v_w, ca_v_b, params['ca_out_w_t'], params['ca_out_b'],
               params['l1_w_t'], params['l1_b'], params['l2_w_t'], params['l2_b'],
               params['n1_w'], params['n1_b'], params['n2_w'], params['n2_b'],
               params['n3_w'], params['n3_b'], head_w, head_b]

    in_specs = [pl.BlockSpec((bt, D), lambda i: (i, 0))]          # vision features tile
    in_specs += [_rep_spec(w.shape) for w in weights]             # grid-invariant weights
    out_spec = pl.BlockSpec((bt * L, S_pad), lambda i: (i, 0))    # lane-dense 2-D output

    cp_kwargs = dict(dimension_semantics=("parallel",))
    if vmem_limit_bytes is not None:
        cp_kwargs["vmem_limit_bytes"] = vmem_limit_bytes

    kernel = functools.partial(clip_skill_kernel, num_layers=num_layers, nhead=nhead)
    out = pl.pallas_call(
        kernel,
        out_shape=jax.ShapeDtypeStruct((Bp * L, S_pad), jnp.float32),
        grid_spec=pltpu.PrefetchScalarGridSpec(
            num_scalar_prefetch=0,
            grid=(Bp // bt,),
            in_specs=in_specs,
            out_specs=out_spec),
        compiler_params=pltpu.CompilerParams(**cp_kwargs),
    )(vf, *weights)

    return out.reshape(Bp, L, S_pad)[:B, :, :S]


# --------------------------- params & reference ------------------------------
def init_params(key, D, H, F, S, L, num_layers):
    keys = iter(jax.random.split(key, 32))

    def w(shape, scale=0.02):
        return (scale * jax.random.normal(next(keys), shape)).astype(jnp.float32)

    p = {}
    p['skill'] = jax.random.normal(next(keys), (L, H)).astype(jnp.float32)   # skill_token
    p['emb_w_t'] = w((D, H))                                                 # embedding (transposed)
    p['emb_b'] = jnp.zeros((1, H), jnp.float32)
    p['sa_in_w_t'] = w((num_layers, H, 3 * H))
    p['sa_in_b'] = w((num_layers, 1, 3 * H))
    p['sa_out_w_t'] = w((num_layers, H, H))
    p['sa_out_b'] = w((num_layers, 1, H))
    p['ca_in_w_t'] = w((num_layers, H, 3 * H))
    p['ca_in_b'] = w((num_layers, 1, 3 * H))
    p['ca_out_w_t'] = w((num_layers, H, H))
    p['ca_out_b'] = w((num_layers, 1, H))
    p['l1_w_t'] = w((num_layers, H, F))
    p['l1_b'] = w((num_layers, 1, F))
    p['l2_w_t'] = w((num_layers, F, H))
    p['l2_b'] = w((num_layers, 1, H))
    for n in ('n1', 'n2', 'n3'):
        p[f'{n}_w'] = jnp.ones((num_layers, 1, H), jnp.float32)
        p[f'{n}_b'] = jnp.zeros((num_layers, 1, H), jnp.float32)
    p['head_w_t'] = w((H, S))                                                # output_head (transposed)
    p['head_b'] = jnp.zeros((1, S), jnp.float32)
    return p


def _mha_ref(q_in, kv_in, in_w_t, in_b, out_w_t, out_b, nhead):
    """Full PyTorch nn.MultiheadAttention forward (eval mode), pure JAX."""
    H = q_in.shape[-1]
    dh = H // nhead
    scale = 1.0 / math.sqrt(dh)
    q = q_in @ in_w_t[:, 0:H] + in_b[:, 0:H]
    k = kv_in @ in_w_t[:, H:2 * H] + in_b[:, H:2 * H]
    v = kv_in @ in_w_t[:, 2 * H:3 * H] + in_b[:, 2 * H:3 * H]
    outs = []
    for h in range(nhead):
        sl = slice(h * dh, (h + 1) * dh)
        s = (q[:, sl] @ k[:, sl].T) * scale
        p = jax.nn.softmax(s, axis=-1)
        outs.append(p @ v[:, sl])
    return jnp.concatenate(outs, axis=-1) @ out_w_t + out_b


def reference_forward(vision_feat, p, *, num_layers, nhead):
    """Pure-JAX mirror of the PyTorch forward (eval mode), per batch element."""
    def ln(x, w, b, eps=1e-5):
        mu = x.mean(-1, keepdims=True)
        var = ((x - mu) ** 2).mean(-1, keepdims=True)
        return (x - mu) / jnp.sqrt(var + eps) * w + b

    outs = []
    for bi in range(vision_feat.shape[0]):
        ctx = vision_feat[bi:bi + 1] @ p['emb_w_t'] + p['emb_b']     # (1, H)
        x = p['skill']                                               # (L, H)
        for li in range(num_layers):
            sa = _mha_ref(x, x, p['sa_in_w_t'][li], p['sa_in_b'][li],
                          p['sa_out_w_t'][li], p['sa_out_b'][li], nhead)
            x = ln(x + sa, p['n1_w'][li], p['n1_b'][li])
            ca = _mha_ref(x, ctx, p['ca_in_w_t'][li], p['ca_in_b'][li],
                          p['ca_out_w_t'][li], p['ca_out_b'][li], nhead)
            x = ln(x + ca, p['n2_w'][li], p['n2_b'][li])
            h1 = jax.nn.relu(x @ p['l1_w_t'][li] + p['l1_b'][li])
            ff = h1 @ p['l2_w_t'][li] + p['l2_b'][li]
            x = ln(x + ff, p['n3_w'][li], p['n3_b'][li])
        outs.append(x @ p['head_w_t'] + p['head_b'])
    return jnp.stack(outs, axis=0)


# --------------------------------- main ---------------------------------------
if __name__ == "__main__":
    # small but lane-aligned test shapes (PyTorch defaults: D=1024, H=512, F=2048)
    B, D, H, F = 16, 128, 128, 256
    S, L = NUM_SKILLS, MAX_LEN
    nhead, num_layers = 4, 2

    key = jax.random.PRNGKey(0)
    kp, kx = jax.random.split(key)
    params = init_params(kp, D, H, F, S, L, num_layers)
    vision_feat = jax.random.normal(kx, (B, D), dtype=jnp.float32)

    # b_tile=8 -> grid=(2,): batched rows (8*5=40) per step, and >=2 parallel
    # grid steps so both v7x TensorCores stay busy.
    logits = clip_skill_predictor(vision_feat, params, nhead=nhead,
                                  num_layers=num_layers, b_tile=8)
    logits = jax.block_until_ready(logits)

    assert logits.shape == (B, L, S), logits.shape
    ref = reference_forward(vision_feat, params, num_layers=num_layers, nhead=nhead)
    np.testing.assert_allclose(np.asarray(logits), np.asarray(ref), atol=2e-2, rtol=2e-2)
    print("KERNEL_OK")
</pallas_src>

<mosaic_0001>
module attributes {stable_mosaic.version = 11 : i64} {
  func.func @clip_skill_kernel(%arg0: i32, %arg1: memref<8x128xf32, #tpu.memory_space<vmem>>, %arg2: memref<5x128xf32, #tpu.memory_space<vmem>>, %arg3: memref<128x128xf32, #tpu.memory_space<vmem>>, %arg4: memref<1x128xf32, #tpu.memory_space<vmem>>, %arg5: memref<2x128x384xf32, #tpu.memory_space<vmem>>, %arg6: memref<2x1x384xf32, #tpu.memory_space<vmem>>, %arg7: memref<2x128x128xf32, #tpu.memory_space<vmem>>, %arg8: memref<2x1x128xf32, #tpu.memory_space<vmem>>, %arg9: memref<2x128x128xf32, #tpu.memory_space<vmem>>, %arg10: memref<2x1x128xf32, #tpu.memory_space<vmem>>, %arg11: memref<2x128x128xf32, #tpu.memory_space<vmem>>, %arg12: memref<2x1x128xf32, #tpu.memory_space<vmem>>, %arg13: memref<2x128x256xf32, #tpu.memory_space<vmem>>, %arg14: memref<2x1x256xf32, #tpu.memory_space<vmem>>, %arg15: memref<2x256x128xf32, #tpu.memory_space<vmem>>, %arg16: memref<2x1x128xf32, #tpu.memory_space<vmem>>, %arg17: memref<2x1x128xf32, #tpu.memory_space<vmem>>, %arg18: memref<2x1x128xf32, #tpu.memory_space<vmem>>, %arg19: memref<2x1x128xf32, #tpu.memory_space<vmem>>, %arg20: memref<2x1x128xf32, #tpu.memory_space<vmem>>, %arg21: memref<2x1x128xf32, #tpu.memory_space<vmem>>, %arg22: memref<2x1x128xf32, #tpu.memory_space<vmem>>, %arg23: memref<128x128xf32, #tpu.memory_space<vmem>>, %arg24: memref<1x128xf32, #tpu.memory_space<vmem>>, %arg25: memref<40x128xf32, #tpu.memory_space<vmem>>) attributes {dimension_semantics = [#tpu.dimension_semantics<parallel>], iteration_bounds = array<i64: 2>, scalar_prefetch = 0 : i64, scratch_operands = 0 : i64, tpu.core_type = #tpu.core_type<tc>, window_params = [{transform_indices = @transform_0, window_bounds = array<i64: 8, 128>}, {pipeline_mode = #tpu.pipeline_mode<synchronous>, transform_indices = @transform_1, window_bounds = array<i64: 5, 128>}, {pipeline_mode = #tpu.pipeline_mode<synchronous>, transform_indices = @transform_2, window_bounds = array<i64: 128, 128>}, {pipeline_mode = #tpu.pipeline_mode<synchronous>, transform_indices = @transform_3, window_bounds = array<i64: 1, 128>}, {pipeline_mode = #tpu.pipeline_mode<synchronous>, transform_indices = @transform_4, window_bounds = array<i64: 2, 128, 384>}, {pipeline_mode = #tpu.pipeline_mode<synchronous>, transform_indices = @transform_5, window_bounds = array<i64: 2, 1, 384>}, {pipeline_mode = #tpu.pipeline_mode<synchronous>, transform_indices = @transform_6, window_bounds = array<i64: 2, 128, 128>}, {pipeline_mode = #tpu.pipeline_mode<synchronous>, transform_indices = @transform_7, window_bounds = array<i64: 2, 1, 128>}, {pipeline_mode = #tpu.pipeline_mode<synchronous>, transform_indices = @transform_8, window_bounds = array<i64: 2, 128, 128>}, {pipeline_mode = #tpu.pipeline_mode<synchronous>, transform_indices = @transform_9, window_bounds = array<i64: 2, 1, 128>}, {pipeline_mode = #tpu.pipeline_mode<synchronous>, transform_indices = @transform_10, window_bounds = array<i64: 2, 128, 128>}, {pipeline_mode = #tpu.pipeline_mode<synchronous>, transform_indices = @transform_11, window_bounds = array<i64: 2, 1, 128>}, {pipeline_mode = #tpu.pipeline_mode<synchronous>, transform_indices = @transform_12, window_bounds = array<i64: 2, 128, 256>}, {pipeline_mode = #tpu.pipeline_mode<synchronous>, transform_indices = @transform_13, window_bounds = array<i64: 2, 1, 256>}, {pipeline_mode = #tpu.pipeline_mode<synchronous>, transform_indices = @transform_14, window_bounds = array<i64: 2, 256, 128>}, {pipeline_mode = #tpu.pipeline_mode<synchronous>, transform_indices = @transform_15, window_bounds = array<i64: 2, 1, 128>}, {pipeline_mode = #tpu.pipeline_mode<synchronous>, transform_indices = @transform_16, window_bounds = array<i64: 2, 1, 128>}, {pipeline_mode = #tpu.pipeline_mode<synchronous>, transform_indices = @transform_17, window_bounds = array<i64: 2, 1, 128>}, {pipeline_mode = #tpu.pipeline_mode<synchronous>, transform_indices = @transform_18, window_bounds = array<i64: 2, 1, 128>}, {pipeline_mode = #tpu.pipeline_mode<synchronous>, transform_indices = @transform_19, window_bounds = array<i64: 2, 1, 128>}, {pipeline_mode = #tpu.pipeline_mode<synchronous>, transform_indices = @transform_20, window_bounds = array<i64: 2, 1, 128>}, {pipeline_mode = #tpu.pipeline_mode<synchronous>, transform_indices = @transform_21, window_bounds = array<i64: 2, 1, 128>}, {pipeline_mode = #tpu.pipeline_mode<synchronous>, transform_indices = @transform_22, window_bounds = array<i64: 128, 128>}, {pipeline_mode = #tpu.pipeline_mode<synchronous>, transform_indices = @transform_23, window_bounds = array<i64: 1, 128>}, {transform_indices = @transform_24, window_bounds = array<i64: 40, 128>}]} {
    %0 = tpu.iota {dimensions = array<i32: 0>} : vector<40x8xi32>
    %1 = tpu.iota {dimensions = array<i32: 1>} : vector<40x8xi32>
    %c5_i32 = arith.constant 5 : i32
    %2 = vector.broadcast %c5_i32 : i32 to vector<40x8xi32>
    %3 = arith.muli %1, %2 : vector<40x8xi32>
    %4 = arith.cmpi sge, %0, %3 : vector<40x8xi32>
    %c5_i32_0 = arith.constant 5 : i32
    %5 = vector.broadcast %c5_i32_0 : i32 to vector<40x8xi32>
    %6 = arith.addi %3, %5 : vector<40x8xi32>
    %7 = arith.cmpi slt, %0, %6 : vector<40x8xi32>
    %8 = arith.andi %4, %7 : vector<40x8xi1>
    %9 = arith.extui %8 : vector<40x8xi1> to vector<40x8xi32>
    %10 = arith.sitofp %9 : vector<40x8xi32> to vector<40x8xf32>
    %cst = arith.constant dense<0.000000e+00> : vector<40x40xf32>
    %11 = tpu.matmul %10, %10, %cst {dimension_numbers = #tpu.dot_dimension_numbers<[1], [1], [0], [0], [0, 0, 1, 0], [], []>} : vector<40x8xf32>, vector<40x8xf32>, vector<40x40xf32> -> vector<40x40xf32>
    %cst_1 = arith.constant 1.000000e+00 : f32
    %12 = vector.broadcast %cst_1 : f32 to vector<40x40xf32>
    %13 = arith.subf %11, %12 : vector<40x40xf32>
    %cst_2 = arith.constant 1.000000e+30 : f32
    %14 = vector.broadcast %cst_2 : f32 to vector<40x40xf32>
    %15 = arith.mulf %13, %14 : vector<40x40xf32>
    %16 = arith.sitofp %1 : vector<40x8xi32> to vector<40x8xf32>
    %17 = arith.mulf %10, %16 : vector<40x8xf32>
    %cst_3 = arith.constant dense<0.000000e+00> : vector<40xf32>
    %18 = vector.multi_reduction <add>, %17, %cst_3 [1] : vector<40x8xf32> to vector<40xf32>
    %19 = vector.shape_cast %18 : vector<40xf32> to vector<40x1xf32>
    %cst_4 = arith.constant 5.000000e+00 : f32
    %20 = vector.broadcast %cst_4 : f32 to vector<40x1xf32>
    %21 = arith.mulf %19, %20 : vector<40x1xf32>
    %22 = tpu.iota {dimensions = array<i32: 0>} : vector<40x5xi32>
    %23 = arith.sitofp %22 : vector<40x5xi32> to vector<40x5xf32>
    %24 = tpu.iota {dimensions = array<i32: 1>} : vector<40x5xi32>
    %25 = arith.sitofp %24 : vector<40x5xi32> to vector<40x5xf32>
    %26 = vector.broadcast %21 : vector<40x1xf32> to vector<40x5xf32>
    %27 = arith.subf %23, %26 : vector<40x5xf32>
    %28 = arith.cmpf oeq, %27, %25 : vector<40x5xf32>
    %29 = arith.extui %28 : vector<40x5xi1> to vector<40x5xi32>
    %30 = arith.sitofp %29 : vector<40x5xi32> to vector<40x5xf32>
    %c0 = arith.constant 0 : index
    %c0_5 = arith.constant 0 : index
    %31 = vector.load %arg1[%c0, %c0_5] : memref<8x128xf32, #tpu.memory_space<vmem>>, vector<8x128xf32>
    %c0_6 = arith.constant 0 : index
    %c0_7 = arith.constant 0 : index
    %32 = vector.load %arg3[%c0_6, %c0_7] : memref<128x128xf32, #tpu.memory_space<vmem>>, vector<128x128xf32>
    %cst_8 = arith.constant dense<0.000000e+00> : vector<8x128xf32>
    %33 = tpu.matmul %31, %32, %cst_8 {dimension_numbers = #tpu.dot_dimension_numbers<[1], [0], [0], [1], [0, 0, 1, 1], [], []>} : vector<8x128xf32>, vector<128x128xf32>, vector<8x128xf32> -> vector<8x128xf32>
    %c0_9 = arith.constant 0 : index
    %c0_10 = arith.constant 0 : index
    %34 = vector.load %arg4[%c0_9, %c0_10] : memref<1x128xf32, #tpu.memory_space<vmem>>, vector<1x128xf32>
    %35 = vector.broadcast %34 : vector<1x128xf32> to vector<8x128xf32>
    %36 = arith.addf %33, %35 : vector<8x128xf32>
    %cst_11 = arith.constant dense<0.000000e+00> : vector<40x128xf32>
    %37 = tpu.matmul %10, %36, %cst_11 {dimension_numbers = #tpu.dot_dimension_numbers<[1], [0], [0], [1], [0, 0, 1, 1], [], []>} : vector<40x8xf32>, vector<8x128xf32>, vector<40x128xf32> -> vector<40x128xf32>
    %c0_12 = arith.constant 0 : index
    %c0_13 = arith.constant 0 : index
    %38 = vector.load %arg2[%c0_12, %c0_13] : memref<5x128xf32, #tpu.memory_space<vmem>>, vector<5x128xf32>
    %cst_14 = arith.constant dense<0.000000e+00> : vector<40x128xf32>
    %39 = tpu.matmul %30, %38, %cst_14 {dimension_numbers = #tpu.dot_dimension_numbers<[1], [0], [0], [1], [0, 0, 1, 1], [], []>} : vector<40x5xf32>, vector<5x128xf32>, vector<40x128xf32> -> vector<40x128xf32>
    %c0_15 = arith.constant 0 : index
    %c0_16 = arith.constant 0 : index
    %c0_17 = arith.constant 0 : index
    %40 = vector.load %arg5[%c0_15, %c0_16, %c0_17] : memref<2x128x384xf32, #tpu.memory_space<vmem>>, vector<1x128x384xf32>
    %41 = vector.shape_cast %40 : vector<1x128x384xf32> to vector<128x384xf32>
    %cst_18 = arith.constant dense<0.000000e+00> : vector<40x384xf32>
    %42 = tpu.matmul %39, %41, %cst_18 {dimension_numbers = #tpu.dot_dimension_numbers<[1], [0], [0], [1], [0, 0, 1, 1], [], []>} : vector<40x128xf32>, vector<128x384xf32>, vector<40x384xf32> -> vector<40x384xf32>
    %c0_19 = arith.constant 0 : index
    %c0_20 = arith.constant 0 : index
    %c0_21 = arith.constant 0 : index
    %43 = vector.load %arg6[%c0_19, %c0_20, %c0_21] : memref<2x1x384xf32, #tpu.memory_space<vmem>>, vector<1x1x384xf32>
    %44 = vector.shape_cast %43 : vector<1x1x384xf32> to vector<1x384xf32>
    %45 = vector.broadcast %44 : vector<1x384xf32> to vector<40x384xf32>
    %46 = arith.addf %42, %45 : vector<40x384xf32>
    %47 = vector.extract_strided_slice %46 {offsets = [0, 0], sizes = [40, 32], strides = [1, 1]} : vector<40x384xf32> to vector<40x32xf32>
    %48 = vector.extract_strided_slice %46 {offsets = [0, 128], sizes = [40, 32], strides = [1, 1]} : vector<40x384xf32> to vector<40x32xf32>
    %49 = vector.extract_strided_slice %46 {offsets = [0, 256], sizes = [40, 32], strides = [1, 1]} : vector<40x384xf32> to vector<40x32xf32>
    %cst_22 = arith.constant dense<0.000000e+00> : vector<40x40xf32>
    %50 = tpu.matmul %47, %48, %cst_22 {dimension_numbers = #tpu.dot_dimension_numbers<[1], [1], [0], [0], [0, 0, 1, 0], [], []>} : vector<40x32xf32>, vector<40x32xf32>, vector<40x40xf32> -> vector<40x40xf32>
    %cst_23 = arith.constant 0.176776692 : f32
    %51 = vector.broadcast %cst_23 : f32 to vector<40x40xf32>
    %52 = arith.mulf %50, %51 : vector<40x40xf32>
    %53 = arith.addf %52, %15 : vector<40x40xf32>
    %cst_24 = arith.constant dense<0xFF800000> : vector<40xf32>
    %54 = vector.multi_reduction <maximumf>, %53, %cst_24 [1] : vector<40x40xf32> to vector<40xf32>
    %55 = vector.shape_cast %54 : vector<40xf32> to vector<40x1xf32>
    %56 = vector.broadcast %55 : vector<40x1xf32> to vector<40x40xf32>
    %57 = arith.subf %53, %56 : vector<40x40xf32>
    %58 = math.exp %57 : vector<40x40xf32>
    %cst_25 = arith.constant dense<0.000000e+00> : vector<40xf32>
    %59 = vector.multi_reduction <add>, %58, %cst_25 [1] : vector<40x40xf32> to vector<40xf32>
    %60 = vector.shape_cast %59 : vector<40xf32> to vector<40x1xf32>
    %61 = tpu.reciprocal %60 {approx = true} : vector<40x1xf32> -> vector<40x1xf32>
    %62 = vector.broadcast %61 : vector<40x1xf32> to vector<40x40xf32>
    %63 = arith.mulf %58, %62 : vector<40x40xf32>
    %cst_26 = arith.constant dense<0.000000e+00> : vector<40x32xf32>
    %64 = tpu.matmul %63, %49, %cst_26 {dimension_numbers = #tpu.dot_dimension_numbers<[1], [0], [0], [1], [0, 0, 1, 1], [], []>} : vector<40x40xf32>, vector<40x32xf32>, vector<40x32xf32> -> vector<40x32xf32>
    %65 = vector.extract_strided_slice %46 {offsets = [0, 32], sizes = [40, 32], strides = [1, 1]} : vector<40x384xf32> to vector<40x32xf32>
    %66 = vector.extract_strided_slice %46 {offsets = [0, 160], sizes = [40, 32], strides = [1, 1]} : vector<40x384xf32> to vector<40x32xf32>
    %67 = vector.extract_strided_slice %46 {offsets = [0, 288], sizes = [40, 32], strides = [1, 1]} : vector<40x384xf32> to vector<40x32xf32>
    %cst_27 = arith.constant dense<0.000000e+00> : vector<40x40xf32>
    %68 = tpu.matmul %65, %66, %cst_27 {dimension_numbers = #tpu.dot_dimension_numbers<[1], [1], [0], [0], [0, 0, 1, 0], [], []>} : vector<40x32xf32>, vector<40x32xf32>, vector<40x40xf32> -> vector<40x40xf32>
    %cst_28 = arith.constant 0.176776692 : f32
    %69 = vector.broadcast %cst_28 : f32 to vector<40x40xf32>
    %70 = arith.mulf %68, %69 : vector<40x40xf32>
    %71 = arith.addf %70, %15 : vector<40x40xf32>
    %cst_29 = arith.constant dense<0xFF800000> : vector<40xf32>
    %72 = vector.multi_reduction <maximumf>, %71, %cst_29 [1] : vector<40x40xf32> to vector<40xf32>
    %73 = vector.shape_cast %72 : vector<40xf32> to vector<40x1xf32>
    %74 = vector.broadcast %73 : vector<40x1xf32> to vector<40x40xf32>
    %75 = arith.subf %71, %74 : vector<40x40xf32>
    %76 = math.exp %75 : vector<40x40xf32>
    %cst_30 = arith.constant dense<0.000000e+00> : vector<40xf32>
    %77 = vector.multi_reduction <add>, %76, %cst_30 [1] : vector<40x40xf32> to vector<40xf32>
    %78 = vector.shape_cast %77 : vector<40xf32> to vector<40x1xf32>
    %79 = tpu.reciprocal %78 {approx = true} : vector<40x1xf32> -> vector<40x1xf32>
    %80 = vector.broadcast %79 : vector<40x1xf32> to vector<40x40xf32>
    %81 = arith.mulf %76, %80 : vector<40x40xf32>
    %cst_31 = arith.constant dense<0.000000e+00> : vector<40x32xf32>
    %82 = tpu.matmul %81, %67, %cst_31 {dimension_numbers = #tpu.dot_dimension_numbers<[1], [0], [0], [1], [0, 0, 1, 1], [], []>} : vector<40x40xf32>, vector<40x32xf32>, vector<40x32xf32> -> vector<40x32xf32>
    %83 = vector.extract_strided_slice %46 {offsets = [0, 64], sizes = [40, 32], strides = [1, 1]} : vector<40x384xf32> to vector<40x32xf32>
    %84 = vector.extract_strided_slice %46 {offsets = [0, 192], sizes = [40, 32], strides = [1, 1]} : vector<40x384xf32> to vector<40x32xf32>
    %85 = vector.extract_strided_slice %46 {offsets = [0, 320], sizes = [40, 32], strides = [1, 1]} : vector<40x384xf32> to vector<40x32xf32>
    %cst_32 = arith.constant dense<0.000000e+00> : vector<40x40xf32>
    %86 = tpu.matmul %83, %84, %cst_32 {dimension_numbers = #tpu.dot_dimension_numbers<[1], [1], [0], [0], [0, 0, 1, 0], [], []>} : vector<40x32xf32>, vector<40x32xf32>, vector<40x40xf32> -> vector<40x40xf32>
    %cst_33 = arith.constant 0.176776692 : f32
    %87 = vector.broadcast %cst_33 : f32 to vector<40x40xf32>
    %88 = arith.mulf %86, %87 : vector<40x40xf32>
    %89 = arith.addf %88, %15 : vector<40x40xf32>
    %cst_34 = arith.constant dense<0xFF800000> : vector<40xf32>
    %90 = vector.multi_reduction <maximumf>, %89, %cst_34 [1] : vector<40x40xf32> to vector<40xf32>
    %91 = vector.shape_cast %90 : vector<40xf32> to vector<40x1xf32>
    %92 = vector.broadcast %91 : vector<40x1xf32> to vector<40x40xf32>
    %93 = arith.subf %89, %92 : vector<40x40xf32>
    %94 = math.exp %93 : vector<40x40xf32>
    %cst_35 = arith.constant dense<0.000000e+00> : vector<40xf32>
    %95 = vector.multi_reduction <add>, %94, %cst_35 [1] : vector<40x40xf32> to vector<40xf32>
    %96 = vector.shape_cast %95 : vector<40xf32> to vector<40x1xf32>
    %97 = tpu.reciprocal %96 {approx = true} : vector<40x1xf32> -> vector<40x1xf32>
    %98 = vector.broadcast %97 : vector<40x1xf32> to vector<40x40xf32>
    %99 = arith.mulf %94, %98 : vector<40x40xf32>
    %cst_36 = arith.constant dense<0.000000e+00> : vector<40x32xf32>
    %100 = tpu.matmul %99, %85, %cst_36 {dimension_numbers = #tpu.dot_dimension_numbers<[1], [0], [0], [1], [0, 0, 1, 1], [], []>} : vector<40x40xf32>, vector<40x32xf32>, vector<40x32xf32> -> vector<40x32xf32>
    %101 = vector.extract_strided_slice %46 {offsets = [0, 96], sizes = [40, 32], strides = [1, 1]} : vector<40x384xf32> to vector<40x32xf32>
    %102 = vector.extract_strided_slice %46 {offsets = [0, 224], sizes = [40, 32], strides = [1, 1]} : vector<40x384xf32> to vector<40x32xf32>
    %103 = vector.extract_strided_slice %46 {offsets = [0, 352], sizes = [40, 32], strides = [1, 1]} : vector<40x384xf32> to vector<40x32xf32>
    %cst_37 = arith.constant dense<0.000000e+00> : vector<40x40xf32>
    %104 = tpu.matmul %101, %102, %cst_37 {dimension_numbers = #tpu.dot_dimension_numbers<[1], [1], [0], [0], [0, 0, 1, 0], [], []>} : vector<40x32xf32>, vector<40x32xf32>, vector<40x40xf32> -> vector<40x40xf32>
    %cst_38 = arith.constant 0.176776692 : f32
    %105 = vector.broadcast %cst_38 : f32 to vector<40x40xf32>
    %106 = arith.mulf %104, %105 : vector<40x40xf32>
    %107 = arith.addf %106, %15 : vector<40x40xf32>
    %cst_39 = arith.constant dense<0xFF800000> : vector<40xf32>
    %108 = vector.multi_reduction <maximumf>, %107, %cst_39 [1] : vector<40x40xf32> to vector<40xf32>
    %109 = vector.shape_cast %108 : vector<40xf32> to vector<40x1xf32>
    %110 = vector.broadcast %109 : vector<40x1xf32> to vector<40x40xf32>
    %111 = arith.subf %107, %110 : vector<40x40xf32>
    %112 = math.exp %111 : vector<40x40xf32>
    %cst_40 = arith.constant dense<0.000000e+00> : vector<40xf32>
    %113 = vector.multi_reduction <add>, %112, %cst_40 [1] : vector<40x40xf32> to vector<40xf32>
    %114 = vector.shape_cast %113 : vector<40xf32> to vector<40x1xf32>
    %115 = tpu.reciprocal %114 {approx = true} : vector<40x1xf32> -> vector<40x1xf32>
    %116 = vector.broadcast %115 : vector<40x1xf32> to vector<40x40xf32>
    %117 = arith.mulf %112, %116 : vector<40x40xf32>
    %cst_41 = arith.constant dense<0.000000e+00> : vector<40x32xf32>
    %118 = tpu.matmul %117, %103, %cst_41 {dimension_numbers = #tpu.dot_dimension_numbers<[1], [0], [0], [1], [0, 0, 1, 1], [], []>} : vector<40x40xf32>, vector<40x32xf32>, vector<40x32xf32> -> vector<40x32xf32>
    %119 = tpu.concatenate %64, %82, %100, %118 in 1 : vector<40x32xf32>, vector<40x32xf32>, vector<40x32xf32>, vector<40x32xf32> -> vector<40x128xf32>
    %c0_42 = arith.constant 0 : index
    %c0_43 = arith.constant 0 : index
    %c0_44 = arith.constant 0 : index
    %120 = vector.load %arg7[%c0_42, %c0_43, %c0_44] : memref<2x128x128xf32, #tpu.memory_space<vmem>>, vector<1x128x128xf32>
    %121 = vector.shape_cast %120 : vector<1x128x128xf32> to vector<128x128xf32>
    %cst_45 = arith.constant dense<0.000000e+00> : vector<40x128xf32>
    %122 = tpu.matmul %119, %121, %cst_45 {dimension_numbers = #tpu.dot_dimension_numbers<[1], [0], [0], [1], [0, 0, 1, 1], [], []>} : vector<40x128xf32>, vector<128x128xf32>, vector<40x128xf32> -> vector<40x128xf32>
    %c0_46 = arith.constant 0 : index
    %c0_47 = arith.constant 0 : index
    %c0_48 = arith.constant 0 : index
    %123 = vector.load %arg8[%c0_46, %c0_47, %c0_48] : memref<2x1x128xf32, #tpu.memory_space<vmem>>, vector<1x1x128xf32>
    %124 = vector.shape_cast %123 : vector<1x1x128xf32> to vector<1x128xf32>
    %125 = vector.broadcast %124 : vector<1x128xf32> to vector<40x128xf32>
    %126 = arith.addf %122, %125 : vector<40x128xf32>
    %127 = arith.addf %39, %126 : vector<40x128xf32>
    %c0_49 = arith.constant 0 : index
    %c0_50 = arith.constant 0 : index
    %c0_51 = arith.constant 0 : index
    %128 = vector.load %arg17[%c0_49, %c0_50, %c0_51] : memref<2x1x128xf32, #tpu.memory_space<vmem>>, vector<1x1x128xf32>
    %129 = vector.shape_cast %128 : vector<1x1x128xf32> to vector<1x128xf32>
    %c0_52 = arith.constant 0 : index
    %c0_53 = arith.constant 0 : index
    %c0_54 = arith.constant 0 : index
    %130 = vector.load %arg18[%c0_52, %c0_53, %c0_54] : memref<2x1x128xf32, #tpu.memory_space<vmem>>, vector<1x1x128xf32>
    %131 = vector.shape_cast %130 : vector<1x1x128xf32> to vector<1x128xf32>
    %cst_55 = arith.constant dense<0.000000e+00> : vector<40xf32>
    %132 = vector.multi_reduction <add>, %127, %cst_55 [1] : vector<40x128xf32> to vector<40xf32>
    %133 = vector.shape_cast %132 : vector<40xf32> to vector<40x1xf32>
    %cst_56 = arith.constant 1.280000e+02 : f32
    %134 = vector.broadcast %cst_56 : f32 to vector<40x1xf32>
    %135 = arith.divf %133, %134 : vector<40x1xf32>
    %136 = vector.broadcast %135 : vector<40x1xf32> to vector<40x128xf32>
    %137 = arith.subf %127, %136 : vector<40x128xf32>
    %138 = arith.mulf %137, %137 : vector<40x128xf32>
    %cst_57 = arith.constant dense<0.000000e+00> : vector<40xf32>
    %139 = vector.multi_reduction <add>, %138, %cst_57 [1] : vector<40x128xf32> to vector<40xf32>
    %140 = vector.shape_cast %139 : vector<40xf32> to vector<40x1xf32>
    %cst_58 = arith.constant 1.280000e+02 : f32
    %141 = vector.broadcast %cst_58 : f32 to vector<40x1xf32>
    %142 = arith.divf %140, %141 : vector<40x1xf32>
    %143 = vector.broadcast %135 : vector<40x1xf32> to vector<40x128xf32>
    %144 = arith.subf %127, %143 : vector<40x128xf32>
    %cst_59 = arith.constant 9.99999974E-6 : f32
    %145 = vector.broadcast %cst_59 : f32 to vector<40x1xf32>
    %146 = arith.addf %142, %145 : vector<40x1xf32>
    %147 = math.rsqrt %146 : vector<40x1xf32>
    %148 = vector.broadcast %147 : vector<40x1xf32> to vector<40x128xf32>
    %149 = arith.mulf %144, %148 : vector<40x128xf32>
    %150 = vector.broadcast %129 : vector<1x128xf32> to vector<40x128xf32>
    %151 = arith.mulf %149, %150 : vector<40x128xf32>
    %152 = vector.broadcast %131 : vector<1x128xf32> to vector<40x128xf32>
    %153 = arith.addf %151, %152 : vector<40x128xf32>
    %c0_60 = arith.constant 0 : index
    %c0_61 = arith.constant 0 : index
    %c0_62 = arith.constant 0 : index
    %154 = vector.load %arg9[%c0_60, %c0_61, %c0_62] : memref<2x128x128xf32, #tpu.memory_space<vmem>>, vector<1x128x128xf32>
    %155 = vector.shape_cast %154 : vector<1x128x128xf32> to vector<128x128xf32>
    %cst_63 = arith.constant dense<0.000000e+00> : vector<40x128xf32>
    %156 = tpu.matmul %37, %155, %cst_63 {dimension_numbers = #tpu.dot_dimension_numbers<[1], [0], [0], [1], [0, 0, 1, 1], [], []>} : vector<40x128xf32>, vector<128x128xf32>, vector<40x128xf32> -> vector<40x128xf32>
    %c0_64 = arith.constant 0 : index
    %c0_65 = arith.constant 0 : index
    %c0_66 = arith.constant 0 : index
    %157 = vector.load %arg10[%c0_64, %c0_65, %c0_66] : memref<2x1x128xf32, #tpu.memory_space<vmem>>, vector<1x1x128xf32>
    %158 = vector.shape_cast %157 : vector<1x1x128xf32> to vector<1x128xf32>
    %159 = vector.broadcast %158 : vector<1x128xf32> to vector<40x128xf32>
    %160 = arith.addf %156, %159 : vector<40x128xf32>
    %c0_67 = arith.constant 0 : index
    %c0_68 = arith.constant 0 : index
    %c0_69 = arith.constant 0 : index
    %161 = vector.load %arg11[%c0_67, %c0_68, %c0_69] : memref<2x128x128xf32, #tpu.memory_space<vmem>>, vector<1x128x128xf32>
    %162 = vector.shape_cast %161 : vector<1x128x128xf32> to vector<128x128xf32>
    %cst_70 = arith.constant dense<0.000000e+00> : vector<40x128xf32>
    %163 = tpu.matmul %160, %162, %cst_70 {dimension_numbers = #tpu.dot_dimension_numbers<[1], [0], [0], [1], [0, 0, 1, 1], [], []>} : vector<40x128xf32>, vector<128x128xf32>, vector<40x128xf32> -> vector<40x128xf32>
    %c0_71 = arith.constant 0 : index
    %c0_72 = arith.constant 0 : index
    %c0_73 = arith.constant 0 : index
    %164 = vector.load %arg12[%c0_71, %c0_72, %c0_73] : memref<2x1x128xf32, #tpu.memory_space<vmem>>, vector<1x1x128xf32>
    %165 = vector.shape_cast %164 : vector<1x1x128xf32> to vector<1x128xf32>
    %166 = vector.broadcast %165 : vector<1x128xf32> to vector<40x128xf32>
    %167 = arith.addf %163, %166 : vector<40x128xf32>
    %168 = arith.addf %153, %167 : vector<40x128xf32>
    %c0_74 = arith.constant 0 : index
    %c0_75 = arith.constant 0 : index
    %c0_76 = arith.constant 0 : index
    %169 = vector.load %arg19[%c0_74, %c0_75, %c0_76] : memref<2x1x128xf32, #tpu.memory_space<vmem>>, vector<1x1x128xf32>
    %170 = vector.shape_cast %169 : vector<1x1x128xf32> to vector<1x128xf32>
    %c0_77 = arith.constant 0 : index
    %c0_78 = arith.constant 0 : index
    %c0_79 = arith.constant 0 : index
    %171 = vector.load %arg20[%c0_77, %c0_78, %c0_79] : memref<2x1x128xf32, #tpu.memory_space<vmem>>, vector<1x1x128xf32>
    %172 = vector.shape_cast %171 : vector<1x1x128xf32> to vector<1x128xf32>
    %cst_80 = arith.constant dense<0.000000e+00> : vector<40xf32>
    %173 = vector.multi_reduction <add>, %168, %cst_80 [1] : vector<40x128xf32> to vector<40xf32>
    %174 = vector.shape_cast %173 : vector<40xf32> to vector<40x1xf32>
    %cst_81 = arith.constant 1.280000e+02 : f32
    %175 = vector.broadcast %cst_81 : f32 to vector<40x1xf32>
    %176 = arith.divf %174, %175 : vector<40x1xf32>
    %177 = vector.broadcast %176 : vector<40x1xf32> to vector<40x128xf32>
    %178 = arith.subf %168, %177 : vector<40x128xf32>
    %179 = arith.mulf %178, %178 : vector<40x128xf32>
    %cst_82 = arith.constant dense<0.000000e+00> : vector<40xf32>
    %180 = vector.multi_reduction <add>, %179, %cst_82 [1] : vector<40x128xf32> to vector<40xf32>
    %181 = vector.shape_cast %180 : vector<40xf32> to vector<40x1xf32>
    %cst_83 = arith.constant 1.280000e+02 : f32
    %182 = vector.broadcast %cst_83 : f32 to vector<40x1xf32>
    %183 = arith.divf %181, %182 : vector<40x1xf32>
    %184 = vector.broadcast %176 : vector<40x1xf32> to vector<40x128xf32>
    %185 = arith.subf %168, %184 : vector<40x128xf32>
    %cst_84 = arith.constant 9.99999974E-6 : f32
    %186 = vector.broadcast %cst_84 : f32 to vector<40x1xf32>
    %187 = arith.addf %183, %186 : vector<40x1xf32>
    %188 = math.rsqrt %187 : vector<40x1xf32>
    %189 = vector.broadcast %188 : vector<40x1xf32> to vector<40x128xf32>
    %190 = arith.mulf %185, %189 : vector<40x128xf32>
    %191 = vector.broadcast %170 : vector<1x128xf32> to vector<40x128xf32>
    %192 = arith.mulf %190, %191 : vector<40x128xf32>
    %193 = vector.broadcast %172 : vector<1x128xf32> to vector<40x128xf32>
    %194 = arith.addf %192, %193 : vector<40x128xf32>
    %c0_85 = arith.constant 0 : index
    %c0_86 = arith.constant 0 : index
    %c0_87 = arith.constant 0 : index
    %195 = vector.load %arg13[%c0_85, %c0_86, %c0_87] : memref<2x128x256xf32, #tpu.memory_space<vmem>>, vector<1x128x256xf32>
    %196 = vector.shape_cast %195 : vector<1x128x256xf32> to vector<128x256xf32>
    %cst_88 = arith.constant dense<0.000000e+00> : vector<40x256xf32>
    %197 = tpu.matmul %194, %196, %cst_88 {dimension_numbers = #tpu.dot_dimension_numbers<[1], [0], [0], [1], [0, 0, 1, 1], [], []>} : vector<40x128xf32>, vector<128x256xf32>, vector<40x256xf32> -> vector<40x256xf32>
    %c0_89 = arith.constant 0 : index
    %c0_90 = arith.constant 0 : index
    %c0_91 = arith.constant 0 : index
    %198 = vector.load %arg14[%c0_89, %c0_90, %c0_91] : memref<2x1x256xf32, #tpu.memory_space<vmem>>, vector<1x1x256xf32>
    %199 = vector.shape_cast %198 : vector<1x1x256xf32> to vector<1x256xf32>
    %200 = vector.broadcast %199 : vector<1x256xf32> to vector<40x256xf32>
    %201 = arith.addf %197, %200 : vector<40x256xf32>
    %cst_92 = arith.constant 0.000000e+00 : f32
    %202 = vector.broadcast %cst_92 : f32 to vector<40x256xf32>
    %203 = arith.maximumf %201, %202 : vector<40x256xf32>
    %c0_93 = arith.constant 0 : index
    %c0_94 = arith.constant 0 : index
    %c0_95 = arith.constant 0 : index
    %204 = vector.load %arg15[%c0_93, %c0_94, %c0_95] : memref<2x256x128xf32, #tpu.memory_space<vmem>>, vector<1x256x128xf32>
    %205 = vector.shape_cast %204 : vector<1x256x128xf32> to vector<256x128xf32>
    %cst_96 = arith.constant dense<0.000000e+00> : vector<40x128xf32>
    %206 = tpu.matmul %203, %205, %cst_96 {dimension_numbers = #tpu.dot_dimension_numbers<[1], [0], [0], [1], [0, 0, 1, 1], [], []>} : vector<40x256xf32>, vector<256x128xf32>, vector<40x128xf32> -> vector<40x128xf32>
    %c0_97 = arith.constant 0 : index
    %c0_98 = arith.constant 0 : index
    %c0_99 = arith.constant 0 : index
    %207 = vector.load %arg16[%c0_97, %c0_98, %c0_99] : memref<2x1x128xf32, #tpu.memory_space<vmem>>, vector<1x1x128xf32>
    %208 = vector.shape_cast %207 : vector<1x1x128xf32> to vector<1x128xf32>
    %209 = vector.broadcast %208 : vector<1x128xf32> to vector<40x128xf32>
    %210 = arith.addf %206, %209 : vector<40x128xf32>
    %211 = arith.addf %194, %210 : vector<40x128xf32>
    %c0_100 = arith.constant 0 : index
    %c0_101 = arith.constant 0 : index
    %c0_102 = arith.constant 0 : index
    %212 = vector.load %arg21[%c0_100, %c0_101, %c0_102] : memref<2x1x128xf32, #tpu.memory_space<vmem>>, vector<1x1x128xf32>
    %213 = vector.shape_cast %212 : vector<1x1x128xf32> to vector<1x128xf32>
    %c0_103 = arith.constant 0 : index
    %c0_104 = arith.constant 0 : index
    %c0_105 = arith.constant 0 : index
    %214 = vector.load %arg22[%c0_103, %c0_104, %c0_105] : memref<2x1x128xf32, #tpu.memory_space<vmem>>, vector<1x1x128xf32>
    %215 = vector.shape_cast %214 : vector<1x1x128xf32> to vector<1x128xf32>
    %cst_106 = arith.constant dense<0.000000e+00> : vector<40xf32>
    %216 = vector.multi_reduction <add>, %211, %cst_106 [1] : vector<40x128xf32> to vector<40xf32>
    %217 = vector.shape_cast %216 : vector<40xf32> to vector<40x1xf32>
    %cst_107 = arith.constant 1.280000e+02 : f32
    %218 = vector.broadcast %cst_107 : f32 to vector<40x1xf32>
    %219 = arith.divf %217, %218 : vector<40x1xf32>
    %220 = vector.broadcast %219 : vector<40x1xf32> to vector<40x128xf32>
    %221 = arith.subf %211, %220 : vector<40x128xf32>
    %222 = arith.mulf %221, %221 : vector<40x128xf32>
    %cst_108 = arith.constant dense<0.000000e+00> : vector<40xf32>
    %223 = vector.multi_reduction <add>, %222, %cst_108 [1] : vector<40x128xf32> to vector<40xf32>
    %224 = vector.shape_cast %223 : vector<40xf32> to vector<40x1xf32>
    %cst_109 = arith.constant 1.280000e+02 : f32
    %225 = vector.broadcast %cst_109 : f32 to vector<40x1xf32>
    %226 = arith.divf %224, %225 : vector<40x1xf32>
    %227 = vector.broadcast %219 : vector<40x1xf32> to vector<40x128xf32>
    %228 = arith.subf %211, %227 : vector<40x128xf32>
    %cst_110 = arith.constant 9.99999974E-6 : f32
    %229 = vector.broadcast %cst_110 : f32 to vector<40x1xf32>
    %230 = arith.addf %226, %229 : vector<40x1xf32>
    %231 = math.rsqrt %230 : vector<40x1xf32>
    %232 = vector.broadcast %231 : vector<40x1xf32> to vector<40x128xf32>
    %233 = arith.mulf %228, %232 : vector<40x128xf32>
    %234 = vector.broadcast %213 : vector<1x128xf32> to vector<40x128xf32>
    %235 = arith.mulf %233, %234 : vector<40x128xf32>
    %236 = vector.broadcast %215 : vector<1x128xf32> to vector<40x128xf32>
    %237 = arith.addf %235, %236 : vector<40x128xf32>
    %c1 = arith.constant 1 : index
    %c0_111 = arith.constant 0 : index
    %c0_112 = arith.constant 0 : index
    %238 = vector.load %arg5[%c1, %c0_111, %c0_112] : memref<2x128x384xf32, #tpu.memory_space<vmem>>, vector<1x128x384xf32>
    %239 = vector.shape_cast %238 : vector<1x128x384xf32> to vector<128x384xf32>
    %cst_113 = arith.constant dense<0.000000e+00> : vector<40x384xf32>
    %240 = tpu.matmul %237, %239, %cst_113 {dimension_numbers = #tpu.dot_dimension_numbers<[1], [0], [0], [1], [0, 0, 1, 1], [], []>} : vector<40x128xf32>, vector<128x384xf32>, vector<40x384xf32> -> vector<40x384xf32>
    %c1_114 = arith.constant 1 : index
    %c0_115 = arith.constant 0 : index
    %c0_116 = arith.constant 0 : index
    %241 = vector.load %arg6[%c1_114, %c0_115, %c0_116] : memref<2x1x384xf32, #tpu.memory_space<vmem>>, vector<1x1x384xf32>
    %242 = vector.shape_cast %241 : vector<1x1x384xf32> to vector<1x384xf32>
    %243 = vector.broadcast %242 : vector<1x384xf32> to vector<40x384xf32>
    %244 = arith.addf %240, %243 : vector<40x384xf32>
    %245 = vector.extract_strided_slice %244 {offsets = [0, 0], sizes = [40, 32], strides = [1, 1]} : vector<40x384xf32> to vector<40x32xf32>
    %246 = vector.extract_strided_slice %244 {offsets = [0, 128], sizes = [40, 32], strides = [1, 1]} : vector<40x384xf32> to vector<40x32xf32>
    %247 = vector.extract_strided_slice %244 {offsets = [0, 256], sizes = [40, 32], strides = [1, 1]} : vector<40x384xf32> to vector<40x32xf32>
    %cst_117 = arith.constant dense<0.000000e+00> : vector<40x40xf32>
    %248 = tpu.matmul %245, %246, %cst_117 {dimension_numbers = #tpu.dot_dimension_numbers<[1], [1], [0], [0], [0, 0, 1, 0], [], []>} : vector<40x32xf32>, vector<40x32xf32>, vector<40x40xf32> -> vector<40x40xf32>
    %cst_118 = arith.constant 0.176776692 : f32
    %249 = vector.broadcast %cst_118 : f32 to vector<40x40xf32>
    %250 = arith.mulf %248, %249 : vector<40x40xf32>
    %251 = arith.addf %250, %15 : vector<40x40xf32>
    %cst_119 = arith.constant dense<0xFF800000> : vector<40xf32>
    %252 = vector.multi_reduction <maximumf>, %251, %cst_119 [1] : vector<40x40xf32> to vector<40xf32>
    %253 = vector.shape_cast %252 : vector<40xf32> to vector<40x1xf32>
    %254 = vector.broadcast %253 : vector<40x1xf32> to vector<40x40xf32>
    %255 = arith.subf %251, %254 : vector<40x40xf32>
    %256 = math.exp %255 : vector<40x40xf32>
    %cst_120 = arith.constant dense<0.000000e+00> : vector<40xf32>
    %257 = vector.multi_reduction <add>, %256, %cst_120 [1] : vector<40x40xf32> to vector<40xf32>
    %258 = vector.shape_cast %257 : vector<40xf32> to vector<40x1xf32>
    %259 = tpu.reciprocal %258 {approx = true} : vector<40x1xf32> -> vector<40x1xf32>
    %260 = vector.broadcast %259 : vector<40x1xf32> to vector<40x40xf32>
    %261 = arith.mulf %256, %260 : vector<40x40xf32>
    %cst_121 = arith.constant dense<0.000000e+00> : vector<40x32xf32>
    %262 = tpu.matmul %261, %247, %cst_121 {dimension_numbers = #tpu.dot_dimension_numbers<[1], [0], [0], [1], [0, 0, 1, 1], [], []>} : vector<40x40xf32>, vector<40x32xf32>, vector<40x32xf32> -> vector<40x32xf32>
    %263 = vector.extract_strided_slice %244 {offsets = [0, 32], sizes = [40, 32], strides = [1, 1]} : vector<40x384xf32> to vector<40x32xf32>
    %264 = vector.extract_strided_slice %244 {offsets = [0, 160], sizes = [40, 32], strides = [1, 1]} : vector<40x384xf32> to vector<40x32xf32>
    %265 = vector.extract_strided_slice %244 {offsets = [0, 288], sizes = [40, 32], strides = [1, 1]} : vector<40x384xf32> to vector<40x32xf32>
    %cst_122 = arith.constant dense<0.000000e+00> : vector<40x40xf32>
    %266 = tpu.matmul %263, %264, %cst_122 {dimension_numbers = #tpu.dot_dimension_numbers<[1], [1], [0], [0], [0, 0, 1, 0], [], []>} : vector<40x32xf32>, vector<40x32xf32>, vector<40x40xf32> -> vector<40x40xf32>
    %cst_123 = arith.constant 0.176776692 : f32
    %267 = vector.broadcast %cst_123 : f32 to vector<40x40xf32>
    %268 = arith.mulf %266, %267 : vector<40x40xf32>
    %269 = arith.addf %268, %15 : vector<40x40xf32>
    %cst_124 = arith.constant dense<0xFF800000> : vector<40xf32>
    %270 = vector.multi_reduction <maximumf>, %269, %cst_124 [1] : vector<40x40xf32> to vector<40xf32>
    %271 = vector.shape_cast %270 : vector<40xf32> to vector<40x1xf32>
    %272 = vector.broadcast %271 : vector<40x1xf32> to vector<40x40xf32>
    %273 = arith.subf %269, %272 : vector<40x40xf32>
    %274 = math.exp %273 : vector<40x40xf32>
    %cst_125 = arith.constant dense<0.000000e+00> : vector<40xf32>
    %275 = vector.multi_reduction <add>, %274, %cst_125 [1] : vector<40x40xf32> to vector<40xf32>
    %276 = vector.shape_cast %275 : vector<40xf32> to vector<40x1xf32>
    %277 = tpu.reciprocal %276 {approx = true} : vector<40x1xf32> -> vector<40x1xf32>
    %278 = vector.broadcast %277 : vector<40x1xf32> to vector<40x40xf32>
    %279 = arith.mulf %274, %278 : vector<40x40xf32>
    %cst_126 = arith.constant dense<0.000000e+00> : vector<40x32xf32>
    %280 = tpu.matmul %279, %265, %cst_126 {dimension_numbers = #tpu.dot_dimension_numbers<[1], [0], [0], [1], [0, 0, 1, 1], [], []>} : vector<40x40xf32>, vector<40x32xf32>, vector<40x32xf32> -> vector<40x32xf32>
    %281 = vector.extract_strided_slice %244 {offsets = [0, 64], sizes = [40, 32], strides = [1, 1]} : vector<40x384xf32> to vector<40x32xf32>
    %282 = vector.extract_strided_slice %244 {offsets = [0, 192], sizes = [40, 32], strides = [1, 1]} : vector<40x384xf32> to vector<40x32xf32>
    %283 = vector.extract_strided_slice %244 {offsets = [0, 320], sizes = [40, 32], strides = [1, 1]} : vector<40x384xf32> to vector<40x32xf32>
    %cst_127 = arith.constant dense<0.000000e+00> : vector<40x40xf32>
    %284 = tpu.matmul %281, %282, %cst_127 {dimension_numbers = #tpu.dot_dimension_numbers<[1], [1], [0], [0], [0, 0, 1, 0], [], []>} : vector<40x32xf32>, vector<40x32xf32>, vector<40x40xf32> -> vector<40x40xf32>
    %cst_128 = arith.constant 0.176776692 : f32
    %285 = vector.broadcast %cst_128 : f32 to vector<40x40xf32>
    %286 = arith.mulf %284, %285 : vector<40x40xf32>
    %287 = arith.addf %286, %15 : vector<40x40xf32>
    %cst_129 = arith.constant dense<0xFF800000> : vector<40xf32>
    %288 = vector.multi_reduction <maximumf>, %287, %cst_129 [1] : vector<40x40xf32> to vector<40xf32>
    %289 = vector.shape_cast %288 : vector<40xf32> to vector<40x1xf32>
    %290 = vector.broadcast %289 : vector<40x1xf32> to vector<40x40xf32>
    %291 = arith.subf %287, %290 : vector<40x40xf32>
    %292 = math.exp %291 : vector<40x40xf32>
    %cst_130 = arith.constant dense<0.000000e+00> : vector<40xf32>
    %293 = vector.multi_reduction <add>, %292, %cst_130 [1] : vector<40x40xf32> to vector<40xf32>
    %294 = vector.shape_cast %293 : vector<40xf32> to vector<40x1xf32>
    %295 = tpu.reciprocal %294 {approx = true} : vector<40x1xf32> -> vector<40x1xf32>
    %296 = vector.broadcast %295 : vector<40x1xf32> to vector<40x40xf32>
    %297 = arith.mulf %292, %296 : vector<40x40xf32>
    %cst_131 = arith.constant dense<0.000000e+00> : vector<40x32xf32>
    %298 = tpu.matmul %297, %283, %cst_131 {dimension_numbers = #tpu.dot_dimension_numbers<[1], [0], [0], [1], [0, 0, 1, 1], [], []>} : vector<40x40xf32>, vector<40x32xf32>, vector<40x32xf32> -> vector<40x32xf32>
    %299 = vector.extract_strided_slice %244 {offsets = [0, 96], sizes = [40, 32], strides = [1, 1]} : vector<40x384xf32> to vector<40x32xf32>
    %300 = vector.extract_strided_slice %244 {offsets = [0, 224], sizes = [40, 32], strides = [1, 1]} : vector<40x384xf32> to vector<40x32xf32>
    %301 = vector.extract_strided_slice %244 {offsets = [0, 352], sizes = [40, 32], strides = [1, 1]} : vector<40x384xf32> to vector<40x32xf32>
    %cst_132 = arith.constant dense<0.000000e+00> : vector<40x40xf32>
    %302 = tpu.matmul %299, %300, %cst_132 {dimension_numbers = #tpu.dot_dimension_numbers<[1], [1], [0], [0], [0, 0, 1, 0], [], []>} : vector<40x32xf32>, vector<40x32xf32>, vector<40x40xf32> -> vector<40x40xf32>
    %cst_133 = arith.constant 0.176776692 : f32
    %303 = vector.broadcast %cst_133 : f32 to vector<40x40xf32>
    %304 = arith.mulf %302, %303 : vector<40x40xf32>
    %305 = arith.addf %304, %15 : vector<40x40xf32>
    %cst_134 = arith.constant dense<0xFF800000> : vector<40xf32>
    %306 = vector.multi_reduction <maximumf>, %305, %cst_134 [1] : vector<40x40xf32> to vector<40xf32>
    %307 = vector.shape_cast %306 : vector<40xf32> to vector<40x1xf32>
    %308 = vector.broadcast %307 : vector<40x1xf32> to vector<40x40xf32>
    %309 = arith.subf %305, %308 : vector<40x40xf32>
    %310 = math.exp %309 : vector<40x40xf32>
    %cst_135 = arith.constant dense<0.000000e+00> : vector<40xf32>
    %311 = vector.multi_reduction <add>, %310, %cst_135 [1] : vector<40x40xf32> to vector<40xf32>
    %312 = vector.shape_cast %311 : vector<40xf32> to vector<40x1xf32>
    %313 = tpu.reciprocal %312 {approx = true} : vector<40x1xf32> -> vector<40x1xf32>
    %314 = vector.broadcast %313 : vector<40x1xf32> to vector<40x40xf32>
    %315 = arith.mulf %310, %314 : vector<40x40xf32>
    %cst_136 = arith.constant dense<0.000000e+00> : vector<40x32xf32>
    %316 = tpu.matmul %315, %301, %cst_136 {dimension_numbers = #tpu.dot_dimension_numbers<[1], [0], [0], [1], [0, 0, 1, 1], [], []>} : vector<40x40xf32>, vector<40x32xf32>, vector<40x32xf32> -> vector<40x32xf32>
    %317 = tpu.concatenate %262, %280, %298, %316 in 1 : vector<40x32xf32>, vector<40x32xf32>, vector<40x32xf32>, vector<40x32xf32> -> vector<40x128xf32>
    %c1_137 = arith.constant 1 : index
    %c0_138 = arith.constant 0 : index
    %c0_139 = arith.constant 0 : index
    %318 = vector.load %arg7[%c1_137, %c0_138, %c0_139] : memref<2x128x128xf32, #tpu.memory_space<vmem>>, vector<1x128x128xf32>
    %319 = vector.shape_cast %318 : vector<1x128x128xf32> to vector<128x128xf32>
    %cst_140 = arith.constant dense<0.000000e+00> : vector<40x128xf32>
    %320 = tpu.matmul %317, %319, %cst_140 {dimension_numbers = #tpu.dot_dimension_numbers<[1], [0], [0], [1], [0, 0, 1, 1], [], []>} : vector<40x128xf32>, vector<128x128xf32>, vector<40x128xf32> -> vector<40x128xf32>
    %c1_141 = arith.constant 1 : index
    %c0_142 = arith.constant 0 : index
    %c0_143 = arith.constant 0 : index
    %321 = vector.load %arg8[%c1_141, %c0_142, %c0_143] : memref<2x1x128xf32, #tpu.memory_space<vmem>>, vector<1x1x128xf32>
    %322 = vector.shape_cast %321 : vector<1x1x128xf32> to vector<1x128xf32>
    %323 = vector.broadcast %322 : vector<1x128xf32> to vector<40x128xf32>
    %324 = arith.addf %320, %323 : vector<40x128xf32>
    %325 = arith.addf %237, %324 : vector<40x128xf32>
    %c1_144 = arith.constant 1 : index
    %c0_145 = arith.constant 0 : index
    %c0_146 = arith.constant 0 : index
    %326 = vector.load %arg17[%c1_144, %c0_145, %c0_146] : memref<2x1x128xf32, #tpu.memory_space<vmem>>, vector<1x1x128xf32>
    %327 = vector.shape_cast %326 : vector<1x1x128xf32> to vector<1x128xf32>
    %c1_147 = arith.constant 1 : index
    %c0_148 = arith.constant 0 : index
    %c0_149 = arith.constant 0 : index
    %328 = vector.load %arg18[%c1_147, %c0_148, %c0_149] : memref<2x1x128xf32, #tpu.memory_space<vmem>>, vector<1x1x128xf32>
    %329 = vector.shape_cast %328 : vector<1x1x128xf32> to vector<1x128xf32>
    %cst_150 = arith.constant dense<0.000000e+00> : vector<40xf32>
    %330 = vector.multi_reduction <add>, %325, %cst_150 [1] : vector<40x128xf32> to vector<40xf32>
    %331 = vector.shape_cast %330 : vector<40xf32> to vector<40x1xf32>
    %cst_151 = arith.constant 1.280000e+02 : f32
    %332 = vector.broadcast %cst_151 : f32 to vector<40x1xf32>
    %333 = arith.divf %331, %332 : vector<40x1xf32>
    %334 = vector.broadcast %333 : vector<40x1xf32> to vector<40x128xf32>
    %335 = arith.subf %325, %334 : vector<40x128xf32>
    %336 = arith.mulf %335, %335 : vector<40x128xf32>
    %cst_152 = arith.constant dense<0.000000e+00> : vector<40xf32>
    %337 = vector.multi_reduction <add>, %336, %cst_152 [1] : vector<40x128xf32> to vector<40xf32>
    %338 = vector.shape_cast %337 : vector<40xf32> to vector<40x1xf32>
    %cst_153 = arith.constant 1.280000e+02 : f32
    %339 = vector.broadcast %cst_153 : f32 to vector<40x1xf32>
    %340 = arith.divf %338, %339 : vector<40x1xf32>
    %341 = vector.broadcast %333 : vector<40x1xf32> to vector<40x128xf32>
    %342 = arith.subf %325, %341 : vector<40x128xf32>
    %cst_154 = arith.constant 9.99999974E-6 : f32
    %343 = vector.broadcast %cst_154 : f32 to vector<40x1xf32>
    %344 = arith.addf %340, %343 : vector<40x1xf32>
    %345 = math.rsqrt %344 : vector<40x1xf32>
    %346 = vector.broadcast %345 : vector<40x1xf32> to vector<40x128xf32>
    %347 = arith.mulf %342, %346 : vector<40x128xf32>
    %348 = vector.broadcast %327 : vector<1x128xf32> to vector<40x128xf32>
    %349 = arith.mulf %347, %348 : vector<40x128xf32>
    %350 = vector.broadcast %329 : vector<1x128xf32> to vector<40x128xf32>
    %351 = arith.addf %349, %350 : vector<40x128xf32>
    %c1_155 = arith.constant 1 : index
    %c0_156 = arith.constant 0 : index
    %c0_157 = arith.constant 0 : index
    %352 = vector.load %arg9[%c1_155, %c0_156, %c0_157] : memref<2x128x128xf32, #tpu.memory_space<vmem>>, vector<1x128x128xf32>
    %353 = vector.shape_cast %352 : vector<1x128x128xf32> to vector<128x128xf32>
    %cst_158 = arith.constant dense<0.000000e+00> : vector<40x128xf32>
    %354 = tpu.matmul %37, %353, %cst_158 {dimension_numbers = #tpu.dot_dimension_numbers<[1], [0], [0], [1], [0, 0, 1, 1], [], []>} : vector<40x128xf32>, vector<128x128xf32>, vector<40x128xf32> -> vector<40x128xf32>
    %c1_159 = arith.constant 1 : index
    %c0_160 = arith.constant 0 : index
    %c0_161 = arith.constant 0 : index
    %355 = vector.load %arg10[%c1_159, %c0_160, %c0_161] : memref<2x1x128xf32, #tpu.memory_space<vmem>>, vector<1x1x128xf32>
    %356 = vector.shape_cast %355 : vector<1x1x128xf32> to vector<1x128xf32>
    %357 = vector.broadcast %356 : vector<1x128xf32> to vector<40x128xf32>
    %358 = arith.addf %354, %357 : vector<40x128xf32>
    %c1_162 = arith.constant 1 : index
    %c0_163 = arith.constant 0 : index
    %c0_164 = arith.constant 0 : index
    %359 = vector.load %arg11[%c1_162, %c0_163, %c0_164] : memref<2x128x128xf32, #tpu.memory_space<vmem>>, vector<1x128x128xf32>
    %360 = vector.shape_cast %359 : vector<1x128x128xf32> to vector<128x128xf32>
    %cst_165 = arith.constant dense<0.000000e+00> : vector<40x128xf32>
    %361 = tpu.matmul %358, %360, %cst_165 {dimension_numbers = #tpu.dot_dimension_numbers<[1], [0], [0], [1], [0, 0, 1, 1], [], []>} : vector<40x128xf32>, vector<128x128xf32>, vector<40x128xf32> -> vector<40x128xf32>
    %c1_166 = arith.constant 1 : index
    %c0_167 = arith.constant 0 : index
    %c0_168 = arith.constant 0 : index
    %362 = vector.load %arg12[%c1_166, %c0_167, %c0_168] : memref<2x1x128xf32, #tpu.memory_space<vmem>>, vector<1x1x128xf32>
    %363 = vector.shape_cast %362 : vector<1x1x128xf32> to vector<1x128xf32>
    %364 = vector.broadcast %363 : vector<1x128xf32> to vector<40x128xf32>
    %365 = arith.addf %361, %364 : vector<40x128xf32>
    %366 = arith.addf %351, %365 : vector<40x128xf32>
    %c1_169 = arith.constant 1 : index
    %c0_170 = arith.constant 0 : index
    %c0_171 = arith.constant 0 : index
    %367 = vector.load %arg19[%c1_169, %c0_170, %c0_171] : memref<2x1x128xf32, #tpu.memory_space<vmem>>, vector<1x1x128xf32>
    %368 = vector.shape_cast %367 : vector<1x1x128xf32> to vector<1x128xf32>
    %c1_172 = arith.constant 1 : index
    %c0_173 = arith.constant 0 : index
    %c0_174 = arith.constant 0 : index
    %369 = vector.load %arg20[%c1_172, %c0_173, %c0_174] : memref<2x1x128xf32, #tpu.memory_space<vmem>>, vector<1x1x128xf32>
    %370 = vector.shape_cast %369 : vector<1x1x128xf32> to vector<1x128xf32>
    %cst_175 = arith.constant dense<0.000000e+00> : vector<40xf32>
    %371 = vector.multi_reduction <add>, %366, %cst_175 [1] : vector<40x128xf32> to vector<40xf32>
    %372 = vector.shape_cast %371 : vector<40xf32> to vector<40x1xf32>
    %cst_176 = arith.constant 1.280000e+02 : f32
    %373 = vector.broadcast %cst_176 : f32 to vector<40x1xf32>
    %374 = arith.divf %372, %373 : vector<40x1xf32>
    %375 = vector.broadcast %374 : vector<40x1xf32> to vector<40x128xf32>
    %376 = arith.subf %366, %375 : vector<40x128xf32>
    %377 = arith.mulf %376, %376 : vector<40x128xf32>
    %cst_177 = arith.constant dense<0.000000e+00> : vector<40xf32>
    %378 = vector.multi_reduction <add>, %377, %cst_177 [1] : vector<40x128xf32> to vector<40xf32>
    %379 = vector.shape_cast %378 : vector<40xf32> to vector<40x1xf32>
    %cst_178 = arith.constant 1.280000e+02 : f32
    %380 = vector.broadcast %cst_178 : f32 to vector<40x1xf32>
    %381 = arith.divf %379, %380 : vector<40x1xf32>
    %382 = vector.broadcast %374 : vector<40x1xf32> to vector<40x128xf32>
    %383 = arith.subf %366, %382 : vector<40x128xf32>
    %cst_179 = arith.constant 9.99999974E-6 : f32
    %384 = vector.broadcast %cst_179 : f32 to vector<40x1xf32>
    %385 = arith.addf %381, %384 : vector<40x1xf32>
    %386 = math.rsqrt %385 : vector<40x1xf32>
    %387 = vector.broadcast %386 : vector<40x1xf32> to vector<40x128xf32>
    %388 = arith.mulf %383, %387 : vector<40x128xf32>
    %389 = vector.broadcast %368 : vector<1x128xf32> to vector<40x128xf32>
    %390 = arith.mulf %388, %389 : vector<40x128xf32>
    %391 = vector.broadcast %370 : vector<1x128xf32> to vector<40x128xf32>
    %392 = arith.addf %390, %391 : vector<40x128xf32>
    %c1_180 = arith.constant 1 : index
    %c0_181 = arith.constant 0 : index
    %c0_182 = arith.constant 0 : index
    %393 = vector.load %arg13[%c1_180, %c0_181, %c0_182] : memref<2x128x256xf32, #tpu.memory_space<vmem>>, vector<1x128x256xf32>
    %394 = vector.shape_cast %393 : vector<1x128x256xf32> to vector<128x256xf32>
    %cst_183 = arith.constant dense<0.000000e+00> : vector<40x256xf32>
    %395 = tpu.matmul %392, %394, %cst_183 {dimension_numbers = #tpu.dot_dimension_numbers<[1], [0], [0], [1], [0, 0, 1, 1], [], []>} : vector<40x128xf32>, vector<128x256xf32>, vector<40x256xf32> -> vector<40x256xf32>
    %c1_184 = arith.constant 1 : index
    %c0_185 = arith.constant 0 : index
    %c0_186 = arith.constant 0 : index
    %396 = vector.load %arg14[%c1_184, %c0_185, %c0_186] : memref<2x1x256xf32, #tpu.memory_space<vmem>>, vector<1x1x256xf32>
    %397 = vector.shape_cast %396 : vector<1x1x256xf32> to vector<1x256xf32>
    %398 = vector.broadcast %397 : vector<1x256xf32> to vector<40x256xf32>
    %399 = arith.addf %395, %398 : vector<40x256xf32>
    %cst_187 = arith.constant 0.000000e+00 : f32
    %400 = vector.broadcast %cst_187 : f32 to vector<40x256xf32>
    %401 = arith.maximumf %399, %400 : vector<40x256xf32>
    %c1_188 = arith.constant 1 : index
    %c0_189 = arith.constant 0 : index
    %c0_190 = arith.constant 0 : index
    %402 = vector.load %arg15[%c1_188, %c0_189, %c0_190] : memref<2x256x128xf32, #tpu.memory_space<vmem>>, vector<1x256x128xf32>
    %403 = vector.shape_cast %402 : vector<1x256x128xf32> to vector<256x128xf32>
    %cst_191 = arith.constant dense<0.000000e+00> : vector<40x128xf32>
    %404 = tpu.matmul %401, %403, %cst_191 {dimension_numbers = #tpu.dot_dimension_numbers<[1], [0], [0], [1], [0, 0, 1, 1], [], []>} : vector<40x256xf32>, vector<256x128xf32>, vector<40x128xf32> -> vector<40x128xf32>
    %c1_192 = arith.constant 1 : index
    %c0_193 = arith.constant 0 : index
    %c0_194 = arith.constant 0 : index
    %405 = vector.load %arg16[%c1_192, %c0_193, %c0_194] : memref<2x1x128xf32, #tpu.memory_space<vmem>>, vector<1x1x128xf32>
    %406 = vector.shape_cast %405 : vector<1x1x128xf32> to vector<1x128xf32>
    %407 = vector.broadcast %406 : vector<1x128xf32> to vector<40x128xf32>
    %408 = arith.addf %404, %407 : vector<40x128xf32>
    %409 = arith.addf %392, %408 : vector<40x128xf32>
    %c1_195 = arith.constant 1 : index
    %c0_196 = arith.constant 0 : index
    %c0_197 = arith.constant 0 : index
    %410 = vector.load %arg21[%c1_195, %c0_196, %c0_197] : memref<2x1x128xf32, #tpu.memory_space<vmem>>, vector<1x1x128xf32>
    %411 = vector.shape_cast %410 : vector<1x1x128xf32> to vector<1x128xf32>
    %c1_198 = arith.constant 1 : index
    %c0_199 = arith.constant 0 : index
    %c0_200 = arith.constant 0 : index
    %412 = vector.load %arg22[%c1_198, %c0_199, %c0_200] : memref<2x1x128xf32, #tpu.memory_space<vmem>>, vector<1x1x128xf32>
    %413 = vector.shape_cast %412 : vector<1x1x128xf32> to vector<1x128xf32>
    %cst_201 = arith.constant dense<0.000000e+00> : vector<40xf32>
    %414 = vector.multi_reduction <add>, %409, %cst_201 [1] : vector<40x128xf32> to vector<40xf32>
    %415 = vector.shape_cast %414 : vector<40xf32> to vector<40x1xf32>
    %cst_202 = arith.constant 1.280000e+02 : f32
    %416 = vector.broadcast %cst_202 : f32 to vector<40x1xf32>
    %417 = arith.divf %415, %416 : vector<40x1xf32>
    %418 = vector.broadcast %417 : vector<40x1xf32> to vector<40x128xf32>
    %419 = arith.subf %409, %418 : vector<40x128xf32>
    %420 = arith.mulf %419, %419 : vector<40x128xf32>
    %cst_203 = arith.constant dense<0.000000e+00> : vector<40xf32>
    %421 = vector.multi_reduction <add>, %420, %cst_203 [1] : vector<40x128xf32> to vector<40xf32>
    %422 = vector.shape_cast %421 : vector<40xf32> to vector<40x1xf32>
    %cst_204 = arith.constant 1.280000e+02 : f32
    %423 = vector.broadcast %cst_204 : f32 to vector<40x1xf32>
    %424 = arith.divf %422, %423 : vector<40x1xf32>
    %425 = vector.broadcast %417 : vector<40x1xf32> to vector<40x128xf32>
    %426 = arith.subf %409, %425 : vector<40x128xf32>
    %cst_205 = arith.constant 9.99999974E-6 : f32
    %427 = vector.broadcast %cst_205 : f32 to vector<40x1xf32>
    %428 = arith.addf %424, %427 : vector<40x1xf32>
    %429 = math.rsqrt %428 : vector<40x1xf32>
    %430 = vector.broadcast %429 : vector<40x1xf32> to vector<40x128xf32>
    %431 = arith.mulf %426, %430 : vector<40x128xf32>
    %432 = vector.broadcast %411 : vector<1x128xf32> to vector<40x128xf32>
    %433 = arith.mulf %431, %432 : vector<40x128xf32>
    %434 = vector.broadcast %413 : vector<1x128xf32> to vector<40x128xf32>
    %435 = arith.addf %433, %434 : vector<40x128xf32>
    %c0_206 = arith.constant 0 : index
    %c0_207 = arith.constant 0 : index
    %436 = vector.load %arg23[%c0_206, %c0_207] : memref<128x128xf32, #tpu.memory_space<vmem>>, vector<128x128xf32>
    %cst_208 = arith.constant dense<0.000000e+00> : vector<40x128xf32>
    %437 = tpu.matmul %435, %436, %cst_208 {dimension_numbers = #tpu.dot_dimension_numbers<[1], [0], [0], [1], [0, 0, 1, 1], [], []>} : vector<40x128xf32>, vector<128x128xf32>, vector<40x128xf32> -> vector<40x128xf32>
    %c0_209 = arith.constant 0 : index
    %c0_210 = arith.constant 0 : index
    %438 = vector.load %arg24[%c0_209, %c0_210] : memref<1x128xf32, #tpu.memory_space<vmem>>, vector<1x128xf32>
    %439 = vector.broadcast %438 : vector<1x128xf32> to vector<40x128xf32>
    %440 = arith.addf %437, %439 : vector<40x128xf32>
    %c0_211 = arith.constant 0 : index
    %c0_212 = arith.constant 0 : index
    %441 = vector.load %arg25[%c0_211, %c0_212] : memref<40x128xf32, #tpu.memory_space<vmem>>, vector<40x128xf32>
    tpu.vector_store %arg25[%c0_211, %c0_212], %440 {strides = array<i32>} : memref<40x128xf32, #tpu.memory_space<vmem>>, vector<40x128xf32>,
    return
  }
  func.func @transform_0(%arg0: i32) -> (i32, i32) {
    %c0_i32 = arith.constant 0 : i32
    %c0_i32_0 = arith.constant 0 : i32
    return %arg0, %c0_i32 : i32, i32
  }
  func.func @transform_1(%arg0: i32) -> (i32, i32) {
    %c0_i32 = arith.constant 0 : i32
    %c0_i32_0 = arith.constant 0 : i32
    %c0_i32_1 = arith.constant 0 : i32
    return %c0_i32, %c0_i32_0 : i32, i32
  }
  func.func @transform_2(%arg0: i32) -> (i32, i32) {
    %c0_i32 = arith.constant 0 : i32
    %c0_i32_0 = arith.constant 0 : i32
    %c0_i32_1 = arith.constant 0 : i32
    return %c0_i32, %c0_i32_0 : i32, i32
  }
  func.func @transform_3(%arg0: i32) -> (i32, i32) {
    %c0_i32 = arith.constant 0 : i32
    %c0_i32_0 = arith.constant 0 : i32
    %c0_i32_1 = arith.constant 0 : i32
    return %c0_i32, %c0_i32_0 : i32, i32
  }
  func.func @transform_4(%arg0: i32) -> (i32, i32, i32) {
    %c0_i32 = arith.constant 0 : i32
    %c0_i32_0 = arith.constant 0 : i32
    %c0_i32_1 = arith.constant 0 : i32
    %c0_i32_2 = arith.constant 0 : i32
    return %c0_i32, %c0_i32_0, %c0_i32_1 : i32, i32, i32
  }
  func.func @transform_5(%arg0: i32) -> (i32, i32, i32) {
    %c0_i32 = arith.constant 0 : i32
    %c0_i32_0 = arith.constant 0 : i32
    %c0_i32_1 = arith.constant 0 : i32
    %c0_i32_2 = arith.constant 0 : i32
    return %c0_i32, %c0_i32_0, %c0_i32_1 : i32, i32, i32
  }
  func.func @transform_6(%arg0: i32) -> (i32, i32, i32) {
    %c0_i32 = arith.constant 0 : i32
    %c0_i32_0 = arith.constant 0 : i32
    %c0_i32_1 = arith.constant 0 : i32
    %c0_i32_2 = arith.constant 0 : i32
    return %c0_i32, %c0_i32_0, %c0_i32_1 : i32, i32, i32
  }
  func.func @transform_7(%arg0: i32) -> (i32, i32, i32) {
    %c0_i32 = arith.constant 0 : i32
    %c0_i32_0 = arith.constant 0 : i32
    %c0_i32_1 = arith.constant 0 : i32
    %c0_i32_2 = arith.constant 0 : i32
    return %c0_i32, %c0_i32_0, %c0_i32_1 : i32, i32, i32
  }
  func.func @transform_8(%arg0: i32) -> (i32, i32, i32) {
    %c0_i32 = arith.constant 0 : i32
    %c0_i32_0 = arith.constant 0 : i32
    %c0_i32_1 = arith.constant 0 : i32
    %c0_i32_2 = arith.constant 0 : i32
    return %c0_i32, %c0_i32_0, %c0_i32_1 : i32, i32, i32
  }
  func.func @transform_9(%arg0: i32) -> (i32, i32, i32) {
    %c0_i32 = arith.constant 0 : i32
    %c0_i32_0 = arith.constant 0 : i32
    %c0_i32_1 = arith.constant 0 : i32
    %c0_i32_2 = arith.constant 0 : i32
    return %c0_i32, %c0_i32_0, %c0_i32_1 : i32, i32, i32
  }
  func.func @transform_10(%arg0: i32) -> (i32, i32, i32) {
    %c0_i32 = arith.constant 0 : i32
    %c0_i32_0 = arith.constant 0 : i32
    %c0_i32_1 = arith.constant 0 : i32
    %c0_i32_2 = arith.constant 0 : i32
    return %c0_i32, %c0_i32_0, %c0_i32_1 : i32, i32, i32
  }
  func.func @transform_11(%arg0: i32) -> (i32, i32, i32) {
    %c0_i32 = arith.constant 0 : i32
    %c0_i32_0 = arith.constant 0 : i32
    %c0_i32_1 = arith.constant 0 : i32
    %c0_i32_2 = arith.constant 0 : i32
    return %c0_i32, %c0_i32_0, %c0_i32_1 : i32, i32, i32
  }
  func.func @transform_12(%arg0: i32) -> (i32, i32, i32) {
    %c0_i32 = arith.constant 0 : i32
    %c0_i32_0 = arith.constant 0 : i32
    %c0_i32_1 = arith.constant 0 : i32
    %c0_i32_2 = arith.constant 0 : i32
    return %c0_i32, %c0_i32_0, %c0_i32_1 : i32, i32, i32
  }
  func.func @transform_13(%arg0: i32) -> (i32, i32, i32) {
    %c0_i32 = arith.constant 0 : i32
    %c0_i32_0 = arith.constant 0 : i32
    %c0_i32_1 = arith.constant 0 : i32
    %c0_i32_2 = arith.constant 0 : i32
    return %c0_i32, %c0_i32_0, %c0_i32_1 : i32, i32, i32
  }
  func.func @transform_14(%arg0: i32) -> (i32, i32, i32) {
    %c0_i32 = arith.constant 0 : i32
    %c0_i32_0 = arith.constant 0 : i32
    %c0_i32_1 = arith.constant 0 : i32
    %c0_i32_2 = arith.constant 0 : i32
    return %c0_i32, %c0_i32_0, %c0_i32_1 : i32, i32, i32
  }
  func.func @transform_15(%arg0: i32) -> (i32, i32, i32) {
    %c0_i32 = arith.constant 0 : i32
    %c0_i32_0 = arith.constant 0 : i32
    %c0_i32_1 = arith.constant 0 : i32
    %c0_i32_2 = arith.constant 0 : i32
    return %c0_i32, %c0_i32_0, %c0_i32_1 : i32, i32, i32
  }
  func.func @transform_16(%arg0: i32) -> (i32, i32, i32) {
    %c0_i32 = arith.constant 0 : i32
    %c0_i32_0 = arith.constant 0 : i32
    %c0_i32_1 = arith.constant 0 : i32
    %c0_i32_2 = arith.constant 0 : i32
    return %c0_i32, %c0_i32_0, %c0_i32_1 : i32, i32, i32
  }
  func.func @transform_17(%arg0: i32) -> (i32, i32, i32) {
    %c0_i32 = arith.constant 0 : i32
    %c0_i32_0 = arith.constant 0 : i32
    %c0_i32_1 = arith.constant 0 : i32
    %c0_i32_2 = arith.constant 0 : i32
    return %c0_i32, %c0_i32_0, %c0_i32_1 : i32, i32, i32
  }
  func.func @transform_18(%arg0: i32) -> (i32, i32, i32) {
    %c0_i32 = arith.constant 0 : i32
    %c0_i32_0 = arith.constant 0 : i32
    %c0_i32_1 = arith.constant 0 : i32
    %c0_i32_2 = arith.constant 0 : i32
    return %c0_i32, %c0_i32_0, %c0_i32_1 : i32, i32, i32
  }
  func.func @transform_19(%arg0: i32) -> (i32, i32, i32) {
    %c0_i32 = arith.constant 0 : i32
    %c0_i32_0 = arith.constant 0 : i32
    %c0_i32_1 = arith.constant 0 : i32
    %c0_i32_2 = arith.constant 0 : i32
    return %c0_i32, %c0_i32_0, %c0_i32_1 : i32, i32, i32
  }
  func.func @transform_20(%arg0: i32) -> (i32, i32, i32) {
    %c0_i32 = arith.constant 0 : i32
    %c0_i32_0 = arith.constant 0 : i32
    %c0_i32_1 = arith.constant 0 : i32
    %c0_i32_2 = arith.constant 0 : i32
    return %c0_i32, %c0_i32_0, %c0_i32_1 : i32, i32, i32
  }
  func.func @transform_21(%arg0: i32) -> (i32, i32, i32) {
    %c0_i32 = arith.constant 0 : i32
    %c0_i32_0 = arith.constant 0 : i32
    %c0_i32_1 = arith.constant 0 : i32
    %c0_i32_2 = arith.constant 0 : i32
    return %c0_i32, %c0_i32_0, %c0_i32_1 : i32, i32, i32
  }
  func.func @transform_22(%arg0: i32) -> (i32, i32) {
    %c0_i32 = arith.constant 0 : i32
    %c0_i32_0 = arith.constant 0 : i32
    %c0_i32_1 = arith.constant 0 : i32
    return %c0_i32, %c0_i32_0 : i32, i32
  }
  func.func @transform_23(%arg0: i32) -> (i32, i32) {
    %c0_i32 = arith.constant 0 : i32
    %c0_i32_0 = arith.constant 0 : i32
    %c0_i32_1 = arith.constant 0 : i32
    return %c0_i32, %c0_i32_0 : i32, i32
  }
  func.func @transform_24(%arg0: i32) -> (i32, i32) {
    %c0_i32 = arith.constant 0 : i32
    %c0_i32_0 = arith.constant 0 : i32
    return %arg0, %c0_i32 : i32, i32
  }
}

</mosaic_0001>

<llo_original>
// kernel: tpu_custom_call.1
$region0: #{tpu_custom_call.1}
  #allocation0 [shape = 'u32[]', space=smem, size = 0x4, offset = 0x4, fixed_abs, tag = 'smem constant byte address 0x4 - core index']
  #allocation1 [shape = 'u32[144,128]{1,0:T(1,128)}', space=vmem, size = 0x12000, scoped, tag = 'internal scratch']
  %s0 = inlined_call_operand.hbm [shape: f32[16,128], index: 0, kind: input, shape index: {}]
  %s1 = inlined_call_operand.hbm [shape: f32[5,128], index: 1, kind: input, shape index: {}]
  %s2 = inlined_call_operand.hbm [shape: f32[128,128], index: 2, kind: input, shape index: {}]
  %s3 = inlined_call_operand.hbm [shape: f32[1,128], index: 3, kind: input, shape index: {}]
  %s4 = inlined_call_operand.hbm [shape: f32[2,128,384], index: 4, kind: input, shape index: {}]
  %s5 = inlined_call_operand.vmem [shape: f32[2,1,384], index: 5, kind: input, shape index: {}]
  %s6 = inlined_call_operand.hbm [shape: f32[2,128,128], index: 6, kind: input, shape index: {}]
  %s7 = inlined_call_operand.vmem [shape: f32[2,1,128], index: 7, kind: input, shape index: {}]
  %s8 = inlined_call_operand.hbm [shape: f32[2,128,128], index: 8, kind: input, shape index: {}]
  %s9 = inlined_call_operand.vmem [shape: f32[2,1,128], index: 9, kind: input, shape index: {}]
  %s10 = inlined_call_operand.hbm [shape: f32[2,128,128], index: 10, kind: input, shape index: {}]
  %s11 = inlined_call_operand.vmem [shape: f32[2,1,128], index: 11, kind: input, shape index: {}]
  %s12 = inlined_call_operand.hbm [shape: f32[2,128,256], index: 12, kind: input, shape index: {}]
  %s13 = inlined_call_operand.vmem [shape: f32[2,1,256], index: 13, kind: input, shape index: {}]
  %s14 = inlined_call_operand.hbm [shape: f32[2,256,128], index: 14, kind: input, shape index: {}]
  %s15 = inlined_call_operand.vmem [shape: f32[2,1,128], index: 15, kind: input, shape index: {}]
  %s16 = inlined_call_operand.vmem [shape: f32[2,1,128], index: 16, kind: input, shape index: {}]
  %s17 = inlined_call_operand.vmem [shape: f32[2,1,128], index: 17, kind: input, shape index: {}]
  %s18 = inlined_call_operand.vmem [shape: f32[2,1,128], index: 18, kind: input, shape index: {}]
  %s19 = inlined_call_operand.vmem [shape: f32[2,1,128], index: 19, kind: input, shape index: {}]
  %s20 = inlined_call_operand.vmem [shape: f32[2,1,128], index: 20, kind: input, shape index: {}]
  %s21 = inlined_call_operand.vmem [shape: f32[2,1,128], index: 21, kind: input, shape index: {}]
  %s22 = inlined_call_operand.hbm [shape: f32[128,128], index: 22, kind: input, shape index: {}]
  %s23 = inlined_call_operand.vmem [shape: f32[1,128], index: 23, kind: input, shape index: {}]
  %s24 = inlined_call_operand.hbm [shape: f32[80,128], index: 24, kind: output, shape index: {}]
  %s25 = sld [smem:[#allocation0]]
  $region173: #{tpu_custom_call.1} parent=0
    _
  %s27 = ssub.s32 1, %s25
  %s28 = scalar_select 0, %s27, %s25
  $region1: #{tpu_custom_call.1} parent=0
    #allocation2 [shape = 'u8[8192]{0}', space=vmem, size = 0x2000, scoped, tag = 'input window, operand 0']
    #allocation3 [shape = 's32[2]{0}', space=sflag, size = 0x8, scoped, tag = 'scoped memory for tpu_custom_call.1']
    #allocation4 [shape = 's32[2]{0}', space=sflag, size = 0x8, scoped, tag = 'scoped memory for tpu_custom_call.1']
    #allocation5 [shape = 'u8[4096]{0}', space=vmem, size = 0x1000, scoped, tag = 'input window, operand 1, single buffered']
    #allocation6 [shape = 's32[1]{0}', space=sflag, size = 0x4, scoped, tag = 'scoped memory for tpu_custom_call.1']
    #allocation7 [shape = 'u8[65536]{0}', space=vmem, size = 0x10000, scoped, tag = 'input window, operand 2, single buffered']
    #allocation8 [shape = 'u8[512]{0}', space=vmem, size = 0x400, scoped, tag = 'input window, operand 3, single buffered']
    #allocation9 [shape = 's32[1]{0}', space=sflag, size = 0x4, scoped, tag = 'scoped memory for tpu_custom_call.1']
    #allocation10 [shape = 'u8[393216]{0}', space=vmem, size = 0x60000, scoped, tag = 'input window, operand 4, single buffered']
    #allocation11 [shape = 'u8[131072]{0}', space=vmem, size = 0x20000, scoped, tag = 'input window, operand 6, single buffered']
    #allocation12 [shape = 's32[1]{0}', space=sflag, size = 0x4, scoped, tag = 'scoped memory for tpu_custom_call.1']
    #allocation13 [shape = 'u8[131072]{0}', space=vmem, size = 0x20000, scoped, tag = 'input window, operand 8, single buffered']
    #allocation14 [shape = 'u8[131072]{0}', space=vmem, size = 0x20000, scoped, tag = 'input window, operand 10, single buffered']
    #allocation15 [shape = 's32[1]{0}', space=sflag, size = 0x4, scoped, tag = 'scoped memory for tpu_custom_call.1']
    #allocation16 [shape = 'u8[262144]{0}', space=vmem, size = 0x40000, scoped, tag = 'input window, operand 12, single buffered']
    #allocation17 [shape = 'u8[262144]{0}', space=vmem, size = 0x40000, scoped, tag = 'input window, operand 14, single buffered']
    #allocation18 [shape = 's32[1]{0}', space=sflag, size = 0x4, scoped, tag = 'scoped memory for tpu_custom_call.1']
    #allocation19 [shape = 'u8[65536]{0}', space=vmem, size = 0x10000, scoped, tag = 'input window, operand 22, single buffered']
    #allocation20 [shape = 'u8[40960]{0}', space=vmem, size = 0xa000, scoped, tag = 'output window, operand 0']
    %29 = vsyncpa [#allocation3], 0
    %s30 = scalar_lea.sflag [#allocation3], 1
    %31 = vsyncpa %s30, 0
    %32 = vsyncpa [#allocation6], 0
    %33 = vsyncpa [#allocation9], 0
    %34 = vsyncpa [#allocation12], 0
    %35 = vsyncpa [#allocation15], 0
    %36 = vsyncpa [#allocation18], 0
    %37 = vsyncpa [#allocation4], 0
    %s38 = scalar_lea.sflag [#allocation4], 1
    %39 = vsyncpa %s38, 0
    loop: start=0, step=1, limit=4
    $region2: #{tpu_custom_call.1} parent=1 // loop_pre_header
      _
    $region3: #{tpu_custom_call.1} parent=1 // loop_header
      %s41 = sphi 0, %s45
      %p42 = scmp.ge.s32.totalorder %s41, 4
      %s51 = sphi 0, %s53
      %s54 = sphi 0, %s51
      %s55 = sphi 0, %s54
      %s71 = sphi 0, %s55
      %s75 = sphi 0, %s75
      %s77 = sphi 0, %s75
      %s78 = sphi 0, %s77
      %s92 = sphi 0, %s78
      %s96 = sphi 0, %s96
      %s98 = sphi 0, %s96
      %s99 = sphi 0, %s98
      %s113 = sphi 0, %s99
      %s117 = sphi 0, %s117
      %s119 = sphi 0, %s117
      %s120 = sphi 0, %s119
      %s134 = sphi 0, %s120
      %s138 = sphi 0, %s138
      %s140 = sphi 0, %s138
      %s141 = sphi 0, %s140
      %s155 = sphi 0, %s141
      %s159 = sphi 0, %s159
      %s161 = sphi 0, %s159
      %s162 = sphi 0, %s161
      %s176 = sphi 0, %s162
      %s180 = sphi 0, %s180
      %s182 = sphi 0, %s180
      %s183 = sphi 0, %s182
      %s197 = sphi 0, %s183
      %s201 = sphi 0, %s201
      %s203 = sphi 0, %s201
      %s204 = sphi 0, %s203
      %s218 = sphi 0, %s204
      %s222 = sphi 0, %s222
      %s224 = sphi 0, %s222
      %s225 = sphi 0, %s224
      %s239 = sphi 0, %s225
      %s243 = sphi 0, %s243
      %s245 = sphi 0, %s243
      %s246 = sphi 0, %s245
      %s260 = sphi 0, %s246
      %s264 = sphi 0, %s264
      %s266 = sphi 0, %s264
      %s267 = sphi 0, %s266
      %s281 = sphi 0, %s267
      %s285 = sphi 0, %s285
      %s287 = sphi 0, %s285
      %s288 = sphi 0, %s287
      %s302 = sphi 0, %s288
      %s306 = sphi 0, %s306
      %s308 = sphi 0, %s306
      %s309 = sphi 0, %s308
      %s323 = sphi 0, %s309
      %s327 = sphi 0, %s327
      %s329 = sphi 0, %s327
      %s330 = sphi 0, %s329
      %s344 = sphi 0, %s330
      %s348 = sphi 0, %s348
      %s350 = sphi 0, %s348
      %s351 = sphi 0, %s350
      %s365 = sphi 0, %s351
      %s369 = sphi 0, %s369
      %s371 = sphi 0, %s369
      %s372 = sphi 0, %s371
      %s386 = sphi 0, %s372
      %s390 = sphi 0, %s390
      %s392 = sphi 0, %s390
      %s393 = sphi 0, %s392
      %s407 = sphi 0, %s393
      %s411 = sphi 0, %s411
      %s413 = sphi 0, %s411
      %s414 = sphi 0, %s413
      %s428 = sphi 0, %s414
      %s432 = sphi 0, %s432
      %s434 = sphi 0, %s432
      %s435 = sphi 0, %s434
      %s449 = sphi 0, %s435
      %s453 = sphi 0, %s453
      %s455 = sphi 0, %s453
      %s456 = sphi 0, %s455
      %s470 = sphi 0, %s456
      %s474 = sphi 0, %s474
      %s476 = sphi 0, %s474
      %s477 = sphi 0, %s476
      %s491 = sphi 0, %s477
      %s495 = sphi 0, %s495
      %s497 = sphi 0, %s495
      %s498 = sphi 0, %s497
      %s512 = sphi 0, %s498
      %s516 = sphi 0, %s516
      %s518 = sphi 0, %s516
      %s519 = sphi 0, %s518
      %s533 = sphi 0, %s519
      %s537 = sphi 0, %s537
      %s539 = sphi 0, %s537
      %s540 = sphi 0, %s539
      %s554 = sphi 0, %s540
      %s560 = sphi 0, %s562
      %s563 = sphi 0, %s560
      %s564 = sphi 0, %s563
      %s580 = sphi 0, %s564
    $region4: #{tpu_custom_call.1} parent=1 // loop_header_branch
      %44 = sbr.rel (%p42) target = $region8
    $region5: #{tpu_custom_call.1} parent=1 // loop_body
      %s46 = ssub.s32 %s41, 1
      %s47 = ssub.s32 %s41, 2
      %s48 = sadd.s32 %s41, 1
      %s49 = ssub.s32 %s41, %s48
      %p50 = scmp.eq.s32.totalorder %s49, 0
      %s52 = sadd.s32 %s51, 1
      %s53 = scalar_select %p50, %s51, %s52
      %p56 = pneg %p50
      %p57 = scmp.eq.s32.totalorder %s41, 1
      %p58 = por %p56, %p57
      %p59 = scmp.ne.s32.totalorder %s51, %s54
      %p60 = scmp.eq.s32.totalorder %s41, 0
      %p61 = por %p59, %p60
      %p62 = scmp.ne.s32.totalorder %s51, %s54
      %p63 = scmp.eq.s32.totalorder %s46, 1
      %p64 = por %p62, %p63
      %p65 = scmp.ne.s32.totalorder %s54, %s55
      %p66 = scmp.eq.s32.totalorder %s46, 0
      %p67 = por %p65, %p66
      %p68 = scmp.ne.s32.totalorder %s54, %s55
      %p69 = scmp.eq.s32.totalorder %s47, 1
      %p70 = por %p68, %p69
      %p72 = scmp.ne.s32.totalorder %s55, %s71
      %p73 = scmp.eq.s32.totalorder %s47, 0
      %p74 = por %p72, %p73
      %s76 = sadd.s32 %s75, 1
      %p79 = scmp.eq.s32.totalorder %s41, 1
      %p80 = scmp.ne.s32.totalorder %s75, %s77
      %p81 = scmp.eq.s32.totalorder %s41, 0
      %p82 = por %p80, %p81
      %p83 = scmp.ne.s32.totalorder %s75, %s77
      %p84 = scmp.eq.s32.totalorder %s46, 1
      %p85 = por %p83, %p84
      %p86 = scmp.ne.s32.totalorder %s77, %s78
      %p87 = scmp.eq.s32.totalorder %s46, 0
      %p88 = por %p86, %p87
      %p89 = scmp.ne.s32.totalorder %s77, %s78
      %p90 = scmp.eq.s32.totalorder %s47, 1
      %p91 = por %p89, %p90
      %p93 = scmp.ne.s32.totalorder %s78, %s92
      %p94 = scmp.eq.s32.totalorder %s47, 0
      %p95 = por %p93, %p94
      %s97 = sadd.s32 %s96, 1
      %p100 = scmp.eq.s32.totalorder %s41, 1
      %p101 = scmp.ne.s32.totalorder %s96, %s98
      %p102 = scmp.eq.s32.totalorder %s41, 0
      %p103 = por %p101, %p102
      %p104 = scmp.ne.s32.totalorder %s96, %s98
      %p105 = scmp.eq.s32.totalorder %s46, 1
      %p106 = por %p104, %p105
      %p107 = scmp.ne.s32.totalorder %s98, %s99
      %p108 = scmp.eq.s32.totalorder %s46, 0
      %p109 = por %p107, %p108
      %p110 = scmp.ne.s32.totalorder %s98, %s99
      %p111 = scmp.eq.s32.totalorder %s47, 1
      %p112 = por %p110, %p111
      %p114 = scmp.ne.s32.totalorder %s99, %s113
      %p115 = scmp.eq.s32.totalorder %s47, 0
      %p116 = por %p114, %p115
      %s118 = sadd.s32 %s117, 1
      %p121 = scmp.eq.s32.totalorder %s41, 1
      %p122 = scmp.ne.s32.totalorder %s117, %s119
      %p123 = scmp.eq.s32.totalorder %s41, 0
      %p124 = por %p122, %p123
      %p125 = scmp.ne.s32.totalorder %s117, %s119
      %p126 = scmp.eq.s32.totalorder %s46, 1
      %p127 = por %p125, %p126
      %p128 = scmp.ne.s32.totalorder %s119, %s120
      %p129 = scmp.eq.s32.totalorder %s46, 0
      %p130 = por %p128, %p129
      %p131 = scmp.ne.s32.totalorder %s119, %s120
      %p132 = scmp.eq.s32.totalorder %s47, 1
      %p133 = por %p131, %p132
      %p135 = scmp.ne.s32.totalorder %s120, %s134
      %p136 = scmp.eq.s32.totalorder %s47, 0
      %p137 = por %p135, %p136
      %s139 = sadd.s32 %s138, 1
      %p142 = scmp.eq.s32.totalorder %s41, 1
      %p143 = scmp.ne.s32.totalorder %s138, %s140
      %p144 = scmp.eq.s32.totalorder %s41, 0
      %p145 = por %p143, %p144
      %p146 = scmp.ne.s32.totalorder %s138, %s140
      %p147 = scmp.eq.s32.totalorder %s46, 1
      %p148 = por %p146, %p147
      %p149 = scmp.ne.s32.totalorder %s140, %s141
      %p150 = scmp.eq.s32.totalorder %s46, 0
      %p151 = por %p149, %p150
      %p152 = scmp.ne.s32.totalorder %s140, %s141
      %p153 = scmp.eq.s32.totalorder %s47, 1
      %p154 = por %p152, %p153
      %p156 = scmp.ne.s32.totalorder %s141, %s155
      %p157 = scmp.eq.s32.totalorder %s47, 0
      %p158 = por %p156, %p157
      %s160 = sadd.s32 %s159, 1
      %p163 = scmp.eq.s32.totalorder %s41, 1
      %p164 = scmp.ne.s32.totalorder %s159, %s161
      %p165 = scmp.eq.s32.totalorder %s41, 0
      %p166 = por %p164, %p165
      %p167 = scmp.ne.s32.totalorder %s159, %s161
      %p168 = scmp.eq.s32.totalorder %s46, 1
      %p169 = por %p167, %p168
      %p170 = scmp.ne.s32.totalorder %s161, %s162
      %p171 = scmp.eq.s32.totalorder %s46, 0
      %p172 = por %p170, %p171
      %p173 = scmp.ne.s32.totalorder %s161, %s162
      %p174 = scmp.eq.s32.totalorder %s47, 1
      %p175 = por %p173, %p174
      %p177 = scmp.ne.s32.totalorder %s162, %s176
      %p178 = scmp.eq.s32.totalorder %s47, 0
      %p179 = por %p177, %p178
      %s181 = sadd.s32 %s180, 1
      %p184 = scmp.eq.s32.totalorder %s41, 1
      %p185 = scmp.ne.s32.totalorder %s180, %s182
      %p186 = scmp.eq.s32.totalorder %s41, 0
      %p187 = por %p185, %p186
      %p188 = scmp.ne.s32.totalorder %s180, %s182
      %p189 = scmp.eq.s32.totalorder %s46, 1
      %p190 = por %p188, %p189
      %p191 = scmp.ne.s32.totalorder %s182, %s183
      %p192 = scmp.eq.s32.totalorder %s46, 0
      %p193 = por %p191, %p192
      %p194 = scmp.ne.s32.totalorder %s182, %s183
      %p195 = scmp.eq.s32.totalorder %s47, 1
      %p196 = por %p194, %p195
      %p198 = scmp.ne.s32.totalorder %s183, %s197
      %p199 = scmp.eq.s32.totalorder %s47, 0
      %p200 = por %p198, %p199
      %s202 = sadd.s32 %s201, 1
      %p205 = scmp.eq.s32.totalorder %s41, 1
      %p206 = scmp.ne.s32.totalorder %s201, %s203
      %p207 = scmp.eq.s32.totalorder %s41, 0
      %p208 = por %p206, %p207
      %p209 = scmp.ne.s32.totalorder %s201, %s203
      %p210 = scmp.eq.s32.totalorder %s46, 1
      %p211 = por %p209, %p210
      %p212 = scmp.ne.s32.totalorder %s203, %s204
      %p213 = scmp.eq.s32.totalorder %s46, 0
      %p214 = por %p212, %p213
      %p215 = scmp.ne.s32.totalorder %s203, %s204
      %p216 = scmp.eq.s32.totalorder %s47, 1
      %p217 = por %p215, %p216
      %p219 = scmp.ne.s32.totalorder %s204, %s218
      %p220 = scmp.eq.s32.totalorder %s47, 0
      %p221 = por %p219, %p220
      %s223 = sadd.s32 %s222, 1
      %p226 = scmp.eq.s32.totalorder %s41, 1
      %p227 = scmp.ne.s32.totalorder %s222, %s224
      %p228 = scmp.eq.s32.totalorder %s41, 0
      %p229 = por %p227, %p228
      %p230 = scmp.ne.s32.totalorder %s222, %s224
      %p231 = scmp.eq.s32.totalorder %s46, 1
      %p232 = por %p230, %p231
      %p233 = scmp.ne.s32.totalorder %s224, %s225
      %p234 = scmp.eq.s32.totalorder %s46, 0
      %p235 = por %p233, %p234
      %p236 = scmp.ne.s32.totalorder %s224, %s225
      %p237 = scmp.eq.s32.totalorder %s47, 1
      %p238 = por %p236, %p237
      %p240 = scmp.ne.s32.totalorder %s225, %s239
      %p241 = scmp.eq.s32.totalorder %s47, 0
      %p242 = por %p240, %p241
      %s244 = sadd.s32 %s243, 1
      %p247 = scmp.eq.s32.totalorder %s41, 1
      %p248 = scmp.ne.s32.totalorder %s243, %s245
      %p249 = scmp.eq.s32.totalorder %s41, 0
      %p250 = por %p248, %p249
      %p251 = scmp.ne.s32.totalorder %s243, %s245
      %p252 = scmp.eq.s32.totalorder %s46, 1
      %p253 = por %p251, %p252
      %p254 = scmp.ne.s32.totalorder %s245, %s246
      %p255 = scmp.eq.s32.totalorder %s46, 0
      %p256 = por %p254, %p255
      %p257 = scmp.ne.s32.totalorder %s245, %s246
      %p258 = scmp.eq.s32.totalorder %s47, 1
      %p259 = por %p257, %p258
      %p261 = scmp.ne.s32.totalorder %s246, %s260
      %p262 = scmp.eq.s32.totalorder %s47, 0
      %p263 = por %p261, %p262
      %s265 = sadd.s32 %s264, 1
      %p268 = scmp.eq.s32.totalorder %s41, 1
      %p269 = scmp.ne.s32.totalorder %s264, %s266
      %p270 = scmp.eq.s32.totalorder %s41, 0
      %p271 = por %p269, %p270
      %p272 = scmp.ne.s32.totalorder %s264, %s266
      %p273 = scmp.eq.s32.totalorder %s46, 1
      %p274 = por %p272, %p273
      %p275 = scmp.ne.s32.totalorder %s266, %s267
      %p276 = scmp.eq.s32.totalorder %s46, 0
      %p277 = por %p275, %p276
      %p278 = scmp.ne.s32.totalorder %s266, %s267
      %p279 = scmp.eq.s32.totalorder %s47, 1
      %p280 = por %p278, %p279
      %p282 = scmp.ne.s32.totalorder %s267, %s281
      %p283 = scmp.eq.s32.totalorder %s47, 0
      %p284 = por %p282, %p283
      %s286 = sadd.s32 %s285, 1
      %p289 = scmp.eq.s32.totalorder %s41, 1
      %p290 = scmp.ne.s32.totalorder %s285, %s287
      %p291 = scmp.eq.s32.totalorder %s41, 0
      %p292 = por %p290, %p291
      %p293 = scmp.ne.s32.totalorder %s285, %s287
      %p294 = scmp.eq.s32.totalorder %s46, 1
      %p295 = por %p293, %p294
      %p296 = scmp.ne.s32.totalorder %s287, %s288
      %p297 = scmp.eq.s32.totalorder %s46, 0
      %p298 = por %p296, %p297
      %p299 = scmp.ne.s32.totalorder %s287, %s288
      %p300 = scmp.eq.s32.totalorder %s47, 1
      %p301 = por %p299, %p300
      %p303 = scmp.ne.s32.totalorder %s288, %s302
      %p304 = scmp.eq.s32.totalorder %s47, 0
      %p305 = por %p303, %p304
      %s307 = sadd.s32 %s306, 1
      %p310 = scmp.eq.s32.totalorder %s41, 1
      %p311 = scmp.ne.s32.totalorder %s306, %s308
      %p312 = scmp.eq.s32.totalorder %s41, 0
      %p313 = por %p311, %p312
      %p314 = scmp.ne.s32.totalorder %s306, %s308
      %p315 = scmp.eq.s32.totalorder %s46, 1
      %p316 = por %p314, %p315
      %p317 = scmp.ne.s32.totalorder %s308, %s309
      %p318 = scmp.eq.s32.totalorder %s46, 0
      %p319 = por %p317, %p318
      %p320 = scmp.ne.s32.totalorder %s308, %s309
      %p321 = scmp.eq.s32.totalorder %s47, 1
      %p322 = por %p320, %p321
      %p324 = scmp.ne.s32.totalorder %s309, %s323
      %p325 = scmp.eq.s32.totalorder %s47, 0
      %p326 = por %p324, %p325
      %s328 = sadd.s32 %s327, 1
      %p331 = scmp.eq.s32.totalorder %s41, 1
      %p332 = scmp.ne.s32.totalorder %s327, %s329
      %p333 = scmp.eq.s32.totalorder %s41, 0
      %p334 = por %p332, %p333
      %p335 = scmp.ne.s32.totalorder %s327, %s329
      %p336 = scmp.eq.s32.totalorder %s46, 1
      %p337 = por %p335, %p336
      %p338 = scmp.ne.s32.totalorder %s329, %s330
      %p339 = scmp.eq.s32.totalorder %s46, 0
      %p340 = por %p338, %p339
      %p341 = scmp.ne.s32.totalorder %s329, %s330
      %p342 = scmp.eq.s32.totalorder %s47, 1
      %p343 = por %p341, %p342
      %p345 = scmp.ne.s32.totalorder %s330, %s344
      %p346 = scmp.eq.s32.totalorder %s47, 0
      %p347 = por %p345, %p346
      %s349 = sadd.s32 %s348, 1
      %p352 = scmp.eq.s32.totalorder %s41, 1
      %p353 = scmp.ne.s32.totalorder %s348, %s350
      %p354 = scmp.eq.s32.totalorder %s41, 0
      %p355 = por %p353, %p354
      %p356 = scmp.ne.s32.totalorder %s348, %s350
      %p357 = scmp.eq.s32.totalorder %s46, 1
      %p358 = por %p356, %p357
      %p359 = scmp.ne.s32.totalorder %s350, %s351
      %p360 = scmp.eq.s32.totalorder %s46, 0
      %p361 = por %p359, %p360
      %p362 = scmp.ne.s32.totalorder %s350, %s351
      %p363 = scmp.eq.s32.totalorder %s47, 1
      %p364 = por %p362, %p363
      %p366 = scmp.ne.s32.totalorder %s351, %s365
      %p367 = scmp.eq.s32.totalorder %s47, 0
      %p368 = por %p366, %p367
      %s370 = sadd.s32 %s369, 1
      %p373 = scmp.eq.s32.totalorder %s41, 1
      %p374 = scmp.ne.s32.totalorder %s369, %s371
      %p375 = scmp.eq.s32.totalorder %s41, 0
      %p376 = por %p374, %p375
      %p377 = scmp.ne.s32.totalorder %s369, %s371
      %p378 = scmp.eq.s32.totalorder %s46, 1
      %p379 = por %p377, %p378
      %p380 = scmp.ne.s32.totalorder %s371, %s372
      %p381 = scmp.eq.s32.totalorder %s46, 0
      %p382 = por %p380, %p381
      %p383 = scmp.ne.s32.totalorder %s371, %s372
      %p384 = scmp.eq.s32.totalorder %s47, 1
      %p385 = por %p383, %p384
      %p387 = scmp.ne.s32.totalorder %s372, %s386
      %p388 = scmp.eq.s32.totalorder %s47, 0
      %p389 = por %p387, %p388
      %s391 = sadd.s32 %s390, 1
      %p394 = scmp.eq.s32.totalorder %s41, 1
      %p395 = scmp.ne.s32.totalorder %s390, %s392
      %p396 = scmp.eq.s32.totalorder %s41, 0
      %p397 = por %p395, %p396
      %p398 = scmp.ne.s32.totalorder %s390, %s392
      %p399 = scmp.eq.s32.totalorder %s46, 1
      %p400 = por %p398, %p399
      %p401 = scmp.ne.s32.totalorder %s392, %s393
      %p402 = scmp.eq.s32.totalorder %s46, 0
      %p403 = por %p401, %p402
      %p404 = scmp.ne.s32.totalorder %s392, %s393
      %p405 = scmp.eq.s32.totalorder %s47, 1
      %p406 = por %p404, %p405
      %p408 = scmp.ne.s32.totalorder %s393, %s407
      %p409 = scmp.eq.s32.totalorder %s47, 0
      %p410 = por %p408, %p409
      %s412 = sadd.s32 %s411, 1
      %p415 = scmp.eq.s32.totalorder %s41, 1
      %p416 = scmp.ne.s32.totalorder %s411, %s413
      %p417 = scmp.eq.s32.totalorder %s41, 0
      %p418 = por %p416, %p417
      %p419 = scmp.ne.s32.totalorder %s411, %s413
      %p420 = scmp.eq.s32.totalorder %s46, 1
      %p421 = por %p419, %p420
      %p422 = scmp.ne.s32.totalorder %s413, %s414
      %p423 = scmp.eq.s32.totalorder %s46, 0
      %p424 = por %p422, %p423
      %p425 = scmp.ne.s32.totalorder %s413, %s414
      %p426 = scmp.eq.s32.totalorder %s47, 1
      %p427 = por %p425, %p426
      %p429 = scmp.ne.s32.totalorder %s414, %s428
      %p430 = scmp.eq.s32.totalorder %s47, 0
      %p431 = por %p429, %p430
      %s433 = sadd.s32 %s432, 1
      %p436 = scmp.eq.s32.totalorder %s41, 1
      %p437 = scmp.ne.s32.totalorder %s432, %s434
      %p438 = scmp.eq.s32.totalorder %s41, 0
      %p439 = por %p437, %p438
      %p440 = scmp.ne.s32.totalorder %s432, %s434
      %p441 = scmp.eq.s32.totalorder %s46, 1
      %p442 = por %p440, %p441
      %p443 = scmp.ne.s32.totalorder %s434, %s435
      %p444 = scmp.eq.s32.totalorder %s46, 0
      %p445 = por %p443, %p444
      %p446 = scmp.ne.s32.totalorder %s434, %s435
      %p447 = scmp.eq.s32.totalorder %s47, 1
      %p448 = por %p446, %p447
      %p450 = scmp.ne.s32.totalorder %s435, %s449
      %p451 = scmp.eq.s32.totalorder %s47, 0
      %p452 = por %p450, %p451
      %s454 = sadd.s32 %s453, 1
      %p457 = scmp.eq.s32.totalorder %s41, 1
      %p458 = scmp.ne.s32.totalorder %s453, %s455
      %p459 = scmp.eq.s32.totalorder %s41, 0
      %p460 = por %p458, %p459
      %p461 = scmp.ne.s32.totalorder %s453, %s455
      %p462 = scmp.eq.s32.totalorder %s46, 1
      %p463 = por %p461, %p462
      %p464 = scmp.ne.s32.totalorder %s455, %s456
      %p465 = scmp.eq.s32.totalorder %s46, 0
      %p466 = por %p464, %p465
      %p467 = scmp.ne.s32.totalorder %s455, %s456
      %p468 = scmp.eq.s32.totalorder %s47, 1
      %p469 = por %p467, %p468
      %p471 = scmp.ne.s32.totalorder %s456, %s470
      %p472 = scmp.eq.s32.totalorder %s47, 0
      %p473 = por %p471, %p472
      %s475 = sadd.s32 %s474, 1
      %p478 = scmp.eq.s32.totalorder %s41, 1
      %p479 = scmp.ne.s32.totalorder %s474, %s476
      %p480 = scmp.eq.s32.totalorder %s41, 0
      %p481 = por %p479, %p480
      %p482 = scmp.ne.s32.totalorder %s474, %s476
      %p483 = scmp.eq.s32.totalorder %s46, 1
      %p484 = por %p482, %p483
      %p485 = scmp.ne.s32.totalorder %s476, %s477
      %p486 = scmp.eq.s32.totalorder %s46, 0
      %p487 = por %p485, %p486
      %p488 = scmp.ne.s32.totalorder %s476, %s477
      %p489 = scmp.eq.s32.totalorder %s47, 1
      %p490 = por %p488, %p489
      %p492 = scmp.ne.s32.totalorder %s477, %s491
      %p493 = scmp.eq.s32.totalorder %s47, 0
      %p494 = por %p492, %p493
      %s496 = sadd.s32 %s495, 1
      %p499 = scmp.eq.s32.totalorder %s41, 1
      %p500 = scmp.ne.s32.totalorder %s495, %s497
      %p501 = scmp.eq.s32.totalorder %s41, 0
      %p502 = por %p500, %p501
      %p503 = scmp.ne.s32.totalorder %s495, %s497
      %p504 = scmp.eq.s32.totalorder %s46, 1
      %p505 = por %p503, %p504
      %p506 = scmp.ne.s32.totalorder %s497, %s498
      %p507 = scmp.eq.s32.totalorder %s46, 0
      %p508 = por %p506, %p507
      %p509 = scmp.ne.s32.totalorder %s497, %s498
      %p510 = scmp.eq.s32.totalorder %s47, 1
      %p511 = por %p509, %p510
      %p513 = scmp.ne.s32.totalorder %s498, %s512
      %p514 = scmp.eq.s32.totalorder %s47, 0
      %p515 = por %p513, %p514
      %s517 = sadd.s32 %s516, 1
      %p520 = scmp.eq.s32.totalorder %s41, 1
      %p521 = scmp.ne.s32.totalorder %s516, %s518
      %p522 = scmp.eq.s32.totalorder %s41, 0
      %p523 = por %p521, %p522
      %p524 = scmp.ne.s32.totalorder %s516, %s518
      %p525 = scmp.eq.s32.totalorder %s46, 1
      %p526 = por %p524, %p525
      %p527 = scmp.ne.s32.totalorder %s518, %s519
      %p528 = scmp.eq.s32.totalorder %s46, 0
      %p529 = por %p527, %p528
      %p530 = scmp.ne.s32.totalorder %s518, %s519
      %p531 = scmp.eq.s32.totalorder %s47, 1
      %p532 = por %p530, %p531
      %p534 = scmp.ne.s32.totalorder %s519, %s533
      %p535 = scmp.eq.s32.totalorder %s47, 0
      %p536 = por %p534, %p535
      %s538 = sadd.s32 %s537, 1
      %p541 = scmp.eq.s32.totalorder %s41, 1
      %p542 = scmp.ne.s32.totalorder %s537, %s539
      %p543 = scmp.eq.s32.totalorder %s41, 0
      %p544 = por %p542, %p543
      %p545 = scmp.ne.s32.totalorder %s537, %s539
      %p546 = scmp.eq.s32.totalorder %s46, 1
      %p547 = por %p545, %p546
      %p548 = scmp.ne.s32.totalorder %s539, %s540
      %p549 = scmp.eq.s32.totalorder %s46, 0
      %p550 = por %p548, %p549
      %p551 = scmp.ne.s32.totalorder %s539, %s540
      %p552 = scmp.eq.s32.totalorder %s47, 1
      %p553 = por %p551, %p552
      %p555 = scmp.ne.s32.totalorder %s540, %s554
      %p556 = scmp.eq.s32.totalorder %s47, 0
      %p557 = por %p555, %p556
      %s558 = ssub.s32 %s41, %s48
      %p559 = scmp.eq.s32.totalorder %s558, 0
      %s561 = sadd.s32 %s560, 1
      %s562 = scalar_select %p559, %s560, %s561
      %p565 = pneg %p559
      %p566 = scmp.eq.s32.totalorder %s41, 1
      %p567 = por %p565, %p566
      %p568 = scmp.ne.s32.totalorder %s560, %s563
      %p569 = scmp.eq.s32.totalorder %s41, 0
      %p570 = por %p568, %p569
      %p571 = scmp.ne.s32.totalorder %s560, %s563
      %p572 = scmp.eq.s32.totalorder %s46, 1
      %p573 = por %p571, %p572
      %p574 = scmp.ne.s32.totalorder %s563, %s564
      %p575 = scmp.eq.s32.totalorder %s46, 0
      %p576 = por %p574, %p575
      %p577 = scmp.ne.s32.totalorder %s563, %s564
      %p578 = scmp.eq.s32.totalorder %s47, 1
      %p579 = por %p577, %p578
      %p581 = scmp.ne.s32.totalorder %s564, %s580
      %p582 = scmp.eq.s32.totalorder %s47, 0
      %p583 = por %p581, %p582
      %p584 = scmp.le.s32.totalorder 1, %s41
      %p585 = scmp.lt.s32.totalorder %s41, 3
      %p586 = pnand %p584, %p585
      %p587 = pneg %p586
      // Predicated region
      $region9: #{tpu_custom_call.1} parent=5 // pred_check
        _
      $region10: #{tpu_custom_call.1} parent=5 // pred_check_branch
        %589 = sbr.rel (%p586) target = $region12
      $region11: #{tpu_custom_call.1} parent=5 // pred_region
        %s590 = ssub.s32 %s41, 1
        // Predicated region
        $region13: #{tpu_custom_call.1} parent=11 // pred_check
          %p591 = pneg %p88
        $region14: #{tpu_custom_call.1} parent=11 // pred_check_branch
          %593 = sbr.rel (%p591) target = $region16
        $region15: #{tpu_custom_call.1} parent=11 // pred_region
          %s595 = ssub.s32 128, 128
          %596 = vsyncadd [#allocation6], %s595
          %s598 = sshll.u32 [#allocation5], 4
          %s599 = int_to_ptr.vmem [resolvable:$true] %s598
          %601 = dma.hbm_to_vmem [thread:$0]  %s1, 128, %s599, [#allocation6]
        $region16: #{tpu_custom_call.1} parent=11 // pred_fallthru
          _
        // Predicated region
        $region17: #{tpu_custom_call.1} parent=11 // pred_check
          %p602 = pneg %p109
        $region18: #{tpu_custom_call.1} parent=11 // pred_check_branch
          %604 = sbr.rel (%p602) target = $region20
        $region19: #{tpu_custom_call.1} parent=11 // pred_region
          %s606 = ssub.s32 2048, 2048
          %607 = vsyncadd [#allocation6], %s606
          %s608 = sshll.u32 [#allocation7], 4
          %s609 = int_to_ptr.vmem [resolvable:$true] %s608
          %614 = dma.hbm_to_vmem [thread:$0]  %s2, 2048, %s609, [#allocation6], 128, 128, 8
        $region20: #{tpu_custom_call.1} parent=11 // pred_fallthru
          _
        // Predicated region
        $region21: #{tpu_custom_call.1} parent=11 // pred_check
          %p615 = pneg %p130
        $region22: #{tpu_custom_call.1} parent=11 // pred_check_branch
          %617 = sbr.rel (%p615) target = $region24
        $region23: #{tpu_custom_call.1} parent=11 // pred_region
          %s619 = ssub.s32 16, 16
          %620 = vsyncadd [#allocation9], %s619
          %s622 = sshll.u32 [#allocation8], 4
          %s623 = int_to_ptr.vmem [resolvable:$true] %s622
          %625 = dma.hbm_to_vmem [thread:$0]  %s3, 16, %s623, [#allocation9]
        $region24: #{tpu_custom_call.1} parent=11 // pred_fallthru
          _
        // Predicated region
        $region25: #{tpu_custom_call.1} parent=11 // pred_check
          %p626 = pneg %p151
        $region26: #{tpu_custom_call.1} parent=11 // pred_check_branch
          %628 = sbr.rel (%p626) target = $region28
        $region27: #{tpu_custom_call.1} parent=11 // pred_region
          %s630 = ssub.s32 12288, 12288
          %631 = vsyncadd [#allocation9], %s630
          %s632 = sshll.u32 [#allocation10], 4
          %s633 = int_to_ptr.vmem [resolvable:$true] %s632
          %638 = dma.hbm_to_vmem [thread:$0]  %s4, 12288, %s633, [#allocation9], 384, 384, 24
        $region28: #{tpu_custom_call.1} parent=11 // pred_fallthru
          _
        // Predicated region
        $region29: #{tpu_custom_call.1} parent=11 // pred_check
          %p639 = pneg %p172
        $region30: #{tpu_custom_call.1} parent=11 // pred_check_branch
          %641 = sbr.rel (%p639) target = $region32
        $region31: #{tpu_custom_call.1} parent=11 // pred_region
          _
        $region32: #{tpu_custom_call.1} parent=11 // pred_fallthru
          _
        // Predicated region
        $region33: #{tpu_custom_call.1} parent=11 // pred_check
          %p642 = pneg %p193
        $region34: #{tpu_custom_call.1} parent=11 // pred_check_branch
          %644 = sbr.rel (%p642) target = $region36
        $region35: #{tpu_custom_call.1} parent=11 // pred_region
          %s646 = ssub.s32 4096, 4096
          %647 = vsyncadd [#allocation12], %s646
          %s648 = sshll.u32 [#allocation11], 4
          %s649 = int_to_ptr.vmem [resolvable:$true] %s648
          %654 = dma.hbm_to_vmem [thread:$0]  %s6, 4096, %s649, [#allocation12], 128, 128, 8
        $region36: #{tpu_custom_call.1} parent=11 // pred_fallthru
          _
        // Predicated region
        $region37: #{tpu_custom_call.1} parent=11 // pred_check
          %p655 = pneg %p214
        $region38: #{tpu_custom_call.1} parent=11 // pred_check_branch
          %657 = sbr.rel (%p655) target = $region40
        $region39: #{tpu_custom_call.1} parent=11 // pred_region
          _
        $region40: #{tpu_custom_call.1} parent=11 // pred_fallthru
          _
        // Predicated region
        $region41: #{tpu_custom_call.1} parent=11 // pred_check
          %p658 = pneg %p235
        $region42: #{tpu_custom_call.1} parent=11 // pred_check_branch
          %660 = sbr.rel (%p658) target = $region44
        $region43: #{tpu_custom_call.1} parent=11 // pred_region
          %s662 = ssub.s32 4096, 4096
          %663 = vsyncadd [#allocation12], %s662
          %s664 = sshll.u32 [#allocation13], 4
          %s665 = int_to_ptr.vmem [resolvable:$true] %s664
          %670 = dma.hbm_to_vmem [thread:$0]  %s8, 4096, %s665, [#allocation12], 128, 128, 8
        $region44: #{tpu_custom_call.1} parent=11 // pred_fallthru
          _
        // Predicated region
        $region45: #{tpu_custom_call.1} parent=11 // pred_check
          %p671 = pneg %p256
        $region46: #{tpu_custom_call.1} parent=11 // pred_check_branch
          %673 = sbr.rel (%p671) target = $region48
        $region47: #{tpu_custom_call.1} parent=11 // pred_region
          _
        $region48: #{tpu_custom_call.1} parent=11 // pred_fallthru
          _
        // Predicated region
        $region49: #{tpu_custom_call.1} parent=11 // pred_check
          %p674 = pneg %p277
        $region50: #{tpu_custom_call.1} parent=11 // pred_check_branch
          %676 = sbr.rel (%p674) target = $region52
        $region51: #{tpu_custom_call.1} parent=11 // pred_region
          %s678 = ssub.s32 4096, 4096
          %679 = vsyncadd [#allocation15], %s678
          %s680 = sshll.u32 [#allocation14], 4
          %s681 = int_to_ptr.vmem [resolvable:$true] %s680
          %686 = dma.hbm_to_vmem [thread:$0]  %s10, 4096, %s681, [#allocation15], 128, 128, 8
        $region52: #{tpu_custom_call.1} parent=11 // pred_fallthru
          _
        // Predicated region
        $region53: #{tpu_custom_call.1} parent=11 // pred_check
          %p687 = pneg %p298
        $region54: #{tpu_custom_call.1} parent=11 // pred_check_branch
          %689 = sbr.rel (%p687) target = $region56
        $region55: #{tpu_custom_call.1} parent=11 // pred_region
          _
        $region56: #{tpu_custom_call.1} parent=11 // pred_fallthru
          _
        // Predicated region
        $region57: #{tpu_custom_call.1} parent=11 // pred_check
          %p690 = pneg %p319
        $region58: #{tpu_custom_call.1} parent=11 // pred_check_branch
          %692 = sbr.rel (%p690) target = $region60
        $region59: #{tpu_custom_call.1} parent=11 // pred_region
          %s694 = ssub.s32 8192, 8192
          %695 = vsyncadd [#allocation15], %s694
          %s696 = sshll.u32 [#allocation16], 4
          %s697 = int_to_ptr.vmem [resolvable:$true] %s696
          %702 = dma.hbm_to_vmem [thread:$0]  %s12, 8192, %s697, [#allocation15], 256, 256, 16
        $region60: #{tpu_custom_call.1} parent=11 // pred_fallthru
          _
        // Predicated region
        $region61: #{tpu_custom_call.1} parent=11 // pred_check
          %p703 = pneg %p340
        $region62: #{tpu_custom_call.1} parent=11 // pred_check_branch
          %705 = sbr.rel (%p703) target = $region64
        $region63: #{tpu_custom_call.1} parent=11 // pred_region
          _
        $region64: #{tpu_custom_call.1} parent=11 // pred_fallthru
          _
        // Predicated region
        $region65: #{tpu_custom_call.1} parent=11 // pred_check
          %p706 = pneg %p361
        $region66: #{tpu_custom_call.1} parent=11 // pred_check_branch
          %708 = sbr.rel (%p706) target = $region68
        $region67: #{tpu_custom_call.1} parent=11 // pred_region
          %s710 = ssub.s32 8192, 8192
          %711 = vsyncadd [#allocation18], %s710
          %s712 = sshll.u32 [#allocation17], 4
          %s713 = int_to_ptr.vmem [resolvable:$true] %s712
          %718 = dma.hbm_to_vmem [thread:$0]  %s14, 8192, %s713, [#allocation18], 128, 128, 8
        $region68: #{tpu_custom_call.1} parent=11 // pred_fallthru
          _
        // Predicated region
        $region69: #{tpu_custom_call.1} parent=11 // pred_check
          %p719 = pneg %p382
        $region70: #{tpu_custom_call.1} parent=11 // pred_check_branch
          %721 = sbr.rel (%p719) target = $region72
        $region71: #{tpu_custom_call.1} parent=11 // pred_region
          _
        $region72: #{tpu_custom_call.1} parent=11 // pred_fallthru
          _
        // Predicated region
        $region73: #{tpu_custom_call.1} parent=11 // pred_check
          %p722 = pneg %p403
        $region74: #{tpu_custom_call.1} parent=11 // pred_check_branch
          %724 = sbr.rel (%p722) target = $region76
        $region75: #{tpu_custom_call.1} parent=11 // pred_region
          _
        $region76: #{tpu_custom_call.1} parent=11 // pred_fallthru
          _
        // Predicated region
        $region77: #{tpu_custom_call.1} parent=11 // pred_check
          %p725 = pneg %p424
        $region78: #{tpu_custom_call.1} parent=11 // pred_check_branch
          %727 = sbr.rel (%p725) target = $region80
        $region79: #{tpu_custom_call.1} parent=11 // pred_region
          _
        $region80: #{tpu_custom_call.1} parent=11 // pred_fallthru
          _
        // Predicated region
        $region81: #{tpu_custom_call.1} parent=11 // pred_check
          %p728 = pneg %p445
        $region82: #{tpu_custom_call.1} parent=11 // pred_check_branch
          %730 = sbr.rel (%p728) target = $region84
        $region83: #{tpu_custom_call.1} parent=11 // pred_region
          _
        $region84: #{tpu_custom_call.1} parent=11 // pred_fallthru
          _
        // Predicated region
        $region85: #{tpu_custom_call.1} parent=11 // pred_check
          %p731 = pneg %p466
        $region86: #{tpu_custom_call.1} parent=11 // pred_check_branch
          %733 = sbr.rel (%p731) target = $region88
        $region87: #{tpu_custom_call.1} parent=11 // pred_region
          _
        $region88: #{tpu_custom_call.1} parent=11 // pred_fallthru
          _
        // Predicated region
        $region89: #{tpu_custom_call.1} parent=11 // pred_check
          %p734 = pneg %p487
        $region90: #{tpu_custom_call.1} parent=11 // pred_check_branch
          %736 = sbr.rel (%p734) target = $region92
        $region91: #{tpu_custom_call.1} parent=11 // pred_region
          _
        $region92: #{tpu_custom_call.1} parent=11 // pred_fallthru
          _
        // Predicated region
        $region93: #{tpu_custom_call.1} parent=11 // pred_check
          %p737 = pneg %p508
        $region94: #{tpu_custom_call.1} parent=11 // pred_check_branch
          %739 = sbr.rel (%p737) target = $region96
        $region95: #{tpu_custom_call.1} parent=11 // pred_region
          _
        $region96: #{tpu_custom_call.1} parent=11 // pred_fallthru
          _
        // Predicated region
        $region97: #{tpu_custom_call.1} parent=11 // pred_check
          %p740 = pneg %p529
        $region98: #{tpu_custom_call.1} parent=11 // pred_check_branch
          %742 = sbr.rel (%p740) target = $region100
        $region99: #{tpu_custom_call.1} parent=11 // pred_region
          %s744 = ssub.s32 2048, 2048
          %745 = vsyncadd [#allocation18], %s744
          %s746 = sshll.u32 [#allocation19], 4
          %s747 = int_to_ptr.vmem [resolvable:$true] %s746
          %752 = dma.hbm_to_vmem [thread:$0]  %s22, 2048, %s747, [#allocation18], 128, 128, 8
        $region100: #{tpu_custom_call.1} parent=11 // pred_fallthru
          _
        // Predicated region
        $region101: #{tpu_custom_call.1} parent=11 // pred_check
          %p753 = pneg %p550
        $region102: #{tpu_custom_call.1} parent=11 // pred_check_branch
          %755 = sbr.rel (%p753) target = $region104
        $region103: #{tpu_custom_call.1} parent=11 // pred_region
          _
        $region104: #{tpu_custom_call.1} parent=11 // pred_fallthru
          _
      $region12: #{tpu_custom_call.1} parent=5 // pred_fallthru
        _
      %p756 = scmp.lt.s32.totalorder %s41, 2
      // Predicated region
      $region105: #{tpu_custom_call.1} parent=5 // pred_check
        %p757 = pneg %p756
      $region106: #{tpu_custom_call.1} parent=5 // pred_check_branch
        %759 = sbr.rel (%p757) target = $region108
      $region107: #{tpu_custom_call.1} parent=5 // pred_region
        // Predicated region
        $region109: #{tpu_custom_call.1} parent=107 // pred_check
          %p760 = pneg %p61
        $region110: #{tpu_custom_call.1} parent=107 // pred_check_branch
          %762 = sbr.rel (%p760) target = $region112
        $region111: #{tpu_custom_call.1} parent=107 // pred_region
          %s763 = sand.u32 %s51, 1
          %s764 = scalar_lea.sflag [#allocation3], %s763
          %s765 = sand.u32 %s51, 1
          %s766 = smul.addr %s765, 8
          %s767 = scalar_lea.vmem [#allocation2], %s766
          %s769 = ssub.s32 128, 128
          %770 = vsyncadd %s764, %s769
          %s771 = smul.addr %s41, 128
          %s772 = scalar_lea.hbm %s0, %s771
          %s774 = sshll.u32 %s767, 4
          %s775 = int_to_ptr.vmem [resolvable:$true] %s774
          %777 = dma.hbm_to_vmem [thread:$0]  %s772, 128, %s775, %s764
        $region112: #{tpu_custom_call.1} parent=107 // pred_fallthru
          _
      $region108: #{tpu_custom_call.1} parent=5 // pred_fallthru
        _
      %p778 = scmp.le.s32.totalorder 1, %s41
      %p779 = scmp.lt.s32.totalorder %s41, 3
      %p780 = pnand %p778, %p779
      %p781 = pneg %p780
      // Predicated region
      $region113: #{tpu_custom_call.1} parent=5 // pred_check
        _
      $region114: #{tpu_custom_call.1} parent=5 // pred_check_branch
        %783 = sbr.rel (%p780) target = $region116
      $region115: #{tpu_custom_call.1} parent=5 // pred_region
        %s784 = ssub.s32 %s41, 1
        %s785 = sand.u32 %s54, 1
        %s786 = scalar_lea.sflag [#allocation3], %s785
        %s787 = sand.u32 %s54, 1
        %s788 = smul.addr %s787, 8
        %s789 = scalar_lea.vmem [#allocation2], %s788
        // Predicated region
        $region117: #{tpu_custom_call.1} parent=115 // pred_check
          %p790 = pneg %p67
        $region118: #{tpu_custom_call.1} parent=115 // pred_check_branch
          %792 = sbr.rel (%p790) target = $region120
        $region119: #{tpu_custom_call.1} parent=115 // pred_region
          %793 = dma.done %s786, 128
        $region120: #{tpu_custom_call.1} parent=115 // pred_fallthru
          _
        // Predicated region
        $region121: #{tpu_custom_call.1} parent=115 // pred_check
          %p794 = pneg %p88
        $region122: #{tpu_custom_call.1} parent=115 // pred_check_branch
          %796 = sbr.rel (%p794) target = $region124
        $region123: #{tpu_custom_call.1} parent=115 // pred_region
          %797 = dma.done [#allocation6], 128
        $region124: #{tpu_custom_call.1} parent=115 // pred_fallthru
          _
        // Predicated region
        $region125: #{tpu_custom_call.1} parent=115 // pred_check
          %p798 = pneg %p109
        $region126: #{tpu_custom_call.1} parent=115 // pred_check_branch
          %800 = sbr.rel (%p798) target = $region128
        $region127: #{tpu_custom_call.1} parent=115 // pred_region
          %801 = dma.done [#allocation6], 2048
        $region128: #{tpu_custom_call.1} parent=115 // pred_fallthru
          _
        // Predicated region
        $region129: #{tpu_custom_call.1} parent=115 // pred_check
          %p802 = pneg %p130
        $region130: #{tpu_custom_call.1} parent=115 // pred_check_branch
          %804 = sbr.rel (%p802) target = $region132
        $region131: #{tpu_custom_call.1} parent=115 // pred_region
          %805 = dma.done [#allocation9], 16
        $region132: #{tpu_custom_call.1} parent=115 // pred_fallthru
          _
        // Predicated region
        $region133: #{tpu_custom_call.1} parent=115 // pred_check
          %p806 = pneg %p151
        $region134: #{tpu_custom_call.1} parent=115 // pred_check_branch
          %808 = sbr.rel (%p806) target = $region136
        $region135: #{tpu_custom_call.1} parent=115 // pred_region
          %809 = dma.done [#allocation9], 12288
        $region136: #{tpu_custom_call.1} parent=115 // pred_fallthru
          _
        // Predicated region
        $region137: #{tpu_custom_call.1} parent=115 // pred_check
          %p810 = pneg %p193
        $region138: #{tpu_custom_call.1} parent=115 // pred_check_branch
          %812 = sbr.rel (%p810) target = $region140
        $region139: #{tpu_custom_call.1} parent=115 // pred_region
          %813 = dma.done [#allocation12], 4096
        $region140: #{tpu_custom_call.1} parent=115 // pred_fallthru
          _
        // Predicated region
        $region141: #{tpu_custom_call.1} parent=115 // pred_check
          %p814 = pneg %p235
        $region142: #{tpu_custom_call.1} parent=115 // pred_check_branch
          %816 = sbr.rel (%p814) target = $region144
        $region143: #{tpu_custom_call.1} parent=115 // pred_region
          %817 = dma.done [#allocation12], 4096
        $region144: #{tpu_custom_call.1} parent=115 // pred_fallthru
          _
        // Predicated region
        $region145: #{tpu_custom_call.1} parent=115 // pred_check
          %p818 = pneg %p277
        $region146: #{tpu_custom_call.1} parent=115 // pred_check_branch
          %820 = sbr.rel (%p818) target = $region148
        $region147: #{tpu_custom_call.1} parent=115 // pred_region
          %821 = dma.done [#allocation15], 4096
        $region148: #{tpu_custom_call.1} parent=115 // pred_fallthru
          _
        // Predicated region
        $region149: #{tpu_custom_call.1} parent=115 // pred_check
          %p822 = pneg %p319
        $region150: #{tpu_custom_call.1} parent=115 // pred_check_branch
          %824 = sbr.rel (%p822) target = $region152
        $region151: #{tpu_custom_call.1} parent=115 // pred_region
          %825 = dma.done [#allocation15], 8192
        $region152: #{tpu_custom_call.1} parent=115 // pred_fallthru
          _
        // Predicated region
        $region153: #{tpu_custom_call.1} parent=115 // pred_check
          %p826 = pneg %p361
        $region154: #{tpu_custom_call.1} parent=115 // pred_check_branch
          %828 = sbr.rel (%p826) target = $region156
        $region155: #{tpu_custom_call.1} parent=115 // pred_region
          %829 = dma.done [#allocation18], 8192
        $region156: #{tpu_custom_call.1} parent=115 // pred_fallthru
          _
        // Predicated region
        $region157: #{tpu_custom_call.1} parent=115 // pred_check
          %p830 = pneg %p529
        $region158: #{tpu_custom_call.1} parent=115 // pred_check_branch
          %832 = sbr.rel (%p830) target = $region160
        $region159: #{tpu_custom_call.1} parent=115 // pred_region
          %833 = dma.done [#allocation18], 2048
        $region160: #{tpu_custom_call.1} parent=115 // pred_fallthru
          _
        %s834 = sand.u32 %s54, 1
        %s835 = scalar_lea.sflag [#allocation3], %s834
        %s836 = sand.u32 %s54, 1
        %s837 = smul.addr %s836, 8
        %s838 = scalar_lea.vmem [#allocation2], %s837
        %p839 = pneg %p67
        %p840 = pneg %p64
        %p841 = pneg %p88
        %p842 = pneg %p85
        %p843 = pneg %p109
        %p844 = pneg %p106
        %p845 = pneg %p130
        %p846 = pneg %p127
        %p847 = pneg %p151
        %p848 = pneg %p148
        %p849 = pneg %p172
        %p850 = pneg %p169
        %p851 = pneg %p193
        %p852 = pneg %p190
        %p853 = pneg %p214
        %p854 = pneg %p211
        %p855 = pneg %p235
        %p856 = pneg %p232
        %p857 = pneg %p256
        %p858 = pneg %p253
        %p859 = pneg %p277
        %p860 = pneg %p274
        %p861 = pneg %p298
        %p862 = pneg %p295
        %p863 = pneg %p319
        %p864 = pneg %p316
        %p865 = pneg %p340
        %p866 = pneg %p337
        %p867 = pneg %p361
        %p868 = pneg %p358
        %p869 = pneg %p382
        %p870 = pneg %p379
        %p871 = pneg %p403
        %p872 = pneg %p400
        %p873 = pneg %p424
        %p874 = pneg %p421
        %p875 = pneg %p445
        %p876 = pneg %p442
        %p877 = pneg %p466
        %p878 = pneg %p463
        %p879 = pneg %p487
        %p880 = pneg %p484
        %p881 = pneg %p508
        %p882 = pneg %p505
        %p883 = pneg %p529
        %p884 = pneg %p526
        %p885 = pneg %p550
        %p886 = pneg %p547
        %p887 = pneg %p576
        %p888 = pneg %p573
        %s889 = sand.u32 %s563, 1
        %s890 = scalar_lea.sflag [#allocation4], %s889
        %s891 = sand.u32 %s563, 1
        %s892 = smul.addr %s891, 40
        %s893 = scalar_lea.vmem [#allocation20], %s892
        %s894 = smul.u32 5, %s46
        %v895 = vlaneseq
        %v896 = vshrl.u32 %v895, 7
        %v897 = vadd.s32 %v896, 8
        %v898 = vadd.s32 %v896, 16
        %v899 = vadd.s32 %v896, 24
        %v900 = vadd.s32 %v896, 32
        %v901 = vlaneseq
        %v902 = vand.u32 %v901, 127
        %v903 = vmul.u32 %v902, 5
        %vm904 = vcmp.ge.s32.totalorder %v896, %v903
        %vm905 = vcmp.ge.s32.totalorder %v897, %v903
        %vm906 = vcmp.ge.s32.totalorder %v898, %v903
        %vm907 = vcmp.ge.s32.totalorder %v899, %v903
        %vm908 = vcmp.ge.s32.totalorder %v900, %v903
        %v909 = vadd.s32 %v903, 5
        %vm910 = vcmp.lt.s32.totalorder %v896, %v909
        %vm911 = vcmp.lt.s32.totalorder %v897, %v909
        %vm912 = vcmp.lt.s32.totalorder %v898, %v909
        %vm913 = vcmp.lt.s32.totalorder %v899, %v909
        %vm914 = vcmp.lt.s32.totalorder %v900, %v909
        %vm915 = vmand %vm904, %vm910
        %vm916 = vmand %vm905, %vm911
        %vm917 = vmand %vm906, %vm912
        %vm918 = vmand %vm907, %vm913
        %vm919 = vmand %vm908, %vm914
        %v920 = vsel %vm915, 1, 0
        %v921 = vsel %vm916, 1, 0
        %v922 = vsel %vm917, 1, 0
        %v923 = vsel %vm918, 1, 0
        %v924 = vsel %vm919, 1, 0
        %v925 = vcvt.s32.f32 %v920
        %v926 = vcvt.s32.f32 %v921
        %v927 = vcvt.s32.f32 %v922
        %v928 = vcvt.s32.f32 %v923
        %v929 = vcvt.s32.f32 %v924
        %vm930 = vcmask 64512
        %v932 = vsel %vm930, %v925, 0
        %v935 = vsel %vm930, %v926, 0
        %v938 = vsel %vm930, %v927, 0
        %v941 = vsel %vm930, %v928, 0
        %v944 = vsel %vm930, %v929, 0
        %946 = vmatprep.subr.mxu0 0.0
        %947 = vmatpush1.xpose.msra.mxu0 0.0
        %948 = vmatprep.subr.mxu0 0.0
        %949 = vmatpush1.xpose.msra.mxu0 0.0
        %950 = vmatprep.subr.mxu0 0.0
        %951 = vmatpush1.xpose.msra.mxu0 0.0
        %952 = vmatprep.subr.mxu0 0.0
        %953 = vmatpush1.xpose.msra.mxu0 0.0
        %954 = vmatprep.subr.mxu0 0.0
        %955 = vmatpush1.xpose.msra.mxu0 0.0
        %956 = vmatprep.subr.mxu0 0.0
        %957 = vmatpush1.xpose.msra.mxu0 0.0
        %958 = vmatprep.subr.mxu0 0.0
        %959 = vmatpush1.xpose.msra.mxu0 0.0
        %960 = vmatprep.subr.mxu0 0.0
        %961 = vmatpush1.xpose.msra.mxu0 0.0
        %962 = vmatprep.subr.mxu0 0.0
        %963 = vmatpush1.xpose.msra.mxu0 0.0
        %964 = vmatprep.subr.mxu0 0.0
        %965 = vmatpush1.xpose.msra.mxu0 0.0
        %966 = vmatprep.subr.mxu0 0.0
        %967 = vmatpush1.xpose.msra.mxu0 0.0
        %968 = vmatprep.subr.mxu0 0.0
        %969 = vmatpush1.xpose.msra.mxu0 %v944
        %970 = vmatprep.subr.mxu0 0.0
        %971 = vmatpush1.xpose.msra.mxu0 %v941
        %972 = vmatprep.subr.mxu0 0.0
        %973 = vmatpush1.xpose.msra.mxu0 %v938
        %974 = vmatprep.subr.mxu0 0.0
        %975 = vmatpush1.xpose.msra.mxu0 %v935
        %976 = vmatprep.subr.mxu0 0.0
        %977 = vmatpush1.xpose.msra.mxu0 %v932
        %978 = vmatprep.subr.mxu0 0.0
        %979 = vmatpush2.xpose.msra.mxu0 0.0
        %980 = vmatprep.subr.mxu0 0.0
        %981 = vmatpush2.xpose.msra.mxu0 0.0
        %982 = vmatprep.subr.mxu0 0.0
        %983 = vmatpush2.xpose.msra.mxu0 0.0
        %984 = vmatprep.subr.mxu0 0.0
        %985 = vmatpush2.xpose.msra.mxu0 0.0
        %986 = vmatprep.subr.mxu0 0.0
        %987 = vmatpush2.xpose.msra.mxu0 0.0
        %988 = vmatprep.subr.mxu0 0.0
        %989 = vmatpush2.xpose.msra.mxu0 0.0
        %990 = vmatprep.subr.mxu0 0.0
        %991 = vmatpush2.xpose.msra.mxu0 0.0
        %992 = vmatprep.subr.mxu0 0.0
        %993 = vmatpush2.xpose.msra.mxu0 0.0
        %994 = vmatprep.subr.mxu0 0.0
        %995 = vmatpush2.xpose.msra.mxu0 0.0
        %996 = vmatprep.subr.mxu0 0.0
        %997 = vmatpush2.xpose.msra.mxu0 0.0
        %998 = vmatprep.subr.mxu0 0.0
        %999 = vmatpush2.xpose.msra.mxu0 0.0
        %1000 = vmatprep.subr.mxu0 0.0
        %1001 = vmatpush2.xpose.msra.mxu0 0.0
        %1002 = vmatprep.subr.mxu0 0.0
        %1003 = vmatpush2.xpose.msra.mxu0 0.0
        %1004 = vmatprep.subr.mxu0 0.0
        %1005 = vmatpush2.xpose.msra.mxu0 0.0
        %1006 = vmatprep.subr.mxu0 0.0
        %1007 = vmatpush2.xpose.msra.mxu0 0.0
        %1008 = vmatprep.subr.mxu0 0.0
        %1009 = vmatpush2.xpose.msra.mxu0 0.0
        %1010 = vmatprep.mubr.f32.mxu0 0.0
        %1011 = vmatmul.mubr.f32.gmra.mxu0 %v932
        %v1012 = vpop.f32.mrf.mxu0
        %v1013 = vadd.f32 0.0, %v1012
        %v1014 = vpop.f32.mrf.mxu0
        %1015 = vmatprep.mubr.f32.mxu0 0.0
        %1016 = vmatmul.mubr.f32.gmra.mxu0 %v935
        %v1017 = vpop.f32.mrf.mxu0
        %v1018 = vadd.f32 0.0, %v1017
        %v1019 = vpop.f32.mrf.mxu0
        %1020 = vmatprep.mubr.f32.mxu0 0.0
        %1021 = vmatmul.mubr.f32.gmra.mxu0 %v938
        %v1022 = vpop.f32.mrf.mxu0
        %v1023 = vadd.f32 0.0, %v1022
        %v1024 = vpop.f32.mrf.mxu0
        %1025 = vmatprep.mubr.f32.mxu0 0.0
        %1026 = vmatmul.mubr.f32.gmra.mxu0 %v941
        %v1027 = vpop.f32.mrf.mxu0
        %v1028 = vadd.f32 0.0, %v1027
        %v1029 = vpop.f32.mrf.mxu0
        %1030 = vmatprep.mubr.f32.mxu0 0.0
        %1031 = vmatmul.mubr.f32.gmra.mxu0 %v944
        %v1032 = vpop.f32.mrf.mxu0
        %v1033 = vadd.f32 0.0, %v1032
        %v1034 = vpop.f32.mrf.mxu0
        %1035 = vdwg.mxu0
        %v1036 = vsub.f32 %v1013, 1.0
        %v1037 = vsub.f32 %v1018, 1.0
        %v1038 = vsub.f32 %v1023, 1.0
        %v1039 = vsub.f32 %v1028, 1.0
        %v1040 = vsub.f32 %v1033, 1.0
        %v1041 = vmul.f32 %v1036, 1e+30
        %v1042 = vmul.f32 %v1037, 1e+30
        %v1043 = vmul.f32 %v1038, 1e+30
        %v1044 = vmul.f32 %v1039, 1e+30
        %v1045 = vmul.f32 %v1040, 1e+30
        %v1046 = vcvt.s32.f32 %v902
        %v1047 = vmul.f32 %v925, %v1046
        %v1048 = vmul.f32 %v926, %v1046
        %v1049 = vmul.f32 %v927, %v1046
        %v1050 = vmul.f32 %v928, %v1046
        %v1051 = vmul.f32 %v929, %v1046
        %v1052 = vsel %vm930, %v1047, 0.0
        %1053 = vadd.xlane.f32.xlu0 %v1052
        %v1054 = vpop.xlane.xlu0 %1053
        %v1055 = vsel %vm930, %v1048, 0.0
        %1056 = vadd.xlane.f32.xlu0 %v1055
        %v1057 = vpop.xlane.xlu0 %1056
        %v1058 = vsel %vm930, %v1049, 0.0
        %1059 = vadd.xlane.f32.xlu0 %v1058
        %v1060 = vpop.xlane.xlu0 %1059
        %v1061 = vsel %vm930, %v1050, 0.0
        %1062 = vadd.xlane.f32.xlu0 %v1061
        %v1063 = vpop.xlane.xlu0 %1062
        %v1064 = vsel %vm930, %v1051, 0.0
        %1065 = vadd.xlane.f32.xlu0 %v1064
        %v1066 = vpop.xlane.xlu0 %1065
        %v1067 = vmul.f32 %v1054, 5.0
        %v1068 = vmul.f32 %v1057, 5.0
        %v1069 = vmul.f32 %v1060, 5.0
        %v1070 = vmul.f32 %v1063, 5.0
        %v1071 = vmul.f32 %v1066, 5.0
        %v1072 = vcvt.s32.f32 %v896
        %v1073 = vcvt.s32.f32 %v897
        %v1074 = vcvt.s32.f32 %v898
        %v1075 = vcvt.s32.f32 %v899
        %v1076 = vcvt.s32.f32 %v900
        %v1077 = vsub.f32 %v1072, %v1067
        %v1078 = vsub.f32 %v1073, %v1068
        %v1079 = vsub.f32 %v1074, %v1069
        %v1080 = vsub.f32 %v1075, %v1070
        %v1081 = vsub.f32 %v1076, %v1071
        %vm1082 = vcmp.eq.f32.partialorder %v1077, %v1046
        %vm1083 = vcmp.eq.f32.partialorder %v1078, %v1046
        %vm1084 = vcmp.eq.f32.partialorder %v1079, %v1046
        %vm1085 = vcmp.eq.f32.partialorder %v1080, %v1046
        %vm1086 = vcmp.eq.f32.partialorder %v1081, %v1046
        %v1087 = vsel %vm1082, 1, 0
        %v1088 = vsel %vm1083, 1, 0
        %v1089 = vsel %vm1084, 1, 0
        %v1090 = vsel %vm1085, 1, 0
        %v1091 = vsel %vm1086, 1, 0
        %v1092 = vcvt.s32.f32 %v1087
        %v1093 = vcvt.s32.f32 %v1088
        %v1094 = vcvt.s32.f32 %v1089
        %v1095 = vcvt.s32.f32 %v1090
        %v1096 = vcvt.s32.f32 %v1091
        %v1097 = vld [vmem:[%s789] sm:$0xff]
        %v1098 = vld [vmem:[#allocation7] sm:$0xff]
        %v1099 = vld [vmem:[#allocation7 + $0x8] sm:$0xff]
        %v1100 = vld [vmem:[#allocation7 + $0x10] sm:$0xff]
        %v1101 = vld [vmem:[#allocation7 + $0x18] sm:$0xff]
        %v1102 = vld [vmem:[#allocation7 + $0x20] sm:$0xff]
        %v1103 = vld [vmem:[#allocation7 + $0x28] sm:$0xff]
        %v1104 = vld [vmem:[#allocation7 + $0x30] sm:$0xff]
        %v1105 = vld [vmem:[#allocation7 + $0x38] sm:$0xff]
        %v1106 = vld [vmem:[#allocation7 + $0x40] sm:$0xff]
        %v1107 = vld [vmem:[#allocation7 + $0x48] sm:$0xff]
        %v1108 = vld [vmem:[#allocation7 + $0x50] sm:$0xff]
        %v1109 = vld [vmem:[#allocation7 + $0x58] sm:$0xff]
        %v1110 = vld [vmem:[#allocation7 + $0x60] sm:$0xff]
        %v1111 = vld [vmem:[#allocation7 + $0x68] sm:$0xff]
        %v1112 = vld [vmem:[#allocation7 + $0x70] sm:$0xff]
        %v1113 = vld [vmem:[#allocation7 + $0x78] sm:$0xff]
        %v1114 = vld [vmem:[#allocation8] sm:$0x1]
        %v1116 = vlaneseq
        %v1117 = vshrl.u32 %v1116, 7
        %v1118 = vsub.s32 0, %v1117
        %v1119 = vrot.slane %v1114, %v1118
        %1121 = vmatprep.subr.mxu0 0.0
        %1122 = vmatpush1.msra.mxu0 %v1113
        %1123 = vmatprep.subr.mxu0 0.0
        %1124 = vmatpush1.msra.mxu0 %v1112
        %1125 = vmatprep.subr.mxu0 0.0
        %1126 = vmatpush1.msra.mxu0 %v1111
        %1127 = vmatprep.subr.mxu0 0.0
        %1128 = vmatpush1.msra.mxu0 %v1110
        %1129 = vmatprep.subr.mxu0 0.0
        %1130 = vmatpush1.msra.mxu0 %v1109
        %1131 = vmatprep.subr.mxu0 0.0
        %1132 = vmatpush1.msra.mxu0 %v1108
        %1133 = vmatprep.subr.mxu0 0.0
        %1134 = vmatpush1.msra.mxu0 %v1107
        %1135 = vmatprep.subr.mxu0 0.0
        %1136 = vmatpush1.msra.mxu0 %v1106
        %1137 = vmatprep.subr.mxu0 0.0
        %1138 = vmatpush1.msra.mxu0 %v1105
        %1139 = vmatprep.subr.mxu0 0.0
        %1140 = vmatpush1.msra.mxu0 %v1104
        %1141 = vmatprep.subr.mxu0 0.0
        %1142 = vmatpush1.msra.mxu0 %v1103
        %1143 = vmatprep.subr.mxu0 0.0
        %1144 = vmatpush1.msra.mxu0 %v1102
        %1145 = vmatprep.subr.mxu0 0.0
        %1146 = vmatpush1.msra.mxu0 %v1101
        %1147 = vmatprep.subr.mxu0 0.0
        %1148 = vmatpush1.msra.mxu0 %v1100
        %1149 = vmatprep.subr.mxu0 0.0
        %1150 = vmatpush1.msra.mxu0 %v1099
        %1151 = vmatprep.subr.mxu0 0.0
        %1152 = vmatpush1.msra.mxu0 %v1098
        %1153 = vmatprep.subr.mxu0 0.0
        %1154 = vmatpush2.msra.mxu0 0.0
        %1155 = vmatprep.subr.mxu0 0.0
        %1156 = vmatpush2.msra.mxu0 0.0
        %1157 = vmatprep.subr.mxu0 0.0
        %1158 = vmatpush2.msra.mxu0 0.0
        %1159 = vmatprep.subr.mxu0 0.0
        %1160 = vmatpush2.msra.mxu0 0.0
        %1161 = vmatprep.subr.mxu0 0.0
        %1162 = vmatpush2.msra.mxu0 0.0
        %1163 = vmatprep.subr.mxu0 0.0
        %1164 = vmatpush2.msra.mxu0 0.0
        %1165 = vmatprep.subr.mxu0 0.0
        %1166 = vmatpush2.msra.mxu0 0.0
        %1167 = vmatprep.subr.mxu0 0.0
        %1168 = vmatpush2.msra.mxu0 0.0
        %1169 = vmatprep.subr.mxu0 0.0
        %1170 = vmatpush2.msra.mxu0 0.0
        %1171 = vmatprep.subr.mxu0 0.0
        %1172 = vmatpush2.msra.mxu0 0.0
        %1173 = vmatprep.subr.mxu0 0.0
        %1174 = vmatpush2.msra.mxu0 0.0
        %1175 = vmatprep.subr.mxu0 0.0
        %1176 = vmatpush2.msra.mxu0 0.0
        %1177 = vmatprep.subr.mxu0 0.0
        %1178 = vmatpush2.msra.mxu0 0.0
        %1179 = vmatprep.subr.mxu0 0.0
        %1180 = vmatpush2.msra.mxu0 0.0
        %1181 = vmatprep.subr.mxu0 0.0
        %1182 = vmatpush2.msra.mxu0 0.0
        %1183 = vmatprep.subr.mxu0 0.0
        %1184 = vmatpush2.msra.mxu0 0.0
        %1185 = vmatprep.mubr.f32.mxu0 0.0
        %1186 = vmatmul.mubr.f32.gmra.mxu0 %v1097
        %v1187 = vpop.f32.mrf.mxu0
        %v1188 = vadd.f32 %v1119, %v1187
        %v1189 = vpop.f32.mrf.mxu0
        %1190 = vdwg.mxu0
        %1191 = vmatprep.subr.mxu0 0.0
        %1192 = vmatpush1.msra.mxu0 0.0
        %1193 = vmatprep.subr.mxu0 0.0
        %1194 = vmatpush1.msra.mxu0 0.0
        %1195 = vmatprep.subr.mxu0 0.0
        %1196 = vmatpush1.msra.mxu0 0.0
        %1197 = vmatprep.subr.mxu0 0.0
        %1198 = vmatpush1.msra.mxu0 0.0
        %1199 = vmatprep.subr.mxu0 0.0
        %1200 = vmatpush1.msra.mxu0 0.0
        %1201 = vmatprep.subr.mxu0 0.0
        %1202 = vmatpush1.msra.mxu0 0.0
        %1203 = vmatprep.subr.mxu0 0.0
        %1204 = vmatpush1.msra.mxu0 0.0
        %1205 = vmatprep.subr.mxu0 0.0
        %1206 = vmatpush1.msra.mxu0 0.0
        %1207 = vmatprep.subr.mxu0 0.0
        %1208 = vmatpush1.msra.mxu0 0.0
        %1209 = vmatprep.subr.mxu0 0.0
        %1210 = vmatpush1.msra.mxu0 0.0
        %1211 = vmatprep.subr.mxu0 0.0
        %1212 = vmatpush1.msra.mxu0 0.0
        %1213 = vmatprep.subr.mxu0 0.0
        %1214 = vmatpush1.msra.mxu0 0.0
        %1215 = vmatprep.subr.mxu0 0.0
        %1216 = vmatpush1.msra.mxu0 0.0
        %1217 = vmatprep.subr.mxu0 0.0
        %1218 = vmatpush1.msra.mxu0 0.0
        %1219 = vmatprep.subr.mxu0 0.0
        %1220 = vmatpush1.msra.mxu0 0.0
        %1221 = vmatprep.subr.mxu0 0.0
        %1222 = vmatpush1.msra.mxu0 %v1188
        %1223 = vmatprep.subr.mxu0 0.0
        %1224 = vmatpush2.msra.mxu0 0.0
        %1225 = vmatprep.subr.mxu0 0.0
        %1226 = vmatpush2.msra.mxu0 0.0
        %1227 = vmatprep.subr.mxu0 0.0
        %1228 = vmatpush2.msra.mxu0 0.0
        %1229 = vmatprep.subr.mxu0 0.0
        %1230 = vmatpush2.msra.mxu0 0.0
        %1231 = vmatprep.subr.mxu0 0.0
        %1232 = vmatpush2.msra.mxu0 0.0
        %1233 = vmatprep.subr.mxu0 0.0
        %1234 = vmatpush2.msra.mxu0 0.0
        %1235 = vmatprep.subr.mxu0 0.0
        %1236 = vmatpush2.msra.mxu0 0.0
        %1237 = vmatprep.subr.mxu0 0.0
        %1238 = vmatpush2.msra.mxu0 0.0
        %1239 = vmatprep.subr.mxu0 0.0
        %1240 = vmatpush2.msra.mxu0 0.0
        %1241 = vmatprep.subr.mxu0 0.0
        %1242 = vmatpush2.msra.mxu0 0.0
        %1243 = vmatprep.subr.mxu0 0.0
        %1244 = vmatpush2.msra.mxu0 0.0
        %1245 = vmatprep.subr.mxu0 0.0
        %1246 = vmatpush2.msra.mxu0 0.0
        %1247 = vmatprep.subr.mxu0 0.0
        %1248 = vmatpush2.msra.mxu0 0.0
        %1249 = vmatprep.subr.mxu0 0.0
        %1250 = vmatpush2.msra.mxu0 0.0
        %1251 = vmatprep.subr.mxu0 0.0
        %1252 = vmatpush2.msra.mxu0 0.0
        %1253 = vmatprep.subr.mxu0 0.0
        %1254 = vmatpush2.msra.mxu0 0.0
        %1255 = vmatprep.mubr.f32.mxu0 0.0
        %1256 = vmatmul.mubr.f32.gmra.mxu0 %v932
        %v1257 = vpop.f32.mrf.mxu0
        %v1258 = vadd.f32 0.0, %v1257
        %v1259 = vpop.f32.mrf.mxu0
        %1260 = vmatprep.mubr.f32.mxu0 0.0
        %1261 = vmatmul.mubr.f32.gmra.mxu0 %v935
        %v1262 = vpop.f32.mrf.mxu0
        %v1263 = vadd.f32 0.0, %v1262
        %v1264 = vpop.f32.mrf.mxu0
        %1265 = vmatprep.mubr.f32.mxu0 0.0
        %1266 = vmatmul.mubr.f32.gmra.mxu0 %v938
        %v1267 = vpop.f32.mrf.mxu0
        %v1268 = vadd.f32 0.0, %v1267
        %v1269 = vpop.f32.mrf.mxu0
        %1270 = vmatprep.mubr.f32.mxu0 0.0
        %1271 = vmatmul.mubr.f32.gmra.mxu0 %v941
        %v1272 = vpop.f32.mrf.mxu0
        %v1273 = vadd.f32 0.0, %v1272
        %v1274 = vpop.f32.mrf.mxu0
        %1275 = vmatprep.mubr.f32.mxu0 0.0
        %1276 = vmatmul.mubr.f32.gmra.mxu0 %v944
        %v1277 = vpop.f32.mrf.mxu0
        %v1278 = vadd.f32 0.0, %v1277
        %v1279 = vpop.f32.mrf.mxu0
        %1280 = vdwg.mxu0
        %v1281 = vld [vmem:[#allocation5] sm:$0x1f]
        %vm1282 = vcmask 39936
        %v1284 = vsel %vm1282, %v1092, 0
        %v1287 = vsel %vm1282, %v1093, 0
        %v1290 = vsel %vm1282, %v1094, 0
        %v1293 = vsel %vm1282, %v1095, 0
        %v1296 = vsel %vm1282, %v1096, 0
        %vm1298 = vcmask 1044480
        %v1300 = vsel %vm1298, %v1281, 0
        %1302 = vmatprep.subr.mxu0 0.0
        %1303 = vmatpush1.msra.mxu0 0.0
        %1304 = vmatprep.subr.mxu0 0.0
        %1305 = vmatpush1.msra.mxu0 0.0
        %1306 = vmatprep.subr.mxu0 0.0
        %1307 = vmatpush1.msra.mxu0 0.0
        %1308 = vmatprep.subr.mxu0 0.0
        %1309 = vmatpush1.msra.mxu0 0.0
        %1310 = vmatprep.subr.mxu0 0.0
        %1311 = vmatpush1.msra.mxu0 0.0
        %1312 = vmatprep.subr.mxu0 0.0
        %1313 = vmatpush1.msra.mxu0 0.0
        %1314 = vmatprep.subr.mxu0 0.0
        %1315 = vmatpush1.msra.mxu0 0.0
        %1316 = vmatprep.subr.mxu0 0.0
        %1317 = vmatpush1.msra.mxu0 0.0
        %1318 = vmatprep.subr.mxu0 0.0
        %1319 = vmatpush1.msra.mxu0 0.0
        %1320 = vmatprep.subr.mxu0 0.0
        %1321 = vmatpush1.msra.mxu0 0.0
        %1322 = vmatprep.subr.mxu0 0.0
        %1323 = vmatpush1.msra.mxu0 0.0
        %1324 = vmatprep.subr.mxu0 0.0
        %1325 = vmatpush1.msra.mxu0 0.0
        %1326 = vmatprep.subr.mxu0 0.0
        %1327 = vmatpush1.msra.mxu0 0.0
        %1328 = vmatprep.subr.mxu0 0.0
        %1329 = vmatpush1.msra.mxu0 0.0
        %1330 = vmatprep.subr.mxu0 0.0
        %1331 = vmatpush1.msra.mxu0 0.0
        %1332 = vmatprep.subr.mxu0 0.0
        %1333 = vmatpush1.msra.mxu0 %v1300
        %1334 = vmatprep.subr.mxu0 0.0
        %1335 = vmatpush2.msra.mxu0 0.0
        %1336 = vmatprep.subr.mxu0 0.0
        %1337 = vmatpush2.msra.mxu0 0.0
        %1338 = vmatprep.subr.mxu0 0.0
        %1339 = vmatpush2.msra.mxu0 0.0
        %1340 = vmatprep.subr.mxu0 0.0
        %1341 = vmatpush2.msra.mxu0 0.0
        %1342 = vmatprep.subr.mxu0 0.0
        %1343 = vmatpush2.msra.mxu0 0.0
        %1344 = vmatprep.subr.mxu0 0.0
        %1345 = vmatpush2.msra.mxu0 0.0
        %1346 = vmatprep.subr.mxu0 0.0
        %1347 = vmatpush2.msra.mxu0 0.0
        %1348 = vmatprep.subr.mxu0 0.0
        %1349 = vmatpush2.msra.mxu0 0.0
        %1350 = vmatprep.subr.mxu0 0.0
        %1351 = vmatpush2.msra.mxu0 0.0
        %1352 = vmatprep.subr.mxu0 0.0
        %1353 = vmatpush2.msra.mxu0 0.0
        %1354 = vmatprep.subr.mxu0 0.0
        %1355 = vmatpush2.msra.mxu0 0.0
        %1356 = vmatprep.subr.mxu0 0.0
        %1357 = vmatpush2.msra.mxu0 0.0
        %1358 = vmatprep.subr.mxu0 0.0
        %1359 = vmatpush2.msra.mxu0 0.0
        %1360 = vmatprep.subr.mxu0 0.0
        %1361 = vmatpush2.msra.mxu0 0.0
        %1362 = vmatprep.subr.mxu0 0.0
        %1363 = vmatpush2.msra.mxu0 0.0
        %1364 = vmatprep.subr.mxu0 0.0
        %1365 = vmatpush2.msra.mxu0 0.0
        %1366 = vmatprep.mubr.f32.mxu0 0.0
        %1367 = vmatmul.mubr.f32.gmra.mxu0 %v1284
        %v1368 = vpop.f32.mrf.mxu0
        %v1369 = vadd.f32 0.0, %v1368
        %v1370 = vpop.f32.mrf.mxu0
        %1371 = vmatprep.mubr.f32.mxu0 0.0
        %1372 = vmatmul.mubr.f32.gmra.mxu0 %v1287
        %v1373 = vpop.f32.mrf.mxu0
        %v1374 = vadd.f32 0.0, %v1373
        %v1375 = vpop.f32.mrf.mxu0
        %1376 = vmatprep.mubr.f32.mxu0 0.0
        %1377 = vmatmul.mubr.f32.gmra.mxu0 %v1290
        %v1378 = vpop.f32.mrf.mxu0
        %v1379 = vadd.f32 0.0, %v1378
        %v1380 = vpop.f32.mrf.mxu0
        %1381 = vmatprep.mubr.f32.mxu0 0.0
        %1382 = vmatmul.mubr.f32.gmra.mxu0 %v1293
        %v1383 = vpop.f32.mrf.mxu0
        %v1384 = vadd.f32 0.0, %v1383
        %v1385 = vpop.f32.mrf.mxu0
        %1386 = vmatprep.mubr.f32.mxu0 0.0
        %1387 = vmatmul.mubr.f32.gmra.mxu0 %v1296
        %v1388 = vpop.f32.mrf.mxu0
        %v1389 = vadd.f32 0.0, %v1388
        %v1390 = vpop.f32.mrf.mxu0
        %1391 = vdwg.mxu0
        %v1392 = vld [vmem:[#allocation10] sm:$0xff]
        %v1393 = vld [vmem:[#allocation10 + $0x8] sm:$0xff]
        %v1394 = vld [vmem:[#allocation10 + $0x10] sm:$0xff]
        %v1395 = vld [vmem:[#allocation10 + $0x18] sm:$0xff]
        %v1396 = vld [vmem:[#allocation10 + $0x20] sm:$0xff]
        %v1397 = vld [vmem:[#allocation10 + $0x28] sm:$0xff]
        %v1398 = vld [vmem:[#allocation10 + $0x30] sm:$0xff]
        %v1399 = vld [vmem:[#allocation10 + $0x38] sm:$0xff]
        %v1400 = vld [vmem:[#allocation10 + $0x40] sm:$0xff]
        %v1401 = vld [vmem:[#allocation10 + $0x48] sm:$0xff]
        %v1402 = vld [vmem:[#allocation10 + $0x50] sm:$0xff]
        %v1403 = vld [vmem:[#allocation10 + $0x58] sm:$0xff]
        %v1404 = vld [vmem:[#allocation10 + $0x60] sm:$0xff]
        %v1405 = vld [vmem:[#allocation10 + $0x68] sm:$0xff]
        %v1406 = vld [vmem:[#allocation10 + $0x70] sm:$0xff]
        %v1407 = vld [vmem:[#allocation10 + $0x78] sm:$0xff]
        %v1408 = vld [vmem:[#allocation10 + $0x80] sm:$0xff]
        %v1409 = vld [vmem:[#allocation10 + $0x88] sm:$0xff]
        %v1410 = vld [vmem:[#allocation10 + $0x90] sm:$0xff]
        %v1411 = vld [vmem:[#allocation10 + $0x98] sm:$0xff]
        %v1412 = vld [vmem:[#allocation10 + $0xa0] sm:$0xff]
        %v1413 = vld [vmem:[#allocation10 + $0xa8] sm:$0xff]
        %v1414 = vld [vmem:[#allocation10 + $0xb0] sm:$0xff]
        %v1415 = vld [vmem:[#allocation10 + $0xb8] sm:$0xff]
        %v1416 = vld [vmem:[#allocation10 + $0xc0] sm:$0xff]
        %v1417 = vld [vmem:[#allocation10 + $0xc8] sm:$0xff]
        %v1418 = vld [vmem:[#allocation10 + $0xd0] sm:$0xff]
        %v1419 = vld [vmem:[#allocation10 + $0xd8] sm:$0xff]
        %v1420 = vld [vmem:[#allocation10 + $0xe0] sm:$0xff]
        %v1421 = vld [vmem:[#allocation10 + $0xe8] sm:$0xff]
        %v1422 = vld [vmem:[#allocation10 + $0xf0] sm:$0xff]
        %v1423 = vld [vmem:[#allocation10 + $0xf8] sm:$0xff]
        %v1424 = vld [vmem:[#allocation10 + $0x100] sm:$0xff]
        %v1425 = vld [vmem:[#allocation10 + $0x108] sm:$0xff]
        %v1426 = vld [vmem:[#allocation10 + $0x110] sm:$0xff]
        %v1427 = vld [vmem:[#allocation10 + $0x118] sm:$0xff]
        %v1428 = vld [vmem:[#allocation10 + $0x120] sm:$0xff]
        %v1429 = vld [vmem:[#allocation10 + $0x128] sm:$0xff]
        %v1430 = vld [vmem:[#allocation10 + $0x130] sm:$0xff]
        %v1431 = vld [vmem:[#allocation10 + $0x138] sm:$0xff]
        %v1432 = vld [vmem:[#allocation10 + $0x140] sm:$0xff]
        %v1433 = vld [vmem:[#allocation10 + $0x148] sm:$0xff]
        %v1434 = vld [vmem:[#allocation10 + $0x150] sm:$0xff]
        %v1435 = vld [vmem:[#allocation10 + $0x158] sm:$0xff]
        %v1436 = vld [vmem:[#allocation10 + $0x160] sm:$0xff]
        %v1437 = vld [vmem:[#allocation10 + $0x168] sm:$0xff]
        %v1438 = vld [vmem:[#allocation10 + $0x170] sm:$0xff]
        %v1439 = vld [vmem:[#allocation10 + $0x178] sm:$0xff]
        %v1440 = vld [vmem:[%s5] sm:$0x7]
        %v1442 = vlaneseq
        %v1443 = vshrl.u32 %v1442, 7
        %v1444 = vsub.s32 0, %v1443
        %v1445 = vrot.slane %v1440, %v1444
        %v1446 = vlaneseq
        %v1447 = vshrl.u32 %v1446, 7
        %v1448 = vsub.s32 1, %v1447
        %v1449 = vrot.slane %v1440, %v1448
        %v1450 = vlaneseq
        %v1451 = vshrl.u32 %v1450, 7
        %v1452 = vsub.s32 2, %v1451
        %v1453 = vrot.slane %v1440, %v1452
        %1457 = vmatprep.subr.mxu0 %v1438
        %1458 = vmatpush1.msra.mxu0 %v1437
        %1459 = vmatprep.subr.mxu0 %v1435
        %1460 = vmatpush1.msra.mxu0 %v1434
        %1461 = vmatprep.subr.mxu0 %v1432
        %1462 = vmatpush1.msra.mxu0 %v1431
        %1463 = vmatprep.subr.mxu0 %v1429
        %1464 = vmatpush1.msra.mxu0 %v1428
        %1465 = vmatprep.subr.mxu0 %v1426
        %1466 = vmatpush1.msra.mxu0 %v1425
        %1467 = vmatprep.subr.mxu0 %v1423
        %1468 = vmatpush1.msra.mxu0 %v1422
        %1469 = vmatprep.subr.mxu0 %v1420
        %1470 = vmatpush1.msra.mxu0 %v1419
        %1471 = vmatprep.subr.mxu0 %v1417
        %1472 = vmatpush1.msra.mxu0 %v1416
        %1473 = vmatprep.subr.mxu0 %v1414
        %1474 = vmatpush1.msra.mxu0 %v1413
        %1475 = vmatprep.subr.mxu0 %v1411
        %1476 = vmatpush1.msra.mxu0 %v1410
        %1477 = vmatprep.subr.mxu0 %v1408
        %1478 = vmatpush1.msra.mxu0 %v1407
        %1479 = vmatprep.subr.mxu0 %v1405
        %1480 = vmatpush1.msra.mxu0 %v1404
        %1481 = vmatprep.subr.mxu0 %v1402
        %1482 = vmatpush1.msra.mxu0 %v1401
        %1483 = vmatprep.subr.mxu0 %v1399
        %1484 = vmatpush1.msra.mxu0 %v1398
        %1485 = vmatprep.subr.mxu0 %v1396
        %1486 = vmatpush1.msra.mxu0 %v1395
        %1487 = vmatprep.subr.mxu0 %v1393
        %1488 = vmatpush1.msra.mxu0 %v1392
        %1489 = vmatprep.subr.mxu0 0.0
        %1490 = vmatpush2.msra.mxu0 0.0
        %1491 = vmatprep.subr.mxu0 0.0
        %1492 = vmatpush2.msra.mxu0 0.0
        %1493 = vmatprep.subr.mxu0 0.0
        %1494 = vmatpush2.msra.mxu0 0.0
        %1495 = vmatprep.subr.mxu0 0.0
        %1496 = vmatpush2.msra.mxu0 0.0
        %1497 = vmatprep.subr.mxu0 0.0
        %1498 = vmatpush2.msra.mxu0 0.0
        %1499 = vmatprep.subr.mxu0 0.0
        %1500 = vmatpush2.msra.mxu0 0.0
        %1501 = vmatprep.subr.mxu0 0.0
        %1502 = vmatpush2.msra.mxu0 0.0
        %1503 = vmatprep.subr.mxu0 0.0
        %1504 = vmatpush2.msra.mxu0 0.0
        %1505 = vmatprep.subr.mxu0 0.0
        %1506 = vmatpush2.msra.mxu0 0.0
        %1507 = vmatprep.subr.mxu0 0.0
        %1508 = vmatpush2.msra.mxu0 0.0
        %1509 = vmatprep.subr.mxu0 0.0
        %1510 = vmatpush2.msra.mxu0 0.0
        %1511 = vmatprep.subr.mxu0 0.0
        %1512 = vmatpush2.msra.mxu0 0.0
        %1513 = vmatprep.subr.mxu0 0.0
        %1514 = vmatpush2.msra.mxu0 0.0
        %1515 = vmatprep.subr.mxu0 0.0
        %1516 = vmatpush2.msra.mxu0 0.0
        %1517 = vmatprep.subr.mxu0 0.0
        %1518 = vmatpush2.msra.mxu0 0.0
        %1519 = vmatprep.subr.mxu0 0.0
        %1520 = vmatpush2.msra.mxu0 0.0
        %1521 = vmatprep.mubr.f32.mxu0 0.0
        %1522 = vmatmul.mubr.f32.gmra.mxu0 %v1369
        %v1523 = vpop.f32.mrf.mxu0
        %v1524 = vadd.f32 %v1445, %v1523
        %v1525 = vpop.f32.mrf.mxu0
        %v1526 = vadd.f32 %v1449, %v1525
        %1527 = vmatprep.mubr.f32.mxu0 0.0
        %1528 = vmatmul.mubr.f32.gmra.mxu0 %v1374
        %v1529 = vpop.f32.mrf.mxu0
        %v1530 = vadd.f32 %v1445, %v1529
        %v1531 = vpop.f32.mrf.mxu0
        %v1532 = vadd.f32 %v1449, %v1531
        %1533 = vmatprep.mubr.f32.mxu0 0.0
        %1534 = vmatmul.mubr.f32.gmra.mxu0 %v1379
        %v1535 = vpop.f32.mrf.mxu0
        %v1536 = vadd.f32 %v1445, %v1535
        %v1537 = vpop.f32.mrf.mxu0
        %v1538 = vadd.f32 %v1449, %v1537
        %1539 = vmatprep.mubr.f32.mxu0 0.0
        %1540 = vmatmul.mubr.f32.gmra.mxu0 %v1384
        %v1541 = vpop.f32.mrf.mxu0
        %v1542 = vadd.f32 %v1445, %v1541
        %v1543 = vpop.f32.mrf.mxu0
        %v1544 = vadd.f32 %v1449, %v1543
        %1545 = vmatprep.mubr.f32.mxu0 0.0
        %1546 = vmatmul.mubr.f32.gmra.mxu0 %v1389
        %v1547 = vpop.f32.mrf.mxu0
        %v1548 = vadd.f32 %v1445, %v1547
        %v1549 = vpop.f32.mrf.mxu0
        %v1550 = vadd.f32 %v1449, %v1549
        %1551 = vdwg.mxu0
        %1552 = vmatprep.subr.mxu0 0.0
        %1553 = vmatpush1.msra.mxu0 %v1439
        %1554 = vmatprep.subr.mxu0 0.0
        %1555 = vmatpush1.msra.mxu0 %v1436
        %1556 = vmatprep.subr.mxu0 0.0
        %1557 = vmatpush1.msra.mxu0 %v1433
        %1558 = vmatprep.subr.mxu0 0.0
        %1559 = vmatpush1.msra.mxu0 %v1430
        %1560 = vmatprep.subr.mxu0 0.0
        %1561 = vmatpush1.msra.mxu0 %v1427
        %1562 = vmatprep.subr.mxu0 0.0
        %1563 = vmatpush1.msra.mxu0 %v1424
        %1564 = vmatprep.subr.mxu0 0.0
        %1565 = vmatpush1.msra.mxu0 %v1421
        %1566 = vmatprep.subr.mxu0 0.0
        %1567 = vmatpush1.msra.mxu0 %v1418
        %1568 = vmatprep.subr.mxu0 0.0
        %1569 = vmatpush1.msra.mxu0 %v1415
        %1570 = vmatprep.subr.mxu0 0.0
        %1571 = vmatpush1.msra.mxu0 %v1412
        %1572 = vmatprep.subr.mxu0 0.0
        %1573 = vmatpush1.msra.mxu0 %v1409
        %1574 = vmatprep.subr.mxu0 0.0
        %1575 = vmatpush1.msra.mxu0 %v1406
        %1576 = vmatprep.subr.mxu0 0.0
        %1577 = vmatpush1.msra.mxu0 %v1403
        %1578 = vmatprep.subr.mxu0 0.0
        %1579 = vmatpush1.msra.mxu0 %v1400
        %1580 = vmatprep.subr.mxu0 0.0
        %1581 = vmatpush1.msra.mxu0 %v1397
        %1582 = vmatprep.subr.mxu0 0.0
        %1583 = vmatpush1.msra.mxu0 %v1394
        %1584 = vmatprep.subr.mxu0 0.0
        %1585 = vmatpush2.msra.mxu0 0.0
        %1586 = vmatprep.subr.mxu0 0.0
        %1587 = vmatpush2.msra.mxu0 0.0
        %1588 = vmatprep.subr.mxu0 0.0
        %1589 = vmatpush2.msra.mxu0 0.0
        %1590 = vmatprep.subr.mxu0 0.0
        %1591 = vmatpush2.msra.mxu0 0.0
        %1592 = vmatprep.subr.mxu0 0.0
        %1593 = vmatpush2.msra.mxu0 0.0
        %1594 = vmatprep.subr.mxu0 0.0
        %1595 = vmatpush2.msra.mxu0 0.0
        %1596 = vmatprep.subr.mxu0 0.0
        %1597 = vmatpush2.msra.mxu0 0.0
        %1598 = vmatprep.subr.mxu0 0.0
        %1599 = vmatpush2.msra.mxu0 0.0
        %1600 = vmatprep.subr.mxu0 0.0
        %1601 = vmatpush2.msra.mxu0 0.0
        %1602 = vmatprep.subr.mxu0 0.0
        %1603 = vmatpush2.msra.mxu0 0.0
        %1604 = vmatprep.subr.mxu0 0.0
        %1605 = vmatpush2.msra.mxu0 0.0
        %1606 = vmatprep.subr.mxu0 0.0
        %1607 = vmatpush2.msra.mxu0 0.0
        %1608 = vmatprep.subr.mxu0 0.0
        %1609 = vmatpush2.msra.mxu0 0.0
        %1610 = vmatprep.subr.mxu0 0.0
        %1611 = vmatpush2.msra.mxu0 0.0
        %1612 = vmatprep.subr.mxu0 0.0
        %1613 = vmatpush2.msra.mxu0 0.0
        %1614 = vmatprep.subr.mxu0 0.0
        %1615 = vmatpush2.msra.mxu0 0.0
        %1616 = vmatprep.mubr.f32.mxu0 0.0
        %1617 = vmatmul.mubr.f32.gmra.mxu0 %v1369
        %v1618 = vpop.f32.mrf.mxu0
        %v1619 = vadd.f32 %v1453, %v1618
        %v1620 = vpop.f32.mrf.mxu0
        %1621 = vmatprep.mubr.f32.mxu0 0.0
        %1622 = vmatmul.mubr.f32.gmra.mxu0 %v1374
        %v1623 = vpop.f32.mrf.mxu0
        %v1624 = vadd.f32 %v1453, %v1623
        %v1625 = vpop.f32.mrf.mxu0
        %1626 = vmatprep.mubr.f32.mxu0 0.0
        %1627 = vmatmul.mubr.f32.gmra.mxu0 %v1379
        %v1628 = vpop.f32.mrf.mxu0
        %v1629 = vadd.f32 %v1453, %v1628
        %v1630 = vpop.f32.mrf.mxu0
        %1631 = vmatprep.mubr.f32.mxu0 0.0
        %1632 = vmatmul.mubr.f32.gmra.mxu0 %v1384
        %v1633 = vpop.f32.mrf.mxu0
        %v1634 = vadd.f32 %v1453, %v1633
        %v1635 = vpop.f32.mrf.mxu0
        %1636 = vmatprep.mubr.f32.mxu0 0.0
        %1637 = vmatmul.mubr.f32.gmra.mxu0 %v1389
        %v1638 = vpop.f32.mrf.mxu0
        %v1639 = vadd.f32 %v1453, %v1638
        %v1640 = vpop.f32.mrf.mxu0
        %1641 = vdwg.mxu0
        %vm1642 = vcmask 261120
        %v1644 = vsel %vm1642, %v1524, 0
        %v1647 = vsel %vm1642, %v1530, 0
        %v1650 = vsel %vm1642, %v1536, 0
        %v1653 = vsel %vm1642, %v1542, 0
        %v1656 = vsel %vm1642, %v1548, 0
        %v1659 = vsel %vm1642, %v1526, 0
        %v1662 = vsel %vm1642, %v1532, 0
        %v1665 = vsel %vm1642, %v1538, 0
        %v1668 = vsel %vm1642, %v1544, 0
        %v1671 = vsel %vm1642, %v1550, 0
        %1673 = vmatprep.subr.mxu0 0.0
        %1674 = vmatpush1.xpose.msra.mxu0 0.0
        %1675 = vmatprep.subr.mxu0 0.0
        %1676 = vmatpush1.xpose.msra.mxu0 0.0
        %1677 = vmatprep.subr.mxu0 0.0
        %1678 = vmatpush1.xpose.msra.mxu0 0.0
        %1679 = vmatprep.subr.mxu0 0.0
        %1680 = vmatpush1.xpose.msra.mxu0 0.0
        %1681 = vmatprep.subr.mxu0 0.0
        %1682 = vmatpush1.xpose.msra.mxu0 0.0
        %1683 = vmatprep.subr.mxu0 0.0
        %1684 = vmatpush1.xpose.msra.mxu0 0.0
        %1685 = vmatprep.subr.mxu0 0.0
        %1686 = vmatpush1.xpose.msra.mxu0 0.0
        %1687 = vmatprep.subr.mxu0 0.0
        %1688 = vmatpush1.xpose.msra.mxu0 0.0
        %1689 = vmatprep.subr.mxu0 0.0
        %1690 = vmatpush1.xpose.msra.mxu0 0.0
        %1691 = vmatprep.subr.mxu0 0.0
        %1692 = vmatpush1.xpose.msra.mxu0 0.0
        %1693 = vmatprep.subr.mxu0 0.0
        %1694 = vmatpush1.xpose.msra.mxu0 0.0
        %1695 = vmatprep.subr.mxu0 0.0
        %1696 = vmatpush1.xpose.msra.mxu0 %v1671
        %1697 = vmatprep.subr.mxu0 0.0
        %1698 = vmatpush1.xpose.msra.mxu0 %v1668
        %1699 = vmatprep.subr.mxu0 0.0
        %1700 = vmatpush1.xpose.msra.mxu0 %v1665
        %1701 = vmatprep.subr.mxu0 0.0
        %1702 = vmatpush1.xpose.msra.mxu0 %v1662
        %1703 = vmatprep.subr.mxu0 0.0
        %1704 = vmatpush1.xpose.msra.mxu0 %v1659
        %1705 = vmatprep.subr.mxu0 0.0
        %1706 = vmatpush2.xpose.msra.mxu0 0.0
        %1707 = vmatprep.subr.mxu0 0.0
        %1708 = vmatpush2.xpose.msra.mxu0 0.0
        %1709 = vmatprep.subr.mxu0 0.0
        %1710 = vmatpush2.xpose.msra.mxu0 0.0
        %1711 = vmatprep.subr.mxu0 0.0
        %1712 = vmatpush2.xpose.msra.mxu0 0.0
        %1713 = vmatprep.subr.mxu0 0.0
        %1714 = vmatpush2.xpose.msra.mxu0 0.0
        %1715 = vmatprep.subr.mxu0 0.0
        %1716 = vmatpush2.xpose.msra.mxu0 0.0
        %1717 = vmatprep.subr.mxu0 0.0
        %1718 = vmatpush2.xpose.msra.mxu0 0.0
        %1719 = vmatprep.subr.mxu0 0.0
        %1720 = vmatpush2.xpose.msra.mxu0 0.0
        %1721 = vmatprep.subr.mxu0 0.0
        %1722 = vmatpush2.xpose.msra.mxu0 0.0
        %1723 = vmatprep.subr.mxu0 0.0
        %1724 = vmatpush2.xpose.msra.mxu0 0.0
        %1725 = vmatprep.subr.mxu0 0.0
        %1726 = vmatpush2.xpose.msra.mxu0 0.0
        %1727 = vmatprep.subr.mxu0 0.0
        %1728 = vmatpush2.xpose.msra.mxu0 0.0
        %1729 = vmatprep.subr.mxu0 0.0
        %1730 = vmatpush2.xpose.msra.mxu0 0.0
        %1731 = vmatprep.subr.mxu0 0.0
        %1732 = vmatpush2.xpose.msra.mxu0 0.0
        %1733 = vmatprep.subr.mxu0 0.0
        %1734 = vmatpush2.xpose.msra.mxu0 0.0
        %1735 = vmatprep.subr.mxu0 0.0
        %1736 = vmatpush2.xpose.msra.mxu0 0.0
        %1737 = vmatprep.mubr.f32.mxu0 0.0
        %1738 = vmatmul.mubr.f32.gmra.mxu0 %v1644
        %v1739 = vpop.f32.mrf.mxu0
        %v1740 = vadd.f32 0.0, %v1739
        %v1741 = vpop.f32.mrf.mxu0
        %1742 = vmatprep.mubr.f32.mxu0 0.0
        %1743 = vmatmul.mubr.f32.gmra.mxu0 %v1647
        %v1744 = vpop.f32.mrf.mxu0
        %v1745 = vadd.f32 0.0, %v1744
        %v1746 = vpop.f32.mrf.mxu0
        %1747 = vmatprep.mubr.f32.mxu0 0.0
        %1748 = vmatmul.mubr.f32.gmra.mxu0 %v1650
        %v1749 = vpop.f32.mrf.mxu0
        %v1750 = vadd.f32 0.0, %v1749
        %v1751 = vpop.f32.mrf.mxu0
        %1752 = vmatprep.mubr.f32.mxu0 0.0
        %1753 = vmatmul.mubr.f32.gmra.mxu0 %v1653
        %v1754 = vpop.f32.mrf.mxu0
        %v1755 = vadd.f32 0.0, %v1754
        %v1756 = vpop.f32.mrf.mxu0
        %1757 = vmatprep.mubr.f32.mxu0 0.0
        %1758 = vmatmul.mubr.f32.gmra.mxu0 %v1656
        %v1759 = vpop.f32.mrf.mxu0
        %v1760 = vadd.f32 0.0, %v1759
        %v1761 = vpop.f32.mrf.mxu0
        %1762 = vdwg.mxu0
        %v1763 = vmul.f32 %v1740, 0.17677669
        %v1764 = vmul.f32 %v1745, 0.17677669
        %v1765 = vmul.f32 %v1750, 0.17677669
        %v1766 = vmul.f32 %v1755, 0.17677669
        %v1767 = vmul.f32 %v1760, 0.17677669
        %v1768 = vadd.f32 %v1763, %v1041
        %v1769 = vadd.f32 %v1764, %v1042
        %v1770 = vadd.f32 %v1765, %v1043
        %v1771 = vadd.f32 %v1766, %v1044
        %v1772 = vadd.f32 %v1767, %v1045
        %vm1773 = vcmask 326656
        %v1774 = vsel %vm1773, %v1768, -inf
        %1775 = vmax.xlane.f32.xlu0 %v1774
        %v1776 = vpop.xlane.xlu0 %1775
        %v1777 = vsel %vm1773, %v1769, -inf
        %1778 = vmax.xlane.f32.xlu0 %v1777
        %v1779 = vpop.xlane.xlu0 %1778
        %v1780 = vsel %vm1773, %v1770, -inf
        %1781 = vmax.xlane.f32.xlu0 %v1780
        %v1782 = vpop.xlane.xlu0 %1781
        %v1783 = vsel %vm1773, %v1771, -inf
        %1784 = vmax.xlane.f32.xlu0 %v1783
        %v1785 = vpop.xlane.xlu0 %1784
        %v1786 = vsel %vm1773, %v1772, -inf
        %1787 = vmax.xlane.f32.xlu0 %v1786
        %v1788 = vpop.xlane.xlu0 %1787
        %v1789 = vsub.f32 %v1768, %v1776
        %v1790 = vsub.f32 %v1769, %v1779
        %v1791 = vsub.f32 %v1770, %v1782
        %v1792 = vsub.f32 %v1771, %v1785
        %v1793 = vsub.f32 %v1772, %v1788
        %v1794 = vmul.f32 %v1789, 1.442695
        %v1795 = vpow.pop %v1794
        %v1796 = vmul.f32 %v1790, 1.442695
        %v1797 = vpow.pop %v1796
        %v1798 = vmul.f32 %v1791, 1.442695
        %v1799 = vpow.pop %v1798
        %v1800 = vmul.f32 %v1792, 1.442695
        %v1801 = vpow.pop %v1800
        %v1802 = vmul.f32 %v1793, 1.442695
        %v1803 = vpow.pop %v1802
        %v1804 = vsel %vm1773, %v1795, 0.0
        %1805 = vadd.xlane.f32.xlu0 %v1804
        %v1806 = vpop.xlane.xlu0 %1805
        %v1807 = vsel %vm1773, %v1797, 0.0
        %1808 = vadd.xlane.f32.xlu0 %v1807
        %v1809 = vpop.xlane.xlu0 %1808
        %v1810 = vsel %vm1773, %v1799, 0.0
        %1811 = vadd.xlane.f32.xlu0 %v1810
        %v1812 = vpop.xlane.xlu0 %1811
        %v1813 = vsel %vm1773, %v1801, 0.0
        %1814 = vadd.xlane.f32.xlu0 %v1813
        %v1815 = vpop.xlane.xlu0 %1814
        %v1816 = vsel %vm1773, %v1803, 0.0
        %1817 = vadd.xlane.f32.xlu0 %v1816
        %v1818 = vpop.xlane.xlu0 %1817
        %v1819 = vrcp.pop %v1806
        %v1820 = vrcp.pop %v1809
        %v1821 = vrcp.pop %v1812
        %v1822 = vrcp.pop %v1815
        %v1823 = vrcp.pop %v1818
        %v1824 = vmul.f32 %v1795, %v1819
        %v1825 = vmul.f32 %v1797, %v1820
        %v1826 = vmul.f32 %v1799, %v1821
        %v1827 = vmul.f32 %v1801, %v1822
        %v1828 = vmul.f32 %v1803, %v1823
        %v1830 = vsel %vm1773, %v1824, 0
        %v1833 = vsel %vm1773, %v1825, 0
        %v1836 = vsel %vm1773, %v1826, 0
        %v1839 = vsel %vm1773, %v1827, 0
        %v1842 = vsel %vm1773, %v1828, 0
        %1844 = vmatprep.subr.mxu0 0.0
        %1845 = vmatpush1.msra.mxu0 0.0
        %1846 = vmatprep.subr.mxu0 0.0
        %1847 = vmatpush1.msra.mxu0 0.0
        %1848 = vmatprep.subr.mxu0 0.0
        %1849 = vmatpush1.msra.mxu0 0.0
        %1850 = vmatprep.subr.mxu0 0.0
        %1851 = vmatpush1.msra.mxu0 0.0
        %1852 = vmatprep.subr.mxu0 0.0
        %1853 = vmatpush1.msra.mxu0 0.0
        %1854 = vmatprep.subr.mxu0 0.0
        %1855 = vmatpush1.msra.mxu0 0.0
        %1856 = vmatprep.subr.mxu0 0.0
        %1857 = vmatpush1.msra.mxu0 0.0
        %1858 = vmatprep.subr.mxu0 0.0
        %1859 = vmatpush1.msra.mxu0 0.0
        %1860 = vmatprep.subr.mxu0 0.0
        %1861 = vmatpush1.msra.mxu0 0.0
        %1862 = vmatprep.subr.mxu0 0.0
        %1863 = vmatpush1.msra.mxu0 0.0
        %1864 = vmatprep.subr.mxu0 0.0
        %1865 = vmatpush1.msra.mxu0 0.0
        %1866 = vmatprep.subr.mxu0 0.0
        %1867 = vmatpush1.msra.mxu0 %v1639
        %1868 = vmatprep.subr.mxu0 0.0
        %1869 = vmatpush1.msra.mxu0 %v1634
        %1870 = vmatprep.subr.mxu0 0.0
        %1871 = vmatpush1.msra.mxu0 %v1629
        %1872 = vmatprep.subr.mxu0 0.0
        %1873 = vmatpush1.msra.mxu0 %v1624
        %1874 = vmatprep.subr.mxu0 0.0
        %1875 = vmatpush1.msra.mxu0 %v1619
        %1876 = vmatprep.subr.mxu0 0.0
        %1877 = vmatpush2.msra.mxu0 0.0
        %1878 = vmatprep.subr.mxu0 0.0
        %1879 = vmatpush2.msra.mxu0 0.0
        %1880 = vmatprep.subr.mxu0 0.0
        %1881 = vmatpush2.msra.mxu0 0.0
        %1882 = vmatprep.subr.mxu0 0.0
        %1883 = vmatpush2.msra.mxu0 0.0
        %1884 = vmatprep.subr.mxu0 0.0
        %1885 = vmatpush2.msra.mxu0 0.0
        %1886 = vmatprep.subr.mxu0 0.0
        %1887 = vmatpush2.msra.mxu0 0.0
        %1888 = vmatprep.subr.mxu0 0.0
        %1889 = vmatpush2.msra.mxu0 0.0
        %1890 = vmatprep.subr.mxu0 0.0
        %1891 = vmatpush2.msra.mxu0 0.0
        %1892 = vmatprep.subr.mxu0 0.0
        %1893 = vmatpush2.msra.mxu0 0.0
        %1894 = vmatprep.subr.mxu0 0.0
        %1895 = vmatpush2.msra.mxu0 0.0
        %1896 = vmatprep.subr.mxu0 0.0
        %1897 = vmatpush2.msra.mxu0 0.0
        %1898 = vmatprep.subr.mxu0 0.0
        %1899 = vmatpush2.msra.mxu0 0.0
        %1900 = vmatprep.subr.mxu0 0.0
        %1901 = vmatpush2.msra.mxu0 0.0
        %1902 = vmatprep.subr.mxu0 0.0
        %1903 = vmatpush2.msra.mxu0 0.0
        %1904 = vmatprep.subr.mxu0 0.0
        %1905 = vmatpush2.msra.mxu0 0.0
        %1906 = vmatprep.subr.mxu0 0.0
        %1907 = vmatpush2.msra.mxu0 0.0
        %1908 = vmatprep.mubr.f32.mxu0 0.0
        %1909 = vmatmul.mubr.f32.gmra.mxu0 %v1830
        %v1910 = vpop.f32.mrf.mxu0
        %v1911 = vadd.f32 0.0, %v1910
        %v1912 = vpop.f32.mrf.mxu0
        %1913 = vmatprep.mubr.f32.mxu0 0.0
        %1914 = vmatmul.mubr.f32.gmra.mxu0 %v1833
        %v1915 = vpop.f32.mrf.mxu0
        %v1916 = vadd.f32 0.0, %v1915
        %v1917 = vpop.f32.mrf.mxu0
        %1918 = vmatprep.mubr.f32.mxu0 0.0
        %1919 = vmatmul.mubr.f32.gmra.mxu0 %v1836
        %v1920 = vpop.f32.mrf.mxu0
        %v1921 = vadd.f32 0.0, %v1920
        %v1922 = vpop.f32.mrf.mxu0
        %1923 = vmatprep.mubr.f32.mxu0 0.0
        %1924 = vmatmul.mubr.f32.gmra.mxu0 %v1839
        %v1925 = vpop.f32.mrf.mxu0
        %v1926 = vadd.f32 0.0, %v1925
        %v1927 = vpop.f32.mrf.mxu0
        %1928 = vmatprep.mubr.f32.mxu0 0.0
        %1929 = vmatmul.mubr.f32.gmra.mxu0 %v1842
        %v1930 = vpop.f32.mrf.mxu0
        %v1931 = vadd.f32 0.0, %v1930
        %v1932 = vpop.f32.mrf.mxu0
        %1933 = vdwg.mxu0
        %1934 = vrot.lane.b32.xlu0 %v1524, 96
        %v1935 = vpop.permute.xlu0 %1934
        %1936 = vrot.lane.b32.xlu0 %v1530, 96
        %v1937 = vpop.permute.xlu0 %1936
        %1938 = vrot.lane.b32.xlu0 %v1536, 96
        %v1939 = vpop.permute.xlu0 %1938
        %1940 = vrot.lane.b32.xlu0 %v1542, 96
        %v1941 = vpop.permute.xlu0 %1940
        %1942 = vrot.lane.b32.xlu0 %v1548, 96
        %v1943 = vpop.permute.xlu0 %1942
        %1944 = vrot.lane.b32.xlu0 %v1526, 96
        %v1945 = vpop.permute.xlu0 %1944
        %1946 = vrot.lane.b32.xlu0 %v1532, 96
        %v1947 = vpop.permute.xlu0 %1946
        %1948 = vrot.lane.b32.xlu0 %v1538, 96
        %v1949 = vpop.permute.xlu0 %1948
        %1950 = vrot.lane.b32.xlu0 %v1544, 96
        %v1951 = vpop.permute.xlu0 %1950
        %1952 = vrot.lane.b32.xlu0 %v1550, 96
        %v1953 = vpop.permute.xlu0 %1952
        %v1954 = vsel %vm1642, %v1935, 0
        %v1956 = vsel %vm1642, %v1937, 0
        %v1958 = vsel %vm1642, %v1939, 0
        %v1960 = vsel %vm1642, %v1941, 0
        %v1962 = vsel %vm1642, %v1943, 0
        %v1964 = vsel %vm1642, %v1945, 0
        %v1966 = vsel %vm1642, %v1947, 0
        %v1968 = vsel %vm1642, %v1949, 0
        %v1970 = vsel %vm1642, %v1951, 0
        %v1972 = vsel %vm1642, %v1953, 0
        %1974 = vmatprep.subr.mxu0 0.0
        %1975 = vmatpush1.xpose.msra.mxu0 0.0
        %1976 = vmatprep.subr.mxu0 0.0
        %1977 = vmatpush1.xpose.msra.mxu0 0.0
        %1978 = vmatprep.subr.mxu0 0.0
        %1979 = vmatpush1.xpose.msra.mxu0 0.0
        %1980 = vmatprep.subr.mxu0 0.0
        %1981 = vmatpush1.xpose.msra.mxu0 0.0
        %1982 = vmatprep.subr.mxu0 0.0
        %1983 = vmatpush1.xpose.msra.mxu0 0.0
        %1984 = vmatprep.subr.mxu0 0.0
        %1985 = vmatpush1.xpose.msra.mxu0 0.0
        %1986 = vmatprep.subr.mxu0 0.0
        %1987 = vmatpush1.xpose.msra.mxu0 0.0
        %1988 = vmatprep.subr.mxu0 0.0
        %1989 = vmatpush1.xpose.msra.mxu0 0.0
        %1990 = vmatprep.subr.mxu0 0.0
        %1991 = vmatpush1.xpose.msra.mxu0 0.0
        %1992 = vmatprep.subr.mxu0 0.0
        %1993 = vmatpush1.xpose.msra.mxu0 0.0
        %1994 = vmatprep.subr.mxu0 0.0
        %1995 = vmatpush1.xpose.msra.mxu0 0.0
        %1996 = vmatprep.subr.mxu0 0.0
        %1997 = vmatpush1.xpose.msra.mxu0 %v1972
        %1998 = vmatprep.subr.mxu0 0.0
        %1999 = vmatpush1.xpose.msra.mxu0 %v1970
        %2000 = vmatprep.subr.mxu0 0.0
        %2001 = vmatpush1.xpose.msra.mxu0 %v1968
        %2002 = vmatprep.subr.mxu0 0.0
        %2003 = vmatpush1.xpose.msra.mxu0 %v1966
        %2004 = vmatprep.subr.mxu0 0.0
        %2005 = vmatpush1.xpose.msra.mxu0 %v1964
        %2006 = vmatprep.subr.mxu0 0.0
        %2007 = vmatpush2.xpose.msra.mxu0 0.0
        %2008 = vmatprep.subr.mxu0 0.0
        %2009 = vmatpush2.xpose.msra.mxu0 0.0
        %2010 = vmatprep.subr.mxu0 0.0
        %2011 = vmatpush2.xpose.msra.mxu0 0.0
        %2012 = vmatprep.subr.mxu0 0.0
        %2013 = vmatpush2.xpose.msra.mxu0 0.0
        %2014 = vmatprep.subr.mxu0 0.0
        %2015 = vmatpush2.xpose.msra.mxu0 0.0
        %2016 = vmatprep.subr.mxu0 0.0
        %2017 = vmatpush2.xpose.msra.mxu0 0.0
        %2018 = vmatprep.subr.mxu0 0.0
        %2019 = vmatpush2.xpose.msra.mxu0 0.0
        %2020 = vmatprep.subr.mxu0 0.0
        %2021 = vmatpush2.xpose.msra.mxu0 0.0
        %2022 = vmatprep.subr.mxu0 0.0
        %2023 = vmatpush2.xpose.msra.mxu0 0.0
        %2024 = vmatprep.subr.mxu0 0.0
        %2025 = vmatpush2.xpose.msra.mxu0 0.0
        %2026 = vmatprep.subr.mxu0 0.0
        %2027 = vmatpush2.xpose.msra.mxu0 0.0
        %2028 = vmatprep.subr.mxu0 0.0
        %2029 = vmatpush2.xpose.msra.mxu0 0.0
        %2030 = vmatprep.subr.mxu0 0.0
        %2031 = vmatpush2.xpose.msra.mxu0 0.0
        %2032 = vmatprep.subr.mxu0 0.0
        %2033 = vmatpush2.xpose.msra.mxu0 0.0
        %2034 = vmatprep.subr.mxu0 0.0
        %2035 = vmatpush2.xpose.msra.mxu0 0.0
        %2036 = vmatprep.subr.mxu0 0.0
        %2037 = vmatpush2.xpose.msra.mxu0 0.0
        %2038 = vmatprep.mubr.f32.mxu0 0.0
        %2039 = vmatmul.mubr.f32.gmra.mxu0 %v1954
        %v2040 = vpop.f32.mrf.mxu0
        %v2041 = vadd.f32 0.0, %v2040
        %v2042 = vpop.f32.mrf.mxu0
        %2043 = vmatprep.mubr.f32.mxu0 0.0
        %2044 = vmatmul.mubr.f32.gmra.mxu0 %v1956
        %v2045 = vpop.f32.mrf.mxu0
        %v2046 = vadd.f32 0.0, %v2045
        %v2047 = vpop.f32.mrf.mxu0
        %2048 = vmatprep.mubr.f32.mxu0 0.0
        %2049 = vmatmul.mubr.f32.gmra.mxu0 %v1958
        %v2050 = vpop.f32.mrf.mxu0
        %v2051 = vadd.f32 0.0, %v2050
        %v2052 = vpop.f32.mrf.mxu0
        %2053 = vmatprep.mubr.f32.mxu0 0.0
        %2054 = vmatmul.mubr.f32.gmra.mxu0 %v1960
        %v2055 = vpop.f32.mrf.mxu0
        %v2056 = vadd.f32 0.0, %v2055
        %v2057 = vpop.f32.mrf.mxu0
        %2058 = vmatprep.mubr.f32.mxu0 0.0
        %2059 = vmatmul.mubr.f32.gmra.mxu0 %v1962
        %v2060 = vpop.f32.mrf.mxu0
        %v2061 = vadd.f32 0.0, %v2060
        %v2062 = vpop.f32.mrf.mxu0
        %2063 = vdwg.mxu0
        %v2064 = vmul.f32 %v2041, 0.17677669
        %v2065 = vmul.f32 %v2046, 0.17677669
        %v2066 = vmul.f32 %v2051, 0.17677669
        %v2067 = vmul.f32 %v2056, 0.17677669
        %v2068 = vmul.f32 %v2061, 0.17677669
        %v2069 = vadd.f32 %v2064, %v1041
        %v2070 = vadd.f32 %v2065, %v1042
        %v2071 = vadd.f32 %v2066, %v1043
        %v2072 = vadd.f32 %v2067, %v1044
        %v2073 = vadd.f32 %v2068, %v1045
        %v2074 = vsel %vm1773, %v2069, -inf
        %2075 = vmax.xlane.f32.xlu0 %v2074
        %v2076 = vpop.xlane.xlu0 %2075
        %v2077 = vsel %vm1773, %v2070, -inf
        %2078 = vmax.xlane.f32.xlu0 %v2077
        %v2079 = vpop.xlane.xlu0 %2078
        %v2080 = vsel %vm1773, %v2071, -inf
        %2081 = vmax.xlane.f32.xlu0 %v2080
        %v2082 = vpop.xlane.xlu0 %2081
        %v2083 = vsel %vm1773, %v2072, -inf
        %2084 = vmax.xlane.f32.xlu0 %v2083
        %v2085 = vpop.xlane.xlu0 %2084
        %v2086 = vsel %vm1773, %v2073, -inf
        %2087 = vmax.xlane.f32.xlu0 %v2086
        %v2088 = vpop.xlane.xlu0 %2087
        %v2089 = vsub.f32 %v2069, %v2076
        %v2090 = vsub.f32 %v2070, %v2079
        %v2091 = vsub.f32 %v2071, %v2082
        %v2092 = vsub.f32 %v2072, %v2085
        %v2093 = vsub.f32 %v2073, %v2088
        %v2094 = vmul.f32 %v2089, 1.442695
        %v2095 = vpow.pop %v2094
        %v2096 = vmul.f32 %v2090, 1.442695
        %v2097 = vpow.pop %v2096
        %v2098 = vmul.f32 %v2091, 1.442695
        %v2099 = vpow.pop %v2098
        %v2100 = vmul.f32 %v2092, 1.442695
        %v2101 = vpow.pop %v2100
        %v2102 = vmul.f32 %v2093, 1.442695
        %v2103 = vpow.pop %v2102
        %v2104 = vsel %vm1773, %v2095, 0.0
        %2105 = vadd.xlane.f32.xlu0 %v2104
        %v2106 = vpop.xlane.xlu0 %2105
        %v2107 = vsel %vm1773, %v2097, 0.0
        %2108 = vadd.xlane.f32.xlu0 %v2107
        %v2109 = vpop.xlane.xlu0 %2108
        %v2110 = vsel %vm1773, %v2099, 0.0
        %2111 = vadd.xlane.f32.xlu0 %v2110
        %v2112 = vpop.xlane.xlu0 %2111
        %v2113 = vsel %vm1773, %v2101, 0.0
        %2114 = vadd.xlane.f32.xlu0 %v2113
        %v2115 = vpop.xlane.xlu0 %2114
        %v2116 = vsel %vm1773, %v2103, 0.0
        %2117 = vadd.xlane.f32.xlu0 %v2116
        %v2118 = vpop.xlane.xlu0 %2117
        %v2119 = vrcp.pop %v2106
        %v2120 = vrcp.pop %v2109
        %v2121 = vrcp.pop %v2112
        %v2122 = vrcp.pop %v2115
        %v2123 = vrcp.pop %v2118
        %v2124 = vmul.f32 %v2095, %v2119
        %v2125 = vmul.f32 %v2097, %v2120
        %v2126 = vmul.f32 %v2099, %v2121
        %v2127 = vmul.f32 %v2101, %v2122
        %v2128 = vmul.f32 %v2103, %v2123
        %2134 = vrot.lane.b32.xlu0 %v1619, 96
        %v2135 = vpop.permute.xlu0 %2134
        %2136 = vrot.lane.b32.xlu0 %v1624, 96
        %v2137 = vpop.permute.xlu0 %2136
        %2138 = vrot.lane.b32.xlu0 %v1629, 96
        %v2139 = vpop.permute.xlu0 %2138
        %2140 = vrot.lane.b32.xlu0 %v1634, 96
        %v2141 = vpop.permute.xlu0 %2140
        %2142 = vrot.lane.b32.xlu0 %v1639, 96
        %v2143 = vpop.permute.xlu0 %2142
        %v2150 = vsel %vm1773, %v2124, 0
        %v2153 = vsel %vm1773, %v2125, 0
        %v2156 = vsel %vm1773, %v2126, 0
        %v2159 = vsel %vm1773, %v2127, 0
        %v2162 = vsel %vm1773, %v2128, 0
        %2164 = vmatprep.subr.mxu0 0.0
        %2165 = vmatpush1.msra.mxu0 0.0
        %2166 = vmatprep.subr.mxu0 0.0
        %2167 = vmatpush1.msra.mxu0 0.0
        %2168 = vmatprep.subr.mxu0 0.0
        %2169 = vmatpush1.msra.mxu0 0.0
        %2170 = vmatprep.subr.mxu0 0.0
        %2171 = vmatpush1.msra.mxu0 0.0
        %2172 = vmatprep.subr.mxu0 0.0
        %2173 = vmatpush1.msra.mxu0 0.0
        %2174 = vmatprep.subr.mxu0 0.0
        %2175 = vmatpush1.msra.mxu0 0.0
        %2176 = vmatprep.subr.mxu0 0.0
        %2177 = vmatpush1.msra.mxu0 0.0
        %2178 = vmatprep.subr.mxu0 0.0
        %2179 = vmatpush1.msra.mxu0 0.0
        %2180 = vmatprep.subr.mxu0 0.0
        %2181 = vmatpush1.msra.mxu0 0.0
        %2182 = vmatprep.subr.mxu0 0.0
        %2183 = vmatpush1.msra.mxu0 0.0
        %2184 = vmatprep.subr.mxu0 0.0
        %2185 = vmatpush1.msra.mxu0 0.0
        %2186 = vmatprep.subr.mxu0 0.0
        %2187 = vmatpush1.msra.mxu0 %v2143
        %2188 = vmatprep.subr.mxu0 0.0
        %2189 = vmatpush1.msra.mxu0 %v2141
        %2190 = vmatprep.subr.mxu0 0.0
        %2191 = vmatpush1.msra.mxu0 %v2139
        %2192 = vmatprep.subr.mxu0 0.0
        %2193 = vmatpush1.msra.mxu0 %v2137
        %2194 = vmatprep.subr.mxu0 0.0
        %2195 = vmatpush1.msra.mxu0 %v2135
        %2196 = vmatprep.subr.mxu0 0.0
        %2197 = vmatpush2.msra.mxu0 0.0
        %2198 = vmatprep.subr.mxu0 0.0
        %2199 = vmatpush2.msra.mxu0 0.0
        %2200 = vmatprep.subr.mxu0 0.0
        %2201 = vmatpush2.msra.mxu0 0.0
        %2202 = vmatprep.subr.mxu0 0.0
        %2203 = vmatpush2.msra.mxu0 0.0
        %2204 = vmatprep.subr.mxu0 0.0
        %2205 = vmatpush2.msra.mxu0 0.0
        %2206 = vmatprep.subr.mxu0 0.0
        %2207 = vmatpush2.msra.mxu0 0.0
        %2208 = vmatprep.subr.mxu0 0.0
        %2209 = vmatpush2.msra.mxu0 0.0
        %2210 = vmatprep.subr.mxu0 0.0
        %2211 = vmatpush2.msra.mxu0 0.0
        %2212 = vmatprep.subr.mxu0 0.0
        %2213 = vmatpush2.msra.mxu0 0.0
        %2214 = vmatprep.subr.mxu0 0.0
        %2215 = vmatpush2.msra.mxu0 0.0
        %2216 = vmatprep.subr.mxu0 0.0
        %2217 = vmatpush2.msra.mxu0 0.0
        %2218 = vmatprep.subr.mxu0 0.0
        %2219 = vmatpush2.msra.mxu0 0.0
        %2220 = vmatprep.subr.mxu0 0.0
        %2221 = vmatpush2.msra.mxu0 0.0
        %2222 = vmatprep.subr.mxu0 0.0
        %2223 = vmatpush2.msra.mxu0 0.0
        %2224 = vmatprep.subr.mxu0 0.0
        %2225 = vmatpush2.msra.mxu0 0.0
        %2226 = vmatprep.subr.mxu0 0.0
        %2227 = vmatpush2.msra.mxu0 0.0
        %2228 = vmatprep.mubr.f32.mxu0 0.0
        %2229 = vmatmul.mubr.f32.gmra.mxu0 %v2150
        %v2230 = vpop.f32.mrf.mxu0
        %v2231 = vadd.f32 0.0, %v2230
        %v2232 = vpop.f32.mrf.mxu0
        %2233 = vmatprep.mubr.f32.mxu0 0.0
        %2234 = vmatmul.mubr.f32.gmra.mxu0 %v2153
        %v2235 = vpop.f32.mrf.mxu0
        %v2236 = vadd.f32 0.0, %v2235
        %v2237 = vpop.f32.mrf.mxu0
        %2238 = vmatprep.mubr.f32.mxu0 0.0
        %2239 = vmatmul.mubr.f32.gmra.mxu0 %v2156
        %v2240 = vpop.f32.mrf.mxu0
        %v2241 = vadd.f32 0.0, %v2240
        %v2242 = vpop.f32.mrf.mxu0
        %2243 = vmatprep.mubr.f32.mxu0 0.0
        %2244 = vmatmul.mubr.f32.gmra.mxu0 %v2159
        %v2245 = vpop.f32.mrf.mxu0
        %v2246 = vadd.f32 0.0, %v2245
        %v2247 = vpop.f32.mrf.mxu0
        %2248 = vmatprep.mubr.f32.mxu0 0.0
        %2249 = vmatmul.mubr.f32.gmra.mxu0 %v2162
        %v2250 = vpop.f32.mrf.mxu0
        %v2251 = vadd.f32 0.0, %v2250
        %v2252 = vpop.f32.mrf.mxu0
        %2253 = vdwg.mxu0
        %2254 = vrot.lane.b32.xlu0 %v1524, 64
        %v2255 = vpop.permute.xlu0 %2254
        %2256 = vrot.lane.b32.xlu0 %v1530, 64
        %v2257 = vpop.permute.xlu0 %2256
        %2258 = vrot.lane.b32.xlu0 %v1536, 64
        %v2259 = vpop.permute.xlu0 %2258
        %2260 = vrot.lane.b32.xlu0 %v1542, 64
        %v2261 = vpop.permute.xlu0 %2260
        %2262 = vrot.lane.b32.xlu0 %v1548, 64
        %v2263 = vpop.permute.xlu0 %2262
        %2264 = vrot.lane.b32.xlu0 %v1526, 64
        %v2265 = vpop.permute.xlu0 %2264
        %2266 = vrot.lane.b32.xlu0 %v1532, 64
        %v2267 = vpop.permute.xlu0 %2266
        %2268 = vrot.lane.b32.xlu0 %v1538, 64
        %v2269 = vpop.permute.xlu0 %2268
        %2270 = vrot.lane.b32.xlu0 %v1544, 64
        %v2271 = vpop.permute.xlu0 %2270
        %2272 = vrot.lane.b32.xlu0 %v1550, 64
        %v2273 = vpop.permute.xlu0 %2272
        %v2274 = vsel %vm1642, %v2255, 0
        %v2276 = vsel %vm1642, %v2257, 0
        %v2278 = vsel %vm1642, %v2259, 0
        %v2280 = vsel %vm1642, %v2261, 0
        %v2282 = vsel %vm1642, %v2263, 0
        %v2284 = vsel %vm1642, %v2265, 0
        %v2286 = vsel %vm1642, %v2267, 0
        %v2288 = vsel %vm1642, %v2269, 0
        %v2290 = vsel %vm1642, %v2271, 0
        %v2292 = vsel %vm1642, %v2273, 0
        %2294 = vmatprep.subr.mxu0 0.0
        %2295 = vmatpush1.xpose.msra.mxu0 0.0
        %2296 = vmatprep.subr.mxu0 0.0
        %2297 = vmatpush1.xpose.msra.mxu0 0.0
        %2298 = vmatprep.subr.mxu0 0.0
        %2299 = vmatpush1.xpose.msra.mxu0 0.0
        %2300 = vmatprep.subr.mxu0 0.0
        %2301 = vmatpush1.xpose.msra.mxu0 0.0
        %2302 = vmatprep.subr.mxu0 0.0
        %2303 = vmatpush1.xpose.msra.mxu0 0.0
        %2304 = vmatprep.subr.mxu0 0.0
        %2305 = vmatpush1.xpose.msra.mxu0 0.0
        %2306 = vmatprep.subr.mxu0 0.0
        %2307 = vmatpush1.xpose.msra.mxu0 0.0
        %2308 = vmatprep.subr.mxu0 0.0
        %2309 = vmatpush1.xpose.msra.mxu0 0.0
        %2310 = vmatprep.subr.mxu0 0.0
        %2311 = vmatpush1.xpose.msra.mxu0 0.0
        %2312 = vmatprep.subr.mxu0 0.0
        %2313 = vmatpush1.xpose.msra.mxu0 0.0
        %2314 = vmatprep.subr.mxu0 0.0
        %2315 = vmatpush1.xpose.msra.mxu0 0.0
        %2316 = vmatprep.subr.mxu0 0.0
        %2317 = vmatpush1.xpose.msra.mxu0 %v2292
        %2318 = vmatprep.subr.mxu0 0.0
        %2319 = vmatpush1.xpose.msra.mxu0 %v2290
        %2320 = vmatprep.subr.mxu0 0.0
        %2321 = vmatpush1.xpose.msra.mxu0 %v2288
        %2322 = vmatprep.subr.mxu0 0.0
        %2323 = vmatpush1.xpose.msra.mxu0 %v2286
        %2324 = vmatprep.subr.mxu0 0.0
        %2325 = vmatpush1.xpose.msra.mxu0 %v2284
        %2326 = vmatprep.subr.mxu0 0.0
        %2327 = vmatpush2.xpose.msra.mxu0 0.0
        %2328 = vmatprep.subr.mxu0 0.0
        %2329 = vmatpush2.xpose.msra.mxu0 0.0
        %2330 = vmatprep.subr.mxu0 0.0
        %2331 = vmatpush2.xpose.msra.mxu0 0.0
        %2332 = vmatprep.subr.mxu0 0.0
        %2333 = vmatpush2.xpose.msra.mxu0 0.0
        %2334 = vmatprep.subr.mxu0 0.0
        %2335 = vmatpush2.xpose.msra.mxu0 0.0
        %2336 = vmatprep.subr.mxu0 0.0
        %2337 = vmatpush2.xpose.msra.mxu0 0.0
        %2338 = vmatprep.subr.mxu0 0.0
        %2339 = vmatpush2.xpose.msra.mxu0 0.0
        %2340 = vmatprep.subr.mxu0 0.0
        %2341 = vmatpush2.xpose.msra.mxu0 0.0
        %2342 = vmatprep.subr.mxu0 0.0
        %2343 = vmatpush2.xpose.msra.mxu0 0.0
        %2344 = vmatprep.subr.mxu0 0.0
        %2345 = vmatpush2.xpose.msra.mxu0 0.0
        %2346 = vmatprep.subr.mxu0 0.0
        %2347 = vmatpush2.xpose.msra.mxu0 0.0
        %2348 = vmatprep.subr.mxu0 0.0
        %2349 = vmatpush2.xpose.msra.mxu0 0.0
        %2350 = vmatprep.subr.mxu0 0.0
        %2351 = vmatpush2.xpose.msra.mxu0 0.0
        %2352 = vmatprep.subr.mxu0 0.0
        %2353 = vmatpush2.xpose.msra.mxu0 0.0
        %2354 = vmatprep.subr.mxu0 0.0
        %2355 = vmatpush2.xpose.msra.mxu0 0.0
        %2356 = vmatprep.subr.mxu0 0.0
        %2357 = vmatpush2.xpose.msra.mxu0 0.0
        %2358 = vmatprep.mubr.f32.mxu0 0.0
        %2359 = vmatmul.mubr.f32.gmra.mxu0 %v2274
        %v2360 = vpop.f32.mrf.mxu0
        %v2361 = vadd.f32 0.0, %v2360
        %v2362 = vpop.f32.mrf.mxu0
        %2363 = vmatprep.mubr.f32.mxu0 0.0
        %2364 = vmatmul.mubr.f32.gmra.mxu0 %v2276
        %v2365 = vpop.f32.mrf.mxu0
        %v2366 = vadd.f32 0.0, %v2365
        %v2367 = vpop.f32.mrf.mxu0
        %2368 = vmatprep.mubr.f32.mxu0 0.0
        %2369 = vmatmul.mubr.f32.gmra.mxu0 %v2278
        %v2370 = vpop.f32.mrf.mxu0
        %v2371 = vadd.f32 0.0, %v2370
        %v2372 = vpop.f32.mrf.mxu0
        %2373 = vmatprep.mubr.f32.mxu0 0.0
        %2374 = vmatmul.mubr.f32.gmra.mxu0 %v2280
        %v2375 = vpop.f32.mrf.mxu0
        %v2376 = vadd.f32 0.0, %v2375
        %v2377 = vpop.f32.mrf.mxu0
        %2378 = vmatprep.mubr.f32.mxu0 0.0
        %2379 = vmatmul.mubr.f32.gmra.mxu0 %v2282
        %v2380 = vpop.f32.mrf.mxu0
        %v2381 = vadd.f32 0.0, %v2380
        %v2382 = vpop.f32.mrf.mxu0
        %2383 = vdwg.mxu0
        %v2384 = vmul.f32 %v2361, 0.17677669
        %v2385 = vmul.f32 %v2366, 0.17677669
        %v2386 = vmul.f32 %v2371, 0.17677669
        %v2387 = vmul.f32 %v2376, 0.17677669
        %v2388 = vmul.f32 %v2381, 0.17677669
        %v2389 = vadd.f32 %v2384, %v1041
        %v2390 = vadd.f32 %v2385, %v1042
        %v2391 = vadd.f32 %v2386, %v1043
        %v2392 = vadd.f32 %v2387, %v1044
        %v2393 = vadd.f32 %v2388, %v1045
        %v2394 = vsel %vm1773, %v2389, -inf
        %2395 = vmax.xlane.f32.xlu0 %v2394
        %v2396 = vpop.xlane.xlu0 %2395
        %v2397 = vsel %vm1773, %v2390, -inf
        %2398 = vmax.xlane.f32.xlu0 %v2397
        %v2399 = vpop.xlane.xlu0 %2398
        %v2400 = vsel %vm1773, %v2391, -inf
        %2401 = vmax.xlane.f32.xlu0 %v2400
        %v2402 = vpop.xlane.xlu0 %2401
        %v2403 = vsel %vm1773, %v2392, -inf
        %2404 = vmax.xlane.f32.xlu0 %v2403
        %v2405 = vpop.xlane.xlu0 %2404
        %v2406 = vsel %vm1773, %v2393, -inf
        %2407 = vmax.xlane.f32.xlu0 %v2406
        %v2408 = vpop.xlane.xlu0 %2407
        %v2409 = vsub.f32 %v2389, %v2396
        %v2410 = vsub.f32 %v2390, %v2399
        %v2411 = vsub.f32 %v2391, %v2402
        %v2412 = vsub.f32 %v2392, %v2405
        %v2413 = vsub.f32 %v2393, %v2408
        %v2414 = vmul.f32 %v2409, 1.442695
        %v2415 = vpow.pop %v2414
        %v2416 = vmul.f32 %v2410, 1.442695
        %v2417 = vpow.pop %v2416
        %v2418 = vmul.f32 %v2411, 1.442695
        %v2419 = vpow.pop %v2418
        %v2420 = vmul.f32 %v2412, 1.442695
        %v2421 = vpow.pop %v2420
        %v2422 = vmul.f32 %v2413, 1.442695
        %v2423 = vpow.pop %v2422
        %v2424 = vsel %vm1773, %v2415, 0.0
        %2425 = vadd.xlane.f32.xlu0 %v2424
        %v2426 = vpop.xlane.xlu0 %2425
        %v2427 = vsel %vm1773, %v2417, 0.0
        %2428 = vadd.xlane.f32.xlu0 %v2427
        %v2429 = vpop.xlane.xlu0 %2428
        %v2430 = vsel %vm1773, %v2419, 0.0
        %2431 = vadd.xlane.f32.xlu0 %v2430
        %v2432 = vpop.xlane.xlu0 %2431
        %v2433 = vsel %vm1773, %v2421, 0.0
        %2434 = vadd.xlane.f32.xlu0 %v2433
        %v2435 = vpop.xlane.xlu0 %2434
        %v2436 = vsel %vm1773, %v2423, 0.0
        %2437 = vadd.xlane.f32.xlu0 %v2436
        %v2438 = vpop.xlane.xlu0 %2437
        %v2439 = vrcp.pop %v2426
        %v2440 = vrcp.pop %v2429
        %v2441 = vrcp.pop %v2432
        %v2442 = vrcp.pop %v2435
        %v2443 = vrcp.pop %v2438
        %v2444 = vmul.f32 %v2415, %v2439
        %v2445 = vmul.f32 %v2417, %v2440
        %v2446 = vmul.f32 %v2419, %v2441
        %v2447 = vmul.f32 %v2421, %v2442
        %v2448 = vmul.f32 %v2423, %v2443
        %2449 = vrot.lane.b32.xlu0 %v1619, 64
        %v2450 = vpop.permute.xlu0 %2449
        %2451 = vrot.lane.b32.xlu0 %v1624, 64
        %v2452 = vpop.permute.xlu0 %2451
        %2453 = vrot.lane.b32.xlu0 %v1629, 64
        %v2454 = vpop.permute.xlu0 %2453
        %2455 = vrot.lane.b32.xlu0 %v1634, 64
        %v2456 = vpop.permute.xlu0 %2455
        %2457 = vrot.lane.b32.xlu0 %v1639, 64
        %v2458 = vpop.permute.xlu0 %2457
        %v2465 = vsel %vm1773, %v2444, 0
        %v2468 = vsel %vm1773, %v2445, 0
        %v2471 = vsel %vm1773, %v2446, 0
        %v2474 = vsel %vm1773, %v2447, 0
        %v2477 = vsel %vm1773, %v2448, 0
        %2479 = vmatprep.subr.mxu0 0.0
        %2480 = vmatpush1.msra.mxu0 0.0
        %2481 = vmatprep.subr.mxu0 0.0
        %2482 = vmatpush1.msra.mxu0 0.0
        %2483 = vmatprep.subr.mxu0 0.0
        %2484 = vmatpush1.msra.mxu0 0.0
        %2485 = vmatprep.subr.mxu0 0.0
        %2486 = vmatpush1.msra.mxu0 0.0
        %2487 = vmatprep.subr.mxu0 0.0
        %2488 = vmatpush1.msra.mxu0 0.0
        %2489 = vmatprep.subr.mxu0 0.0
        %2490 = vmatpush1.msra.mxu0 0.0
        %2491 = vmatprep.subr.mxu0 0.0
        %2492 = vmatpush1.msra.mxu0 0.0
        %2493 = vmatprep.subr.mxu0 0.0
        %2494 = vmatpush1.msra.mxu0 0.0
        %2495 = vmatprep.subr.mxu0 0.0
        %2496 = vmatpush1.msra.mxu0 0.0
        %2497 = vmatprep.subr.mxu0 0.0
        %2498 = vmatpush1.msra.mxu0 0.0
        %2499 = vmatprep.subr.mxu0 0.0
        %2500 = vmatpush1.msra.mxu0 0.0
        %2501 = vmatprep.subr.mxu0 0.0
        %2502 = vmatpush1.msra.mxu0 %v2458
        %2503 = vmatprep.subr.mxu0 0.0
        %2504 = vmatpush1.msra.mxu0 %v2456
        %2505 = vmatprep.subr.mxu0 0.0
        %2506 = vmatpush1.msra.mxu0 %v2454
        %2507 = vmatprep.subr.mxu0 0.0
        %2508 = vmatpush1.msra.mxu0 %v2452
        %2509 = vmatprep.subr.mxu0 0.0
        %2510 = vmatpush1.msra.mxu0 %v2450
        %2511 = vmatprep.subr.mxu0 0.0
        %2512 = vmatpush2.msra.mxu0 0.0
        %2513 = vmatprep.subr.mxu0 0.0
        %2514 = vmatpush2.msra.mxu0 0.0
        %2515 = vmatprep.subr.mxu0 0.0
        %2516 = vmatpush2.msra.mxu0 0.0
        %2517 = vmatprep.subr.mxu0 0.0
        %2518 = vmatpush2.msra.mxu0 0.0
        %2519 = vmatprep.subr.mxu0 0.0
        %2520 = vmatpush2.msra.mxu0 0.0
        %2521 = vmatprep.subr.mxu0 0.0
        %2522 = vmatpush2.msra.mxu0 0.0
        %2523 = vmatprep.subr.mxu0 0.0
        %2524 = vmatpush2.msra.mxu0 0.0
        %2525 = vmatprep.subr.mxu0 0.0
        %2526 = vmatpush2.msra.mxu0 0.0
        %2527 = vmatprep.subr.mxu0 0.0
        %2528 = vmatpush2.msra.mxu0 0.0
        %2529 = vmatprep.subr.mxu0 0.0
        %2530 = vmatpush2.msra.mxu0 0.0
        %2531 = vmatprep.subr.mxu0 0.0
        %2532 = vmatpush2.msra.mxu0 0.0
        %2533 = vmatprep.subr.mxu0 0.0
        %2534 = vmatpush2.msra.mxu0 0.0
        %2535 = vmatprep.subr.mxu0 0.0
        %2536 = vmatpush2.msra.mxu0 0.0
        %2537 = vmatprep.subr.mxu0 0.0
        %2538 = vmatpush2.msra.mxu0 0.0
        %2539 = vmatprep.subr.mxu0 0.0
        %2540 = vmatpush2.msra.mxu0 0.0
        %2541 = vmatprep.subr.mxu0 0.0
        %2542 = vmatpush2.msra.mxu0 0.0
        %2543 = vmatprep.mubr.f32.mxu0 0.0
        %2544 = vmatmul.mubr.f32.gmra.mxu0 %v2465
        %v2545 = vpop.f32.mrf.mxu0
        %v2546 = vadd.f32 0.0, %v2545
        %v2547 = vpop.f32.mrf.mxu0
        %2548 = vmatprep.mubr.f32.mxu0 0.0
        %2549 = vmatmul.mubr.f32.gmra.mxu0 %v2468
        %v2550 = vpop.f32.mrf.mxu0
        %v2551 = vadd.f32 0.0, %v2550
        %v2552 = vpop.f32.mrf.mxu0
        %2553 = vmatprep.mubr.f32.mxu0 0.0
        %2554 = vmatmul.mubr.f32.gmra.mxu0 %v2471
        %v2555 = vpop.f32.mrf.mxu0
        %v2556 = vadd.f32 0.0, %v2555
        %v2557 = vpop.f32.mrf.mxu0
        %2558 = vmatprep.mubr.f32.mxu0 0.0
        %2559 = vmatmul.mubr.f32.gmra.mxu0 %v2474
        %v2560 = vpop.f32.mrf.mxu0
        %v2561 = vadd.f32 0.0, %v2560
        %v2562 = vpop.f32.mrf.mxu0
        %2563 = vmatprep.mubr.f32.mxu0 0.0
        %2564 = vmatmul.mubr.f32.gmra.mxu0 %v2477
        %v2565 = vpop.f32.mrf.mxu0
        %v2566 = vadd.f32 0.0, %v2565
        %v2567 = vpop.f32.mrf.mxu0
        %2568 = vdwg.mxu0
        %2569 = vrot.lane.b32.xlu0 %v1524, 32
        %v2570 = vpop.permute.xlu0 %2569
        %2571 = vrot.lane.b32.xlu0 %v1530, 32
        %v2572 = vpop.permute.xlu0 %2571
        %2573 = vrot.lane.b32.xlu0 %v1536, 32
        %v2574 = vpop.permute.xlu0 %2573
        %2575 = vrot.lane.b32.xlu0 %v1542, 32
        %v2576 = vpop.permute.xlu0 %2575
        %2577 = vrot.lane.b32.xlu0 %v1548, 32
        %v2578 = vpop.permute.xlu0 %2577
        %2579 = vrot.lane.b32.xlu0 %v1526, 32
        %v2580 = vpop.permute.xlu0 %2579
        %2581 = vrot.lane.b32.xlu0 %v1532, 32
        %v2582 = vpop.permute.xlu0 %2581
        %2583 = vrot.lane.b32.xlu0 %v1538, 32
        %v2584 = vpop.permute.xlu0 %2583
        %2585 = vrot.lane.b32.xlu0 %v1544, 32
        %v2586 = vpop.permute.xlu0 %2585
        %2587 = vrot.lane.b32.xlu0 %v1550, 32
        %v2588 = vpop.permute.xlu0 %2587
        %v2589 = vsel %vm1642, %v2570, 0
        %v2591 = vsel %vm1642, %v2572, 0
        %v2593 = vsel %vm1642, %v2574, 0
        %v2595 = vsel %vm1642, %v2576, 0
        %v2597 = vsel %vm1642, %v2578, 0
        %v2599 = vsel %vm1642, %v2580, 0
        %v2601 = vsel %vm1642, %v2582, 0
        %v2603 = vsel %vm1642, %v2584, 0
        %v2605 = vsel %vm1642, %v2586, 0
        %v2607 = vsel %vm1642, %v2588, 0
        %2609 = vmatprep.subr.mxu0 0.0
        %2610 = vmatpush1.xpose.msra.mxu0 0.0
        %2611 = vmatprep.subr.mxu0 0.0
        %2612 = vmatpush1.xpose.msra.mxu0 0.0
        %2613 = vmatprep.subr.mxu0 0.0
        %2614 = vmatpush1.xpose.msra.mxu0 0.0
        %2615 = vmatprep.subr.mxu0 0.0
        %2616 = vmatpush1.xpose.msra.mxu0 0.0
        %2617 = vmatprep.subr.mxu0 0.0
        %2618 = vmatpush1.xpose.msra.mxu0 0.0
        %2619 = vmatprep.subr.mxu0 0.0
        %2620 = vmatpush1.xpose.msra.mxu0 0.0
        %2621 = vmatprep.subr.mxu0 0.0
        %2622 = vmatpush1.xpose.msra.mxu0 0.0
        %2623 = vmatprep.subr.mxu0 0.0
        %2624 = vmatpush1.xpose.msra.mxu0 0.0
        %2625 = vmatprep.subr.mxu0 0.0
        %2626 = vmatpush1.xpose.msra.mxu0 0.0
        %2627 = vmatprep.subr.mxu0 0.0
        %2628 = vmatpush1.xpose.msra.mxu0 0.0
        %2629 = vmatprep.subr.mxu0 0.0
        %2630 = vmatpush1.xpose.msra.mxu0 0.0
        %2631 = vmatprep.subr.mxu0 0.0
        %2632 = vmatpush1.xpose.msra.mxu0 %v2607
        %2633 = vmatprep.subr.mxu0 0.0
        %2634 = vmatpush1.xpose.msra.mxu0 %v2605
        %2635 = vmatprep.subr.mxu0 0.0
        %2636 = vmatpush1.xpose.msra.mxu0 %v2603
        %2637 = vmatprep.subr.mxu0 0.0
        %2638 = vmatpush1.xpose.msra.mxu0 %v2601
        %2639 = vmatprep.subr.mxu0 0.0
        %2640 = vmatpush1.xpose.msra.mxu0 %v2599
        %2641 = vmatprep.subr.mxu0 0.0
        %2642 = vmatpush2.xpose.msra.mxu0 0.0
        %2643 = vmatprep.subr.mxu0 0.0
        %2644 = vmatpush2.xpose.msra.mxu0 0.0
        %2645 = vmatprep.subr.mxu0 0.0
        %2646 = vmatpush2.xpose.msra.mxu0 0.0
        %2647 = vmatprep.subr.mxu0 0.0
        %2648 = vmatpush2.xpose.msra.mxu0 0.0
        %2649 = vmatprep.subr.mxu0 0.0
        %2650 = vmatpush2.xpose.msra.mxu0 0.0
        %2651 = vmatprep.subr.mxu0 0.0
        %2652 = vmatpush2.xpose.msra.mxu0 0.0
        %2653 = vmatprep.subr.mxu0 0.0
        %2654 = vmatpush2.xpose.msra.mxu0 0.0
        %2655 = vmatprep.subr.mxu0 0.0
        %2656 = vmatpush2.xpose.msra.mxu0 0.0
        %2657 = vmatprep.subr.mxu0 0.0
        %2658 = vmatpush2.xpose.msra.mxu0 0.0
        %2659 = vmatprep.subr.mxu0 0.0
        %2660 = vmatpush2.xpose.msra.mxu0 0.0
        %2661 = vmatprep.subr.mxu0 0.0
        %2662 = vmatpush2.xpose.msra.mxu0 0.0
        %2663 = vmatprep.subr.mxu0 0.0
        %2664 = vmatpush2.xpose.msra.mxu0 0.0
        %2665 = vmatprep.subr.mxu0 0.0
        %2666 = vmatpush2.xpose.msra.mxu0 0.0
        %2667 = vmatprep.subr.mxu0 0.0
        %2668 = vmatpush2.xpose.msra.mxu0 0.0
        %2669 = vmatprep.subr.mxu0 0.0
        %2670 = vmatpush2.xpose.msra.mxu0 0.0
        %2671 = vmatprep.subr.mxu0 0.0
        %2672 = vmatpush2.xpose.msra.mxu0 0.0
        %2673 = vmatprep.mubr.f32.mxu0 0.0
        %2674 = vmatmul.mubr.f32.gmra.mxu0 %v2589
        %v2675 = vpop.f32.mrf.mxu0
        %v2676 = vadd.f32 0.0, %v2675
        %v2677 = vpop.f32.mrf.mxu0
        %2678 = vmatprep.mubr.f32.mxu0 0.0
        %2679 = vmatmul.mubr.f32.gmra.mxu0 %v2591
        %v2680 = vpop.f32.mrf.mxu0
        %v2681 = vadd.f32 0.0, %v2680
        %v2682 = vpop.f32.mrf.mxu0
        %2683 = vmatprep.mubr.f32.mxu0 0.0
        %2684 = vmatmul.mubr.f32.gmra.mxu0 %v2593
        %v2685 = vpop.f32.mrf.mxu0
        %v2686 = vadd.f32 0.0, %v2685
        %v2687 = vpop.f32.mrf.mxu0
        %2688 = vmatprep.mubr.f32.mxu0 0.0
        %2689 = vmatmul.mubr.f32.gmra.mxu0 %v2595
        %v2690 = vpop.f32.mrf.mxu0
        %v2691 = vadd.f32 0.0, %v2690
        %v2692 = vpop.f32.mrf.mxu0
        %2693 = vmatprep.mubr.f32.mxu0 0.0
        %2694 = vmatmul.mubr.f32.gmra.mxu0 %v2597
        %v2695 = vpop.f32.mrf.mxu0
        %v2696 = vadd.f32 0.0, %v2695
        %v2697 = vpop.f32.mrf.mxu0
        %2698 = vdwg.mxu0
        %v2699 = vmul.f32 %v2676, 0.17677669
        %v2700 = vmul.f32 %v2681, 0.17677669
        %v2701 = vmul.f32 %v2686, 0.17677669
        %v2702 = vmul.f32 %v2691, 0.17677669
        %v2703 = vmul.f32 %v2696, 0.17677669
        %v2704 = vadd.f32 %v2699, %v1041
        %v2705 = vadd.f32 %v2700, %v1042
        %v2706 = vadd.f32 %v2701, %v1043
        %v2707 = vadd.f32 %v2702, %v1044
        %v2708 = vadd.f32 %v2703, %v1045
        %v2709 = vsel %vm1773, %v2704, -inf
        %2710 = vmax.xlane.f32.xlu0 %v2709
        %v2711 = vpop.xlane.xlu0 %2710
        %v2712 = vsel %vm1773, %v2705, -inf
        %2713 = vmax.xlane.f32.xlu0 %v2712
        %v2714 = vpop.xlane.xlu0 %2713
        %v2715 = vsel %vm1773, %v2706, -inf
        %2716 = vmax.xlane.f32.xlu0 %v2715
        %v2717 = vpop.xlane.xlu0 %2716
        %v2718 = vsel %vm1773, %v2707, -inf
        %2719 = vmax.xlane.f32.xlu0 %v2718
        %v2720 = vpop.xlane.xlu0 %2719
        %v2721 = vsel %vm1773, %v2708, -inf
        %2722 = vmax.xlane.f32.xlu0 %v2721
        %v2723 = vpop.xlane.xlu0 %2722
        %v2724 = vsub.f32 %v2704, %v2711
        %v2725 = vsub.f32 %v2705, %v2714
        %v2726 = vsub.f32 %v2706, %v2717
        %v2727 = vsub.f32 %v2707, %v2720
        %v2728 = vsub.f32 %v2708, %v2723
        %v2729 = vmul.f32 %v2724, 1.442695
        %v2730 = vpow.pop %v2729
        %v2731 = vmul.f32 %v2725, 1.442695
        %v2732 = vpow.pop %v2731
        %v2733 = vmul.f32 %v2726, 1.442695
        %v2734 = vpow.pop %v2733
        %v2735 = vmul.f32 %v2727, 1.442695
        %v2736 = vpow.pop %v2735
        %v2737 = vmul.f32 %v2728, 1.442695
        %v2738 = vpow.pop %v2737
        %v2739 = vsel %vm1773, %v2730, 0.0
        %2740 = vadd.xlane.f32.xlu0 %v2739
        %v2741 = vpop.xlane.xlu0 %2740
        %v2742 = vsel %vm1773, %v2732, 0.0
        %2743 = vadd.xlane.f32.xlu0 %v2742
        %v2744 = vpop.xlane.xlu0 %2743
        %v2745 = vsel %vm1773, %v2734, 0.0
        %2746 = vadd.xlane.f32.xlu0 %v2745
        %v2747 = vpop.xlane.xlu0 %2746
        %v2748 = vsel %vm1773, %v2736, 0.0
        %2749 = vadd.xlane.f32.xlu0 %v2748
        %v2750 = vpop.xlane.xlu0 %2749
        %v2751 = vsel %vm1773, %v2738, 0.0
        %2752 = vadd.xlane.f32.xlu0 %v2751
        %v2753 = vpop.xlane.xlu0 %2752
        %v2754 = vrcp.pop %v2741
        %v2755 = vrcp.pop %v2744
        %v2756 = vrcp.pop %v2747
        %v2757 = vrcp.pop %v2750
        %v2758 = vrcp.pop %v2753
        %v2759 = vmul.f32 %v2730, %v2754
        %v2760 = vmul.f32 %v2732, %v2755
        %v2761 = vmul.f32 %v2734, %v2756
        %v2762 = vmul.f32 %v2736, %v2757
        %v2763 = vmul.f32 %v2738, %v2758
        %2764 = vrot.lane.b32.xlu0 %v1619, 32
        %v2765 = vpop.permute.xlu0 %2764
        %2766 = vrot.lane.b32.xlu0 %v1624, 32
        %v2767 = vpop.permute.xlu0 %2766
        %2768 = vrot.lane.b32.xlu0 %v1629, 32
        %v2769 = vpop.permute.xlu0 %2768
        %2770 = vrot.lane.b32.xlu0 %v1634, 32
        %v2771 = vpop.permute.xlu0 %2770
        %2772 = vrot.lane.b32.xlu0 %v1639, 32
        %v2773 = vpop.permute.xlu0 %2772
        %v2780 = vsel %vm1773, %v2759, 0
        %v2783 = vsel %vm1773, %v2760, 0
        %v2786 = vsel %vm1773, %v2761, 0
        %v2789 = vsel %vm1773, %v2762, 0
        %v2792 = vsel %vm1773, %v2763, 0
        %2794 = vmatprep.subr.mxu0 0.0
        %2795 = vmatpush1.msra.mxu0 0.0
        %2796 = vmatprep.subr.mxu0 0.0
        %2797 = vmatpush1.msra.mxu0 0.0
        %2798 = vmatprep.subr.mxu0 0.0
        %2799 = vmatpush1.msra.mxu0 0.0
        %2800 = vmatprep.subr.mxu0 0.0
        %2801 = vmatpush1.msra.mxu0 0.0
        %2802 = vmatprep.subr.mxu0 0.0
        %2803 = vmatpush1.msra.mxu0 0.0
        %2804 = vmatprep.subr.mxu0 0.0
        %2805 = vmatpush1.msra.mxu0 0.0
        %2806 = vmatprep.subr.mxu0 0.0
        %2807 = vmatpush1.msra.mxu0 0.0
        %2808 = vmatprep.subr.mxu0 0.0
        %2809 = vmatpush1.msra.mxu0 0.0
        %2810 = vmatprep.subr.mxu0 0.0
        %2811 = vmatpush1.msra.mxu0 0.0
        %2812 = vmatprep.subr.mxu0 0.0
        %2813 = vmatpush1.msra.mxu0 0.0
        %2814 = vmatprep.subr.mxu0 0.0
        %2815 = vmatpush1.msra.mxu0 0.0
        %2816 = vmatprep.subr.mxu0 0.0
        %2817 = vmatpush1.msra.mxu0 %v2773
        %2818 = vmatprep.subr.mxu0 0.0
        %2819 = vmatpush1.msra.mxu0 %v2771
        %2820 = vmatprep.subr.mxu0 0.0
        %2821 = vmatpush1.msra.mxu0 %v2769
        %2822 = vmatprep.subr.mxu0 0.0
        %2823 = vmatpush1.msra.mxu0 %v2767
        %2824 = vmatprep.subr.mxu0 0.0
        %2825 = vmatpush1.msra.mxu0 %v2765
        %2826 = vmatprep.subr.mxu0 0.0
        %2827 = vmatpush2.msra.mxu0 0.0
        %2828 = vmatprep.subr.mxu0 0.0
        %2829 = vmatpush2.msra.mxu0 0.0
        %2830 = vmatprep.subr.mxu0 0.0
        %2831 = vmatpush2.msra.mxu0 0.0
        %2832 = vmatprep.subr.mxu0 0.0
        %2833 = vmatpush2.msra.mxu0 0.0
        %2834 = vmatprep.subr.mxu0 0.0
        %2835 = vmatpush2.msra.mxu0 0.0
        %2836 = vmatprep.subr.mxu0 0.0
        %2837 = vmatpush2.msra.mxu0 0.0
        %2838 = vmatprep.subr.mxu0 0.0
        %2839 = vmatpush2.msra.mxu0 0.0
        %2840 = vmatprep.subr.mxu0 0.0
        %2841 = vmatpush2.msra.mxu0 0.0
        %2842 = vmatprep.subr.mxu0 0.0
        %2843 = vmatpush2.msra.mxu0 0.0
        %2844 = vmatprep.subr.mxu0 0.0
        %2845 = vmatpush2.msra.mxu0 0.0
        %2846 = vmatprep.subr.mxu0 0.0
        %2847 = vmatpush2.msra.mxu0 0.0
        %2848 = vmatprep.subr.mxu0 0.0
        %2849 = vmatpush2.msra.mxu0 0.0
        %2850 = vmatprep.subr.mxu0 0.0
        %2851 = vmatpush2.msra.mxu0 0.0
        %2852 = vmatprep.subr.mxu0 0.0
        %2853 = vmatpush2.msra.mxu0 0.0
        %2854 = vmatprep.subr.mxu0 0.0
        %2855 = vmatpush2.msra.mxu0 0.0
        %2856 = vmatprep.subr.mxu0 0.0
        %2857 = vmatpush2.msra.mxu0 0.0
        %2858 = vmatprep.mubr.f32.mxu0 0.0
        %2859 = vmatmul.mubr.f32.gmra.mxu0 %v2780
        %v2860 = vpop.f32.mrf.mxu0
        %v2861 = vadd.f32 0.0, %v2860
        %v2862 = vpop.f32.mrf.mxu0
        %2863 = vmatprep.mubr.f32.mxu0 0.0
        %2864 = vmatmul.mubr.f32.gmra.mxu0 %v2783
        %v2865 = vpop.f32.mrf.mxu0
        %v2866 = vadd.f32 0.0, %v2865
        %v2867 = vpop.f32.mrf.mxu0
        %2868 = vmatprep.mubr.f32.mxu0 0.0
        %2869 = vmatmul.mubr.f32.gmra.mxu0 %v2786
        %v2870 = vpop.f32.mrf.mxu0
        %v2871 = vadd.f32 0.0, %v2870
        %v2872 = vpop.f32.mrf.mxu0
        %2873 = vmatprep.mubr.f32.mxu0 0.0
        %2874 = vmatmul.mubr.f32.gmra.mxu0 %v2789
        %v2875 = vpop.f32.mrf.mxu0
        %v2876 = vadd.f32 0.0, %v2875
        %v2877 = vpop.f32.mrf.mxu0
        %2878 = vmatprep.mubr.f32.mxu0 0.0
        %2879 = vmatmul.mubr.f32.gmra.mxu0 %v2792
        %v2880 = vpop.f32.mrf.mxu0
        %v2881 = vadd.f32 0.0, %v2880
        %v2882 = vpop.f32.mrf.mxu0
        %2883 = vdwg.mxu0
        %2889 = vrot.lane.b32.xlu0 %v2231, 32
        %v2890 = vpop.permute.xlu0 %2889
        %2891 = vrot.lane.b32.xlu0 %v2236, 32
        %v2892 = vpop.permute.xlu0 %2891
        %2893 = vrot.lane.b32.xlu0 %v2241, 32
        %v2894 = vpop.permute.xlu0 %2893
        %2895 = vrot.lane.b32.xlu0 %v2246, 32
        %v2896 = vpop.permute.xlu0 %2895
        %2897 = vrot.lane.b32.xlu0 %v2251, 32
        %v2898 = vpop.permute.xlu0 %2897
        %2909 = vrot.lane.b32.xlu0 %v2546, 64
        %v2910 = vpop.permute.xlu0 %2909
        %2911 = vrot.lane.b32.xlu0 %v2551, 64
        %v2912 = vpop.permute.xlu0 %2911
        %2913 = vrot.lane.b32.xlu0 %v2556, 64
        %v2914 = vpop.permute.xlu0 %2913
        %2915 = vrot.lane.b32.xlu0 %v2561, 64
        %v2916 = vpop.permute.xlu0 %2915
        %2917 = vrot.lane.b32.xlu0 %v2566, 64
        %v2918 = vpop.permute.xlu0 %2917
        %2929 = vrot.lane.b32.xlu0 %v2861, 96
        %v2930 = vpop.permute.xlu0 %2929
        %2931 = vrot.lane.b32.xlu0 %v2866, 96
        %v2932 = vpop.permute.xlu0 %2931
        %2933 = vrot.lane.b32.xlu0 %v2871, 96
        %v2934 = vpop.permute.xlu0 %2933
        %2935 = vrot.lane.b32.xlu0 %v2876, 96
        %v2936 = vpop.permute.xlu0 %2935
        %2937 = vrot.lane.b32.xlu0 %v2881, 96
        %v2938 = vpop.permute.xlu0 %2937
        %v2944 = vsel %vm1642, %v1911, %v2890
        %v2945 = vsel %vm1642, %v1916, %v2892
        %v2946 = vsel %vm1642, %v1921, %v2894
        %v2947 = vsel %vm1642, %v1926, %v2896
        %v2948 = vsel %vm1642, %v1931, %v2898
        %vm2949 = vcmask 523264
        %v2950 = vsel %vm2949, %v2944, %v2910
        %v2951 = vsel %vm2949, %v2945, %v2912
        %v2952 = vsel %vm2949, %v2946, %v2914
        %v2953 = vsel %vm2949, %v2947, %v2916
        %v2954 = vsel %vm2949, %v2948, %v2918
        %vm2955 = vcmask 785408
        %v2956 = vsel %vm2955, %v2950, %v2930
        %v2957 = vsel %vm2955, %v2951, %v2932
        %v2958 = vsel %vm2955, %v2952, %v2934
        %v2959 = vsel %vm2955, %v2953, %v2936
        %v2960 = vsel %vm2955, %v2954, %v2938
        %v2961 = vld [vmem:[#allocation11] sm:$0xff]
        %v2962 = vld [vmem:[#allocation11 + $0x8] sm:$0xff]
        %v2963 = vld [vmem:[#allocation11 + $0x10] sm:$0xff]
        %v2964 = vld [vmem:[#allocation11 + $0x18] sm:$0xff]
        %v2965 = vld [vmem:[#allocation11 + $0x20] sm:$0xff]
        %v2966 = vld [vmem:[#allocation11 + $0x28] sm:$0xff]
        %v2967 = vld [vmem:[#allocation11 + $0x30] sm:$0xff]
        %v2968 = vld [vmem:[#allocation11 + $0x38] sm:$0xff]
        %v2969 = vld [vmem:[#allocation11 + $0x40] sm:$0xff]
        %v2970 = vld [vmem:[#allocation11 + $0x48] sm:$0xff]
        %v2971 = vld [vmem:[#allocation11 + $0x50] sm:$0xff]
        %v2972 = vld [vmem:[#allocation11 + $0x58] sm:$0xff]
        %v2973 = vld [vmem:[#allocation11 + $0x60] sm:$0xff]
        %v2974 = vld [vmem:[#allocation11 + $0x68] sm:$0xff]
        %v2975 = vld [vmem:[#allocation11 + $0x70] sm:$0xff]
        %v2976 = vld [vmem:[#allocation11 + $0x78] sm:$0xff]
        %v2977 = vld [vmem:[%s7] sm:$0x1]
        %v2979 = vlaneseq
        %v2980 = vshrl.u32 %v2979, 7
        %v2981 = vsub.s32 0, %v2980
        %v2982 = vrot.slane %v2977, %v2981
        %2984 = vmatprep.subr.mxu0 0.0
        %2985 = vmatpush1.msra.mxu0 %v2976
        %2986 = vmatprep.subr.mxu0 0.0
        %2987 = vmatpush1.msra.mxu0 %v2975
        %2988 = vmatprep.subr.mxu0 0.0
        %2989 = vmatpush1.msra.mxu0 %v2974
        %2990 = vmatprep.subr.mxu0 0.0
        %2991 = vmatpush1.msra.mxu0 %v2973
        %2992 = vmatprep.subr.mxu0 0.0
        %2993 = vmatpush1.msra.mxu0 %v2972
        %2994 = vmatprep.subr.mxu0 0.0
        %2995 = vmatpush1.msra.mxu0 %v2971
        %2996 = vmatprep.subr.mxu0 0.0
        %2997 = vmatpush1.msra.mxu0 %v2970
        %2998 = vmatprep.subr.mxu0 0.0
        %2999 = vmatpush1.msra.mxu0 %v2969
        %3000 = vmatprep.subr.mxu0 0.0
        %3001 = vmatpush1.msra.mxu0 %v2968
        %3002 = vmatprep.subr.mxu0 0.0
        %3003 = vmatpush1.msra.mxu0 %v2967
        %3004 = vmatprep.subr.mxu0 0.0
        %3005 = vmatpush1.msra.mxu0 %v2966
        %3006 = vmatprep.subr.mxu0 0.0
        %3007 = vmatpush1.msra.mxu0 %v2965
        %3008 = vmatprep.subr.mxu0 0.0
        %3009 = vmatpush1.msra.mxu0 %v2964
        %3010 = vmatprep.subr.mxu0 0.0
        %3011 = vmatpush1.msra.mxu0 %v2963
        %3012 = vmatprep.subr.mxu0 0.0
        %3013 = vmatpush1.msra.mxu0 %v2962
        %3014 = vmatprep.subr.mxu0 0.0
        %3015 = vmatpush1.msra.mxu0 %v2961
        %3016 = vmatprep.subr.mxu0 0.0
        %3017 = vmatpush2.msra.mxu0 0.0
        %3018 = vmatprep.subr.mxu0 0.0
        %3019 = vmatpush2.msra.mxu0 0.0
        %3020 = vmatprep.subr.mxu0 0.0
        %3021 = vmatpush2.msra.mxu0 0.0
        %3022 = vmatprep.subr.mxu0 0.0
        %3023 = vmatpush2.msra.mxu0 0.0
        %3024 = vmatprep.subr.mxu0 0.0
        %3025 = vmatpush2.msra.mxu0 0.0
        %3026 = vmatprep.subr.mxu0 0.0
        %3027 = vmatpush2.msra.mxu0 0.0
        %3028 = vmatprep.subr.mxu0 0.0
        %3029 = vmatpush2.msra.mxu0 0.0
        %3030 = vmatprep.subr.mxu0 0.0
        %3031 = vmatpush2.msra.mxu0 0.0
        %3032 = vmatprep.subr.mxu0 0.0
        %3033 = vmatpush2.msra.mxu0 0.0
        %3034 = vmatprep.subr.mxu0 0.0
        %3035 = vmatpush2.msra.mxu0 0.0
        %3036 = vmatprep.subr.mxu0 0.0
        %3037 = vmatpush2.msra.mxu0 0.0
        %3038 = vmatprep.subr.mxu0 0.0
        %3039 = vmatpush2.msra.mxu0 0.0
        %3040 = vmatprep.subr.mxu0 0.0
        %3041 = vmatpush2.msra.mxu0 0.0
        %3042 = vmatprep.subr.mxu0 0.0
        %3043 = vmatpush2.msra.mxu0 0.0
        %3044 = vmatprep.subr.mxu0 0.0
        %3045 = vmatpush2.msra.mxu0 0.0
        %3046 = vmatprep.subr.mxu0 0.0
        %3047 = vmatpush2.msra.mxu0 0.0
        %3048 = vmatprep.mubr.f32.mxu0 0.0
        %3049 = vmatmul.mubr.f32.gmra.mxu0 %v2956
        %v3050 = vpop.f32.mrf.mxu0
        %v3051 = vadd.f32 %v2982, %v3050
        %v3052 = vpop.f32.mrf.mxu0
        %3053 = vmatprep.mubr.f32.mxu0 0.0
        %3054 = vmatmul.mubr.f32.gmra.mxu0 %v2957
        %v3055 = vpop.f32.mrf.mxu0
        %v3056 = vadd.f32 %v2982, %v3055
        %v3057 = vpop.f32.mrf.mxu0
        %3058 = vmatprep.mubr.f32.mxu0 0.0
        %3059 = vmatmul.mubr.f32.gmra.mxu0 %v2958
        %v3060 = vpop.f32.mrf.mxu0
        %v3061 = vadd.f32 %v2982, %v3060
        %v3062 = vpop.f32.mrf.mxu0
        %3063 = vmatprep.mubr.f32.mxu0 0.0
        %3064 = vmatmul.mubr.f32.gmra.mxu0 %v2959
        %v3065 = vpop.f32.mrf.mxu0
        %v3066 = vadd.f32 %v2982, %v3065
        %v3067 = vpop.f32.mrf.mxu0
        %3068 = vmatprep.mubr.f32.mxu0 0.0
        %3069 = vmatmul.mubr.f32.gmra.mxu0 %v2960
        %v3070 = vpop.f32.mrf.mxu0
        %v3071 = vadd.f32 %v2982, %v3070
        %v3072 = vpop.f32.mrf.mxu0
        %3073 = vdwg.mxu0
        %v3074 = vadd.f32 %v1369, %v3051
        %v3075 = vadd.f32 %v1374, %v3056
        %v3076 = vadd.f32 %v1379, %v3061
        %v3077 = vadd.f32 %v1384, %v3066
        %v3078 = vadd.f32 %v1389, %v3071
        %v3079 = vld [vmem:[%s16] sm:$0x1]
        %v3080 = vld [vmem:[%s17] sm:$0x1]
        %3081 = vadd.xlane.f32.xlu0 %v3074
        %v3082 = vpop.xlane.xlu0 %3081
        %3083 = vadd.xlane.f32.xlu0 %v3075
        %v3084 = vpop.xlane.xlu0 %3083
        %3085 = vadd.xlane.f32.xlu0 %v3076
        %v3086 = vpop.xlane.xlu0 %3085
        %3087 = vadd.xlane.f32.xlu0 %v3077
        %v3088 = vpop.xlane.xlu0 %3087
        %3089 = vadd.xlane.f32.xlu0 %v3078
        %v3090 = vpop.xlane.xlu0 %3089
        %v3091 = vrcp.pop 128.0
        %v3092 = vmul.f32 %v3082, %v3091
        %v3093 = vmul.f32 %v3084, %v3091
        %v3094 = vmul.f32 %v3086, %v3091
        %v3095 = vmul.f32 %v3088, %v3091
        %v3096 = vmul.f32 %v3090, %v3091
        %v3097 = vsub.f32 %v3074, %v3092
        %v3098 = vsub.f32 %v3075, %v3093
        %v3099 = vsub.f32 %v3076, %v3094
        %v3100 = vsub.f32 %v3077, %v3095
        %v3101 = vsub.f32 %v3078, %v3096
        %v3102 = vmul.f32 %v3097, %v3097
        %v3103 = vmul.f32 %v3098, %v3098
        %v3104 = vmul.f32 %v3099, %v3099
        %v3105 = vmul.f32 %v3100, %v3100
        %v3106 = vmul.f32 %v3101, %v3101
        %3107 = vadd.xlane.f32.xlu0 %v3102
        %v3108 = vpop.xlane.xlu0 %3107
        %3109 = vadd.xlane.f32.xlu0 %v3103
        %v3110 = vpop.xlane.xlu0 %3109
        %3111 = vadd.xlane.f32.xlu0 %v3104
        %v3112 = vpop.xlane.xlu0 %3111
        %3113 = vadd.xlane.f32.xlu0 %v3105
        %v3114 = vpop.xlane.xlu0 %3113
        %3115 = vadd.xlane.f32.xlu0 %v3106
        %v3116 = vpop.xlane.xlu0 %3115
        %v3117 = vmul.f32 %v3108, %v3091
        %v3118 = vmul.f32 %v3110, %v3091
        %v3119 = vmul.f32 %v3112, %v3091
        %v3120 = vmul.f32 %v3114, %v3091
        %v3121 = vmul.f32 %v3116, %v3091
        %v3122 = vadd.f32 %v3117, 1e-05
        %v3123 = vadd.f32 %v3118, 1e-05
        %v3124 = vadd.f32 %v3119, 1e-05
        %v3125 = vadd.f32 %v3120, 1e-05
        %v3126 = vadd.f32 %v3121, 1e-05
        %v3127 = vrsqrt.pop %v3122
        %v3128 = vrsqrt.pop %v3123
        %v3129 = vrsqrt.pop %v3124
        %v3130 = vrsqrt.pop %v3125
        %v3131 = vrsqrt.pop %v3126
        %v3132 = vmul.f32 %v3097, %v3127
        %v3133 = vmul.f32 %v3098, %v3128
        %v3134 = vmul.f32 %v3099, %v3129
        %v3135 = vmul.f32 %v3100, %v3130
        %v3136 = vmul.f32 %v3101, %v3131
        %v3138 = vlaneseq
        %v3139 = vshrl.u32 %v3138, 7
        %v3140 = vsub.s32 0, %v3139
        %v3141 = vrot.slane %v3079, %v3140
        %v3143 = vmul.f32 %v3132, %v3141
        %v3144 = vmul.f32 %v3133, %v3141
        %v3145 = vmul.f32 %v3134, %v3141
        %v3146 = vmul.f32 %v3135, %v3141
        %v3147 = vmul.f32 %v3136, %v3141
        %v3149 = vlaneseq
        %v3150 = vshrl.u32 %v3149, 7
        %v3151 = vsub.s32 0, %v3150
        %v3152 = vrot.slane %v3080, %v3151
        %v3154 = vadd.f32 %v3143, %v3152
        %v3155 = vadd.f32 %v3144, %v3152
        %v3156 = vadd.f32 %v3145, %v3152
        %v3157 = vadd.f32 %v3146, %v3152
        %v3158 = vadd.f32 %v3147, %v3152
        %v3159 = vld [vmem:[#allocation13] sm:$0xff]
        %v3160 = vld [vmem:[#allocation13 + $0x8] sm:$0xff]
        %v3161 = vld [vmem:[#allocation13 + $0x10] sm:$0xff]
        %v3162 = vld [vmem:[#allocation13 + $0x18] sm:$0xff]
        %v3163 = vld [vmem:[#allocation13 + $0x20] sm:$0xff]
        %v3164 = vld [vmem:[#allocation13 + $0x28] sm:$0xff]
        %v3165 = vld [vmem:[#allocation13 + $0x30] sm:$0xff]
        %v3166 = vld [vmem:[#allocation13 + $0x38] sm:$0xff]
        %v3167 = vld [vmem:[#allocation13 + $0x40] sm:$0xff]
        %v3168 = vld [vmem:[#allocation13 + $0x48] sm:$0xff]
        %v3169 = vld [vmem:[#allocation13 + $0x50] sm:$0xff]
        %v3170 = vld [vmem:[#allocation13 + $0x58] sm:$0xff]
        %v3171 = vld [vmem:[#allocation13 + $0x60] sm:$0xff]
        %v3172 = vld [vmem:[#allocation13 + $0x68] sm:$0xff]
        %v3173 = vld [vmem:[#allocation13 + $0x70] sm:$0xff]
        %v3174 = vld [vmem:[#allocation13 + $0x78] sm:$0xff]
        %v3175 = vld [vmem:[%s9] sm:$0x1]
        %v3177 = vlaneseq
        %v3178 = vshrl.u32 %v3177, 7
        %v3179 = vsub.s32 0, %v3178
        %v3180 = vrot.slane %v3175, %v3179
        %3182 = vmatprep.subr.mxu0 0.0
        %3183 = vmatpush1.msra.mxu0 %v3174
        %3184 = vmatprep.subr.mxu0 0.0
        %3185 = vmatpush1.msra.mxu0 %v3173
        %3186 = vmatprep.subr.mxu0 0.0
        %3187 = vmatpush1.msra.mxu0 %v3172
        %3188 = vmatprep.subr.mxu0 0.0
        %3189 = vmatpush1.msra.mxu0 %v3171
        %3190 = vmatprep.subr.mxu0 0.0
        %3191 = vmatpush1.msra.mxu0 %v3170
        %3192 = vmatprep.subr.mxu0 0.0
        %3193 = vmatpush1.msra.mxu0 %v3169
        %3194 = vmatprep.subr.mxu0 0.0
        %3195 = vmatpush1.msra.mxu0 %v3168
        %3196 = vmatprep.subr.mxu0 0.0
        %3197 = vmatpush1.msra.mxu0 %v3167
        %3198 = vmatprep.subr.mxu0 0.0
        %3199 = vmatpush1.msra.mxu0 %v3166
        %3200 = vmatprep.subr.mxu0 0.0
        %3201 = vmatpush1.msra.mxu0 %v3165
        %3202 = vmatprep.subr.mxu0 0.0
        %3203 = vmatpush1.msra.mxu0 %v3164
        %3204 = vmatprep.subr.mxu0 0.0
        %3205 = vmatpush1.msra.mxu0 %v3163
        %3206 = vmatprep.subr.mxu0 0.0
        %3207 = vmatpush1.msra.mxu0 %v3162
        %3208 = vmatprep.subr.mxu0 0.0
        %3209 = vmatpush1.msra.mxu0 %v3161
        %3210 = vmatprep.subr.mxu0 0.0
        %3211 = vmatpush1.msra.mxu0 %v3160
        %3212 = vmatprep.subr.mxu0 0.0
        %3213 = vmatpush1.msra.mxu0 %v3159
        %3214 = vmatprep.subr.mxu0 0.0
        %3215 = vmatpush2.msra.mxu0 0.0
        %3216 = vmatprep.subr.mxu0 0.0
        %3217 = vmatpush2.msra.mxu0 0.0
        %3218 = vmatprep.subr.mxu0 0.0
        %3219 = vmatpush2.msra.mxu0 0.0
        %3220 = vmatprep.subr.mxu0 0.0
        %3221 = vmatpush2.msra.mxu0 0.0
        %3222 = vmatprep.subr.mxu0 0.0
        %3223 = vmatpush2.msra.mxu0 0.0
        %3224 = vmatprep.subr.mxu0 0.0
        %3225 = vmatpush2.msra.mxu0 0.0
        %3226 = vmatprep.subr.mxu0 0.0
        %3227 = vmatpush2.msra.mxu0 0.0
        %3228 = vmatprep.subr.mxu0 0.0
        %3229 = vmatpush2.msra.mxu0 0.0
        %3230 = vmatprep.subr.mxu0 0.0
        %3231 = vmatpush2.msra.mxu0 0.0
        %3232 = vmatprep.subr.mxu0 0.0
        %3233 = vmatpush2.msra.mxu0 0.0
        %3234 = vmatprep.subr.mxu0 0.0
        %3235 = vmatpush2.msra.mxu0 0.0
        %3236 = vmatprep.subr.mxu0 0.0
        %3237 = vmatpush2.msra.mxu0 0.0
        %3238 = vmatprep.subr.mxu0 0.0
        %3239 = vmatpush2.msra.mxu0 0.0
        %3240 = vmatprep.subr.mxu0 0.0
        %3241 = vmatpush2.msra.mxu0 0.0
        %3242 = vmatprep.subr.mxu0 0.0
        %3243 = vmatpush2.msra.mxu0 0.0
        %3244 = vmatprep.subr.mxu0 0.0
        %3245 = vmatpush2.msra.mxu0 0.0
        %3246 = vmatprep.mubr.f32.mxu0 0.0
        %3247 = vmatmul.mubr.f32.gmra.mxu0 %v1258
        %v3248 = vpop.f32.mrf.mxu0
        %v3249 = vadd.f32 %v3180, %v3248
        %v3250 = vpop.f32.mrf.mxu0
        %3251 = vmatprep.mubr.f32.mxu0 0.0
        %3252 = vmatmul.mubr.f32.gmra.mxu0 %v1263
        %v3253 = vpop.f32.mrf.mxu0
        %v3254 = vadd.f32 %v3180, %v3253
        %v3255 = vpop.f32.mrf.mxu0
        %3256 = vmatprep.mubr.f32.mxu0 0.0
        %3257 = vmatmul.mubr.f32.gmra.mxu0 %v1268
        %v3258 = vpop.f32.mrf.mxu0
        %v3259 = vadd.f32 %v3180, %v3258
        %v3260 = vpop.f32.mrf.mxu0
        %3261 = vmatprep.mubr.f32.mxu0 0.0
        %3262 = vmatmul.mubr.f32.gmra.mxu0 %v1273
        %v3263 = vpop.f32.mrf.mxu0
        %v3264 = vadd.f32 %v3180, %v3263
        %v3265 = vpop.f32.mrf.mxu0
        %3266 = vmatprep.mubr.f32.mxu0 0.0
        %3267 = vmatmul.mubr.f32.gmra.mxu0 %v1278
        %v3268 = vpop.f32.mrf.mxu0
        %v3269 = vadd.f32 %v3180, %v3268
        %v3270 = vpop.f32.mrf.mxu0
        %3271 = vdwg.mxu0
        %v3272 = vld [vmem:[#allocation14] sm:$0xff]
        %v3273 = vld [vmem:[#allocation14 + $0x8] sm:$0xff]
        %v3274 = vld [vmem:[#allocation14 + $0x10] sm:$0xff]
        %v3275 = vld [vmem:[#allocation14 + $0x18] sm:$0xff]
        %v3276 = vld [vmem:[#allocation14 + $0x20] sm:$0xff]
        %v3277 = vld [vmem:[#allocation14 + $0x28] sm:$0xff]
        %v3278 = vld [vmem:[#allocation14 + $0x30] sm:$0xff]
        %v3279 = vld [vmem:[#allocation14 + $0x38] sm:$0xff]
        %v3280 = vld [vmem:[#allocation14 + $0x40] sm:$0xff]
        %v3281 = vld [vmem:[#allocation14 + $0x48] sm:$0xff]
        %v3282 = vld [vmem:[#allocation14 + $0x50] sm:$0xff]
        %v3283 = vld [vmem:[#allocation14 + $0x58] sm:$0xff]
        %v3284 = vld [vmem:[#allocation14 + $0x60] sm:$0xff]
        %v3285 = vld [vmem:[#allocation14 + $0x68] sm:$0xff]
        %v3286 = vld [vmem:[#allocation14 + $0x70] sm:$0xff]
        %v3287 = vld [vmem:[#allocation14 + $0x78] sm:$0xff]
        %v3288 = vld [vmem:[%s11] sm:$0x1]
        %v3290 = vlaneseq
        %v3291 = vshrl.u32 %v3290, 7
        %v3292 = vsub.s32 0, %v3291
        %v3293 = vrot.slane %v3288, %v3292
        %3295 = vmatprep.subr.mxu0 0.0
        %3296 = vmatpush1.msra.mxu0 %v3287
        %3297 = vmatprep.subr.mxu0 0.0
        %3298 = vmatpush1.msra.mxu0 %v3286
        %3299 = vmatprep.subr.mxu0 0.0
        %3300 = vmatpush1.msra.mxu0 %v3285
        %3301 = vmatprep.subr.mxu0 0.0
        %3302 = vmatpush1.msra.mxu0 %v3284
        %3303 = vmatprep.subr.mxu0 0.0
        %3304 = vmatpush1.msra.mxu0 %v3283
        %3305 = vmatprep.subr.mxu0 0.0
        %3306 = vmatpush1.msra.mxu0 %v3282
        %3307 = vmatprep.subr.mxu0 0.0
        %3308 = vmatpush1.msra.mxu0 %v3281
        %3309 = vmatprep.subr.mxu0 0.0
        %3310 = vmatpush1.msra.mxu0 %v3280
        %3311 = vmatprep.subr.mxu0 0.0
        %3312 = vmatpush1.msra.mxu0 %v3279
        %3313 = vmatprep.subr.mxu0 0.0
        %3314 = vmatpush1.msra.mxu0 %v3278
        %3315 = vmatprep.subr.mxu0 0.0
        %3316 = vmatpush1.msra.mxu0 %v3277
        %3317 = vmatprep.subr.mxu0 0.0
        %3318 = vmatpush1.msra.mxu0 %v3276
        %3319 = vmatprep.subr.mxu0 0.0
        %3320 = vmatpush1.msra.mxu0 %v3275
        %3321 = vmatprep.subr.mxu0 0.0
        %3322 = vmatpush1.msra.mxu0 %v3274
        %3323 = vmatprep.subr.mxu0 0.0
        %3324 = vmatpush1.msra.mxu0 %v3273
        %3325 = vmatprep.subr.mxu0 0.0
        %3326 = vmatpush1.msra.mxu0 %v3272
        %3327 = vmatprep.subr.mxu0 0.0
        %3328 = vmatpush2.msra.mxu0 0.0
        %3329 = vmatprep.subr.mxu0 0.0
        %3330 = vmatpush2.msra.mxu0 0.0
        %3331 = vmatprep.subr.mxu0 0.0
        %3332 = vmatpush2.msra.mxu0 0.0
        %3333 = vmatprep.subr.mxu0 0.0
        %3334 = vmatpush2.msra.mxu0 0.0
        %3335 = vmatprep.subr.mxu0 0.0
        %3336 = vmatpush2.msra.mxu0 0.0
        %3337 = vmatprep.subr.mxu0 0.0
        %3338 = vmatpush2.msra.mxu0 0.0
        %3339 = vmatprep.subr.mxu0 0.0
        %3340 = vmatpush2.msra.mxu0 0.0
        %3341 = vmatprep.subr.mxu0 0.0
        %3342 = vmatpush2.msra.mxu0 0.0
        %3343 = vmatprep.subr.mxu0 0.0
        %3344 = vmatpush2.msra.mxu0 0.0
        %3345 = vmatprep.subr.mxu0 0.0
        %3346 = vmatpush2.msra.mxu0 0.0
        %3347 = vmatprep.subr.mxu0 0.0
        %3348 = vmatpush2.msra.mxu0 0.0
        %3349 = vmatprep.subr.mxu0 0.0
        %3350 = vmatpush2.msra.mxu0 0.0
        %3351 = vmatprep.subr.mxu0 0.0
        %3352 = vmatpush2.msra.mxu0 0.0
        %3353 = vmatprep.subr.mxu0 0.0
        %3354 = vmatpush2.msra.mxu0 0.0
        %3355 = vmatprep.subr.mxu0 0.0
        %3356 = vmatpush2.msra.mxu0 0.0
        %3357 = vmatprep.subr.mxu0 0.0
        %3358 = vmatpush2.msra.mxu0 0.0
        %3359 = vmatprep.mubr.f32.mxu0 0.0
        %3360 = vmatmul.mubr.f32.gmra.mxu0 %v3249
        %v3361 = vpop.f32.mrf.mxu0
        %v3362 = vadd.f32 %v3293, %v3361
        %v3363 = vpop.f32.mrf.mxu0
        %3364 = vmatprep.mubr.f32.mxu0 0.0
        %3365 = vmatmul.mubr.f32.gmra.mxu0 %v3254
        %v3366 = vpop.f32.mrf.mxu0
        %v3367 = vadd.f32 %v3293, %v3366
        %v3368 = vpop.f32.mrf.mxu0
        %3369 = vmatprep.mubr.f32.mxu0 0.0
        %3370 = vmatmul.mubr.f32.gmra.mxu0 %v3259
        %v3371 = vpop.f32.mrf.mxu0
        %v3372 = vadd.f32 %v3293, %v3371
        %v3373 = vpop.f32.mrf.mxu0
        %3374 = vmatprep.mubr.f32.mxu0 0.0
        %3375 = vmatmul.mubr.f32.gmra.mxu0 %v3264
        %v3376 = vpop.f32.mrf.mxu0
        %v3377 = vadd.f32 %v3293, %v3376
        %v3378 = vpop.f32.mrf.mxu0
        %3379 = vmatprep.mubr.f32.mxu0 0.0
        %3380 = vmatmul.mubr.f32.gmra.mxu0 %v3269
        %v3381 = vpop.f32.mrf.mxu0
        %v3382 = vadd.f32 %v3293, %v3381
        %v3383 = vpop.f32.mrf.mxu0
        %3384 = vdwg.mxu0
        %v3385 = vadd.f32 %v3154, %v3362
        %v3386 = vadd.f32 %v3155, %v3367
        %v3387 = vadd.f32 %v3156, %v3372
        %v3388 = vadd.f32 %v3157, %v3377
        %v3389 = vadd.f32 %v3158, %v3382
        %v3390 = vld [vmem:[%s18] sm:$0x1]
        %v3391 = vld [vmem:[%s19] sm:$0x1]
        %3392 = vadd.xlane.f32.xlu0 %v3385
        %v3393 = vpop.xlane.xlu0 %3392
        %3394 = vadd.xlane.f32.xlu0 %v3386
        %v3395 = vpop.xlane.xlu0 %3394
        %3396 = vadd.xlane.f32.xlu0 %v3387
        %v3397 = vpop.xlane.xlu0 %3396
        %3398 = vadd.xlane.f32.xlu0 %v3388
        %v3399 = vpop.xlane.xlu0 %3398
        %3400 = vadd.xlane.f32.xlu0 %v3389
        %v3401 = vpop.xlane.xlu0 %3400
        %v3402 = vmul.f32 %v3393, %v3091
        %v3403 = vmul.f32 %v3395, %v3091
        %v3404 = vmul.f32 %v3397, %v3091
        %v3405 = vmul.f32 %v3399, %v3091
        %v3406 = vmul.f32 %v3401, %v3091
        %v3407 = vsub.f32 %v3385, %v3402
        %v3408 = vsub.f32 %v3386, %v3403
        %v3409 = vsub.f32 %v3387, %v3404
        %v3410 = vsub.f32 %v3388, %v3405
        %v3411 = vsub.f32 %v3389, %v3406
        %v3412 = vmul.f32 %v3407, %v3407
        %v3413 = vmul.f32 %v3408, %v3408
        %v3414 = vmul.f32 %v3409, %v3409
        %v3415 = vmul.f32 %v3410, %v3410
        %v3416 = vmul.f32 %v3411, %v3411
        %3417 = vadd.xlane.f32.xlu0 %v3412
        %v3418 = vpop.xlane.xlu0 %3417
        %3419 = vadd.xlane.f32.xlu0 %v3413
        %v3420 = vpop.xlane.xlu0 %3419
        %3421 = vadd.xlane.f32.xlu0 %v3414
        %v3422 = vpop.xlane.xlu0 %3421
        %3423 = vadd.xlane.f32.xlu0 %v3415
        %v3424 = vpop.xlane.xlu0 %3423
        %3425 = vadd.xlane.f32.xlu0 %v3416
        %v3426 = vpop.xlane.xlu0 %3425
        %v3427 = vmul.f32 %v3418, %v3091
        %v3428 = vmul.f32 %v3420, %v3091
        %v3429 = vmul.f32 %v3422, %v3091
        %v3430 = vmul.f32 %v3424, %v3091
        %v3431 = vmul.f32 %v3426, %v3091
        %v3432 = vadd.f32 %v3427, 1e-05
        %v3433 = vadd.f32 %v3428, 1e-05
        %v3434 = vadd.f32 %v3429, 1e-05
        %v3435 = vadd.f32 %v3430, 1e-05
        %v3436 = vadd.f32 %v3431, 1e-05
        %v3437 = vrsqrt.pop %v3432
        %v3438 = vrsqrt.pop %v3433
        %v3439 = vrsqrt.pop %v3434
        %v3440 = vrsqrt.pop %v3435
        %v3441 = vrsqrt.pop %v3436
        %v3442 = vmul.f32 %v3407, %v3437
        %v3443 = vmul.f32 %v3408, %v3438
        %v3444 = vmul.f32 %v3409, %v3439
        %v3445 = vmul.f32 %v3410, %v3440
        %v3446 = vmul.f32 %v3411, %v3441
        %v3448 = vlaneseq
        %v3449 = vshrl.u32 %v3448, 7
        %v3450 = vsub.s32 0, %v3449
        %v3451 = vrot.slane %v3390, %v3450
        %v3453 = vmul.f32 %v3442, %v3451
        %v3454 = vmul.f32 %v3443, %v3451
        %v3455 = vmul.f32 %v3444, %v3451
        %v3456 = vmul.f32 %v3445, %v3451
        %v3457 = vmul.f32 %v3446, %v3451
        %v3459 = vlaneseq
        %v3460 = vshrl.u32 %v3459, 7
        %v3461 = vsub.s32 0, %v3460
        %v3462 = vrot.slane %v3391, %v3461
        %v3464 = vadd.f32 %v3453, %v3462
        %v3465 = vadd.f32 %v3454, %v3462
        %v3466 = vadd.f32 %v3455, %v3462
        %v3467 = vadd.f32 %v3456, %v3462
        %v3468 = vadd.f32 %v3457, %v3462
        %v3469 = vld [vmem:[#allocation16] sm:$0xff]
        %v3470 = vld [vmem:[#allocation16 + $0x8] sm:$0xff]
        %v3471 = vld [vmem:[#allocation16 + $0x10] sm:$0xff]
        %v3472 = vld [vmem:[#allocation16 + $0x18] sm:$0xff]
        %v3473 = vld [vmem:[#allocation16 + $0x20] sm:$0xff]
        %v3474 = vld [vmem:[#allocation16 + $0x28] sm:$0xff]
        %v3475 = vld [vmem:[#allocation16 + $0x30] sm:$0xff]
        %v3476 = vld [vmem:[#allocation16 + $0x38] sm:$0xff]
        %v3477 = vld [vmem:[#allocation16 + $0x40] sm:$0xff]
        %v3478 = vld [vmem:[#allocation16 + $0x48] sm:$0xff]
        %v3479 = vld [vmem:[#allocation16 + $0x50] sm:$0xff]
        %v3480 = vld [vmem:[#allocation16 + $0x58] sm:$0xff]
        %v3481 = vld [vmem:[#allocation16 + $0x60] sm:$0xff]
        %v3482 = vld [vmem:[#allocation16 + $0x68] sm:$0xff]
        %v3483 = vld [vmem:[#allocation16 + $0x70] sm:$0xff]
        %v3484 = vld [vmem:[#allocation16 + $0x78] sm:$0xff]
        %v3485 = vld [vmem:[#allocation16 + $0x80] sm:$0xff]
        %v3486 = vld [vmem:[#allocation16 + $0x88] sm:$0xff]
        %v3487 = vld [vmem:[#allocation16 + $0x90] sm:$0xff]
        %v3488 = vld [vmem:[#allocation16 + $0x98] sm:$0xff]
        %v3489 = vld [vmem:[#allocation16 + $0xa0] sm:$0xff]
        %v3490 = vld [vmem:[#allocation16 + $0xa8] sm:$0xff]
        %v3491 = vld [vmem:[#allocation16 + $0xb0] sm:$0xff]
        %v3492 = vld [vmem:[#allocation16 + $0xb8] sm:$0xff]
        %v3493 = vld [vmem:[#allocation16 + $0xc0] sm:$0xff]
        %v3494 = vld [vmem:[#allocation16 + $0xc8] sm:$0xff]
        %v3495 = vld [vmem:[#allocation16 + $0xd0] sm:$0xff]
        %v3496 = vld [vmem:[#allocation16 + $0xd8] sm:$0xff]
        %v3497 = vld [vmem:[#allocation16 + $0xe0] sm:$0xff]
        %v3498 = vld [vmem:[#allocation16 + $0xe8] sm:$0xff]
        %v3499 = vld [vmem:[#allocation16 + $0xf0] sm:$0xff]
        %v3500 = vld [vmem:[#allocation16 + $0xf8] sm:$0xff]
        %v3501 = vld [vmem:[%s13] sm:$0x3]
        %v3503 = vlaneseq
        %v3504 = vshrl.u32 %v3503, 7
        %v3505 = vsub.s32 0, %v3504
        %v3506 = vrot.slane %v3501, %v3505
        %v3507 = vlaneseq
        %v3508 = vshrl.u32 %v3507, 7
        %v3509 = vsub.s32 1, %v3508
        %v3510 = vrot.slane %v3501, %v3509
        %3513 = vmatprep.subr.mxu0 %v3500
        %3514 = vmatpush1.msra.mxu0 %v3499
        %3515 = vmatprep.subr.mxu0 %v3498
        %3516 = vmatpush1.msra.mxu0 %v3497
        %3517 = vmatprep.subr.mxu0 %v3496
        %3518 = vmatpush1.msra.mxu0 %v3495
        %3519 = vmatprep.subr.mxu0 %v3494
        %3520 = vmatpush1.msra.mxu0 %v3493
        %3521 = vmatprep.subr.mxu0 %v3492
        %3522 = vmatpush1.msra.mxu0 %v3491
        %3523 = vmatprep.subr.mxu0 %v3490
        %3524 = vmatpush1.msra.mxu0 %v3489
        %3525 = vmatprep.subr.mxu0 %v3488
        %3526 = vmatpush1.msra.mxu0 %v3487
        %3527 = vmatprep.subr.mxu0 %v3486
        %3528 = vmatpush1.msra.mxu0 %v3485
        %3529 = vmatprep.subr.mxu0 %v3484
        %3530 = vmatpush1.msra.mxu0 %v3483
        %3531 = vmatprep.subr.mxu0 %v3482
        %3532 = vmatpush1.msra.mxu0 %v3481
        %3533 = vmatprep.subr.mxu0 %v3480
        %3534 = vmatpush1.msra.mxu0 %v3479
        %3535 = vmatprep.subr.mxu0 %v3478
        %3536 = vmatpush1.msra.mxu0 %v3477
        %3537 = vmatprep.subr.mxu0 %v3476
        %3538 = vmatpush1.msra.mxu0 %v3475
        %3539 = vmatprep.subr.mxu0 %v3474
        %3540 = vmatpush1.msra.mxu0 %v3473
        %3541 = vmatprep.subr.mxu0 %v3472
        %3542 = vmatpush1.msra.mxu0 %v3471
        %3543 = vmatprep.subr.mxu0 %v3470
        %3544 = vmatpush1.msra.mxu0 %v3469
        %3545 = vmatprep.subr.mxu0 0.0
        %3546 = vmatpush2.msra.mxu0 0.0
        %3547 = vmatprep.subr.mxu0 0.0
        %3548 = vmatpush2.msra.mxu0 0.0
        %3549 = vmatprep.subr.mxu0 0.0
        %3550 = vmatpush2.msra.mxu0 0.0
        %3551 = vmatprep.subr.mxu0 0.0
        %3552 = vmatpush2.msra.mxu0 0.0
        %3553 = vmatprep.subr.mxu0 0.0
        %3554 = vmatpush2.msra.mxu0 0.0
        %3555 = vmatprep.subr.mxu0 0.0
        %3556 = vmatpush2.msra.mxu0 0.0
        %3557 = vmatprep.subr.mxu0 0.0
        %3558 = vmatpush2.msra.mxu0 0.0
        %3559 = vmatprep.subr.mxu0 0.0
        %3560 = vmatpush2.msra.mxu0 0.0
        %3561 = vmatprep.subr.mxu0 0.0
        %3562 = vmatpush2.msra.mxu0 0.0
        %3563 = vmatprep.subr.mxu0 0.0
        %3564 = vmatpush2.msra.mxu0 0.0
        %3565 = vmatprep.subr.mxu0 0.0
        %3566 = vmatpush2.msra.mxu0 0.0
        %3567 = vmatprep.subr.mxu0 0.0
        %3568 = vmatpush2.msra.mxu0 0.0
        %3569 = vmatprep.subr.mxu0 0.0
        %3570 = vmatpush2.msra.mxu0 0.0
        %3571 = vmatprep.subr.mxu0 0.0
        %3572 = vmatpush2.msra.mxu0 0.0
        %3573 = vmatprep.subr.mxu0 0.0
        %3574 = vmatpush2.msra.mxu0 0.0
        %3575 = vmatprep.subr.mxu0 0.0
        %3576 = vmatpush2.msra.mxu0 0.0
        %3577 = vmatprep.mubr.f32.mxu0 0.0
        %3578 = vmatmul.mubr.f32.gmra.mxu0 %v3464
        %v3579 = vpop.f32.mrf.mxu0
        %v3580 = vadd.f32 %v3506, %v3579
        %v3581 = vpop.f32.mrf.mxu0
        %v3582 = vadd.f32 %v3510, %v3581
        %3583 = vmatprep.mubr.f32.mxu0 0.0
        %3584 = vmatmul.mubr.f32.gmra.mxu0 %v3465
        %v3585 = vpop.f32.mrf.mxu0
        %v3586 = vadd.f32 %v3506, %v3585
        %v3587 = vpop.f32.mrf.mxu0
        %v3588 = vadd.f32 %v3510, %v3587
        %3589 = vmatprep.mubr.f32.mxu0 0.0
        %3590 = vmatmul.mubr.f32.gmra.mxu0 %v3466
        %v3591 = vpop.f32.mrf.mxu0
        %v3592 = vadd.f32 %v3506, %v3591
        %v3593 = vpop.f32.mrf.mxu0
        %v3594 = vadd.f32 %v3510, %v3593
        %3595 = vmatprep.mubr.f32.mxu0 0.0
        %3596 = vmatmul.mubr.f32.gmra.mxu0 %v3467
        %v3597 = vpop.f32.mrf.mxu0
        %v3598 = vadd.f32 %v3506, %v3597
        %v3599 = vpop.f32.mrf.mxu0
        %v3600 = vadd.f32 %v3510, %v3599
        %3601 = vmatprep.mubr.f32.mxu0 0.0
        %3602 = vmatmul.mubr.f32.gmra.mxu0 %v3468
        %v3603 = vpop.f32.mrf.mxu0
        %v3604 = vadd.f32 %v3506, %v3603
        %v3605 = vpop.f32.mrf.mxu0
        %v3606 = vadd.f32 %v3510, %v3605
        %3607 = vdwg.mxu0
        %v3608 = vmax.f32 %v3580, 0.0
        %v3609 = vmax.f32 %v3582, 0.0
        %v3610 = vmax.f32 %v3586, 0.0
        %v3611 = vmax.f32 %v3588, 0.0
        %v3612 = vmax.f32 %v3592, 0.0
        %v3613 = vmax.f32 %v3594, 0.0
        %v3614 = vmax.f32 %v3598, 0.0
        %v3615 = vmax.f32 %v3600, 0.0
        %v3616 = vmax.f32 %v3604, 0.0
        %v3617 = vmax.f32 %v3606, 0.0
        %v3618 = vld [vmem:[#allocation17] sm:$0xff]
        %v3619 = vld [vmem:[#allocation17 + $0x8] sm:$0xff]
        %v3620 = vld [vmem:[#allocation17 + $0x10] sm:$0xff]
        %v3621 = vld [vmem:[#allocation17 + $0x18] sm:$0xff]
        %v3622 = vld [vmem:[#allocation17 + $0x20] sm:$0xff]
        %v3623 = vld [vmem:[#allocation17 + $0x28] sm:$0xff]
        %v3624 = vld [vmem:[#allocation17 + $0x30] sm:$0xff]
        %v3625 = vld [vmem:[#allocation17 + $0x38] sm:$0xff]
        %v3626 = vld [vmem:[#allocation17 + $0x40] sm:$0xff]
        %v3627 = vld [vmem:[#allocation17 + $0x48] sm:$0xff]
        %v3628 = vld [vmem:[#allocation17 + $0x50] sm:$0xff]
        %v3629 = vld [vmem:[#allocation17 + $0x58] sm:$0xff]
        %v3630 = vld [vmem:[#allocation17 + $0x60] sm:$0xff]
        %v3631 = vld [vmem:[#allocation17 + $0x68] sm:$0xff]
        %v3632 = vld [vmem:[#allocation17 + $0x70] sm:$0xff]
        %v3633 = vld [vmem:[#allocation17 + $0x78] sm:$0xff]
        %v3634 = vld [vmem:[#allocation17 + $0x80] sm:$0xff]
        %v3635 = vld [vmem:[#allocation17 + $0x88] sm:$0xff]
        %v3636 = vld [vmem:[#allocation17 + $0x90] sm:$0xff]
        %v3637 = vld [vmem:[#allocation17 + $0x98] sm:$0xff]
        %v3638 = vld [vmem:[#allocation17 + $0xa0] sm:$0xff]
        %v3639 = vld [vmem:[#allocation17 + $0xa8] sm:$0xff]
        %v3640 = vld [vmem:[#allocation17 + $0xb0] sm:$0xff]
        %v3641 = vld [vmem:[#allocation17 + $0xb8] sm:$0xff]
        %v3642 = vld [vmem:[#allocation17 + $0xc0] sm:$0xff]
        %v3643 = vld [vmem:[#allocation17 + $0xc8] sm:$0xff]
        %v3644 = vld [vmem:[#allocation17 + $0xd0] sm:$0xff]
        %v3645 = vld [vmem:[#allocation17 + $0xd8] sm:$0xff]
        %v3646 = vld [vmem:[#allocation17 + $0xe0] sm:$0xff]
        %v3647 = vld [vmem:[#allocation17 + $0xe8] sm:$0xff]
        %v3648 = vld [vmem:[#allocation17 + $0xf0] sm:$0xff]
        %v3649 = vld [vmem:[#allocation17 + $0xf8] sm:$0xff]
        %v3650 = vld [vmem:[%s15] sm:$0x1]
        %v3652 = vlaneseq
        %v3653 = vshrl.u32 %v3652, 7
        %v3654 = vsub.s32 0, %v3653
        %v3655 = vrot.slane %v3650, %v3654
        %3657 = vmatprep.subr.mxu0 0.0
        %3658 = vmatpush1.msra.mxu0 %v3633
        %3659 = vmatprep.subr.mxu0 0.0
        %3660 = vmatpush1.msra.mxu0 %v3632
        %3661 = vmatprep.subr.mxu0 0.0
        %3662 = vmatpush1.msra.mxu0 %v3631
        %3663 = vmatprep.subr.mxu0 0.0
        %3664 = vmatpush1.msra.mxu0 %v3630
        %3665 = vmatprep.subr.mxu0 0.0
        %3666 = vmatpush1.msra.mxu0 %v3629
        %3667 = vmatprep.subr.mxu0 0.0
        %3668 = vmatpush1.msra.mxu0 %v3628
        %3669 = vmatprep.subr.mxu0 0.0
        %3670 = vmatpush1.msra.mxu0 %v3627
        %3671 = vmatprep.subr.mxu0 0.0
        %3672 = vmatpush1.msra.mxu0 %v3626
        %3673 = vmatprep.subr.mxu0 0.0
        %3674 = vmatpush1.msra.mxu0 %v3625
        %3675 = vmatprep.subr.mxu0 0.0
        %3676 = vmatpush1.msra.mxu0 %v3624
        %3677 = vmatprep.subr.mxu0 0.0
        %3678 = vmatpush1.msra.mxu0 %v3623
        %3679 = vmatprep.subr.mxu0 0.0
        %3680 = vmatpush1.msra.mxu0 %v3622
        %3681 = vmatprep.subr.mxu0 0.0
        %3682 = vmatpush1.msra.mxu0 %v3621
        %3683 = vmatprep.subr.mxu0 0.0
        %3684 = vmatpush1.msra.mxu0 %v3620
        %3685 = vmatprep.subr.mxu0 0.0
        %3686 = vmatpush1.msra.mxu0 %v3619
        %3687 = vmatprep.subr.mxu0 0.0
        %3688 = vmatpush1.msra.mxu0 %v3618
        %3689 = vmatprep.subr.mxu0 0.0
        %3690 = vmatpush2.msra.mxu0 %v3649
        %3691 = vmatprep.subr.mxu0 0.0
        %3692 = vmatpush2.msra.mxu0 %v3648
        %3693 = vmatprep.subr.mxu0 0.0
        %3694 = vmatpush2.msra.mxu0 %v3647
        %3695 = vmatprep.subr.mxu0 0.0
        %3696 = vmatpush2.msra.mxu0 %v3646
        %3697 = vmatprep.subr.mxu0 0.0
        %3698 = vmatpush2.msra.mxu0 %v3645
        %3699 = vmatprep.subr.mxu0 0.0
        %3700 = vmatpush2.msra.mxu0 %v3644
        %3701 = vmatprep.subr.mxu0 0.0
        %3702 = vmatpush2.msra.mxu0 %v3643
        %3703 = vmatprep.subr.mxu0 0.0
        %3704 = vmatpush2.msra.mxu0 %v3642
        %3705 = vmatprep.subr.mxu0 0.0
        %3706 = vmatpush2.msra.mxu0 %v3641
        %3707 = vmatprep.subr.mxu0 0.0
        %3708 = vmatpush2.msra.mxu0 %v3640
        %3709 = vmatprep.subr.mxu0 0.0
        %3710 = vmatpush2.msra.mxu0 %v3639
        %3711 = vmatprep.subr.mxu0 0.0
        %3712 = vmatpush2.msra.mxu0 %v3638
        %3713 = vmatprep.subr.mxu0 0.0
        %3714 = vmatpush2.msra.mxu0 %v3637
        %3715 = vmatprep.subr.mxu0 0.0
        %3716 = vmatpush2.msra.mxu0 %v3636
        %3717 = vmatprep.subr.mxu0 0.0
        %3718 = vmatpush2.msra.mxu0 %v3635
        %3719 = vmatprep.subr.mxu0 0.0
        %3720 = vmatpush2.msra.mxu0 %v3634
        %3721 = vmatprep.mubr.f32.mxu0 %v3609
        %3722 = vmatmul.mubr.f32.gmra.mxu0 %v3608
        %v3723 = vpop.f32.mrf.mxu0
        %v3724 = vadd.f32 %v3655, %v3723
        %v3725 = vpop.f32.mrf.mxu0
        %3726 = vmatprep.mubr.f32.mxu0 %v3611
        %3727 = vmatmul.mubr.f32.gmra.mxu0 %v3610
        %v3728 = vpop.f32.mrf.mxu0
        %v3729 = vadd.f32 %v3655, %v3728
        %v3730 = vpop.f32.mrf.mxu0
        %3731 = vmatprep.mubr.f32.mxu0 %v3613
        %3732 = vmatmul.mubr.f32.gmra.mxu0 %v3612
        %v3733 = vpop.f32.mrf.mxu0
        %v3734 = vadd.f32 %v3655, %v3733
        %v3735 = vpop.f32.mrf.mxu0
        %3736 = vmatprep.mubr.f32.mxu0 %v3615
        %3737 = vmatmul.mubr.f32.gmra.mxu0 %v3614
        %v3738 = vpop.f32.mrf.mxu0
        %v3739 = vadd.f32 %v3655, %v3738
        %v3740 = vpop.f32.mrf.mxu0
        %3741 = vmatprep.mubr.f32.mxu0 %v3617
        %3742 = vmatmul.mubr.f32.gmra.mxu0 %v3616
        %v3743 = vpop.f32.mrf.mxu0
        %v3744 = vadd.f32 %v3655, %v3743
        %v3745 = vpop.f32.mrf.mxu0
        %3746 = vdwg.mxu0
        %v3747 = vadd.f32 %v3464, %v3724
        %v3748 = vadd.f32 %v3465, %v3729
        %v3749 = vadd.f32 %v3466, %v3734
        %v3750 = vadd.f32 %v3467, %v3739
        %v3751 = vadd.f32 %v3468, %v3744
        %v3752 = vld [vmem:[%s20] sm:$0x1]
        %v3753 = vld [vmem:[%s21] sm:$0x1]
        %3754 = vadd.xlane.f32.xlu0 %v3747
        %v3755 = vpop.xlane.xlu0 %3754
        %3756 = vadd.xlane.f32.xlu0 %v3748
        %v3757 = vpop.xlane.xlu0 %3756
        %3758 = vadd.xlane.f32.xlu0 %v3749
        %v3759 = vpop.xlane.xlu0 %3758
        %3760 = vadd.xlane.f32.xlu0 %v3750
        %v3761 = vpop.xlane.xlu0 %3760
        %3762 = vadd.xlane.f32.xlu0 %v3751
        %v3763 = vpop.xlane.xlu0 %3762
        %v3764 = vmul.f32 %v3755, %v3091
        %v3765 = vmul.f32 %v3757, %v3091
        %v3766 = vmul.f32 %v3759, %v3091
        %v3767 = vmul.f32 %v3761, %v3091
        %v3768 = vmul.f32 %v3763, %v3091
        %v3769 = vsub.f32 %v3747, %v3764
        %v3770 = vsub.f32 %v3748, %v3765
        %v3771 = vsub.f32 %v3749, %v3766
        %v3772 = vsub.f32 %v3750, %v3767
        %v3773 = vsub.f32 %v3751, %v3768
        %v3774 = vmul.f32 %v3769, %v3769
        %v3775 = vmul.f32 %v3770, %v3770
        %v3776 = vmul.f32 %v3771, %v3771
        %v3777 = vmul.f32 %v3772, %v3772
        %v3778 = vmul.f32 %v3773, %v3773
        %3779 = vadd.xlane.f32.xlu0 %v3774
        %v3780 = vpop.xlane.xlu0 %3779
        %3781 = vadd.xlane.f32.xlu0 %v3775
        %v3782 = vpop.xlane.xlu0 %3781
        %3783 = vadd.xlane.f32.xlu0 %v3776
        %v3784 = vpop.xlane.xlu0 %3783
        %3785 = vadd.xlane.f32.xlu0 %v3777
        %v3786 = vpop.xlane.xlu0 %3785
        %3787 = vadd.xlane.f32.xlu0 %v3778
        %v3788 = vpop.xlane.xlu0 %3787
        %v3789 = vmul.f32 %v3780, %v3091
        %v3790 = vmul.f32 %v3782, %v3091
        %v3791 = vmul.f32 %v3784, %v3091
        %v3792 = vmul.f32 %v3786, %v3091
        %v3793 = vmul.f32 %v3788, %v3091
        %v3794 = vadd.f32 %v3789, 1e-05
        %v3795 = vadd.f32 %v3790, 1e-05
        %v3796 = vadd.f32 %v3791, 1e-05
        %v3797 = vadd.f32 %v3792, 1e-05
        %v3798 = vadd.f32 %v3793, 1e-05
        %v3799 = vrsqrt.pop %v3794
        %v3800 = vrsqrt.pop %v3795
        %v3801 = vrsqrt.pop %v3796
        %v3802 = vrsqrt.pop %v3797
        %v3803 = vrsqrt.pop %v3798
        %v3804 = vmul.f32 %v3769, %v3799
        %v3805 = vmul.f32 %v3770, %v3800
        %v3806 = vmul.f32 %v3771, %v3801
        %v3807 = vmul.f32 %v3772, %v3802
        %v3808 = vmul.f32 %v3773, %v3803
        %v3810 = vlaneseq
        %v3811 = vshrl.u32 %v3810, 7
        %v3812 = vsub.s32 0, %v3811
        %v3813 = vrot.slane %v3752, %v3812
        %v3815 = vmul.f32 %v3804, %v3813
        %v3816 = vmul.f32 %v3805, %v3813
        %v3817 = vmul.f32 %v3806, %v3813
        %v3818 = vmul.f32 %v3807, %v3813
        %v3819 = vmul.f32 %v3808, %v3813
        %v3821 = vlaneseq
        %v3822 = vshrl.u32 %v3821, 7
        %v3823 = vsub.s32 0, %v3822
        %v3824 = vrot.slane %v3753, %v3823
        %v3826 = vadd.f32 %v3815, %v3824
        %v3827 = vadd.f32 %v3816, %v3824
        %v3828 = vadd.f32 %v3817, %v3824
        %v3829 = vadd.f32 %v3818, %v3824
        %v3830 = vadd.f32 %v3819, %v3824
        %s3831 = scalar_lea.vmem [#allocation10], 384
        %v3832 = vld [vmem:[%s3831] sm:$0xff]
        %v3833 = vld [vmem:[%s3831 + $0x8] sm:$0xff]
        %v3834 = vld [vmem:[%s3831 + $0x10] sm:$0xff]
        %v3835 = vld [vmem:[%s3831 + $0x18] sm:$0xff]
        %v3836 = vld [vmem:[%s3831 + $0x20] sm:$0xff]
        %v3837 = vld [vmem:[%s3831 + $0x28] sm:$0xff]
        %v3838 = vld [vmem:[%s3831 + $0x30] sm:$0xff]
        %v3839 = vld [vmem:[%s3831 + $0x38] sm:$0xff]
        %v3840 = vld [vmem:[%s3831 + $0x40] sm:$0xff]
        %v3841 = vld [vmem:[%s3831 + $0x48] sm:$0xff]
        %v3842 = vld [vmem:[%s3831 + $0x50] sm:$0xff]
        %v3843 = vld [vmem:[%s3831 + $0x58] sm:$0xff]
        %v3844 = vld [vmem:[%s3831 + $0x60] sm:$0xff]
        %v3845 = vld [vmem:[%s3831 + $0x68] sm:$0xff]
        %v3846 = vld [vmem:[%s3831 + $0x70] sm:$0xff]
        %v3847 = vld [vmem:[%s3831 + $0x78] sm:$0xff]
        %v3848 = vld [vmem:[%s3831 + $0x80] sm:$0xff]
        %v3849 = vld [vmem:[%s3831 + $0x88] sm:$0xff]
        %v3850 = vld [vmem:[%s3831 + $0x90] sm:$0xff]
        %v3851 = vld [vmem:[%s3831 + $0x98] sm:$0xff]
        %v3852 = vld [vmem:[%s3831 + $0xa0] sm:$0xff]
        %v3853 = vld [vmem:[%s3831 + $0xa8] sm:$0xff]
        %v3854 = vld [vmem:[%s3831 + $0xb0] sm:$0xff]
        %v3855 = vld [vmem:[%s3831 + $0xb8] sm:$0xff]
        %v3856 = vld [vmem:[%s3831 + $0xc0] sm:$0xff]
        %v3857 = vld [vmem:[%s3831 + $0xc8] sm:$0xff]
        %v3858 = vld [vmem:[%s3831 + $0xd0] sm:$0xff]
        %v3859 = vld [vmem:[%s3831 + $0xd8] sm:$0xff]
        %v3860 = vld [vmem:[%s3831 + $0xe0] sm:$0xff]
        %v3861 = vld [vmem:[%s3831 + $0xe8] sm:$0xff]
        %v3862 = vld [vmem:[%s3831 + $0xf0] sm:$0xff]
        %v3863 = vld [vmem:[%s3831 + $0xf8] sm:$0xff]
        %v3864 = vld [vmem:[%s3831 + $0x100] sm:$0xff]
        %v3865 = vld [vmem:[%s3831 + $0x108] sm:$0xff]
        %v3866 = vld [vmem:[%s3831 + $0x110] sm:$0xff]
        %v3867 = vld [vmem:[%s3831 + $0x118] sm:$0xff]
        %v3868 = vld [vmem:[%s3831 + $0x120] sm:$0xff]
        %v3869 = vld [vmem:[%s3831 + $0x128] sm:$0xff]
        %v3870 = vld [vmem:[%s3831 + $0x130] sm:$0xff]
        %v3871 = vld [vmem:[%s3831 + $0x138] sm:$0xff]
        %v3872 = vld [vmem:[%s3831 + $0x140] sm:$0xff]
        %v3873 = vld [vmem:[%s3831 + $0x148] sm:$0xff]
        %v3874 = vld [vmem:[%s3831 + $0x150] sm:$0xff]
        %v3875 = vld [vmem:[%s3831 + $0x158] sm:$0xff]
        %v3876 = vld [vmem:[%s3831 + $0x160] sm:$0xff]
        %v3877 = vld [vmem:[%s3831 + $0x168] sm:$0xff]
        %v3878 = vld [vmem:[%s3831 + $0x170] sm:$0xff]
        %v3879 = vld [vmem:[%s3831 + $0x178] sm:$0xff]
        %s3880 = scalar_lea.vmem %s5, 3
        %v3881 = vld [vmem:[%s3880] sm:$0x7]
        %v3883 = vlaneseq
        %v3884 = vshrl.u32 %v3883, 7
        %v3885 = vsub.s32 0, %v3884
        %v3886 = vrot.slane %v3881, %v3885
        %v3887 = vlaneseq
        %v3888 = vshrl.u32 %v3887, 7
        %v3889 = vsub.s32 1, %v3888
        %v3890 = vrot.slane %v3881, %v3889
        %v3891 = vlaneseq
        %v3892 = vshrl.u32 %v3891, 7
        %v3893 = vsub.s32 2, %v3892
        %v3894 = vrot.slane %v3881, %v3893
        %3898 = vmatprep.subr.mxu0 %v3878
        %3899 = vmatpush1.msra.mxu0 %v3877
        %3900 = vmatprep.subr.mxu0 %v3875
        %3901 = vmatpush1.msra.mxu0 %v3874
        %3902 = vmatprep.subr.mxu0 %v3872
        %3903 = vmatpush1.msra.mxu0 %v3871
        %3904 = vmatprep.subr.mxu0 %v3869
        %3905 = vmatpush1.msra.mxu0 %v3868
        %3906 = vmatprep.subr.mxu0 %v3866
        %3907 = vmatpush1.msra.mxu0 %v3865
        %3908 = vmatprep.subr.mxu0 %v3863
        %3909 = vmatpush1.msra.mxu0 %v3862
        %3910 = vmatprep.subr.mxu0 %v3860
        %3911 = vmatpush1.msra.mxu0 %v3859
        %3912 = vmatprep.subr.mxu0 %v3857
        %3913 = vmatpush1.msra.mxu0 %v3856
        %3914 = vmatprep.subr.mxu0 %v3854
        %3915 = vmatpush1.msra.mxu0 %v3853
        %3916 = vmatprep.subr.mxu0 %v3851
        %3917 = vmatpush1.msra.mxu0 %v3850
        %3918 = vmatprep.subr.mxu0 %v3848
        %3919 = vmatpush1.msra.mxu0 %v3847
        %3920 = vmatprep.subr.mxu0 %v3845
        %3921 = vmatpush1.msra.mxu0 %v3844
        %3922 = vmatprep.subr.mxu0 %v3842
        %3923 = vmatpush1.msra.mxu0 %v3841
        %3924 = vmatprep.subr.mxu0 %v3839
        %3925 = vmatpush1.msra.mxu0 %v3838
        %3926 = vmatprep.subr.mxu0 %v3836
        %3927 = vmatpush1.msra.mxu0 %v3835
        %3928 = vmatprep.subr.mxu0 %v3833
        %3929 = vmatpush1.msra.mxu0 %v3832
        %3930 = vmatprep.subr.mxu0 0.0
        %3931 = vmatpush2.msra.mxu0 0.0
        %3932 = vmatprep.subr.mxu0 0.0
        %3933 = vmatpush2.msra.mxu0 0.0
        %3934 = vmatprep.subr.mxu0 0.0
        %3935 = vmatpush2.msra.mxu0 0.0
        %3936 = vmatprep.subr.mxu0 0.0
        %3937 = vmatpush2.msra.mxu0 0.0
        %3938 = vmatprep.subr.mxu0 0.0
        %3939 = vmatpush2.msra.mxu0 0.0
        %3940 = vmatprep.subr.mxu0 0.0
        %3941 = vmatpush2.msra.mxu0 0.0
        %3942 = vmatprep.subr.mxu0 0.0
        %3943 = vmatpush2.msra.mxu0 0.0
        %3944 = vmatprep.subr.mxu0 0.0
        %3945 = vmatpush2.msra.mxu0 0.0
        %3946 = vmatprep.subr.mxu0 0.0
        %3947 = vmatpush2.msra.mxu0 0.0
        %3948 = vmatprep.subr.mxu0 0.0
        %3949 = vmatpush2.msra.mxu0 0.0
        %3950 = vmatprep.subr.mxu0 0.0
        %3951 = vmatpush2.msra.mxu0 0.0
        %3952 = vmatprep.subr.mxu0 0.0
        %3953 = vmatpush2.msra.mxu0 0.0
        %3954 = vmatprep.subr.mxu0 0.0
        %3955 = vmatpush2.msra.mxu0 0.0
        %3956 = vmatprep.subr.mxu0 0.0
        %3957 = vmatpush2.msra.mxu0 0.0
        %3958 = vmatprep.subr.mxu0 0.0
        %3959 = vmatpush2.msra.mxu0 0.0
        %3960 = vmatprep.subr.mxu0 0.0
        %3961 = vmatpush2.msra.mxu0 0.0
        %3962 = vmatprep.mubr.f32.mxu0 0.0
        %3963 = vmatmul.mubr.f32.gmra.mxu0 %v3826
        %v3964 = vpop.f32.mrf.mxu0
        %v3965 = vadd.f32 %v3886, %v3964
        %v3966 = vpop.f32.mrf.mxu0
        %v3967 = vadd.f32 %v3890, %v3966
        %3968 = vmatprep.mubr.f32.mxu0 0.0
        %3969 = vmatmul.mubr.f32.gmra.mxu0 %v3827
        %v3970 = vpop.f32.mrf.mxu0
        %v3971 = vadd.f32 %v3886, %v3970
        %v3972 = vpop.f32.mrf.mxu0
        %v3973 = vadd.f32 %v3890, %v3972
        %3974 = vmatprep.mubr.f32.mxu0 0.0
        %3975 = vmatmul.mubr.f32.gmra.mxu0 %v3828
        %v3976 = vpop.f32.mrf.mxu0
        %v3977 = vadd.f32 %v3886, %v3976
        %v3978 = vpop.f32.mrf.mxu0
        %v3979 = vadd.f32 %v3890, %v3978
        %3980 = vmatprep.mubr.f32.mxu0 0.0
        %3981 = vmatmul.mubr.f32.gmra.mxu0 %v3829
        %v3982 = vpop.f32.mrf.mxu0
        %v3983 = vadd.f32 %v3886, %v3982
        %v3984 = vpop.f32.mrf.mxu0
        %v3985 = vadd.f32 %v3890, %v3984
        %3986 = vmatprep.mubr.f32.mxu0 0.0
        %3987 = vmatmul.mubr.f32.gmra.mxu0 %v3830
        %v3988 = vpop.f32.mrf.mxu0
        %v3989 = vadd.f32 %v3886, %v3988
        %v3990 = vpop.f32.mrf.mxu0
        %v3991 = vadd.f32 %v3890, %v3990
        %3992 = vdwg.mxu0
        %3993 = vmatprep.subr.mxu0 0.0
        %3994 = vmatpush1.msra.mxu0 %v3879
        %3995 = vmatprep.subr.mxu0 0.0
        %3996 = vmatpush1.msra.mxu0 %v3876
        %3997 = vmatprep.subr.mxu0 0.0
        %3998 = vmatpush1.msra.mxu0 %v3873
        %3999 = vmatprep.subr.mxu0 0.0
        %4000 = vmatpush1.msra.mxu0 %v3870
        %4001 = vmatprep.subr.mxu0 0.0
        %4002 = vmatpush1.msra.mxu0 %v3867
        %4003 = vmatprep.subr.mxu0 0.0
        %4004 = vmatpush1.msra.mxu0 %v3864
        %4005 = vmatprep.subr.mxu0 0.0
        %4006 = vmatpush1.msra.mxu0 %v3861
        %4007 = vmatprep.subr.mxu0 0.0
        %4008 = vmatpush1.msra.mxu0 %v3858
        %4009 = vmatprep.subr.mxu0 0.0
        %4010 = vmatpush1.msra.mxu0 %v3855
        %4011 = vmatprep.subr.mxu0 0.0
        %4012 = vmatpush1.msra.mxu0 %v3852
        %4013 = vmatprep.subr.mxu0 0.0
        %4014 = vmatpush1.msra.mxu0 %v3849
        %4015 = vmatprep.subr.mxu0 0.0
        %4016 = vmatpush1.msra.mxu0 %v3846
        %4017 = vmatprep.subr.mxu0 0.0
        %4018 = vmatpush1.msra.mxu0 %v3843
        %4019 = vmatprep.subr.mxu0 0.0
        %4020 = vmatpush1.msra.mxu0 %v3840
        %4021 = vmatprep.subr.mxu0 0.0
        %4022 = vmatpush1.msra.mxu0 %v3837
        %4023 = vmatprep.subr.mxu0 0.0
        %4024 = vmatpush1.msra.mxu0 %v3834
        %4025 = vmatprep.subr.mxu0 0.0
        %4026 = vmatpush2.msra.mxu0 0.0
        %4027 = vmatprep.subr.mxu0 0.0
        %4028 = vmatpush2.msra.mxu0 0.0
        %4029 = vmatprep.subr.mxu0 0.0
        %4030 = vmatpush2.msra.mxu0 0.0
        %4031 = vmatprep.subr.mxu0 0.0
        %4032 = vmatpush2.msra.mxu0 0.0
        %4033 = vmatprep.subr.mxu0 0.0
        %4034 = vmatpush2.msra.mxu0 0.0
        %4035 = vmatprep.subr.mxu0 0.0
        %4036 = vmatpush2.msra.mxu0 0.0
        %4037 = vmatprep.subr.mxu0 0.0
        %4038 = vmatpush2.msra.mxu0 0.0
        %4039 = vmatprep.subr.mxu0 0.0
        %4040 = vmatpush2.msra.mxu0 0.0
        %4041 = vmatprep.subr.mxu0 0.0
        %4042 = vmatpush2.msra.mxu0 0.0
        %4043 = vmatprep.subr.mxu0 0.0
        %4044 = vmatpush2.msra.mxu0 0.0
        %4045 = vmatprep.subr.mxu0 0.0
        %4046 = vmatpush2.msra.mxu0 0.0
        %4047 = vmatprep.subr.mxu0 0.0
        %4048 = vmatpush2.msra.mxu0 0.0
        %4049 = vmatprep.subr.mxu0 0.0
        %4050 = vmatpush2.msra.mxu0 0.0
        %4051 = vmatprep.subr.mxu0 0.0
        %4052 = vmatpush2.msra.mxu0 0.0
        %4053 = vmatprep.subr.mxu0 0.0
        %4054 = vmatpush2.msra.mxu0 0.0
        %4055 = vmatprep.subr.mxu0 0.0
        %4056 = vmatpush2.msra.mxu0 0.0
        %4057 = vmatprep.mubr.f32.mxu0 0.0
        %4058 = vmatmul.mubr.f32.gmra.mxu0 %v3826
        %v4059 = vpop.f32.mrf.mxu0
        %v4060 = vadd.f32 %v3894, %v4059
        %v4061 = vpop.f32.mrf.mxu0
        %4062 = vmatprep.mubr.f32.mxu0 0.0
        %4063 = vmatmul.mubr.f32.gmra.mxu0 %v3827
        %v4064 = vpop.f32.mrf.mxu0
        %v4065 = vadd.f32 %v3894, %v4064
        %v4066 = vpop.f32.mrf.mxu0
        %4067 = vmatprep.mubr.f32.mxu0 0.0
        %4068 = vmatmul.mubr.f32.gmra.mxu0 %v3828
        %v4069 = vpop.f32.mrf.mxu0
        %v4070 = vadd.f32 %v3894, %v4069
        %v4071 = vpop.f32.mrf.mxu0
        %4072 = vmatprep.mubr.f32.mxu0 0.0
        %4073 = vmatmul.mubr.f32.gmra.mxu0 %v3829
        %v4074 = vpop.f32.mrf.mxu0
        %v4075 = vadd.f32 %v3894, %v4074
        %v4076 = vpop.f32.mrf.mxu0
        %4077 = vmatprep.mubr.f32.mxu0 0.0
        %4078 = vmatmul.mubr.f32.gmra.mxu0 %v3830
        %v4079 = vpop.f32.mrf.mxu0
        %v4080 = vadd.f32 %v3894, %v4079
        %v4081 = vpop.f32.mrf.mxu0
        %4082 = vdwg.mxu0
        %v4084 = vsel %vm1642, %v3965, 0
        %v4087 = vsel %vm1642, %v3971, 0
        %v4090 = vsel %vm1642, %v3977, 0
        %v4093 = vsel %vm1642, %v3983, 0
        %v4096 = vsel %vm1642, %v3989, 0
        %v4099 = vsel %vm1642, %v3967, 0
        %v4102 = vsel %vm1642, %v3973, 0
        %v4105 = vsel %vm1642, %v3979, 0
        %v4108 = vsel %vm1642, %v3985, 0
        %v4111 = vsel %vm1642, %v3991, 0
        %4113 = vmatprep.subr.mxu0 0.0
        %4114 = vmatpush1.xpose.msra.mxu0 0.0
        %4115 = vmatprep.subr.mxu0 0.0
        %4116 = vmatpush1.xpose.msra.mxu0 0.0
        %4117 = vmatprep.subr.mxu0 0.0
        %4118 = vmatpush1.xpose.msra.mxu0 0.0
        %4119 = vmatprep.subr.mxu0 0.0
        %4120 = vmatpush1.xpose.msra.mxu0 0.0
        %4121 = vmatprep.subr.mxu0 0.0
        %4122 = vmatpush1.xpose.msra.mxu0 0.0
        %4123 = vmatprep.subr.mxu0 0.0
        %4124 = vmatpush1.xpose.msra.mxu0 0.0
        %4125 = vmatprep.subr.mxu0 0.0
        %4126 = vmatpush1.xpose.msra.mxu0 0.0
        %4127 = vmatprep.subr.mxu0 0.0
        %4128 = vmatpush1.xpose.msra.mxu0 0.0
        %4129 = vmatprep.subr.mxu0 0.0
        %4130 = vmatpush1.xpose.msra.mxu0 0.0
        %4131 = vmatprep.subr.mxu0 0.0
        %4132 = vmatpush1.xpose.msra.mxu0 0.0
        %4133 = vmatprep.subr.mxu0 0.0
        %4134 = vmatpush1.xpose.msra.mxu0 0.0
        %4135 = vmatprep.subr.mxu0 0.0
        %4136 = vmatpush1.xpose.msra.mxu0 %v4111
        %4137 = vmatprep.subr.mxu0 0.0
        %4138 = vmatpush1.xpose.msra.mxu0 %v4108
        %4139 = vmatprep.subr.mxu0 0.0
        %4140 = vmatpush1.xpose.msra.mxu0 %v4105
        %4141 = vmatprep.subr.mxu0 0.0
        %4142 = vmatpush1.xpose.msra.mxu0 %v4102
        %4143 = vmatprep.subr.mxu0 0.0
        %4144 = vmatpush1.xpose.msra.mxu0 %v4099
        %4145 = vmatprep.subr.mxu0 0.0
        %4146 = vmatpush2.xpose.msra.mxu0 0.0
        %4147 = vmatprep.subr.mxu0 0.0
        %4148 = vmatpush2.xpose.msra.mxu0 0.0
        %4149 = vmatprep.subr.mxu0 0.0
        %4150 = vmatpush2.xpose.msra.mxu0 0.0
        %4151 = vmatprep.subr.mxu0 0.0
        %4152 = vmatpush2.xpose.msra.mxu0 0.0
        %4153 = vmatprep.subr.mxu0 0.0
        %4154 = vmatpush2.xpose.msra.mxu0 0.0
        %4155 = vmatprep.subr.mxu0 0.0
        %4156 = vmatpush2.xpose.msra.mxu0 0.0
        %4157 = vmatprep.subr.mxu0 0.0
        %4158 = vmatpush2.xpose.msra.mxu0 0.0
        %4159 = vmatprep.subr.mxu0 0.0
        %4160 = vmatpush2.xpose.msra.mxu0 0.0
        %4161 = vmatprep.subr.mxu0 0.0
        %4162 = vmatpush2.xpose.msra.mxu0 0.0
        %4163 = vmatprep.subr.mxu0 0.0
        %4164 = vmatpush2.xpose.msra.mxu0 0.0
        %4165 = vmatprep.subr.mxu0 0.0
        %4166 = vmatpush2.xpose.msra.mxu0 0.0
        %4167 = vmatprep.subr.mxu0 0.0
        %4168 = vmatpush2.xpose.msra.mxu0 0.0
        %4169 = vmatprep.subr.mxu0 0.0
        %4170 = vmatpush2.xpose.msra.mxu0 0.0
        %4171 = vmatprep.subr.mxu0 0.0
        %4172 = vmatpush2.xpose.msra.mxu0 0.0
        %4173 = vmatprep.subr.mxu0 0.0
        %4174 = vmatpush2.xpose.msra.mxu0 0.0
        %4175 = vmatprep.subr.mxu0 0.0
        %4176 = vmatpush2.xpose.msra.mxu0 0.0
        %4177 = vmatprep.mubr.f32.mxu0 0.0
        %4178 = vmatmul.mubr.f32.gmra.mxu0 %v4084
        %v4179 = vpop.f32.mrf.mxu0
        %v4180 = vadd.f32 0.0, %v4179
        %v4181 = vpop.f32.mrf.mxu0
        %4182 = vmatprep.mubr.f32.mxu0 0.0
        %4183 = vmatmul.mubr.f32.gmra.mxu0 %v4087
        %v4184 = vpop.f32.mrf.mxu0
        %v4185 = vadd.f32 0.0, %v4184
        %v4186 = vpop.f32.mrf.mxu0
        %4187 = vmatprep.mubr.f32.mxu0 0.0
        %4188 = vmatmul.mubr.f32.gmra.mxu0 %v4090
        %v4189 = vpop.f32.mrf.mxu0
        %v4190 = vadd.f32 0.0, %v4189
        %v4191 = vpop.f32.mrf.mxu0
        %4192 = vmatprep.mubr.f32.mxu0 0.0
        %4193 = vmatmul.mubr.f32.gmra.mxu0 %v4093
        %v4194 = vpop.f32.mrf.mxu0
        %v4195 = vadd.f32 0.0, %v4194
        %v4196 = vpop.f32.mrf.mxu0
        %4197 = vmatprep.mubr.f32.mxu0 0.0
        %4198 = vmatmul.mubr.f32.gmra.mxu0 %v4096
        %v4199 = vpop.f32.mrf.mxu0
        %v4200 = vadd.f32 0.0, %v4199
        %v4201 = vpop.f32.mrf.mxu0
        %4202 = vdwg.mxu0
        %v4203 = vmul.f32 %v4180, 0.17677669
        %v4204 = vmul.f32 %v4185, 0.17677669
        %v4205 = vmul.f32 %v4190, 0.17677669
        %v4206 = vmul.f32 %v4195, 0.17677669
        %v4207 = vmul.f32 %v4200, 0.17677669
        %v4208 = vadd.f32 %v4203, %v1041
        %v4209 = vadd.f32 %v4204, %v1042
        %v4210 = vadd.f32 %v4205, %v1043
        %v4211 = vadd.f32 %v4206, %v1044
        %v4212 = vadd.f32 %v4207, %v1045
        %v4213 = vsel %vm1773, %v4208, -inf
        %4214 = vmax.xlane.f32.xlu0 %v4213
        %v4215 = vpop.xlane.xlu0 %4214
        %v4216 = vsel %vm1773, %v4209, -inf
        %4217 = vmax.xlane.f32.xlu0 %v4216
        %v4218 = vpop.xlane.xlu0 %4217
        %v4219 = vsel %vm1773, %v4210, -inf
        %4220 = vmax.xlane.f32.xlu0 %v4219
        %v4221 = vpop.xlane.xlu0 %4220
        %v4222 = vsel %vm1773, %v4211, -inf
        %4223 = vmax.xlane.f32.xlu0 %v4222
        %v4224 = vpop.xlane.xlu0 %4223
        %v4225 = vsel %vm1773, %v4212, -inf
        %4226 = vmax.xlane.f32.xlu0 %v4225
        %v4227 = vpop.xlane.xlu0 %4226
        %v4228 = vsub.f32 %v4208, %v4215
        %v4229 = vsub.f32 %v4209, %v4218
        %v4230 = vsub.f32 %v4210, %v4221
        %v4231 = vsub.f32 %v4211, %v4224
        %v4232 = vsub.f32 %v4212, %v4227
        %v4233 = vmul.f32 %v4228, 1.442695
        %v4234 = vpow.pop %v4233
        %v4235 = vmul.f32 %v4229, 1.442695
        %v4236 = vpow.pop %v4235
        %v4237 = vmul.f32 %v4230, 1.442695
        %v4238 = vpow.pop %v4237
        %v4239 = vmul.f32 %v4231, 1.442695
        %v4240 = vpow.pop %v4239
        %v4241 = vmul.f32 %v4232, 1.442695
        %v4242 = vpow.pop %v4241
        %v4243 = vsel %vm1773, %v4234, 0.0
        %4244 = vadd.xlane.f32.xlu0 %v4243
        %v4245 = vpop.xlane.xlu0 %4244
        %v4246 = vsel %vm1773, %v4236, 0.0
        %4247 = vadd.xlane.f32.xlu0 %v4246
        %v4248 = vpop.xlane.xlu0 %4247
        %v4249 = vsel %vm1773, %v4238, 0.0
        %4250 = vadd.xlane.f32.xlu0 %v4249
        %v4251 = vpop.xlane.xlu0 %4250
        %v4252 = vsel %vm1773, %v4240, 0.0
        %4253 = vadd.xlane.f32.xlu0 %v4252
        %v4254 = vpop.xlane.xlu0 %4253
        %v4255 = vsel %vm1773, %v4242, 0.0
        %4256 = vadd.xlane.f32.xlu0 %v4255
        %v4257 = vpop.xlane.xlu0 %4256
        %v4258 = vrcp.pop %v4245
        %v4259 = vrcp.pop %v4248
        %v4260 = vrcp.pop %v4251
        %v4261 = vrcp.pop %v4254
        %v4262 = vrcp.pop %v4257
        %v4263 = vmul.f32 %v4234, %v4258
        %v4264 = vmul.f32 %v4236, %v4259
        %v4265 = vmul.f32 %v4238, %v4260
        %v4266 = vmul.f32 %v4240, %v4261
        %v4267 = vmul.f32 %v4242, %v4262
        %v4269 = vsel %vm1773, %v4263, 0
        %v4272 = vsel %vm1773, %v4264, 0
        %v4275 = vsel %vm1773, %v4265, 0
        %v4278 = vsel %vm1773, %v4266, 0
        %v4281 = vsel %vm1773, %v4267, 0
        %4283 = vmatprep.subr.mxu0 0.0
        %4284 = vmatpush1.msra.mxu0 0.0
        %4285 = vmatprep.subr.mxu0 0.0
        %4286 = vmatpush1.msra.mxu0 0.0
        %4287 = vmatprep.subr.mxu0 0.0
        %4288 = vmatpush1.msra.mxu0 0.0
        %4289 = vmatprep.subr.mxu0 0.0
        %4290 = vmatpush1.msra.mxu0 0.0
        %4291 = vmatprep.subr.mxu0 0.0
        %4292 = vmatpush1.msra.mxu0 0.0
        %4293 = vmatprep.subr.mxu0 0.0
        %4294 = vmatpush1.msra.mxu0 0.0
        %4295 = vmatprep.subr.mxu0 0.0
        %4296 = vmatpush1.msra.mxu0 0.0
        %4297 = vmatprep.subr.mxu0 0.0
        %4298 = vmatpush1.msra.mxu0 0.0
        %4299 = vmatprep.subr.mxu0 0.0
        %4300 = vmatpush1.msra.mxu0 0.0
        %4301 = vmatprep.subr.mxu0 0.0
        %4302 = vmatpush1.msra.mxu0 0.0
        %4303 = vmatprep.subr.mxu0 0.0
        %4304 = vmatpush1.msra.mxu0 0.0
        %4305 = vmatprep.subr.mxu0 0.0
        %4306 = vmatpush1.msra.mxu0 %v4080
        %4307 = vmatprep.subr.mxu0 0.0
        %4308 = vmatpush1.msra.mxu0 %v4075
        %4309 = vmatprep.subr.mxu0 0.0
        %4310 = vmatpush1.msra.mxu0 %v4070
        %4311 = vmatprep.subr.mxu0 0.0
        %4312 = vmatpush1.msra.mxu0 %v4065
        %4313 = vmatprep.subr.mxu0 0.0
        %4314 = vmatpush1.msra.mxu0 %v4060
        %4315 = vmatprep.subr.mxu0 0.0
        %4316 = vmatpush2.msra.mxu0 0.0
        %4317 = vmatprep.subr.mxu0 0.0
        %4318 = vmatpush2.msra.mxu0 0.0
        %4319 = vmatprep.subr.mxu0 0.0
        %4320 = vmatpush2.msra.mxu0 0.0
        %4321 = vmatprep.subr.mxu0 0.0
        %4322 = vmatpush2.msra.mxu0 0.0
        %4323 = vmatprep.subr.mxu0 0.0
        %4324 = vmatpush2.msra.mxu0 0.0
        %4325 = vmatprep.subr.mxu0 0.0
        %4326 = vmatpush2.msra.mxu0 0.0
        %4327 = vmatprep.subr.mxu0 0.0
        %4328 = vmatpush2.msra.mxu0 0.0
        %4329 = vmatprep.subr.mxu0 0.0
        %4330 = vmatpush2.msra.mxu0 0.0
        %4331 = vmatprep.subr.mxu0 0.0
        %4332 = vmatpush2.msra.mxu0 0.0
        %4333 = vmatprep.subr.mxu0 0.0
        %4334 = vmatpush2.msra.mxu0 0.0
        %4335 = vmatprep.subr.mxu0 0.0
        %4336 = vmatpush2.msra.mxu0 0.0
        %4337 = vmatprep.subr.mxu0 0.0
        %4338 = vmatpush2.msra.mxu0 0.0
        %4339 = vmatprep.subr.mxu0 0.0
        %4340 = vmatpush2.msra.mxu0 0.0
        %4341 = vmatprep.subr.mxu0 0.0
        %4342 = vmatpush2.msra.mxu0 0.0
        %4343 = vmatprep.subr.mxu0 0.0
        %4344 = vmatpush2.msra.mxu0 0.0
        %4345 = vmatprep.subr.mxu0 0.0
        %4346 = vmatpush2.msra.mxu0 0.0
        %4347 = vmatprep.mubr.f32.mxu0 0.0
        %4348 = vmatmul.mubr.f32.gmra.mxu0 %v4269
        %v4349 = vpop.f32.mrf.mxu0
        %v4350 = vadd.f32 0.0, %v4349
        %v4351 = vpop.f32.mrf.mxu0
        %4352 = vmatprep.mubr.f32.mxu0 0.0
        %4353 = vmatmul.mubr.f32.gmra.mxu0 %v4272
        %v4354 = vpop.f32.mrf.mxu0
        %v4355 = vadd.f32 0.0, %v4354
        %v4356 = vpop.f32.mrf.mxu0
        %4357 = vmatprep.mubr.f32.mxu0 0.0
        %4358 = vmatmul.mubr.f32.gmra.mxu0 %v4275
        %v4359 = vpop.f32.mrf.mxu0
        %v4360 = vadd.f32 0.0, %v4359
        %v4361 = vpop.f32.mrf.mxu0
        %4362 = vmatprep.mubr.f32.mxu0 0.0
        %4363 = vmatmul.mubr.f32.gmra.mxu0 %v4278
        %v4364 = vpop.f32.mrf.mxu0
        %v4365 = vadd.f32 0.0, %v4364
        %v4366 = vpop.f32.mrf.mxu0
        %4367 = vmatprep.mubr.f32.mxu0 0.0
        %4368 = vmatmul.mubr.f32.gmra.mxu0 %v4281
        %v4369 = vpop.f32.mrf.mxu0
        %v4370 = vadd.f32 0.0, %v4369
        %v4371 = vpop.f32.mrf.mxu0
        %4372 = vdwg.mxu0
        %4373 = vrot.lane.b32.xlu0 %v3965, 96
        %v4374 = vpop.permute.xlu0 %4373
        %4375 = vrot.lane.b32.xlu0 %v3971, 96
        %v4376 = vpop.permute.xlu0 %4375
        %4377 = vrot.lane.b32.xlu0 %v3977, 96
        %v4378 = vpop.permute.xlu0 %4377
        %4379 = vrot.lane.b32.xlu0 %v3983, 96
        %v4380 = vpop.permute.xlu0 %4379
        %4381 = vrot.lane.b32.xlu0 %v3989, 96
        %v4382 = vpop.permute.xlu0 %4381
        %4383 = vrot.lane.b32.xlu0 %v3967, 96
        %v4384 = vpop.permute.xlu0 %4383
        %4385 = vrot.lane.b32.xlu0 %v3973, 96
        %v4386 = vpop.permute.xlu0 %4385
        %4387 = vrot.lane.b32.xlu0 %v3979, 96
        %v4388 = vpop.permute.xlu0 %4387
        %4389 = vrot.lane.b32.xlu0 %v3985, 96
        %v4390 = vpop.permute.xlu0 %4389
        %4391 = vrot.lane.b32.xlu0 %v3991, 96
        %v4392 = vpop.permute.xlu0 %4391
        %v4393 = vsel %vm1642, %v4374, 0
        %v4395 = vsel %vm1642, %v4376, 0
        %v4397 = vsel %vm1642, %v4378, 0
        %v4399 = vsel %vm1642, %v4380, 0
        %v4401 = vsel %vm1642, %v4382, 0
        %v4403 = vsel %vm1642, %v4384, 0
        %v4405 = vsel %vm1642, %v4386, 0
        %v4407 = vsel %vm1642, %v4388, 0
        %v4409 = vsel %vm1642, %v4390, 0
        %v4411 = vsel %vm1642, %v4392, 0
        %4413 = vmatprep.subr.mxu0 0.0
        %4414 = vmatpush1.xpose.msra.mxu0 0.0
        %4415 = vmatprep.subr.mxu0 0.0
        %4416 = vmatpush1.xpose.msra.mxu0 0.0
        %4417 = vmatprep.subr.mxu0 0.0
        %4418 = vmatpush1.xpose.msra.mxu0 0.0
        %4419 = vmatprep.subr.mxu0 0.0
        %4420 = vmatpush1.xpose.msra.mxu0 0.0
        %4421 = vmatprep.subr.mxu0 0.0
        %4422 = vmatpush1.xpose.msra.mxu0 0.0
        %4423 = vmatprep.subr.mxu0 0.0
        %4424 = vmatpush1.xpose.msra.mxu0 0.0
        %4425 = vmatprep.subr.mxu0 0.0
        %4426 = vmatpush1.xpose.msra.mxu0 0.0
        %4427 = vmatprep.subr.mxu0 0.0
        %4428 = vmatpush1.xpose.msra.mxu0 0.0
        %4429 = vmatprep.subr.mxu0 0.0
        %4430 = vmatpush1.xpose.msra.mxu0 0.0
        %4431 = vmatprep.subr.mxu0 0.0
        %4432 = vmatpush1.xpose.msra.mxu0 0.0
        %4433 = vmatprep.subr.mxu0 0.0
        %4434 = vmatpush1.xpose.msra.mxu0 0.0
        %4435 = vmatprep.subr.mxu0 0.0
        %4436 = vmatpush1.xpose.msra.mxu0 %v4411
        %4437 = vmatprep.subr.mxu0 0.0
        %4438 = vmatpush1.xpose.msra.mxu0 %v4409
        %4439 = vmatprep.subr.mxu0 0.0
        %4440 = vmatpush1.xpose.msra.mxu0 %v4407
        %4441 = vmatprep.subr.mxu0 0.0
        %4442 = vmatpush1.xpose.msra.mxu0 %v4405
        %4443 = vmatprep.subr.mxu0 0.0
        %4444 = vmatpush1.xpose.msra.mxu0 %v4403
        %4445 = vmatprep.subr.mxu0 0.0
        %4446 = vmatpush2.xpose.msra.mxu0 0.0
        %4447 = vmatprep.subr.mxu0 0.0
        %4448 = vmatpush2.xpose.msra.mxu0 0.0
        %4449 = vmatprep.subr.mxu0 0.0
        %4450 = vmatpush2.xpose.msra.mxu0 0.0
        %4451 = vmatprep.subr.mxu0 0.0
        %4452 = vmatpush2.xpose.msra.mxu0 0.0
        %4453 = vmatprep.subr.mxu0 0.0
        %4454 = vmatpush2.xpose.msra.mxu0 0.0
        %4455 = vmatprep.subr.mxu0 0.0
        %4456 = vmatpush2.xpose.msra.mxu0 0.0
        %4457 = vmatprep.subr.mxu0 0.0
        %4458 = vmatpush2.xpose.msra.mxu0 0.0
        %4459 = vmatprep.subr.mxu0 0.0
        %4460 = vmatpush2.xpose.msra.mxu0 0.0
        %4461 = vmatprep.subr.mxu0 0.0
        %4462 = vmatpush2.xpose.msra.mxu0 0.0
        %4463 = vmatprep.subr.mxu0 0.0
        %4464 = vmatpush2.xpose.msra.mxu0 0.0
        %4465 = vmatprep.subr.mxu0 0.0
        %4466 = vmatpush2.xpose.msra.mxu0 0.0
        %4467 = vmatprep.subr.mxu0 0.0
        %4468 = vmatpush2.xpose.msra.mxu0 0.0
        %4469 = vmatprep.subr.mxu0 0.0
        %4470 = vmatpush2.xpose.msra.mxu0 0.0
        %4471 = vmatprep.subr.mxu0 0.0
        %4472 = vmatpush2.xpose.msra.mxu0 0.0
        %4473 = vmatprep.subr.mxu0 0.0
        %4474 = vmatpush2.xpose.msra.mxu0 0.0
        %4475 = vmatprep.subr.mxu0 0.0
        %4476 = vmatpush2.xpose.msra.mxu0 0.0
        %4477 = vmatprep.mubr.f32.mxu0 0.0
        %4478 = vmatmul.mubr.f32.gmra.mxu0 %v4393
        %v4479 = vpop.f32.mrf.mxu0
        %v4480 = vadd.f32 0.0, %v4479
        %v4481 = vpop.f32.mrf.mxu0
        %4482 = vmatprep.mubr.f32.mxu0 0.0
        %4483 = vmatmul.mubr.f32.gmra.mxu0 %v4395
        %v4484 = vpop.f32.mrf.mxu0
        %v4485 = vadd.f32 0.0, %v4484
        %v4486 = vpop.f32.mrf.mxu0
        %4487 = vmatprep.mubr.f32.mxu0 0.0
        %4488 = vmatmul.mubr.f32.gmra.mxu0 %v4397
        %v4489 = vpop.f32.mrf.mxu0
        %v4490 = vadd.f32 0.0, %v4489
        %v4491 = vpop.f32.mrf.mxu0
        %4492 = vmatprep.mubr.f32.mxu0 0.0
        %4493 = vmatmul.mubr.f32.gmra.mxu0 %v4399
        %v4494 = vpop.f32.mrf.mxu0
        %v4495 = vadd.f32 0.0, %v4494
        %v4496 = vpop.f32.mrf.mxu0
        %4497 = vmatprep.mubr.f32.mxu0 0.0
        %4498 = vmatmul.mubr.f32.gmra.mxu0 %v4401
        %v4499 = vpop.f32.mrf.mxu0
        %v4500 = vadd.f32 0.0, %v4499
        %v4501 = vpop.f32.mrf.mxu0
        %4502 = vdwg.mxu0
        %v4503 = vmul.f32 %v4480, 0.17677669
        %v4504 = vmul.f32 %v4485, 0.17677669
        %v4505 = vmul.f32 %v4490, 0.17677669
        %v4506 = vmul.f32 %v4495, 0.17677669
        %v4507 = vmul.f32 %v4500, 0.17677669
        %v4508 = vadd.f32 %v4503, %v1041
        %v4509 = vadd.f32 %v4504, %v1042
        %v4510 = vadd.f32 %v4505, %v1043
        %v4511 = vadd.f32 %v4506, %v1044
        %v4512 = vadd.f32 %v4507, %v1045
        %v4513 = vsel %vm1773, %v4508, -inf
        %4514 = vmax.xlane.f32.xlu0 %v4513
        %v4515 = vpop.xlane.xlu0 %4514
        %v4516 = vsel %vm1773, %v4509, -inf
        %4517 = vmax.xlane.f32.xlu0 %v4516
        %v4518 = vpop.xlane.xlu0 %4517
        %v4519 = vsel %vm1773, %v4510, -inf
        %4520 = vmax.xlane.f32.xlu0 %v4519
        %v4521 = vpop.xlane.xlu0 %4520
        %v4522 = vsel %vm1773, %v4511, -inf
        %4523 = vmax.xlane.f32.xlu0 %v4522
        %v4524 = vpop.xlane.xlu0 %4523
        %v4525 = vsel %vm1773, %v4512, -inf
        %4526 = vmax.xlane.f32.xlu0 %v4525
        %v4527 = vpop.xlane.xlu0 %4526
        %v4528 = vsub.f32 %v4508, %v4515
        %v4529 = vsub.f32 %v4509, %v4518
        %v4530 = vsub.f32 %v4510, %v4521
        %v4531 = vsub.f32 %v4511, %v4524
        %v4532 = vsub.f32 %v4512, %v4527
        %v4533 = vmul.f32 %v4528, 1.442695
        %v4534 = vpow.pop %v4533
        %v4535 = vmul.f32 %v4529, 1.442695
        %v4536 = vpow.pop %v4535
        %v4537 = vmul.f32 %v4530, 1.442695
        %v4538 = vpow.pop %v4537
        %v4539 = vmul.f32 %v4531, 1.442695
        %v4540 = vpow.pop %v4539
        %v4541 = vmul.f32 %v4532, 1.442695
        %v4542 = vpow.pop %v4541
        %v4543 = vsel %vm1773, %v4534, 0.0
        %4544 = vadd.xlane.f32.xlu0 %v4543
        %v4545 = vpop.xlane.xlu0 %4544
        %v4546 = vsel %vm1773, %v4536, 0.0
        %4547 = vadd.xlane.f32.xlu0 %v4546
        %v4548 = vpop.xlane.xlu0 %4547
        %v4549 = vsel %vm1773, %v4538, 0.0
        %4550 = vadd.xlane.f32.xlu0 %v4549
        %v4551 = vpop.xlane.xlu0 %4550
        %v4552 = vsel %vm1773, %v4540, 0.0
        %4553 = vadd.xlane.f32.xlu0 %v4552
        %v4554 = vpop.xlane.xlu0 %4553
        %v4555 = vsel %vm1773, %v4542, 0.0
        %4556 = vadd.xlane.f32.xlu0 %v4555
        %v4557 = vpop.xlane.xlu0 %4556
        %v4558 = vrcp.pop %v4545
        %v4559 = vrcp.pop %v4548
        %v4560 = vrcp.pop %v4551
        %v4561 = vrcp.pop %v4554
        %v4562 = vrcp.pop %v4557
        %v4563 = vmul.f32 %v4534, %v4558
        %v4564 = vmul.f32 %v4536, %v4559
        %v4565 = vmul.f32 %v4538, %v4560
        %v4566 = vmul.f32 %v4540, %v4561
        %v4567 = vmul.f32 %v4542, %v4562
        %4573 = vrot.lane.b32.xlu0 %v4060, 96
        %v4574 = vpop.permute.xlu0 %4573
        %4575 = vrot.lane.b32.xlu0 %v4065, 96
        %v4576 = vpop.permute.xlu0 %4575
        %4577 = vrot.lane.b32.xlu0 %v4070, 96
        %v4578 = vpop.permute.xlu0 %4577
        %4579 = vrot.lane.b32.xlu0 %v4075, 96
        %v4580 = vpop.permute.xlu0 %4579
        %4581 = vrot.lane.b32.xlu0 %v4080, 96
        %v4582 = vpop.permute.xlu0 %4581
        %v4589 = vsel %vm1773, %v4563, 0
        %v4592 = vsel %vm1773, %v4564, 0
        %v4595 = vsel %vm1773, %v4565, 0
        %v4598 = vsel %vm1773, %v4566, 0
        %v4601 = vsel %vm1773, %v4567, 0
        %4603 = vmatprep.subr.mxu0 0.0
        %4604 = vmatpush1.msra.mxu0 0.0
        %4605 = vmatprep.subr.mxu0 0.0
        %4606 = vmatpush1.msra.mxu0 0.0
        %4607 = vmatprep.subr.mxu0 0.0
        %4608 = vmatpush1.msra.mxu0 0.0
        %4609 = vmatprep.subr.mxu0 0.0
        %4610 = vmatpush1.msra.mxu0 0.0
        %4611 = vmatprep.subr.mxu0 0.0
        %4612 = vmatpush1.msra.mxu0 0.0
        %4613 = vmatprep.subr.mxu0 0.0
        %4614 = vmatpush1.msra.mxu0 0.0
        %4615 = vmatprep.subr.mxu0 0.0
        %4616 = vmatpush1.msra.mxu0 0.0
        %4617 = vmatprep.subr.mxu0 0.0
        %4618 = vmatpush1.msra.mxu0 0.0
        %4619 = vmatprep.subr.mxu0 0.0
        %4620 = vmatpush1.msra.mxu0 0.0
        %4621 = vmatprep.subr.mxu0 0.0
        %4622 = vmatpush1.msra.mxu0 0.0
        %4623 = vmatprep.subr.mxu0 0.0
        %4624 = vmatpush1.msra.mxu0 0.0
        %4625 = vmatprep.subr.mxu0 0.0
        %4626 = vmatpush1.msra.mxu0 %v4582
        %4627 = vmatprep.subr.mxu0 0.0
        %4628 = vmatpush1.msra.mxu0 %v4580
        %4629 = vmatprep.subr.mxu0 0.0
        %4630 = vmatpush1.msra.mxu0 %v4578
        %4631 = vmatprep.subr.mxu0 0.0
        %4632 = vmatpush1.msra.mxu0 %v4576
        %4633 = vmatprep.subr.mxu0 0.0
        %4634 = vmatpush1.msra.mxu0 %v4574
        %4635 = vmatprep.subr.mxu0 0.0
        %4636 = vmatpush2.msra.mxu0 0.0
        %4637 = vmatprep.subr.mxu0 0.0
        %4638 = vmatpush2.msra.mxu0 0.0
        %4639 = vmatprep.subr.mxu0 0.0
        %4640 = vmatpush2.msra.mxu0 0.0
        %4641 = vmatprep.subr.mxu0 0.0
        %4642 = vmatpush2.msra.mxu0 0.0
        %4643 = vmatprep.subr.mxu0 0.0
        %4644 = vmatpush2.msra.mxu0 0.0
        %4645 = vmatprep.subr.mxu0 0.0
        %4646 = vmatpush2.msra.mxu0 0.0
        %4647 = vmatprep.subr.mxu0 0.0
        %4648 = vmatpush2.msra.mxu0 0.0
        %4649 = vmatprep.subr.mxu0 0.0
        %4650 = vmatpush2.msra.mxu0 0.0
        %4651 = vmatprep.subr.mxu0 0.0
        %4652 = vmatpush2.msra.mxu0 0.0
        %4653 = vmatprep.subr.mxu0 0.0
        %4654 = vmatpush2.msra.mxu0 0.0
        %4655 = vmatprep.subr.mxu0 0.0
        %4656 = vmatpush2.msra.mxu0 0.0
        %4657 = vmatprep.subr.mxu0 0.0
        %4658 = vmatpush2.msra.mxu0 0.0
        %4659 = vmatprep.subr.mxu0 0.0
        %4660 = vmatpush2.msra.mxu0 0.0
        %4661 = vmatprep.subr.mxu0 0.0
        %4662 = vmatpush2.msra.mxu0 0.0
        %4663 = vmatprep.subr.mxu0 0.0
        %4664 = vmatpush2.msra.mxu0 0.0
        %4665 = vmatprep.subr.mxu0 0.0
        %4666 = vmatpush2.msra.mxu0 0.0
        %4667 = vmatprep.mubr.f32.mxu0 0.0
        %4668 = vmatmul.mubr.f32.gmra.mxu0 %v4589
        %v4669 = vpop.f32.mrf.mxu0
        %v4670 = vadd.f32 0.0, %v4669
        %v4671 = vpop.f32.mrf.mxu0
        %4672 = vmatprep.mubr.f32.mxu0 0.0
        %4673 = vmatmul.mubr.f32.gmra.mxu0 %v4592
        %v4674 = vpop.f32.mrf.mxu0
        %v4675 = vadd.f32 0.0, %v4674
        %v4676 = vpop.f32.mrf.mxu0
        %4677 = vmatprep.mubr.f32.mxu0 0.0
        %4678 = vmatmul.mubr.f32.gmra.mxu0 %v4595
        %v4679 = vpop.f32.mrf.mxu0
        %v4680 = vadd.f32 0.0, %v4679
        %v4681 = vpop.f32.mrf.mxu0
        %4682 = vmatprep.mubr.f32.mxu0 0.0
        %4683 = vmatmul.mubr.f32.gmra.mxu0 %v4598
        %v4684 = vpop.f32.mrf.mxu0
        %v4685 = vadd.f32 0.0, %v4684
        %v4686 = vpop.f32.mrf.mxu0
        %4687 = vmatprep.mubr.f32.mxu0 0.0
        %4688 = vmatmul.mubr.f32.gmra.mxu0 %v4601
        %v4689 = vpop.f32.mrf.mxu0
        %v4690 = vadd.f32 0.0, %v4689
        %v4691 = vpop.f32.mrf.mxu0
        %4692 = vdwg.mxu0
        %4693 = vrot.lane.b32.xlu0 %v3965, 64
        %v4694 = vpop.permute.xlu0 %4693
        %4695 = vrot.lane.b32.xlu0 %v3971, 64
        %v4696 = vpop.permute.xlu0 %4695
        %4697 = vrot.lane.b32.xlu0 %v3977, 64
        %v4698 = vpop.permute.xlu0 %4697
        %4699 = vrot.lane.b32.xlu0 %v3983, 64
        %v4700 = vpop.permute.xlu0 %4699
        %4701 = vrot.lane.b32.xlu0 %v3989, 64
        %v4702 = vpop.permute.xlu0 %4701
        %4703 = vrot.lane.b32.xlu0 %v3967, 64
        %v4704 = vpop.permute.xlu0 %4703
        %4705 = vrot.lane.b32.xlu0 %v3973, 64
        %v4706 = vpop.permute.xlu0 %4705
        %4707 = vrot.lane.b32.xlu0 %v3979, 64
        %v4708 = vpop.permute.xlu0 %4707
        %4709 = vrot.lane.b32.xlu0 %v3985, 64
        %v4710 = vpop.permute.xlu0 %4709
        %4711 = vrot.lane.b32.xlu0 %v3991, 64
        %v4712 = vpop.permute.xlu0 %4711
        %v4713 = vsel %vm1642, %v4694, 0
        %v4715 = vsel %vm1642, %v4696, 0
        %v4717 = vsel %vm1642, %v4698, 0
        %v4719 = vsel %vm1642, %v4700, 0
        %v4721 = vsel %vm1642, %v4702, 0
        %v4723 = vsel %vm1642, %v4704, 0
        %v4725 = vsel %vm1642, %v4706, 0
        %v4727 = vsel %vm1642, %v4708, 0
        %v4729 = vsel %vm1642, %v4710, 0
        %v4731 = vsel %vm1642, %v4712, 0
        %4733 = vmatprep.subr.mxu0 0.0
        %4734 = vmatpush1.xpose.msra.mxu0 0.0
        %4735 = vmatprep.subr.mxu0 0.0
        %4736 = vmatpush1.xpose.msra.mxu0 0.0
        %4737 = vmatprep.subr.mxu0 0.0
        %4738 = vmatpush1.xpose.msra.mxu0 0.0
        %4739 = vmatprep.subr.mxu0 0.0
        %4740 = vmatpush1.xpose.msra.mxu0 0.0
        %4741 = vmatprep.subr.mxu0 0.0
        %4742 = vmatpush1.xpose.msra.mxu0 0.0
        %4743 = vmatprep.subr.mxu0 0.0
        %4744 = vmatpush1.xpose.msra.mxu0 0.0
        %4745 = vmatprep.subr.mxu0 0.0
        %4746 = vmatpush1.xpose.msra.mxu0 0.0
        %4747 = vmatprep.subr.mxu0 0.0
        %4748 = vmatpush1.xpose.msra.mxu0 0.0
        %4749 = vmatprep.subr.mxu0 0.0
        %4750 = vmatpush1.xpose.msra.mxu0 0.0
        %4751 = vmatprep.subr.mxu0 0.0
        %4752 = vmatpush1.xpose.msra.mxu0 0.0
        %4753 = vmatprep.subr.mxu0 0.0
        %4754 = vmatpush1.xpose.msra.mxu0 0.0
        %4755 = vmatprep.subr.mxu0 0.0
        %4756 = vmatpush1.xpose.msra.mxu0 %v4731
        %4757 = vmatprep.subr.mxu0 0.0
        %4758 = vmatpush1.xpose.msra.mxu0 %v4729
        %4759 = vmatprep.subr.mxu0 0.0
        %4760 = vmatpush1.xpose.msra.mxu0 %v4727
        %4761 = vmatprep.subr.mxu0 0.0
        %4762 = vmatpush1.xpose.msra.mxu0 %v4725
        %4763 = vmatprep.subr.mxu0 0.0
        %4764 = vmatpush1.xpose.msra.mxu0 %v4723
        %4765 = vmatprep.subr.mxu0 0.0
        %4766 = vmatpush2.xpose.msra.mxu0 0.0
        %4767 = vmatprep.subr.mxu0 0.0
        %4768 = vmatpush2.xpose.msra.mxu0 0.0
        %4769 = vmatprep.subr.mxu0 0.0
        %4770 = vmatpush2.xpose.msra.mxu0 0.0
        %4771 = vmatprep.subr.mxu0 0.0
        %4772 = vmatpush2.xpose.msra.mxu0 0.0
        %4773 = vmatprep.subr.mxu0 0.0
        %4774 = vmatpush2.xpose.msra.mxu0 0.0
        %4775 = vmatprep.subr.mxu0 0.0
        %4776 = vmatpush2.xpose.msra.mxu0 0.0
        %4777 = vmatprep.subr.mxu0 0.0
        %4778 = vmatpush2.xpose.msra.mxu0 0.0
        %4779 = vmatprep.subr.mxu0 0.0
        %4780 = vmatpush2.xpose.msra.mxu0 0.0
        %4781 = vmatprep.subr.mxu0 0.0
        %4782 = vmatpush2.xpose.msra.mxu0 0.0
        %4783 = vmatprep.subr.mxu0 0.0
        %4784 = vmatpush2.xpose.msra.mxu0 0.0
        %4785 = vmatprep.subr.mxu0 0.0
        %4786 = vmatpush2.xpose.msra.mxu0 0.0
        %4787 = vmatprep.subr.mxu0 0.0
        %4788 = vmatpush2.xpose.msra.mxu0 0.0
        %4789 = vmatprep.subr.mxu0 0.0
        %4790 = vmatpush2.xpose.msra.mxu0 0.0
        %4791 = vmatprep.subr.mxu0 0.0
        %4792 = vmatpush2.xpose.msra.mxu0 0.0
        %4793 = vmatprep.subr.mxu0 0.0
        %4794 = vmatpush2.xpose.msra.mxu0 0.0
        %4795 = vmatprep.subr.mxu0 0.0
        %4796 = vmatpush2.xpose.msra.mxu0 0.0
        %4797 = vmatprep.mubr.f32.mxu0 0.0
        %4798 = vmatmul.mubr.f32.gmra.mxu0 %v4713
        %v4799 = vpop.f32.mrf.mxu0
        %v4800 = vadd.f32 0.0, %v4799
        %v4801 = vpop.f32.mrf.mxu0
        %4802 = vmatprep.mubr.f32.mxu0 0.0
        %4803 = vmatmul.mubr.f32.gmra.mxu0 %v4715
        %v4804 = vpop.f32.mrf.mxu0
        %v4805 = vadd.f32 0.0, %v4804
        %v4806 = vpop.f32.mrf.mxu0
        %4807 = vmatprep.mubr.f32.mxu0 0.0
        %4808 = vmatmul.mubr.f32.gmra.mxu0 %v4717
        %v4809 = vpop.f32.mrf.mxu0
        %v4810 = vadd.f32 0.0, %v4809
        %v4811 = vpop.f32.mrf.mxu0
        %4812 = vmatprep.mubr.f32.mxu0 0.0
        %4813 = vmatmul.mubr.f32.gmra.mxu0 %v4719
        %v4814 = vpop.f32.mrf.mxu0
        %v4815 = vadd.f32 0.0, %v4814
        %v4816 = vpop.f32.mrf.mxu0
        %4817 = vmatprep.mubr.f32.mxu0 0.0
        %4818 = vmatmul.mubr.f32.gmra.mxu0 %v4721
        %v4819 = vpop.f32.mrf.mxu0
        %v4820 = vadd.f32 0.0, %v4819
        %v4821 = vpop.f32.mrf.mxu0
        %4822 = vdwg.mxu0
        %v4823 = vmul.f32 %v4800, 0.17677669
        %v4824 = vmul.f32 %v4805, 0.17677669
        %v4825 = vmul.f32 %v4810, 0.17677669
        %v4826 = vmul.f32 %v4815, 0.17677669
        %v4827 = vmul.f32 %v4820, 0.17677669
        %v4828 = vadd.f32 %v4823, %v1041
        %v4829 = vadd.f32 %v4824, %v1042
        %v4830 = vadd.f32 %v4825, %v1043
        %v4831 = vadd.f32 %v4826, %v1044
        %v4832 = vadd.f32 %v4827, %v1045
        %v4833 = vsel %vm1773, %v4828, -inf
        %4834 = vmax.xlane.f32.xlu0 %v4833
        %v4835 = vpop.xlane.xlu0 %4834
        %v4836 = vsel %vm1773, %v4829, -inf
        %4837 = vmax.xlane.f32.xlu0 %v4836
        %v4838 = vpop.xlane.xlu0 %4837
        %v4839 = vsel %vm1773, %v4830, -inf
        %4840 = vmax.xlane.f32.xlu0 %v4839
        %v4841 = vpop.xlane.xlu0 %4840
        %v4842 = vsel %vm1773, %v4831, -inf
        %4843 = vmax.xlane.f32.xlu0 %v4842
        %v4844 = vpop.xlane.xlu0 %4843
        %v4845 = vsel %vm1773, %v4832, -inf
        %4846 = vmax.xlane.f32.xlu0 %v4845
        %v4847 = vpop.xlane.xlu0 %4846
        %v4848 = vsub.f32 %v4828, %v4835
        %v4849 = vsub.f32 %v4829, %v4838
        %v4850 = vsub.f32 %v4830, %v4841
        %v4851 = vsub.f32 %v4831, %v4844
        %v4852 = vsub.f32 %v4832, %v4847
        %v4853 = vmul.f32 %v4848, 1.442695
        %v4854 = vpow.pop %v4853
        %v4855 = vmul.f32 %v4849, 1.442695
        %v4856 = vpow.pop %v4855
        %v4857 = vmul.f32 %v4850, 1.442695
        %v4858 = vpow.pop %v4857
        %v4859 = vmul.f32 %v4851, 1.442695
        %v4860 = vpow.pop %v4859
        %v4861 = vmul.f32 %v4852, 1.442695
        %v4862 = vpow.pop %v4861
        %v4863 = vsel %vm1773, %v4854, 0.0
        %4864 = vadd.xlane.f32.xlu0 %v4863
        %v4865 = vpop.xlane.xlu0 %4864
        %v4866 = vsel %vm1773, %v4856, 0.0
        %4867 = vadd.xlane.f32.xlu0 %v4866
        %v4868 = vpop.xlane.xlu0 %4867
        %v4869 = vsel %vm1773, %v4858, 0.0
        %4870 = vadd.xlane.f32.xlu0 %v4869
        %v4871 = vpop.xlane.xlu0 %4870
        %v4872 = vsel %vm1773, %v4860, 0.0
        %4873 = vadd.xlane.f32.xlu0 %v4872
        %v4874 = vpop.xlane.xlu0 %4873
        %v4875 = vsel %vm1773, %v4862, 0.0
        %4876 = vadd.xlane.f32.xlu0 %v4875
        %v4877 = vpop.xlane.xlu0 %4876
        %v4878 = vrcp.pop %v4865
        %v4879 = vrcp.pop %v4868
        %v4880 = vrcp.pop %v4871
        %v4881 = vrcp.pop %v4874
        %v4882 = vrcp.pop %v4877
        %v4883 = vmul.f32 %v4854, %v4878
        %v4884 = vmul.f32 %v4856, %v4879
        %v4885 = vmul.f32 %v4858, %v4880
        %v4886 = vmul.f32 %v4860, %v4881
        %v4887 = vmul.f32 %v4862, %v4882
        %4888 = vrot.lane.b32.xlu0 %v4060, 64
        %v4889 = vpop.permute.xlu0 %4888
        %4890 = vrot.lane.b32.xlu0 %v4065, 64
        %v4891 = vpop.permute.xlu0 %4890
        %4892 = vrot.lane.b32.xlu0 %v4070, 64
        %v4893 = vpop.permute.xlu0 %4892
        %4894 = vrot.lane.b32.xlu0 %v4075, 64
        %v4895 = vpop.permute.xlu0 %4894
        %4896 = vrot.lane.b32.xlu0 %v4080, 64
        %v4897 = vpop.permute.xlu0 %4896
        %v4904 = vsel %vm1773, %v4883, 0
        %v4907 = vsel %vm1773, %v4884, 0
        %v4910 = vsel %vm1773, %v4885, 0
        %v4913 = vsel %vm1773, %v4886, 0
        %v4916 = vsel %vm1773, %v4887, 0
        %4918 = vmatprep.subr.mxu0 0.0
        %4919 = vmatpush1.msra.mxu0 0.0
        %4920 = vmatprep.subr.mxu0 0.0
        %4921 = vmatpush1.msra.mxu0 0.0
        %4922 = vmatprep.subr.mxu0 0.0
        %4923 = vmatpush1.msra.mxu0 0.0
        %4924 = vmatprep.subr.mxu0 0.0
        %4925 = vmatpush1.msra.mxu0 0.0
        %4926 = vmatprep.subr.mxu0 0.0
        %4927 = vmatpush1.msra.mxu0 0.0
        %4928 = vmatprep.subr.mxu0 0.0
        %4929 = vmatpush1.msra.mxu0 0.0
        %4930 = vmatprep.subr.mxu0 0.0
        %4931 = vmatpush1.msra.mxu0 0.0
        %4932 = vmatprep.subr.mxu0 0.0
        %4933 = vmatpush1.msra.mxu0 0.0
        %4934 = vmatprep.subr.mxu0 0.0
        %4935 = vmatpush1.msra.mxu0 0.0
        %4936 = vmatprep.subr.mxu0 0.0
        %4937 = vmatpush1.msra.mxu0 0.0
        %4938 = vmatprep.subr.mxu0 0.0
        %4939 = vmatpush1.msra.mxu0 0.0
        %4940 = vmatprep.subr.mxu0 0.0
        %4941 = vmatpush1.msra.mxu0 %v4897
        %4942 = vmatprep.subr.mxu0 0.0
        %4943 = vmatpush1.msra.mxu0 %v4895
        %4944 = vmatprep.subr.mxu0 0.0
        %4945 = vmatpush1.msra.mxu0 %v4893
        %4946 = vmatprep.subr.mxu0 0.0
        %4947 = vmatpush1.msra.mxu0 %v4891
        %4948 = vmatprep.subr.mxu0 0.0
        %4949 = vmatpush1.msra.mxu0 %v4889
        %4950 = vmatprep.subr.mxu0 0.0
        %4951 = vmatpush2.msra.mxu0 0.0
        %4952 = vmatprep.subr.mxu0 0.0
        %4953 = vmatpush2.msra.mxu0 0.0
        %4954 = vmatprep.subr.mxu0 0.0
        %4955 = vmatpush2.msra.mxu0 0.0
        %4956 = vmatprep.subr.mxu0 0.0
        %4957 = vmatpush2.msra.mxu0 0.0
        %4958 = vmatprep.subr.mxu0 0.0
        %4959 = vmatpush2.msra.mxu0 0.0
        %4960 = vmatprep.subr.mxu0 0.0
        %4961 = vmatpush2.msra.mxu0 0.0
        %4962 = vmatprep.subr.mxu0 0.0
        %4963 = vmatpush2.msra.mxu0 0.0
        %4964 = vmatprep.subr.mxu0 0.0
        %4965 = vmatpush2.msra.mxu0 0.0
        %4966 = vmatprep.subr.mxu0 0.0
        %4967 = vmatpush2.msra.mxu0 0.0
        %4968 = vmatprep.subr.mxu0 0.0
        %4969 = vmatpush2.msra.mxu0 0.0
        %4970 = vmatprep.subr.mxu0 0.0
        %4971 = vmatpush2.msra.mxu0 0.0
        %4972 = vmatprep.subr.mxu0 0.0
        %4973 = vmatpush2.msra.mxu0 0.0
        %4974 = vmatprep.subr.mxu0 0.0
        %4975 = vmatpush2.msra.mxu0 0.0
        %4976 = vmatprep.subr.mxu0 0.0
        %4977 = vmatpush2.msra.mxu0 0.0
        %4978 = vmatprep.subr.mxu0 0.0
        %4979 = vmatpush2.msra.mxu0 0.0
        %4980 = vmatprep.subr.mxu0 0.0
        %4981 = vmatpush2.msra.mxu0 0.0
        %4982 = vmatprep.mubr.f32.mxu0 0.0
        %4983 = vmatmul.mubr.f32.gmra.mxu0 %v4904
        %v4984 = vpop.f32.mrf.mxu0
        %v4985 = vadd.f32 0.0, %v4984
        %v4986 = vpop.f32.mrf.mxu0
        %4987 = vmatprep.mubr.f32.mxu0 0.0
        %4988 = vmatmul.mubr.f32.gmra.mxu0 %v4907
        %v4989 = vpop.f32.mrf.mxu0
        %v4990 = vadd.f32 0.0, %v4989
        %v4991 = vpop.f32.mrf.mxu0
        %4992 = vmatprep.mubr.f32.mxu0 0.0
        %4993 = vmatmul.mubr.f32.gmra.mxu0 %v4910
        %v4994 = vpop.f32.mrf.mxu0
        %v4995 = vadd.f32 0.0, %v4994
        %v4996 = vpop.f32.mrf.mxu0
        %4997 = vmatprep.mubr.f32.mxu0 0.0
        %4998 = vmatmul.mubr.f32.gmra.mxu0 %v4913
        %v4999 = vpop.f32.mrf.mxu0
        %v5000 = vadd.f32 0.0, %v4999
        %v5001 = vpop.f32.mrf.mxu0
        %5002 = vmatprep.mubr.f32.mxu0 0.0
        %5003 = vmatmul.mubr.f32.gmra.mxu0 %v4916
        %v5004 = vpop.f32.mrf.mxu0
        %v5005 = vadd.f32 0.0, %v5004
        %v5006 = vpop.f32.mrf.mxu0
        %5007 = vdwg.mxu0
        %5008 = vrot.lane.b32.xlu0 %v3965, 32
        %v5009 = vpop.permute.xlu0 %5008
        %5010 = vrot.lane.b32.xlu0 %v3971, 32
        %v5011 = vpop.permute.xlu0 %5010
        %5012 = vrot.lane.b32.xlu0 %v3977, 32
        %v5013 = vpop.permute.xlu0 %5012
        %5014 = vrot.lane.b32.xlu0 %v3983, 32
        %v5015 = vpop.permute.xlu0 %5014
        %5016 = vrot.lane.b32.xlu0 %v3989, 32
        %v5017 = vpop.permute.xlu0 %5016
        %5018 = vrot.lane.b32.xlu0 %v3967, 32
        %v5019 = vpop.permute.xlu0 %5018
        %5020 = vrot.lane.b32.xlu0 %v3973, 32
        %v5021 = vpop.permute.xlu0 %5020
        %5022 = vrot.lane.b32.xlu0 %v3979, 32
        %v5023 = vpop.permute.xlu0 %5022
        %5024 = vrot.lane.b32.xlu0 %v3985, 32
        %v5025 = vpop.permute.xlu0 %5024
        %5026 = vrot.lane.b32.xlu0 %v3991, 32
        %v5027 = vpop.permute.xlu0 %5026
        %v5028 = vsel %vm1642, %v5009, 0
        %v5030 = vsel %vm1642, %v5011, 0
        %v5032 = vsel %vm1642, %v5013, 0
        %v5034 = vsel %vm1642, %v5015, 0
        %v5036 = vsel %vm1642, %v5017, 0
        %v5038 = vsel %vm1642, %v5019, 0
        %v5040 = vsel %vm1642, %v5021, 0
        %v5042 = vsel %vm1642, %v5023, 0
        %v5044 = vsel %vm1642, %v5025, 0
        %v5046 = vsel %vm1642, %v5027, 0
        %5048 = vmatprep.subr.mxu0 0.0
        %5049 = vmatpush1.xpose.msra.mxu0 0.0
        %5050 = vmatprep.subr.mxu0 0.0
        %5051 = vmatpush1.xpose.msra.mxu0 0.0
        %5052 = vmatprep.subr.mxu0 0.0
        %5053 = vmatpush1.xpose.msra.mxu0 0.0
        %5054 = vmatprep.subr.mxu0 0.0
        %5055 = vmatpush1.xpose.msra.mxu0 0.0
        %5056 = vmatprep.subr.mxu0 0.0
        %5057 = vmatpush1.xpose.msra.mxu0 0.0
        %5058 = vmatprep.subr.mxu0 0.0
        %5059 = vmatpush1.xpose.msra.mxu0 0.0
        %5060 = vmatprep.subr.mxu0 0.0
        %5061 = vmatpush1.xpose.msra.mxu0 0.0
        %5062 = vmatprep.subr.mxu0 0.0
        %5063 = vmatpush1.xpose.msra.mxu0 0.0
        %5064 = vmatprep.subr.mxu0 0.0
        %5065 = vmatpush1.xpose.msra.mxu0 0.0
        %5066 = vmatprep.subr.mxu0 0.0
        %5067 = vmatpush1.xpose.msra.mxu0 0.0
        %5068 = vmatprep.subr.mxu0 0.0
        %5069 = vmatpush1.xpose.msra.mxu0 0.0
        %5070 = vmatprep.subr.mxu0 0.0
        %5071 = vmatpush1.xpose.msra.mxu0 %v5046
        %5072 = vmatprep.subr.mxu0 0.0
        %5073 = vmatpush1.xpose.msra.mxu0 %v5044
        %5074 = vmatprep.subr.mxu0 0.0
        %5075 = vmatpush1.xpose.msra.mxu0 %v5042
        %5076 = vmatprep.subr.mxu0 0.0
        %5077 = vmatpush1.xpose.msra.mxu0 %v5040
        %5078 = vmatprep.subr.mxu0 0.0
        %5079 = vmatpush1.xpose.msra.mxu0 %v5038
        %5080 = vmatprep.subr.mxu0 0.0
        %5081 = vmatpush2.xpose.msra.mxu0 0.0
        %5082 = vmatprep.subr.mxu0 0.0
        %5083 = vmatpush2.xpose.msra.mxu0 0.0
        %5084 = vmatprep.subr.mxu0 0.0
        %5085 = vmatpush2.xpose.msra.mxu0 0.0
        %5086 = vmatprep.subr.mxu0 0.0
        %5087 = vmatpush2.xpose.msra.mxu0 0.0
        %5088 = vmatprep.subr.mxu0 0.0
        %5089 = vmatpush2.xpose.msra.mxu0 0.0
        %5090 = vmatprep.subr.mxu0 0.0
        %5091 = vmatpush2.xpose.msra.mxu0 0.0
        %5092 = vmatprep.subr.mxu0 0.0
        %5093 = vmatpush2.xpose.msra.mxu0 0.0
        %5094 = vmatprep.subr.mxu0 0.0
        %5095 = vmatpush2.xpose.msra.mxu0 0.0
        %5096 = vmatprep.subr.mxu0 0.0
        %5097 = vmatpush2.xpose.msra.mxu0 0.0
        %5098 = vmatprep.subr.mxu0 0.0
        %5099 = vmatpush2.xpose.msra.mxu0 0.0
        %5100 = vmatprep.subr.mxu0 0.0
        %5101 = vmatpush2.xpose.msra.mxu0 0.0
        %5102 = vmatprep.subr.mxu0 0.0
        %5103 = vmatpush2.xpose.msra.mxu0 0.0
        %5104 = vmatprep.subr.mxu0 0.0
        %5105 = vmatpush2.xpose.msra.mxu0 0.0
        %5106 = vmatprep.subr.mxu0 0.0
        %5107 = vmatpush2.xpose.msra.mxu0 0.0
        %5108 = vmatprep.subr.mxu0 0.0
        %5109 = vmatpush2.xpose.msra.mxu0 0.0
        %5110 = vmatprep.subr.mxu0 0.0
        %5111 = vmatpush2.xpose.msra.mxu0 0.0
        %5112 = vmatprep.mubr.f32.mxu0 0.0
        %5113 = vmatmul.mubr.f32.gmra.mxu0 %v5028
        %v5114 = vpop.f32.mrf.mxu0
        %v5115 = vadd.f32 0.0, %v5114
        %v5116 = vpop.f32.mrf.mxu0
        %5117 = vmatprep.mubr.f32.mxu0 0.0
        %5118 = vmatmul.mubr.f32.gmra.mxu0 %v5030
        %v5119 = vpop.f32.mrf.mxu0
        %v5120 = vadd.f32 0.0, %v5119
        %v5121 = vpop.f32.mrf.mxu0
        %5122 = vmatprep.mubr.f32.mxu0 0.0
        %5123 = vmatmul.mubr.f32.gmra.mxu0 %v5032
        %v5124 = vpop.f32.mrf.mxu0
        %v5125 = vadd.f32 0.0, %v5124
        %v5126 = vpop.f32.mrf.mxu0
        %5127 = vmatprep.mubr.f32.mxu0 0.0
        %5128 = vmatmul.mubr.f32.gmra.mxu0 %v5034
        %v5129 = vpop.f32.mrf.mxu0
        %v5130 = vadd.f32 0.0, %v5129
        %v5131 = vpop.f32.mrf.mxu0
        %5132 = vmatprep.mubr.f32.mxu0 0.0
        %5133 = vmatmul.mubr.f32.gmra.mxu0 %v5036
        %v5134 = vpop.f32.mrf.mxu0
        %v5135 = vadd.f32 0.0, %v5134
        %v5136 = vpop.f32.mrf.mxu0
        %5137 = vdwg.mxu0
        %v5138 = vmul.f32 %v5115, 0.17677669
        %v5139 = vmul.f32 %v5120, 0.17677669
        %v5140 = vmul.f32 %v5125, 0.17677669
        %v5141 = vmul.f32 %v5130, 0.17677669
        %v5142 = vmul.f32 %v5135, 0.17677669
        %v5143 = vadd.f32 %v5138, %v1041
        %v5144 = vadd.f32 %v5139, %v1042
        %v5145 = vadd.f32 %v5140, %v1043
        %v5146 = vadd.f32 %v5141, %v1044
        %v5147 = vadd.f32 %v5142, %v1045
        %v5148 = vsel %vm1773, %v5143, -inf
        %5149 = vmax.xlane.f32.xlu0 %v5148
        %v5150 = vpop.xlane.xlu0 %5149
        %v5151 = vsel %vm1773, %v5144, -inf
        %5152 = vmax.xlane.f32.xlu0 %v5151
        %v5153 = vpop.xlane.xlu0 %5152
        %v5154 = vsel %vm1773, %v5145, -inf
        %5155 = vmax.xlane.f32.xlu0 %v5154
        %v5156 = vpop.xlane.xlu0 %5155
        %v5157 = vsel %vm1773, %v5146, -inf
        %5158 = vmax.xlane.f32.xlu0 %v5157
        %v5159 = vpop.xlane.xlu0 %5158
        %v5160 = vsel %vm1773, %v5147, -inf
        %5161 = vmax.xlane.f32.xlu0 %v5160
        %v5162 = vpop.xlane.xlu0 %5161
        %v5163 = vsub.f32 %v5143, %v5150
        %v5164 = vsub.f32 %v5144, %v5153
        %v5165 = vsub.f32 %v5145, %v5156
        %v5166 = vsub.f32 %v5146, %v5159
        %v5167 = vsub.f32 %v5147, %v5162
        %v5168 = vmul.f32 %v5163, 1.442695
        %v5169 = vpow.pop %v5168
        %v5170 = vmul.f32 %v5164, 1.442695
        %v5171 = vpow.pop %v5170
        %v5172 = vmul.f32 %v5165, 1.442695
        %v5173 = vpow.pop %v5172
        %v5174 = vmul.f32 %v5166, 1.442695
        %v5175 = vpow.pop %v5174
        %v5176 = vmul.f32 %v5167, 1.442695
        %v5177 = vpow.pop %v5176
        %v5178 = vsel %vm1773, %v5169, 0.0
        %5179 = vadd.xlane.f32.xlu0 %v5178
        %v5180 = vpop.xlane.xlu0 %5179
        %v5181 = vsel %vm1773, %v5171, 0.0
        %5182 = vadd.xlane.f32.xlu0 %v5181
        %v5183 = vpop.xlane.xlu0 %5182
        %v5184 = vsel %vm1773, %v5173, 0.0
        %5185 = vadd.xlane.f32.xlu0 %v5184
        %v5186 = vpop.xlane.xlu0 %5185
        %v5187 = vsel %vm1773, %v5175, 0.0
        %5188 = vadd.xlane.f32.xlu0 %v5187
        %v5189 = vpop.xlane.xlu0 %5188
        %v5190 = vsel %vm1773, %v5177, 0.0
        %5191 = vadd.xlane.f32.xlu0 %v5190
        %v5192 = vpop.xlane.xlu0 %5191
        %v5193 = vrcp.pop %v5180
        %v5194 = vrcp.pop %v5183
        %v5195 = vrcp.pop %v5186
        %v5196 = vrcp.pop %v5189
        %v5197 = vrcp.pop %v5192
        %v5198 = vmul.f32 %v5169, %v5193
        %v5199 = vmul.f32 %v5171, %v5194
        %v5200 = vmul.f32 %v5173, %v5195
        %v5201 = vmul.f32 %v5175, %v5196
        %v5202 = vmul.f32 %v5177, %v5197
        %5203 = vrot.lane.b32.xlu0 %v4060, 32
        %v5204 = vpop.permute.xlu0 %5203
        %5205 = vrot.lane.b32.xlu0 %v4065, 32
        %v5206 = vpop.permute.xlu0 %5205
        %5207 = vrot.lane.b32.xlu0 %v4070, 32
        %v5208 = vpop.permute.xlu0 %5207
        %5209 = vrot.lane.b32.xlu0 %v4075, 32
        %v5210 = vpop.permute.xlu0 %5209
        %5211 = vrot.lane.b32.xlu0 %v4080, 32
        %v5212 = vpop.permute.xlu0 %5211
        %v5219 = vsel %vm1773, %v5198, 0
        %v5222 = vsel %vm1773, %v5199, 0
        %v5225 = vsel %vm1773, %v5200, 0
        %v5228 = vsel %vm1773, %v5201, 0
        %v5231 = vsel %vm1773, %v5202, 0
        %5233 = vmatprep.subr.mxu0 0.0
        %5234 = vmatpush1.msra.mxu0 0.0
        %5235 = vmatprep.subr.mxu0 0.0
        %5236 = vmatpush1.msra.mxu0 0.0
        %5237 = vmatprep.subr.mxu0 0.0
        %5238 = vmatpush1.msra.mxu0 0.0
        %5239 = vmatprep.subr.mxu0 0.0
        %5240 = vmatpush1.msra.mxu0 0.0
        %5241 = vmatprep.subr.mxu0 0.0
        %5242 = vmatpush1.msra.mxu0 0.0
        %5243 = vmatprep.subr.mxu0 0.0
        %5244 = vmatpush1.msra.mxu0 0.0
        %5245 = vmatprep.subr.mxu0 0.0
        %5246 = vmatpush1.msra.mxu0 0.0
        %5247 = vmatprep.subr.mxu0 0.0
        %5248 = vmatpush1.msra.mxu0 0.0
        %5249 = vmatprep.subr.mxu0 0.0
        %5250 = vmatpush1.msra.mxu0 0.0
        %5251 = vmatprep.subr.mxu0 0.0
        %5252 = vmatpush1.msra.mxu0 0.0
        %5253 = vmatprep.subr.mxu0 0.0
        %5254 = vmatpush1.msra.mxu0 0.0
        %5255 = vmatprep.subr.mxu0 0.0
        %5256 = vmatpush1.msra.mxu0 %v5212
        %5257 = vmatprep.subr.mxu0 0.0
        %5258 = vmatpush1.msra.mxu0 %v5210
        %5259 = vmatprep.subr.mxu0 0.0
        %5260 = vmatpush1.msra.mxu0 %v5208
        %5261 = vmatprep.subr.mxu0 0.0
        %5262 = vmatpush1.msra.mxu0 %v5206
        %5263 = vmatprep.subr.mxu0 0.0
        %5264 = vmatpush1.msra.mxu0 %v5204
        %5265 = vmatprep.subr.mxu0 0.0
        %5266 = vmatpush2.msra.mxu0 0.0
        %5267 = vmatprep.subr.mxu0 0.0
        %5268 = vmatpush2.msra.mxu0 0.0
        %5269 = vmatprep.subr.mxu0 0.0
        %5270 = vmatpush2.msra.mxu0 0.0
        %5271 = vmatprep.subr.mxu0 0.0
        %5272 = vmatpush2.msra.mxu0 0.0
        %5273 = vmatprep.subr.mxu0 0.0
        %5274 = vmatpush2.msra.mxu0 0.0
        %5275 = vmatprep.subr.mxu0 0.0
        %5276 = vmatpush2.msra.mxu0 0.0
        %5277 = vmatprep.subr.mxu0 0.0
        %5278 = vmatpush2.msra.mxu0 0.0
        %5279 = vmatprep.subr.mxu0 0.0
        %5280 = vmatpush2.msra.mxu0 0.0
        %5281 = vmatprep.subr.mxu0 0.0
        %5282 = vmatpush2.msra.mxu0 0.0
        %5283 = vmatprep.subr.mxu0 0.0
        %5284 = vmatpush2.msra.mxu0 0.0
        %5285 = vmatprep.subr.mxu0 0.0
        %5286 = vmatpush2.msra.mxu0 0.0
        %5287 = vmatprep.subr.mxu0 0.0
        %5288 = vmatpush2.msra.mxu0 0.0
        %5289 = vmatprep.subr.mxu0 0.0
        %5290 = vmatpush2.msra.mxu0 0.0
        %5291 = vmatprep.subr.mxu0 0.0
        %5292 = vmatpush2.msra.mxu0 0.0
        %5293 = vmatprep.subr.mxu0 0.0
        %5294 = vmatpush2.msra.mxu0 0.0
        %5295 = vmatprep.subr.mxu0 0.0
        %5296 = vmatpush2.msra.mxu0 0.0
        %5297 = vmatprep.mubr.f32.mxu0 0.0
        %5298 = vmatmul.mubr.f32.gmra.mxu0 %v5219
        %v5299 = vpop.f32.mrf.mxu0
        %v5300 = vadd.f32 0.0, %v5299
        %v5301 = vpop.f32.mrf.mxu0
        %5302 = vmatprep.mubr.f32.mxu0 0.0
        %5303 = vmatmul.mubr.f32.gmra.mxu0 %v5222
        %v5304 = vpop.f32.mrf.mxu0
        %v5305 = vadd.f32 0.0, %v5304
        %v5306 = vpop.f32.mrf.mxu0
        %5307 = vmatprep.mubr.f32.mxu0 0.0
        %5308 = vmatmul.mubr.f32.gmra.mxu0 %v5225
        %v5309 = vpop.f32.mrf.mxu0
        %v5310 = vadd.f32 0.0, %v5309
        %v5311 = vpop.f32.mrf.mxu0
        %5312 = vmatprep.mubr.f32.mxu0 0.0
        %5313 = vmatmul.mubr.f32.gmra.mxu0 %v5228
        %v5314 = vpop.f32.mrf.mxu0
        %v5315 = vadd.f32 0.0, %v5314
        %v5316 = vpop.f32.mrf.mxu0
        %5317 = vmatprep.mubr.f32.mxu0 0.0
        %5318 = vmatmul.mubr.f32.gmra.mxu0 %v5231
        %v5319 = vpop.f32.mrf.mxu0
        %v5320 = vadd.f32 0.0, %v5319
        %v5321 = vpop.f32.mrf.mxu0
        %5322 = vdwg.mxu0
        %5328 = vrot.lane.b32.xlu0 %v4670, 32
        %v5329 = vpop.permute.xlu0 %5328
        %5330 = vrot.lane.b32.xlu0 %v4675, 32
        %v5331 = vpop.permute.xlu0 %5330
        %5332 = vrot.lane.b32.xlu0 %v4680, 32
        %v5333 = vpop.permute.xlu0 %5332
        %5334 = vrot.lane.b32.xlu0 %v4685, 32
        %v5335 = vpop.permute.xlu0 %5334
        %5336 = vrot.lane.b32.xlu0 %v4690, 32
        %v5337 = vpop.permute.xlu0 %5336
        %5348 = vrot.lane.b32.xlu0 %v4985, 64
        %v5349 = vpop.permute.xlu0 %5348
        %5350 = vrot.lane.b32.xlu0 %v4990, 64
        %v5351 = vpop.permute.xlu0 %5350
        %5352 = vrot.lane.b32.xlu0 %v4995, 64
        %v5353 = vpop.permute.xlu0 %5352
        %5354 = vrot.lane.b32.xlu0 %v5000, 64
        %v5355 = vpop.permute.xlu0 %5354
        %5356 = vrot.lane.b32.xlu0 %v5005, 64
        %v5357 = vpop.permute.xlu0 %5356
        %5368 = vrot.lane.b32.xlu0 %v5300, 96
        %v5369 = vpop.permute.xlu0 %5368
        %5370 = vrot.lane.b32.xlu0 %v5305, 96
        %v5371 = vpop.permute.xlu0 %5370
        %5372 = vrot.lane.b32.xlu0 %v5310, 96
        %v5373 = vpop.permute.xlu0 %5372
        %5374 = vrot.lane.b32.xlu0 %v5315, 96
        %v5375 = vpop.permute.xlu0 %5374
        %5376 = vrot.lane.b32.xlu0 %v5320, 96
        %v5377 = vpop.permute.xlu0 %5376
        %v5383 = vsel %vm1642, %v4350, %v5329
        %v5384 = vsel %vm1642, %v4355, %v5331
        %v5385 = vsel %vm1642, %v4360, %v5333
        %v5386 = vsel %vm1642, %v4365, %v5335
        %v5387 = vsel %vm1642, %v4370, %v5337
        %v5388 = vsel %vm2949, %v5383, %v5349
        %v5389 = vsel %vm2949, %v5384, %v5351
        %v5390 = vsel %vm2949, %v5385, %v5353
        %v5391 = vsel %vm2949, %v5386, %v5355
        %v5392 = vsel %vm2949, %v5387, %v5357
        %v5393 = vsel %vm2955, %v5388, %v5369
        %v5394 = vsel %vm2955, %v5389, %v5371
        %v5395 = vsel %vm2955, %v5390, %v5373
        %v5396 = vsel %vm2955, %v5391, %v5375
        %v5397 = vsel %vm2955, %v5392, %v5377
        %s5398 = scalar_lea.vmem [#allocation11], 128
        %v5399 = vld [vmem:[%s5398] sm:$0xff]
        %v5400 = vld [vmem:[%s5398 + $0x8] sm:$0xff]
        %v5401 = vld [vmem:[%s5398 + $0x10] sm:$0xff]
        %v5402 = vld [vmem:[%s5398 + $0x18] sm:$0xff]
        %v5403 = vld [vmem:[%s5398 + $0x20] sm:$0xff]
        %v5404 = vld [vmem:[%s5398 + $0x28] sm:$0xff]
        %v5405 = vld [vmem:[%s5398 + $0x30] sm:$0xff]
        %v5406 = vld [vmem:[%s5398 + $0x38] sm:$0xff]
        %v5407 = vld [vmem:[%s5398 + $0x40] sm:$0xff]
        %v5408 = vld [vmem:[%s5398 + $0x48] sm:$0xff]
        %v5409 = vld [vmem:[%s5398 + $0x50] sm:$0xff]
        %v5410 = vld [vmem:[%s5398 + $0x58] sm:$0xff]
        %v5411 = vld [vmem:[%s5398 + $0x60] sm:$0xff]
        %v5412 = vld [vmem:[%s5398 + $0x68] sm:$0xff]
        %v5413 = vld [vmem:[%s5398 + $0x70] sm:$0xff]
        %v5414 = vld [vmem:[%s5398 + $0x78] sm:$0xff]
        %s5415 = scalar_lea.vmem %s7, 1
        %v5416 = vld [vmem:[%s5415] sm:$0x1]
        %v5418 = vlaneseq
        %v5419 = vshrl.u32 %v5418, 7
        %v5420 = vsub.s32 0, %v5419
        %v5421 = vrot.slane %v5416, %v5420
        %5423 = vmatprep.subr.mxu0 0.0
        %5424 = vmatpush1.msra.mxu0 %v5414
        %5425 = vmatprep.subr.mxu0 0.0
        %5426 = vmatpush1.msra.mxu0 %v5413
        %5427 = vmatprep.subr.mxu0 0.0
        %5428 = vmatpush1.msra.mxu0 %v5412
        %5429 = vmatprep.subr.mxu0 0.0
        %5430 = vmatpush1.msra.mxu0 %v5411
        %5431 = vmatprep.subr.mxu0 0.0
        %5432 = vmatpush1.msra.mxu0 %v5410
        %5433 = vmatprep.subr.mxu0 0.0
        %5434 = vmatpush1.msra.mxu0 %v5409
        %5435 = vmatprep.subr.mxu0 0.0
        %5436 = vmatpush1.msra.mxu0 %v5408
        %5437 = vmatprep.subr.mxu0 0.0
        %5438 = vmatpush1.msra.mxu0 %v5407
        %5439 = vmatprep.subr.mxu0 0.0
        %5440 = vmatpush1.msra.mxu0 %v5406
        %5441 = vmatprep.subr.mxu0 0.0
        %5442 = vmatpush1.msra.mxu0 %v5405
        %5443 = vmatprep.subr.mxu0 0.0
        %5444 = vmatpush1.msra.mxu0 %v5404
        %5445 = vmatprep.subr.mxu0 0.0
        %5446 = vmatpush1.msra.mxu0 %v5403
        %5447 = vmatprep.subr.mxu0 0.0
        %5448 = vmatpush1.msra.mxu0 %v5402
        %5449 = vmatprep.subr.mxu0 0.0
        %5450 = vmatpush1.msra.mxu0 %v5401
        %5451 = vmatprep.subr.mxu0 0.0
        %5452 = vmatpush1.msra.mxu0 %v5400
        %5453 = vmatprep.subr.mxu0 0.0
        %5454 = vmatpush1.msra.mxu0 %v5399
        %5455 = vmatprep.subr.mxu0 0.0
        %5456 = vmatpush2.msra.mxu0 0.0
        %5457 = vmatprep.subr.mxu0 0.0
        %5458 = vmatpush2.msra.mxu0 0.0
        %5459 = vmatprep.subr.mxu0 0.0
        %5460 = vmatpush2.msra.mxu0 0.0
        %5461 = vmatprep.subr.mxu0 0.0
        %5462 = vmatpush2.msra.mxu0 0.0
        %5463 = vmatprep.subr.mxu0 0.0
        %5464 = vmatpush2.msra.mxu0 0.0
        %5465 = vmatprep.subr.mxu0 0.0
        %5466 = vmatpush2.msra.mxu0 0.0
        %5467 = vmatprep.subr.mxu0 0.0
        %5468 = vmatpush2.msra.mxu0 0.0
        %5469 = vmatprep.subr.mxu0 0.0
        %5470 = vmatpush2.msra.mxu0 0.0
        %5471 = vmatprep.subr.mxu0 0.0
        %5472 = vmatpush2.msra.mxu0 0.0
        %5473 = vmatprep.subr.mxu0 0.0
        %5474 = vmatpush2.msra.mxu0 0.0
        %5475 = vmatprep.subr.mxu0 0.0
        %5476 = vmatpush2.msra.mxu0 0.0
        %5477 = vmatprep.subr.mxu0 0.0
        %5478 = vmatpush2.msra.mxu0 0.0
        %5479 = vmatprep.subr.mxu0 0.0
        %5480 = vmatpush2.msra.mxu0 0.0
        %5481 = vmatprep.subr.mxu0 0.0
        %5482 = vmatpush2.msra.mxu0 0.0
        %5483 = vmatprep.subr.mxu0 0.0
        %5484 = vmatpush2.msra.mxu0 0.0
        %5485 = vmatprep.subr.mxu0 0.0
        %5486 = vmatpush2.msra.mxu0 0.0
        %5487 = vmatprep.mubr.f32.mxu0 0.0
        %5488 = vmatmul.mubr.f32.gmra.mxu0 %v5393
        %v5489 = vpop.f32.mrf.mxu0
        %v5490 = vadd.f32 %v5421, %v5489
        %v5491 = vpop.f32.mrf.mxu0
        %5492 = vmatprep.mubr.f32.mxu0 0.0
        %5493 = vmatmul.mubr.f32.gmra.mxu0 %v5394
        %v5494 = vpop.f32.mrf.mxu0
        %v5495 = vadd.f32 %v5421, %v5494
        %v5496 = vpop.f32.mrf.mxu0
        %5497 = vmatprep.mubr.f32.mxu0 0.0
        %5498 = vmatmul.mubr.f32.gmra.mxu0 %v5395
        %v5499 = vpop.f32.mrf.mxu0
        %v5500 = vadd.f32 %v5421, %v5499
        %v5501 = vpop.f32.mrf.mxu0
        %5502 = vmatprep.mubr.f32.mxu0 0.0
        %5503 = vmatmul.mubr.f32.gmra.mxu0 %v5396
        %v5504 = vpop.f32.mrf.mxu0
        %v5505 = vadd.f32 %v5421, %v5504
        %v5506 = vpop.f32.mrf.mxu0
        %5507 = vmatprep.mubr.f32.mxu0 0.0
        %5508 = vmatmul.mubr.f32.gmra.mxu0 %v5397
        %v5509 = vpop.f32.mrf.mxu0
        %v5510 = vadd.f32 %v5421, %v5509
        %v5511 = vpop.f32.mrf.mxu0
        %5512 = vdwg.mxu0
        %v5513 = vadd.f32 %v3826, %v5490
        %v5514 = vadd.f32 %v3827, %v5495
        %v5515 = vadd.f32 %v3828, %v5500
        %v5516 = vadd.f32 %v3829, %v5505
        %v5517 = vadd.f32 %v3830, %v5510
        %s5518 = scalar_lea.vmem %s16, 1
        %v5519 = vld [vmem:[%s5518] sm:$0x1]
        %s5520 = scalar_lea.vmem %s17, 1
        %v5521 = vld [vmem:[%s5520] sm:$0x1]
        %5522 = vadd.xlane.f32.xlu0 %v5513
        %v5523 = vpop.xlane.xlu0 %5522
        %5524 = vadd.xlane.f32.xlu0 %v5514
        %v5525 = vpop.xlane.xlu0 %5524
        %5526 = vadd.xlane.f32.xlu0 %v5515
        %v5527 = vpop.xlane.xlu0 %5526
        %5528 = vadd.xlane.f32.xlu0 %v5516
        %v5529 = vpop.xlane.xlu0 %5528
        %5530 = vadd.xlane.f32.xlu0 %v5517
        %v5531 = vpop.xlane.xlu0 %5530
        %v5532 = vmul.f32 %v5523, %v3091
        %v5533 = vmul.f32 %v5525, %v3091
        %v5534 = vmul.f32 %v5527, %v3091
        %v5535 = vmul.f32 %v5529, %v3091
        %v5536 = vmul.f32 %v5531, %v3091
        %v5537 = vsub.f32 %v5513, %v5532
        %v5538 = vsub.f32 %v5514, %v5533
        %v5539 = vsub.f32 %v5515, %v5534
        %v5540 = vsub.f32 %v5516, %v5535
        %v5541 = vsub.f32 %v5517, %v5536
        %v5542 = vmul.f32 %v5537, %v5537
        %v5543 = vmul.f32 %v5538, %v5538
        %v5544 = vmul.f32 %v5539, %v5539
        %v5545 = vmul.f32 %v5540, %v5540
        %v5546 = vmul.f32 %v5541, %v5541
        %5547 = vadd.xlane.f32.xlu0 %v5542
        %v5548 = vpop.xlane.xlu0 %5547
        %5549 = vadd.xlane.f32.xlu0 %v5543
        %v5550 = vpop.xlane.xlu0 %5549
        %5551 = vadd.xlane.f32.xlu0 %v5544
        %v5552 = vpop.xlane.xlu0 %5551
        %5553 = vadd.xlane.f32.xlu0 %v5545
        %v5554 = vpop.xlane.xlu0 %5553
        %5555 = vadd.xlane.f32.xlu0 %v5546
        %v5556 = vpop.xlane.xlu0 %5555
        %v5557 = vmul.f32 %v5548, %v3091
        %v5558 = vmul.f32 %v5550, %v3091
        %v5559 = vmul.f32 %v5552, %v3091
        %v5560 = vmul.f32 %v5554, %v3091
        %v5561 = vmul.f32 %v5556, %v3091
        %v5562 = vadd.f32 %v5557, 1e-05
        %v5563 = vadd.f32 %v5558, 1e-05
        %v5564 = vadd.f32 %v5559, 1e-05
        %v5565 = vadd.f32 %v5560, 1e-05
        %v5566 = vadd.f32 %v5561, 1e-05
        %v5567 = vrsqrt.pop %v5562
        %v5568 = vrsqrt.pop %v5563
        %v5569 = vrsqrt.pop %v5564
        %v5570 = vrsqrt.pop %v5565
        %v5571 = vrsqrt.pop %v5566
        %v5572 = vmul.f32 %v5537, %v5567
        %v5573 = vmul.f32 %v5538, %v5568
        %v5574 = vmul.f32 %v5539, %v5569
        %v5575 = vmul.f32 %v5540, %v5570
        %v5576 = vmul.f32 %v5541, %v5571
        %v5578 = vlaneseq
        %v5579 = vshrl.u32 %v5578, 7
        %v5580 = vsub.s32 0, %v5579
        %v5581 = vrot.slane %v5519, %v5580
        %v5583 = vmul.f32 %v5572, %v5581
        %v5584 = vmul.f32 %v5573, %v5581
        %v5585 = vmul.f32 %v5574, %v5581
        %v5586 = vmul.f32 %v5575, %v5581
        %v5587 = vmul.f32 %v5576, %v5581
        %v5589 = vlaneseq
        %v5590 = vshrl.u32 %v5589, 7
        %v5591 = vsub.s32 0, %v5590
        %v5592 = vrot.slane %v5521, %v5591
        %v5594 = vadd.f32 %v5583, %v5592
        %v5595 = vadd.f32 %v5584, %v5592
        %v5596 = vadd.f32 %v5585, %v5592
        %v5597 = vadd.f32 %v5586, %v5592
        %v5598 = vadd.f32 %v5587, %v5592
        %s5599 = scalar_lea.vmem [#allocation13], 128
        %v5600 = vld [vmem:[%s5599] sm:$0xff]
        %v5601 = vld [vmem:[%s5599 + $0x8] sm:$0xff]
        %v5602 = vld [vmem:[%s5599 + $0x10] sm:$0xff]
        %v5603 = vld [vmem:[%s5599 + $0x18] sm:$0xff]
        %v5604 = vld [vmem:[%s5599 + $0x20] sm:$0xff]
        %v5605 = vld [vmem:[%s5599 + $0x28] sm:$0xff]
        %v5606 = vld [vmem:[%s5599 + $0x30] sm:$0xff]
        %v5607 = vld [vmem:[%s5599 + $0x38] sm:$0xff]
        %v5608 = vld [vmem:[%s5599 + $0x40] sm:$0xff]
        %v5609 = vld [vmem:[%s5599 + $0x48] sm:$0xff]
        %v5610 = vld [vmem:[%s5599 + $0x50] sm:$0xff]
        %v5611 = vld [vmem:[%s5599 + $0x58] sm:$0xff]
        %v5612 = vld [vmem:[%s5599 + $0x60] sm:$0xff]
        %v5613 = vld [vmem:[%s5599 + $0x68] sm:$0xff]
        %v5614 = vld [vmem:[%s5599 + $0x70] sm:$0xff]
        %v5615 = vld [vmem:[%s5599 + $0x78] sm:$0xff]
        %s5616 = scalar_lea.vmem %s9, 1
        %v5617 = vld [vmem:[%s5616] sm:$0x1]
        %v5619 = vlaneseq
        %v5620 = vshrl.u32 %v5619, 7
        %v5621 = vsub.s32 0, %v5620
        %v5622 = vrot.slane %v5617, %v5621
        %5624 = vmatprep.subr.mxu0 0.0
        %5625 = vmatpush1.msra.mxu0 %v5615
        %5626 = vmatprep.subr.mxu0 0.0
        %5627 = vmatpush1.msra.mxu0 %v5614
        %5628 = vmatprep.subr.mxu0 0.0
        %5629 = vmatpush1.msra.mxu0 %v5613
        %5630 = vmatprep.subr.mxu0 0.0
        %5631 = vmatpush1.msra.mxu0 %v5612
        %5632 = vmatprep.subr.mxu0 0.0
        %5633 = vmatpush1.msra.mxu0 %v5611
        %5634 = vmatprep.subr.mxu0 0.0
        %5635 = vmatpush1.msra.mxu0 %v5610
        %5636 = vmatprep.subr.mxu0 0.0
        %5637 = vmatpush1.msra.mxu0 %v5609
        %5638 = vmatprep.subr.mxu0 0.0
        %5639 = vmatpush1.msra.mxu0 %v5608
        %5640 = vmatprep.subr.mxu0 0.0
        %5641 = vmatpush1.msra.mxu0 %v5607
        %5642 = vmatprep.subr.mxu0 0.0
        %5643 = vmatpush1.msra.mxu0 %v5606
        %5644 = vmatprep.subr.mxu0 0.0
        %5645 = vmatpush1.msra.mxu0 %v5605
        %5646 = vmatprep.subr.mxu0 0.0
        %5647 = vmatpush1.msra.mxu0 %v5604
        %5648 = vmatprep.subr.mxu0 0.0
        %5649 = vmatpush1.msra.mxu0 %v5603
        %5650 = vmatprep.subr.mxu0 0.0
        %5651 = vmatpush1.msra.mxu0 %v5602
        %5652 = vmatprep.subr.mxu0 0.0
        %5653 = vmatpush1.msra.mxu0 %v5601
        %5654 = vmatprep.subr.mxu0 0.0
        %5655 = vmatpush1.msra.mxu0 %v5600
        %5656 = vmatprep.subr.mxu0 0.0
        %5657 = vmatpush2.msra.mxu0 0.0
        %5658 = vmatprep.subr.mxu0 0.0
        %5659 = vmatpush2.msra.mxu0 0.0
        %5660 = vmatprep.subr.mxu0 0.0
        %5661 = vmatpush2.msra.mxu0 0.0
        %5662 = vmatprep.subr.mxu0 0.0
        %5663 = vmatpush2.msra.mxu0 0.0
        %5664 = vmatprep.subr.mxu0 0.0
        %5665 = vmatpush2.msra.mxu0 0.0
        %5666 = vmatprep.subr.mxu0 0.0
        %5667 = vmatpush2.msra.mxu0 0.0
        %5668 = vmatprep.subr.mxu0 0.0
        %5669 = vmatpush2.msra.mxu0 0.0
        %5670 = vmatprep.subr.mxu0 0.0
        %5671 = vmatpush2.msra.mxu0 0.0
        %5672 = vmatprep.subr.mxu0 0.0
        %5673 = vmatpush2.msra.mxu0 0.0
        %5674 = vmatprep.subr.mxu0 0.0
        %5675 = vmatpush2.msra.mxu0 0.0
        %5676 = vmatprep.subr.mxu0 0.0
        %5677 = vmatpush2.msra.mxu0 0.0
        %5678 = vmatprep.subr.mxu0 0.0
        %5679 = vmatpush2.msra.mxu0 0.0
        %5680 = vmatprep.subr.mxu0 0.0
        %5681 = vmatpush2.msra.mxu0 0.0
        %5682 = vmatprep.subr.mxu0 0.0
        %5683 = vmatpush2.msra.mxu0 0.0
        %5684 = vmatprep.subr.mxu0 0.0
        %5685 = vmatpush2.msra.mxu0 0.0
        %5686 = vmatprep.subr.mxu0 0.0
        %5687 = vmatpush2.msra.mxu0 0.0
        %5688 = vmatprep.mubr.f32.mxu0 0.0
        %5689 = vmatmul.mubr.f32.gmra.mxu0 %v1258
        %v5690 = vpop.f32.mrf.mxu0
        %v5691 = vadd.f32 %v5622, %v5690
        %v5692 = vpop.f32.mrf.mxu0
        %5693 = vmatprep.mubr.f32.mxu0 0.0
        %5694 = vmatmul.mubr.f32.gmra.mxu0 %v1263
        %v5695 = vpop.f32.mrf.mxu0
        %v5696 = vadd.f32 %v5622, %v5695
        %v5697 = vpop.f32.mrf.mxu0
        %5698 = vmatprep.mubr.f32.mxu0 0.0
        %5699 = vmatmul.mubr.f32.gmra.mxu0 %v1268
        %v5700 = vpop.f32.mrf.mxu0
        %v5701 = vadd.f32 %v5622, %v5700
        %v5702 = vpop.f32.mrf.mxu0
        %5703 = vmatprep.mubr.f32.mxu0 0.0
        %5704 = vmatmul.mubr.f32.gmra.mxu0 %v1273
        %v5705 = vpop.f32.mrf.mxu0
        %v5706 = vadd.f32 %v5622, %v5705
        %v5707 = vpop.f32.mrf.mxu0
        %5708 = vmatprep.mubr.f32.mxu0 0.0
        %5709 = vmatmul.mubr.f32.gmra.mxu0 %v1278
        %v5710 = vpop.f32.mrf.mxu0
        %v5711 = vadd.f32 %v5622, %v5710
        %v5712 = vpop.f32.mrf.mxu0
        %5713 = vdwg.mxu0
        %s5714 = scalar_lea.vmem [#allocation14], 128
        %v5715 = vld [vmem:[%s5714] sm:$0xff]
        %v5716 = vld [vmem:[%s5714 + $0x8] sm:$0xff]
        %v5717 = vld [vmem:[%s5714 + $0x10] sm:$0xff]
        %v5718 = vld [vmem:[%s5714 + $0x18] sm:$0xff]
        %v5719 = vld [vmem:[%s5714 + $0x20] sm:$0xff]
        %v5720 = vld [vmem:[%s5714 + $0x28] sm:$0xff]
        %v5721 = vld [vmem:[%s5714 + $0x30] sm:$0xff]
        %v5722 = vld [vmem:[%s5714 + $0x38] sm:$0xff]
        %v5723 = vld [vmem:[%s5714 + $0x40] sm:$0xff]
        %v5724 = vld [vmem:[%s5714 + $0x48] sm:$0xff]
        %v5725 = vld [vmem:[%s5714 + $0x50] sm:$0xff]
        %v5726 = vld [vmem:[%s5714 + $0x58] sm:$0xff]
        %v5727 = vld [vmem:[%s5714 + $0x60] sm:$0xff]
        %v5728 = vld [vmem:[%s5714 + $0x68] sm:$0xff]
        %v5729 = vld [vmem:[%s5714 + $0x70] sm:$0xff]
        %v5730 = vld [vmem:[%s5714 + $0x78] sm:$0xff]
        %s5731 = scalar_lea.vmem %s11, 1
        %v5732 = vld [vmem:[%s5731] sm:$0x1]
        %v5734 = vlaneseq
        %v5735 = vshrl.u32 %v5734, 7
        %v5736 = vsub.s32 0, %v5735
        %v5737 = vrot.slane %v5732, %v5736
        %5739 = vmatprep.subr.mxu0 0.0
        %5740 = vmatpush1.msra.mxu0 %v5730
        %5741 = vmatprep.subr.mxu0 0.0
        %5742 = vmatpush1.msra.mxu0 %v5729
        %5743 = vmatprep.subr.mxu0 0.0
        %5744 = vmatpush1.msra.mxu0 %v5728
        %5745 = vmatprep.subr.mxu0 0.0
        %5746 = vmatpush1.msra.mxu0 %v5727
        %5747 = vmatprep.subr.mxu0 0.0
        %5748 = vmatpush1.msra.mxu0 %v5726
        %5749 = vmatprep.subr.mxu0 0.0
        %5750 = vmatpush1.msra.mxu0 %v5725
        %5751 = vmatprep.subr.mxu0 0.0
        %5752 = vmatpush1.msra.mxu0 %v5724
        %5753 = vmatprep.subr.mxu0 0.0
        %5754 = vmatpush1.msra.mxu0 %v5723
        %5755 = vmatprep.subr.mxu0 0.0
        %5756 = vmatpush1.msra.mxu0 %v5722
        %5757 = vmatprep.subr.mxu0 0.0
        %5758 = vmatpush1.msra.mxu0 %v5721
        %5759 = vmatprep.subr.mxu0 0.0
        %5760 = vmatpush1.msra.mxu0 %v5720
        %5761 = vmatprep.subr.mxu0 0.0
        %5762 = vmatpush1.msra.mxu0 %v5719
        %5763 = vmatprep.subr.mxu0 0.0
        %5764 = vmatpush1.msra.mxu0 %v5718
        %5765 = vmatprep.subr.mxu0 0.0
        %5766 = vmatpush1.msra.mxu0 %v5717
        %5767 = vmatprep.subr.mxu0 0.0
        %5768 = vmatpush1.msra.mxu0 %v5716
        %5769 = vmatprep.subr.mxu0 0.0
        %5770 = vmatpush1.msra.mxu0 %v5715
        %5771 = vmatprep.subr.mxu0 0.0
        %5772 = vmatpush2.msra.mxu0 0.0
        %5773 = vmatprep.subr.mxu0 0.0
        %5774 = vmatpush2.msra.mxu0 0.0
        %5775 = vmatprep.subr.mxu0 0.0
        %5776 = vmatpush2.msra.mxu0 0.0
        %5777 = vmatprep.subr.mxu0 0.0
        %5778 = vmatpush2.msra.mxu0 0.0
        %5779 = vmatprep.subr.mxu0 0.0
        %5780 = vmatpush2.msra.mxu0 0.0
        %5781 = vmatprep.subr.mxu0 0.0
        %5782 = vmatpush2.msra.mxu0 0.0
        %5783 = vmatprep.subr.mxu0 0.0
        %5784 = vmatpush2.msra.mxu0 0.0
        %5785 = vmatprep.subr.mxu0 0.0
        %5786 = vmatpush2.msra.mxu0 0.0
        %5787 = vmatprep.subr.mxu0 0.0
        %5788 = vmatpush2.msra.mxu0 0.0
        %5789 = vmatprep.subr.mxu0 0.0
        %5790 = vmatpush2.msra.mxu0 0.0
        %5791 = vmatprep.subr.mxu0 0.0
        %5792 = vmatpush2.msra.mxu0 0.0
        %5793 = vmatprep.subr.mxu0 0.0
        %5794 = vmatpush2.msra.mxu0 0.0
        %5795 = vmatprep.subr.mxu0 0.0
        %5796 = vmatpush2.msra.mxu0 0.0
        %5797 = vmatprep.subr.mxu0 0.0
        %5798 = vmatpush2.msra.mxu0 0.0
        %5799 = vmatprep.subr.mxu0 0.0
        %5800 = vmatpush2.msra.mxu0 0.0
        %5801 = vmatprep.subr.mxu0 0.0
        %5802 = vmatpush2.msra.mxu0 0.0
        %5803 = vmatprep.mubr.f32.mxu0 0.0
        %5804 = vmatmul.mubr.f32.gmra.mxu0 %v5691
        %v5805 = vpop.f32.mrf.mxu0
        %v5806 = vadd.f32 %v5737, %v5805
        %v5807 = vpop.f32.mrf.mxu0
        %5808 = vmatprep.mubr.f32.mxu0 0.0
        %5809 = vmatmul.mubr.f32.gmra.mxu0 %v5696
        %v5810 = vpop.f32.mrf.mxu0
        %v5811 = vadd.f32 %v5737, %v5810
        %v5812 = vpop.f32.mrf.mxu0
        %5813 = vmatprep.mubr.f32.mxu0 0.0
        %5814 = vmatmul.mubr.f32.gmra.mxu0 %v5701
        %v5815 = vpop.f32.mrf.mxu0
        %v5816 = vadd.f32 %v5737, %v5815
        %v5817 = vpop.f32.mrf.mxu0
        %5818 = vmatprep.mubr.f32.mxu0 0.0
        %5819 = vmatmul.mubr.f32.gmra.mxu0 %v5706
        %v5820 = vpop.f32.mrf.mxu0
        %v5821 = vadd.f32 %v5737, %v5820
        %v5822 = vpop.f32.mrf.mxu0
        %5823 = vmatprep.mubr.f32.mxu0 0.0
        %5824 = vmatmul.mubr.f32.gmra.mxu0 %v5711
        %v5825 = vpop.f32.mrf.mxu0
        %v5826 = vadd.f32 %v5737, %v5825
        %v5827 = vpop.f32.mrf.mxu0
        %5828 = vdwg.mxu0
        %v5829 = vadd.f32 %v5594, %v5806
        %v5830 = vadd.f32 %v5595, %v5811
        %v5831 = vadd.f32 %v5596, %v5816
        %v5832 = vadd.f32 %v5597, %v5821
        %v5833 = vadd.f32 %v5598, %v5826
        %s5834 = scalar_lea.vmem %s18, 1
        %v5835 = vld [vmem:[%s5834] sm:$0x1]
        %s5836 = scalar_lea.vmem %s19, 1
        %v5837 = vld [vmem:[%s5836] sm:$0x1]
        %5838 = vadd.xlane.f32.xlu0 %v5829
        %v5839 = vpop.xlane.xlu0 %5838
        %5840 = vadd.xlane.f32.xlu0 %v5830
        %v5841 = vpop.xlane.xlu0 %5840
        %5842 = vadd.xlane.f32.xlu0 %v5831
        %v5843 = vpop.xlane.xlu0 %5842
        %5844 = vadd.xlane.f32.xlu0 %v5832
        %v5845 = vpop.xlane.xlu0 %5844
        %5846 = vadd.xlane.f32.xlu0 %v5833
        %v5847 = vpop.xlane.xlu0 %5846
        %v5848 = vmul.f32 %v5839, %v3091
        %v5849 = vmul.f32 %v5841, %v3091
        %v5850 = vmul.f32 %v5843, %v3091
        %v5851 = vmul.f32 %v5845, %v3091
        %v5852 = vmul.f32 %v5847, %v3091
        %v5853 = vsub.f32 %v5829, %v5848
        %v5854 = vsub.f32 %v5830, %v5849
        %v5855 = vsub.f32 %v5831, %v5850
        %v5856 = vsub.f32 %v5832, %v5851
        %v5857 = vsub.f32 %v5833, %v5852
        %v5858 = vmul.f32 %v5853, %v5853
        %v5859 = vmul.f32 %v5854, %v5854
        %v5860 = vmul.f32 %v5855, %v5855
        %v5861 = vmul.f32 %v5856, %v5856
        %v5862 = vmul.f32 %v5857, %v5857
        %5863 = vadd.xlane.f32.xlu0 %v5858
        %v5864 = vpop.xlane.xlu0 %5863
        %5865 = vadd.xlane.f32.xlu0 %v5859
        %v5866 = vpop.xlane.xlu0 %5865
        %5867 = vadd.xlane.f32.xlu0 %v5860
        %v5868 = vpop.xlane.xlu0 %5867
        %5869 = vadd.xlane.f32.xlu0 %v5861
        %v5870 = vpop.xlane.xlu0 %5869
        %5871 = vadd.xlane.f32.xlu0 %v5862
        %v5872 = vpop.xlane.xlu0 %5871
        %v5873 = vmul.f32 %v5864, %v3091
        %v5874 = vmul.f32 %v5866, %v3091
        %v5875 = vmul.f32 %v5868, %v3091
        %v5876 = vmul.f32 %v5870, %v3091
        %v5877 = vmul.f32 %v5872, %v3091
        %v5878 = vadd.f32 %v5873, 1e-05
        %v5879 = vadd.f32 %v5874, 1e-05
        %v5880 = vadd.f32 %v5875, 1e-05
        %v5881 = vadd.f32 %v5876, 1e-05
        %v5882 = vadd.f32 %v5877, 1e-05
        %v5883 = vrsqrt.pop %v5878
        %v5884 = vrsqrt.pop %v5879
        %v5885 = vrsqrt.pop %v5880
        %v5886 = vrsqrt.pop %v5881
        %v5887 = vrsqrt.pop %v5882
        %v5888 = vmul.f32 %v5853, %v5883
        %v5889 = vmul.f32 %v5854, %v5884
        %v5890 = vmul.f32 %v5855, %v5885
        %v5891 = vmul.f32 %v5856, %v5886
        %v5892 = vmul.f32 %v5857, %v5887
        %v5894 = vlaneseq
        %v5895 = vshrl.u32 %v5894, 7
        %v5896 = vsub.s32 0, %v5895
        %v5897 = vrot.slane %v5835, %v5896
        %v5899 = vmul.f32 %v5888, %v5897
        %v5900 = vmul.f32 %v5889, %v5897
        %v5901 = vmul.f32 %v5890, %v5897
        %v5902 = vmul.f32 %v5891, %v5897
        %v5903 = vmul.f32 %v5892, %v5897
        %v5905 = vlaneseq
        %v5906 = vshrl.u32 %v5905, 7
        %v5907 = vsub.s32 0, %v5906
        %v5908 = vrot.slane %v5837, %v5907
        %v5910 = vadd.f32 %v5899, %v5908
        %v5911 = vadd.f32 %v5900, %v5908
        %v5912 = vadd.f32 %v5901, %v5908
        %v5913 = vadd.f32 %v5902, %v5908
        %v5914 = vadd.f32 %v5903, %v5908
        %s5915 = scalar_lea.vmem [#allocation16], 256
        %v5916 = vld [vmem:[%s5915] sm:$0xff]
        %v5917 = vld [vmem:[%s5915 + $0x8] sm:$0xff]
        %v5918 = vld [vmem:[%s5915 + $0x10] sm:$0xff]
        %v5919 = vld [vmem:[%s5915 + $0x18] sm:$0xff]
        %v5920 = vld [vmem:[%s5915 + $0x20] sm:$0xff]
        %v5921 = vld [vmem:[%s5915 + $0x28] sm:$0xff]
        %v5922 = vld [vmem:[%s5915 + $0x30] sm:$0xff]
        %v5923 = vld [vmem:[%s5915 + $0x38] sm:$0xff]
        %v5924 = vld [vmem:[%s5915 + $0x40] sm:$0xff]
        %v5925 = vld [vmem:[%s5915 + $0x48] sm:$0xff]
        %v5926 = vld [vmem:[%s5915 + $0x50] sm:$0xff]
        %v5927 = vld [vmem:[%s5915 + $0x58] sm:$0xff]
        %v5928 = vld [vmem:[%s5915 + $0x60] sm:$0xff]
        %v5929 = vld [vmem:[%s5915 + $0x68] sm:$0xff]
        %v5930 = vld [vmem:[%s5915 + $0x70] sm:$0xff]
        %v5931 = vld [vmem:[%s5915 + $0x78] sm:$0xff]
        %v5932 = vld [vmem:[%s5915 + $0x80] sm:$0xff]
        %v5933 = vld [vmem:[%s5915 + $0x88] sm:$0xff]
        %v5934 = vld [vmem:[%s5915 + $0x90] sm:$0xff]
        %v5935 = vld [vmem:[%s5915 + $0x98] sm:$0xff]
        %v5936 = vld [vmem:[%s5915 + $0xa0] sm:$0xff]
        %v5937 = vld [vmem:[%s5915 + $0xa8] sm:$0xff]
        %v5938 = vld [vmem:[%s5915 + $0xb0] sm:$0xff]
        %v5939 = vld [vmem:[%s5915 + $0xb8] sm:$0xff]
        %v5940 = vld [vmem:[%s5915 + $0xc0] sm:$0xff]
        %v5941 = vld [vmem:[%s5915 + $0xc8] sm:$0xff]
        %v5942 = vld [vmem:[%s5915 + $0xd0] sm:$0xff]
        %v5943 = vld [vmem:[%s5915 + $0xd8] sm:$0xff]
        %v5944 = vld [vmem:[%s5915 + $0xe0] sm:$0xff]
        %v5945 = vld [vmem:[%s5915 + $0xe8] sm:$0xff]
        %v5946 = vld [vmem:[%s5915 + $0xf0] sm:$0xff]
        %v5947 = vld [vmem:[%s5915 + $0xf8] sm:$0xff]
        %s5948 = scalar_lea.vmem %s13, 2
        %v5949 = vld [vmem:[%s5948] sm:$0x3]
        %v5951 = vlaneseq
        %v5952 = vshrl.u32 %v5951, 7
        %v5953 = vsub.s32 0, %v5952
        %v5954 = vrot.slane %v5949, %v5953
        %v5955 = vlaneseq
        %v5956 = vshrl.u32 %v5955, 7
        %v5957 = vsub.s32 1, %v5956
        %v5958 = vrot.slane %v5949, %v5957
        %5961 = vmatprep.subr.mxu0 %v5947
        %5962 = vmatpush1.msra.mxu0 %v5946
        %5963 = vmatprep.subr.mxu0 %v5945
        %5964 = vmatpush1.msra.mxu0 %v5944
        %5965 = vmatprep.subr.mxu0 %v5943
        %5966 = vmatpush1.msra.mxu0 %v5942
        %5967 = vmatprep.subr.mxu0 %v5941
        %5968 = vmatpush1.msra.mxu0 %v5940
        %5969 = vmatprep.subr.mxu0 %v5939
        %5970 = vmatpush1.msra.mxu0 %v5938
        %5971 = vmatprep.subr.mxu0 %v5937
        %5972 = vmatpush1.msra.mxu0 %v5936
        %5973 = vmatprep.subr.mxu0 %v5935
        %5974 = vmatpush1.msra.mxu0 %v5934
        %5975 = vmatprep.subr.mxu0 %v5933
        %5976 = vmatpush1.msra.mxu0 %v5932
        %5977 = vmatprep.subr.mxu0 %v5931
        %5978 = vmatpush1.msra.mxu0 %v5930
        %5979 = vmatprep.subr.mxu0 %v5929
        %5980 = vmatpush1.msra.mxu0 %v5928
        %5981 = vmatprep.subr.mxu0 %v5927
        %5982 = vmatpush1.msra.mxu0 %v5926
        %5983 = vmatprep.subr.mxu0 %v5925
        %5984 = vmatpush1.msra.mxu0 %v5924
        %5985 = vmatprep.subr.mxu0 %v5923
        %5986 = vmatpush1.msra.mxu0 %v5922
        %5987 = vmatprep.subr.mxu0 %v5921
        %5988 = vmatpush1.msra.mxu0 %v5920
        %5989 = vmatprep.subr.mxu0 %v5919
        %5990 = vmatpush1.msra.mxu0 %v5918
        %5991 = vmatprep.subr.mxu0 %v5917
        %5992 = vmatpush1.msra.mxu0 %v5916
        %5993 = vmatprep.subr.mxu0 0.0
        %5994 = vmatpush2.msra.mxu0 0.0
        %5995 = vmatprep.subr.mxu0 0.0
        %5996 = vmatpush2.msra.mxu0 0.0
        %5997 = vmatprep.subr.mxu0 0.0
        %5998 = vmatpush2.msra.mxu0 0.0
        %5999 = vmatprep.subr.mxu0 0.0
        %6000 = vmatpush2.msra.mxu0 0.0
        %6001 = vmatprep.subr.mxu0 0.0
        %6002 = vmatpush2.msra.mxu0 0.0
        %6003 = vmatprep.subr.mxu0 0.0
        %6004 = vmatpush2.msra.mxu0 0.0
        %6005 = vmatprep.subr.mxu0 0.0
        %6006 = vmatpush2.msra.mxu0 0.0
        %6007 = vmatprep.subr.mxu0 0.0
        %6008 = vmatpush2.msra.mxu0 0.0
        %6009 = vmatprep.subr.mxu0 0.0
        %6010 = vmatpush2.msra.mxu0 0.0
        %6011 = vmatprep.subr.mxu0 0.0
        %6012 = vmatpush2.msra.mxu0 0.0
        %6013 = vmatprep.subr.mxu0 0.0
        %6014 = vmatpush2.msra.mxu0 0.0
        %6015 = vmatprep.subr.mxu0 0.0
        %6016 = vmatpush2.msra.mxu0 0.0
        %6017 = vmatprep.subr.mxu0 0.0
        %6018 = vmatpush2.msra.mxu0 0.0
        %6019 = vmatprep.subr.mxu0 0.0
        %6020 = vmatpush2.msra.mxu0 0.0
        %6021 = vmatprep.subr.mxu0 0.0
        %6022 = vmatpush2.msra.mxu0 0.0
        %6023 = vmatprep.subr.mxu0 0.0
        %6024 = vmatpush2.msra.mxu0 0.0
        %6025 = vmatprep.mubr.f32.mxu0 0.0
        %6026 = vmatmul.mubr.f32.gmra.mxu0 %v5910
        %v6027 = vpop.f32.mrf.mxu0
        %v6028 = vadd.f32 %v5954, %v6027
        %v6029 = vpop.f32.mrf.mxu0
        %v6030 = vadd.f32 %v5958, %v6029
        %6031 = vmatprep.mubr.f32.mxu0 0.0
        %6032 = vmatmul.mubr.f32.gmra.mxu0 %v5911
        %v6033 = vpop.f32.mrf.mxu0
        %v6034 = vadd.f32 %v5954, %v6033
        %v6035 = vpop.f32.mrf.mxu0
        %v6036 = vadd.f32 %v5958, %v6035
        %6037 = vmatprep.mubr.f32.mxu0 0.0
        %6038 = vmatmul.mubr.f32.gmra.mxu0 %v5912
        %v6039 = vpop.f32.mrf.mxu0
        %v6040 = vadd.f32 %v5954, %v6039
        %v6041 = vpop.f32.mrf.mxu0
        %v6042 = vadd.f32 %v5958, %v6041
        %6043 = vmatprep.mubr.f32.mxu0 0.0
        %6044 = vmatmul.mubr.f32.gmra.mxu0 %v5913
        %v6045 = vpop.f32.mrf.mxu0
        %v6046 = vadd.f32 %v5954, %v6045
        %v6047 = vpop.f32.mrf.mxu0
        %v6048 = vadd.f32 %v5958, %v6047
        %6049 = vmatprep.mubr.f32.mxu0 0.0
        %6050 = vmatmul.mubr.f32.gmra.mxu0 %v5914
        %v6051 = vpop.f32.mrf.mxu0
        %v6052 = vadd.f32 %v5954, %v6051
        %v6053 = vpop.f32.mrf.mxu0
        %v6054 = vadd.f32 %v5958, %v6053
        %6055 = vdwg.mxu0
        %v6056 = vmax.f32 %v6028, 0.0
        %v6057 = vmax.f32 %v6030, 0.0
        %v6058 = vmax.f32 %v6034, 0.0
        %v6059 = vmax.f32 %v6036, 0.0
        %v6060 = vmax.f32 %v6040, 0.0
        %v6061 = vmax.f32 %v6042, 0.0
        %v6062 = vmax.f32 %v6046, 0.0
        %v6063 = vmax.f32 %v6048, 0.0
        %v6064 = vmax.f32 %v6052, 0.0
        %v6065 = vmax.f32 %v6054, 0.0
        %s6066 = scalar_lea.vmem [#allocation17], 256
        %v6067 = vld [vmem:[%s6066] sm:$0xff]
        %v6068 = vld [vmem:[%s6066 + $0x8] sm:$0xff]
        %v6069 = vld [vmem:[%s6066 + $0x10] sm:$0xff]
        %v6070 = vld [vmem:[%s6066 + $0x18] sm:$0xff]
        %v6071 = vld [vmem:[%s6066 + $0x20] sm:$0xff]
        %v6072 = vld [vmem:[%s6066 + $0x28] sm:$0xff]
        %v6073 = vld [vmem:[%s6066 + $0x30] sm:$0xff]
        %v6074 = vld [vmem:[%s6066 + $0x38] sm:$0xff]
        %v6075 = vld [vmem:[%s6066 + $0x40] sm:$0xff]
        %v6076 = vld [vmem:[%s6066 + $0x48] sm:$0xff]
        %v6077 = vld [vmem:[%s6066 + $0x50] sm:$0xff]
        %v6078 = vld [vmem:[%s6066 + $0x58] sm:$0xff]
        %v6079 = vld [vmem:[%s6066 + $0x60] sm:$0xff]
        %v6080 = vld [vmem:[%s6066 + $0x68] sm:$0xff]
        %v6081 = vld [vmem:[%s6066 + $0x70] sm:$0xff]
        %v6082 = vld [vmem:[%s6066 + $0x78] sm:$0xff]
        %v6083 = vld [vmem:[%s6066 + $0x80] sm:$0xff]
        %v6084 = vld [vmem:[%s6066 + $0x88] sm:$0xff]
        %v6085 = vld [vmem:[%s6066 + $0x90] sm:$0xff]
        %v6086 = vld [vmem:[%s6066 + $0x98] sm:$0xff]
        %v6087 = vld [vmem:[%s6066 + $0xa0] sm:$0xff]
        %v6088 = vld [vmem:[%s6066 + $0xa8] sm:$0xff]
        %v6089 = vld [vmem:[%s6066 + $0xb0] sm:$0xff]
        %v6090 = vld [vmem:[%s6066 + $0xb8] sm:$0xff]
        %v6091 = vld [vmem:[%s6066 + $0xc0] sm:$0xff]
        %v6092 = vld [vmem:[%s6066 + $0xc8] sm:$0xff]
        %v6093 = vld [vmem:[%s6066 + $0xd0] sm:$0xff]
        %v6094 = vld [vmem:[%s6066 + $0xd8] sm:$0xff]
        %v6095 = vld [vmem:[%s6066 + $0xe0] sm:$0xff]
        %v6096 = vld [vmem:[%s6066 + $0xe8] sm:$0xff]
        %v6097 = vld [vmem:[%s6066 + $0xf0] sm:$0xff]
        %v6098 = vld [vmem:[%s6066 + $0xf8] sm:$0xff]
        %s6099 = scalar_lea.vmem %s15, 1
        %v6100 = vld [vmem:[%s6099] sm:$0x1]
        %v6102 = vlaneseq
        %v6103 = vshrl.u32 %v6102, 7
        %v6104 = vsub.s32 0, %v6103
        %v6105 = vrot.slane %v6100, %v6104
        %6107 = vmatprep.subr.mxu0 0.0
        %6108 = vmatpush1.msra.mxu0 %v6082
        %6109 = vmatprep.subr.mxu0 0.0
        %6110 = vmatpush1.msra.mxu0 %v6081
        %6111 = vmatprep.subr.mxu0 0.0
        %6112 = vmatpush1.msra.mxu0 %v6080
        %6113 = vmatprep.subr.mxu0 0.0
        %6114 = vmatpush1.msra.mxu0 %v6079
        %6115 = vmatprep.subr.mxu0 0.0
        %6116 = vmatpush1.msra.mxu0 %v6078
        %6117 = vmatprep.subr.mxu0 0.0
        %6118 = vmatpush1.msra.mxu0 %v6077
        %6119 = vmatprep.subr.mxu0 0.0
        %6120 = vmatpush1.msra.mxu0 %v6076
        %6121 = vmatprep.subr.mxu0 0.0
        %6122 = vmatpush1.msra.mxu0 %v6075
        %6123 = vmatprep.subr.mxu0 0.0
        %6124 = vmatpush1.msra.mxu0 %v6074
        %6125 = vmatprep.subr.mxu0 0.0
        %6126 = vmatpush1.msra.mxu0 %v6073
        %6127 = vmatprep.subr.mxu0 0.0
        %6128 = vmatpush1.msra.mxu0 %v6072
        %6129 = vmatprep.subr.mxu0 0.0
        %6130 = vmatpush1.msra.mxu0 %v6071
        %6131 = vmatprep.subr.mxu0 0.0
        %6132 = vmatpush1.msra.mxu0 %v6070
        %6133 = vmatprep.subr.mxu0 0.0
        %6134 = vmatpush1.msra.mxu0 %v6069
        %6135 = vmatprep.subr.mxu0 0.0
        %6136 = vmatpush1.msra.mxu0 %v6068
        %6137 = vmatprep.subr.mxu0 0.0
        %6138 = vmatpush1.msra.mxu0 %v6067
        %6139 = vmatprep.subr.mxu0 0.0
        %6140 = vmatpush2.msra.mxu0 %v6098
        %6141 = vmatprep.subr.mxu0 0.0
        %6142 = vmatpush2.msra.mxu0 %v6097
        %6143 = vmatprep.subr.mxu0 0.0
        %6144 = vmatpush2.msra.mxu0 %v6096
        %6145 = vmatprep.subr.mxu0 0.0
        %6146 = vmatpush2.msra.mxu0 %v6095
        %6147 = vmatprep.subr.mxu0 0.0
        %6148 = vmatpush2.msra.mxu0 %v6094
        %6149 = vmatprep.subr.mxu0 0.0
        %6150 = vmatpush2.msra.mxu0 %v6093
        %6151 = vmatprep.subr.mxu0 0.0
        %6152 = vmatpush2.msra.mxu0 %v6092
        %6153 = vmatprep.subr.mxu0 0.0
        %6154 = vmatpush2.msra.mxu0 %v6091
        %6155 = vmatprep.subr.mxu0 0.0
        %6156 = vmatpush2.msra.mxu0 %v6090
        %6157 = vmatprep.subr.mxu0 0.0
        %6158 = vmatpush2.msra.mxu0 %v6089
        %6159 = vmatprep.subr.mxu0 0.0
        %6160 = vmatpush2.msra.mxu0 %v6088
        %6161 = vmatprep.subr.mxu0 0.0
        %6162 = vmatpush2.msra.mxu0 %v6087
        %6163 = vmatprep.subr.mxu0 0.0
        %6164 = vmatpush2.msra.mxu0 %v6086
        %6165 = vmatprep.subr.mxu0 0.0
        %6166 = vmatpush2.msra.mxu0 %v6085
        %6167 = vmatprep.subr.mxu0 0.0
        %6168 = vmatpush2.msra.mxu0 %v6084
        %6169 = vmatprep.subr.mxu0 0.0
        %6170 = vmatpush2.msra.mxu0 %v6083
        %6171 = vmatprep.mubr.f32.mxu0 %v6057
        %6172 = vmatmul.mubr.f32.gmra.mxu0 %v6056
        %v6173 = vpop.f32.mrf.mxu0
        %v6174 = vadd.f32 %v6105, %v6173
        %v6175 = vpop.f32.mrf.mxu0
        %6176 = vmatprep.mubr.f32.mxu0 %v6059
        %6177 = vmatmul.mubr.f32.gmra.mxu0 %v6058
        %v6178 = vpop.f32.mrf.mxu0
        %v6179 = vadd.f32 %v6105, %v6178
        %v6180 = vpop.f32.mrf.mxu0
        %6181 = vmatprep.mubr.f32.mxu0 %v6061
        %6182 = vmatmul.mubr.f32.gmra.mxu0 %v6060
        %v6183 = vpop.f32.mrf.mxu0
        %v6184 = vadd.f32 %v6105, %v6183
        %v6185 = vpop.f32.mrf.mxu0
        %6186 = vmatprep.mubr.f32.mxu0 %v6063
        %6187 = vmatmul.mubr.f32.gmra.mxu0 %v6062
        %v6188 = vpop.f32.mrf.mxu0
        %v6189 = vadd.f32 %v6105, %v6188
        %v6190 = vpop.f32.mrf.mxu0
        %6191 = vmatprep.mubr.f32.mxu0 %v6065
        %6192 = vmatmul.mubr.f32.gmra.mxu0 %v6064
        %v6193 = vpop.f32.mrf.mxu0
        %v6194 = vadd.f32 %v6105, %v6193
        %v6195 = vpop.f32.mrf.mxu0
        %6196 = vdwg.mxu0
        %v6197 = vadd.f32 %v5910, %v6174
        %v6198 = vadd.f32 %v5911, %v6179
        %v6199 = vadd.f32 %v5912, %v6184
        %v6200 = vadd.f32 %v5913, %v6189
        %v6201 = vadd.f32 %v5914, %v6194
        %s6202 = scalar_lea.vmem %s20, 1
        %v6203 = vld [vmem:[%s6202] sm:$0x1]
        %s6204 = scalar_lea.vmem %s21, 1
        %v6205 = vld [vmem:[%s6204] sm:$0x1]
        %6206 = vadd.xlane.f32.xlu0 %v6197
        %v6207 = vpop.xlane.xlu0 %6206
        %6208 = vadd.xlane.f32.xlu0 %v6198
        %v6209 = vpop.xlane.xlu0 %6208
        %6210 = vadd.xlane.f32.xlu0 %v6199
        %v6211 = vpop.xlane.xlu0 %6210
        %6212 = vadd.xlane.f32.xlu0 %v6200
        %v6213 = vpop.xlane.xlu0 %6212
        %6214 = vadd.xlane.f32.xlu0 %v6201
        %v6215 = vpop.xlane.xlu0 %6214
        %v6216 = vmul.f32 %v6207, %v3091
        %v6217 = vmul.f32 %v6209, %v3091
        %v6218 = vmul.f32 %v6211, %v3091
        %v6219 = vmul.f32 %v6213, %v3091
        %v6220 = vmul.f32 %v6215, %v3091
        %v6221 = vsub.f32 %v6197, %v6216
        %v6222 = vsub.f32 %v6198, %v6217
        %v6223 = vsub.f32 %v6199, %v6218
        %v6224 = vsub.f32 %v6200, %v6219
        %v6225 = vsub.f32 %v6201, %v6220
        %v6226 = vmul.f32 %v6221, %v6221
        %v6227 = vmul.f32 %v6222, %v6222
        %v6228 = vmul.f32 %v6223, %v6223
        %v6229 = vmul.f32 %v6224, %v6224
        %v6230 = vmul.f32 %v6225, %v6225
        %6231 = vadd.xlane.f32.xlu0 %v6226
        %v6232 = vpop.xlane.xlu0 %6231
        %6233 = vadd.xlane.f32.xlu0 %v6227
        %v6234 = vpop.xlane.xlu0 %6233
        %6235 = vadd.xlane.f32.xlu0 %v6228
        %v6236 = vpop.xlane.xlu0 %6235
        %6237 = vadd.xlane.f32.xlu0 %v6229
        %v6238 = vpop.xlane.xlu0 %6237
        %6239 = vadd.xlane.f32.xlu0 %v6230
        %v6240 = vpop.xlane.xlu0 %6239
        %v6241 = vmul.f32 %v6232, %v3091
        %v6242 = vmul.f32 %v6234, %v3091
        %v6243 = vmul.f32 %v6236, %v3091
        %v6244 = vmul.f32 %v6238, %v3091
        %v6245 = vmul.f32 %v6240, %v3091
        %v6246 = vadd.f32 %v6241, 1e-05
        %v6247 = vadd.f32 %v6242, 1e-05
        %v6248 = vadd.f32 %v6243, 1e-05
        %v6249 = vadd.f32 %v6244, 1e-05
        %v6250 = vadd.f32 %v6245, 1e-05
        %v6251 = vrsqrt.pop %v6246
        %v6252 = vrsqrt.pop %v6247
        %v6253 = vrsqrt.pop %v6248
        %v6254 = vrsqrt.pop %v6249
        %v6255 = vrsqrt.pop %v6250
        %v6256 = vmul.f32 %v6221, %v6251
        %v6257 = vmul.f32 %v6222, %v6252
        %v6258 = vmul.f32 %v6223, %v6253
        %v6259 = vmul.f32 %v6224, %v6254
        %v6260 = vmul.f32 %v6225, %v6255
        %v6262 = vlaneseq
        %v6263 = vshrl.u32 %v6262, 7
        %v6264 = vsub.s32 0, %v6263
        %v6265 = vrot.slane %v6203, %v6264
        %v6267 = vmul.f32 %v6256, %v6265
        %v6268 = vmul.f32 %v6257, %v6265
        %v6269 = vmul.f32 %v6258, %v6265
        %v6270 = vmul.f32 %v6259, %v6265
        %v6271 = vmul.f32 %v6260, %v6265
        %v6273 = vlaneseq
        %v6274 = vshrl.u32 %v6273, 7
        %v6275 = vsub.s32 0, %v6274
        %v6276 = vrot.slane %v6205, %v6275
        %v6278 = vadd.f32 %v6267, %v6276
        %v6279 = vadd.f32 %v6268, %v6276
        %v6280 = vadd.f32 %v6269, %v6276
        %v6281 = vadd.f32 %v6270, %v6276
        %v6282 = vadd.f32 %v6271, %v6276
        %v6283 = vld [vmem:[#allocation19] sm:$0xff]
        %v6284 = vld [vmem:[#allocation19 + $0x8] sm:$0xff]
        %v6285 = vld [vmem:[#allocation19 + $0x10] sm:$0xff]
        %v6286 = vld [vmem:[#allocation19 + $0x18] sm:$0xff]
        %v6287 = vld [vmem:[#allocation19 + $0x20] sm:$0xff]
        %v6288 = vld [vmem:[#allocation19 + $0x28] sm:$0xff]
        %v6289 = vld [vmem:[#allocation19 + $0x30] sm:$0xff]
        %v6290 = vld [vmem:[#allocation19 + $0x38] sm:$0xff]
        %v6291 = vld [vmem:[#allocation19 + $0x40] sm:$0xff]
        %v6292 = vld [vmem:[#allocation19 + $0x48] sm:$0xff]
        %v6293 = vld [vmem:[#allocation19 + $0x50] sm:$0xff]
        %v6294 = vld [vmem:[#allocation19 + $0x58] sm:$0xff]
        %v6295 = vld [vmem:[#allocation19 + $0x60] sm:$0xff]
        %v6296 = vld [vmem:[#allocation19 + $0x68] sm:$0xff]
        %v6297 = vld [vmem:[#allocation19 + $0x70] sm:$0xff]
        %v6298 = vld [vmem:[#allocation19 + $0x78] sm:$0xff]
        %v6299 = vld [vmem:[%s23] sm:$0x1]
        %v6301 = vlaneseq
        %v6302 = vshrl.u32 %v6301, 7
        %v6303 = vsub.s32 0, %v6302
        %v6304 = vrot.slane %v6299, %v6303
        %6306 = vmatprep.subr.mxu0 0.0
        %6307 = vmatpush1.msra.mxu0 %v6298
        %6308 = vmatprep.subr.mxu0 0.0
        %6309 = vmatpush1.msra.mxu0 %v6297
        %6310 = vmatprep.subr.mxu0 0.0
        %6311 = vmatpush1.msra.mxu0 %v6296
        %6312 = vmatprep.subr.mxu0 0.0
        %6313 = vmatpush1.msra.mxu0 %v6295
        %6314 = vmatprep.subr.mxu0 0.0
        %6315 = vmatpush1.msra.mxu0 %v6294
        %6316 = vmatprep.subr.mxu0 0.0
        %6317 = vmatpush1.msra.mxu0 %v6293
        %6318 = vmatprep.subr.mxu0 0.0
        %6319 = vmatpush1.msra.mxu0 %v6292
        %6320 = vmatprep.subr.mxu0 0.0
        %6321 = vmatpush1.msra.mxu0 %v6291
        %6322 = vmatprep.subr.mxu0 0.0
        %6323 = vmatpush1.msra.mxu0 %v6290
        %6324 = vmatprep.subr.mxu0 0.0
        %6325 = vmatpush1.msra.mxu0 %v6289
        %6326 = vmatprep.subr.mxu0 0.0
        %6327 = vmatpush1.msra.mxu0 %v6288
        %6328 = vmatprep.subr.mxu0 0.0
        %6329 = vmatpush1.msra.mxu0 %v6287
        %6330 = vmatprep.subr.mxu0 0.0
        %6331 = vmatpush1.msra.mxu0 %v6286
        %6332 = vmatprep.subr.mxu0 0.0
        %6333 = vmatpush1.msra.mxu0 %v6285
        %6334 = vmatprep.subr.mxu0 0.0
        %6335 = vmatpush1.msra.mxu0 %v6284
        %6336 = vmatprep.subr.mxu0 0.0
        %6337 = vmatpush1.msra.mxu0 %v6283
        %6338 = vmatprep.subr.mxu0 0.0
        %6339 = vmatpush2.msra.mxu0 0.0
        %6340 = vmatprep.subr.mxu0 0.0
        %6341 = vmatpush2.msra.mxu0 0.0
        %6342 = vmatprep.subr.mxu0 0.0
        %6343 = vmatpush2.msra.mxu0 0.0
        %6344 = vmatprep.subr.mxu0 0.0
        %6345 = vmatpush2.msra.mxu0 0.0
        %6346 = vmatprep.subr.mxu0 0.0
        %6347 = vmatpush2.msra.mxu0 0.0
        %6348 = vmatprep.subr.mxu0 0.0
        %6349 = vmatpush2.msra.mxu0 0.0
        %6350 = vmatprep.subr.mxu0 0.0
        %6351 = vmatpush2.msra.mxu0 0.0
        %6352 = vmatprep.subr.mxu0 0.0
        %6353 = vmatpush2.msra.mxu0 0.0
        %6354 = vmatprep.subr.mxu0 0.0
        %6355 = vmatpush2.msra.mxu0 0.0
        %6356 = vmatprep.subr.mxu0 0.0
        %6357 = vmatpush2.msra.mxu0 0.0
        %6358 = vmatprep.subr.mxu0 0.0
        %6359 = vmatpush2.msra.mxu0 0.0
        %6360 = vmatprep.subr.mxu0 0.0
        %6361 = vmatpush2.msra.mxu0 0.0
        %6362 = vmatprep.subr.mxu0 0.0
        %6363 = vmatpush2.msra.mxu0 0.0
        %6364 = vmatprep.subr.mxu0 0.0
        %6365 = vmatpush2.msra.mxu0 0.0
        %6366 = vmatprep.subr.mxu0 0.0
        %6367 = vmatpush2.msra.mxu0 0.0
        %6368 = vmatprep.subr.mxu0 0.0
        %6369 = vmatpush2.msra.mxu0 0.0
        %6370 = vmatprep.mubr.f32.mxu0 0.0
        %6371 = vmatmul.mubr.f32.gmra.mxu0 %v6278
        %v6372 = vpop.f32.mrf.mxu0
        %v6373 = vadd.f32 %v6304, %v6372
        %v6374 = vpop.f32.mrf.mxu0
        %6375 = vmatprep.mubr.f32.mxu0 0.0
        %6376 = vmatmul.mubr.f32.gmra.mxu0 %v6279
        %v6377 = vpop.f32.mrf.mxu0
        %v6378 = vadd.f32 %v6304, %v6377
        %v6379 = vpop.f32.mrf.mxu0
        %6380 = vmatprep.mubr.f32.mxu0 0.0
        %6381 = vmatmul.mubr.f32.gmra.mxu0 %v6280
        %v6382 = vpop.f32.mrf.mxu0
        %v6383 = vadd.f32 %v6304, %v6382
        %v6384 = vpop.f32.mrf.mxu0
        %6385 = vmatprep.mubr.f32.mxu0 0.0
        %6386 = vmatmul.mubr.f32.gmra.mxu0 %v6281
        %v6387 = vpop.f32.mrf.mxu0
        %v6388 = vadd.f32 %v6304, %v6387
        %v6389 = vpop.f32.mrf.mxu0
        %6390 = vmatprep.mubr.f32.mxu0 0.0
        %6391 = vmatmul.mubr.f32.gmra.mxu0 %v6282
        %v6392 = vpop.f32.mrf.mxu0
        %v6393 = vadd.f32 %v6304, %v6392
        %v6394 = vpop.f32.mrf.mxu0
        %6395 = vdwg.mxu0
        %6396 = vst [vmem:[%s893] sm:$0xff] %v6373
        %6397 = vst [vmem:[%s893 + $0x8] sm:$0xff] %v6378
        %6398 = vst [vmem:[%s893 + $0x10] sm:$0xff] %v6383
        %6399 = vst [vmem:[%s893 + $0x18] sm:$0xff] %v6388
        %6400 = vst [vmem:[%s893 + $0x20] sm:$0xff] %v6393
        %s6401 = sand.u32 %s563, 1
        %s6402 = scalar_lea.sflag [#allocation4], %s6401
        %s6403 = sand.u32 %s563, 1
        %s6404 = smul.addr %s6403, 40
        %s6405 = scalar_lea.vmem [#allocation20], %s6404
        // Predicated region
        $region161: #{tpu_custom_call.1} parent=115 // pred_check
          %p6406 = pneg %p573
        $region162: #{tpu_custom_call.1} parent=115 // pred_check_branch
          %6408 = sbr.rel (%p6406) target = $region164
        $region163: #{tpu_custom_call.1} parent=115 // pred_region
          %s6409 = smul.u32 5, %s46
          %s6411 = ssub.s32 640, 640
          %6412 = vsyncadd %s6402, %s6411
          %s6413 = smul.addr %s6409, 128
          %s6414 = scalar_lea.hbm %s24, %s6413
          %s6415 = sshll.u32 %s6405, 4
          %s6416 = int_to_ptr.vmem [resolvable:$true] %s6415
          %6421 = dma.vmem_to_hbm [thread:$0]  %s6416, 640, %s6414, %s6402, 128, 128, 8
        $region164: #{tpu_custom_call.1} parent=115 // pred_fallthru
          _
      $region116: #{tpu_custom_call.1} parent=5 // pred_fallthru
        _
      %p6422 = scmp.le.s32.totalorder 2, %s41
      // Predicated region
      $region165: #{tpu_custom_call.1} parent=5 // pred_check
        %p6423 = pneg %p6422
      $region166: #{tpu_custom_call.1} parent=5 // pred_check_branch
        %6425 = sbr.rel (%p6423) target = $region168
      $region167: #{tpu_custom_call.1} parent=5 // pred_region
        %s6426 = ssub.s32 %s41, 2
        // Predicated region
        $region169: #{tpu_custom_call.1} parent=167 // pred_check
          %p6427 = pneg %p579
        $region170: #{tpu_custom_call.1} parent=167 // pred_check_branch
          %6429 = sbr.rel (%p6427) target = $region172
        $region171: #{tpu_custom_call.1} parent=167 // pred_region
          %s6430 = sand.u32 %s564, 1
          %s6431 = scalar_lea.sflag [#allocation4], %s6430
          %s6432 = sand.u32 %s564, 1
          %s6433 = smul.addr %s6432, 40
          %s6434 = scalar_lea.vmem [#allocation20], %s6433
          %6435 = dma.done %s6431, 640
        $region172: #{tpu_custom_call.1} parent=167 // pred_fallthru
          _
      $region168: #{tpu_custom_call.1} parent=5 // pred_fallthru
        _
    $region6: #{tpu_custom_call.1} parent=1 // loop_footer
      %s45 = sadd.s32 1, %s41
    $region7: #{tpu_custom_call.1} parent=1 // loop_footer_branch
      %40 = sbr.rel target = $region3
    $region8: #{tpu_custom_call.1} parent=1 // loop_exit
      _
    %6436 = vsyncpa [#allocation3], 1
    %s6437 = scalar_lea.sflag [#allocation3], 1
    %6438 = vsyncpa %s6437, 1
    %6439 = vsyncpa [#allocation6], 1
    %6440 = vsyncpa [#allocation9], 1
    %6441 = vsyncpa [#allocation12], 1
    %6442 = vsyncpa [#allocation15], 1
    %6443 = vsyncpa [#allocation18], 1
    %6444 = vsyncpa [#allocation4], 1
    %s6445 = scalar_lea.sflag [#allocation4], 1
    %6446 = vsyncpa %s6445, 1

</llo_original>
